<compile_context>
chip_gen: v5e
topology: v5e:2x2
jax: 0.10.0
libtpu: 0.0.40
codegen_flags: <defaults>
</compile_context>

<pallas_src>
import jax
import jax.numpy as jnp
from jax import lax
from jax.experimental import pallas as pl
from jax.experimental.pallas import tpu as pltpu

# ----- small shapes consistent with the module -----
B = 2
C_IN = 32          # KPClassifier(in_channels=...) kept small for the demo
C_OUT = 256        # hard-coded in KPClassifier.__init__ (KPConv out / BatchNorm2d)
H = W = 16
N_PTS = 128        # number of projected points (grid_sample output width)
K_NB = 8           # neighbors per point (pknn last dim)
K_KP = 15          # KPConv kernel_size
KP_EXTENT = 1.2
RADIUS = 0.6
BN_EPS = 1e-5
ROW_CHUNK = 64     # channel-row chunk for the BN/ReLU phase (16 vregs per chunk)


# ---------------------------------------------------------------------------
# Fused Pallas kernel: KPConv + BatchNorm2d (training stats) + ReLU
# ---------------------------------------------------------------------------
def kpclassifier_fused_kernel(aw_ref, nx_ref, w_ref, gamma_ref, beta_ref,
                              out_ref, fk_ref, conv_ref):
    # aw_ref   : (K_KP, K_NB, B*N)   f32   kernel-point influence weights
    # nx_ref   : (K_NB, C_IN, B*N)   f32   gathered neighbor features
    # w_ref    : (C_OUT, K_KP*C_IN)  bf16  KPConv weights, output-major, flat
    # gamma/beta: (C_OUT, 1)         f32   BatchNorm affine parameters
    # out_ref  : (B, C_OUT, N)       f32   BN+ReLU'ed KPConv output (channel-major)
    # fk_ref   : (K_KP*C_IN, B*N)    bf16  VMEM slab feeding the single MXU matmul
    # conv_ref : (C_OUT, B*N)        f32   VMEM conv result (read twice: stats, apply)
    bn_pts = aw_ref.shape[-1]                     # B * N (batch folded into lanes)

    # ---- Stage 1: fk[k*C_IN+ci, p] = sum_nb aw[k,nb,p] * nx[nb,ci,p] ----
    # Chunked per kernel point so only ~40 vregs stay live (the old broadcast
    # multiply-reduce implied a ~480-vreg intermediate and spilled via VMEM).
    for k in range(K_KP):
        aw_k = aw_ref[k]                                    # (K_NB, B*N) f32
        acc = aw_k[0:1, :] * nx_ref[0]                      # (C_IN, B*N) f32
        for nb in range(1, K_NB):
            acc = acc + aw_k[nb:nb + 1, :] * nx_ref[nb]
        fk_ref[k * C_IN:(k + 1) * C_IN, :] = acc.astype(jnp.bfloat16)
    # TODO(synk): on v6e/v7x this multiply-accumulate can run in packed bf16 on
    # the VPU (pass aw/nx as bf16 to also halve their DMA); kept f32 here so
    # v5e sees no upcast and accuracy vs. the f32 reference stays comfortable.

    # ---- Stage 2: one fused (C_OUT,480)x(480,B*N) bf16 MXU matmul, f32 acc ----
    conv_ref[...] = jnp.dot(w_ref[...], fk_ref[...],
                            preferred_element_type=jnp.float32)

    # ---- Stage 3: BatchNorm2d training-mode stats over (B,N) + ReLU ----
    # Chunked over channel rows to bound vreg pressure; rsqrt goes to the EUP.
    inv_cnt = 1.0 / float(bn_pts)
    for r0 in range(0, C_OUT, ROW_CHUNK):
        blk = conv_ref[r0:r0 + ROW_CHUNK, :]                # (RC, B*N) f32
        mean = jnp.sum(blk, axis=1, keepdims=True) * inv_cnt
        ex2 = jnp.sum(blk * blk, axis=1, keepdims=True) * inv_cnt
        var = jnp.maximum(ex2 - mean * mean, 0.0)           # guard cancellation
        scale = gamma_ref[r0:r0 + ROW_CHUNK, :] * lax.rsqrt(var + BN_EPS)
        shift = beta_ref[r0:r0 + ROW_CHUNK, :] - mean * scale
        y = jnp.maximum(blk * scale + shift, 0.0)
        for bi in range(B):   # lane-dense, 128-wide aligned output stores
            out_ref[bi, r0:r0 + ROW_CHUNK, :] = y[:, bi * N_PTS:(bi + 1) * N_PTS]


def kpclassifier_fused_pallas(aw, nx, w2d, gamma, beta):
    # aw: (K_KP, K_NB, B*N) f32; nx: (K_NB, C_IN, B*N) f32
    # w2d: (C_OUT, K_KP*C_IN) bf16; gamma/beta: (C_OUT, 1) f32
    bn_pts = aw.shape[-1]
    # TODO(synk): on v7x one could instead keep grid=(B,) "parallel" (one batch
    # per TensorCore); at B=2 / ~us-scale work the single fused call measured
    # cheaper on v5e/v6e and is used unconditionally here.
    return pl.pallas_call(
        kpclassifier_fused_kernel,
        out_shape=jax.ShapeDtypeStruct((B, C_OUT, N_PTS), jnp.float32),
        grid_spec=pltpu.PrefetchScalarGridSpec(
            num_scalar_prefetch=0,
            grid=(1,),
            in_specs=[
                pl.BlockSpec((K_KP, K_NB, bn_pts), lambda i: (0, 0, 0)),
                pl.BlockSpec((K_NB, C_IN, bn_pts), lambda i: (0, 0, 0)),
                pl.BlockSpec((C_OUT, K_KP * C_IN), lambda i: (0, 0)),
                pl.BlockSpec((C_OUT, 1), lambda i: (0, 0)),
                pl.BlockSpec((C_OUT, 1), lambda i: (0, 0)),
            ],
            out_specs=pl.BlockSpec((B, C_OUT, N_PTS), lambda i: (0, 0, 0)),
            scratch_shapes=[
                pltpu.VMEM((K_KP * C_IN, bn_pts), jnp.bfloat16),   # fk slab (480, B*N)
                pltpu.VMEM((C_OUT, bn_pts), jnp.float32),          # conv (256, B*N)
            ],
        ),
        compiler_params=pltpu.CompilerParams(
            dimension_semantics=("arbitrary",)),
    )(aw, nx, w2d, gamma, beta)


# ---------------------------------------------------------------------------
# Plain-JAX glue (gathers / index math / parameter setup)
# ---------------------------------------------------------------------------
def grid_sample_bilinear(img, gx, gy):
    # F.grid_sample with mode='bilinear', padding_mode='zeros', align_corners=False.
    # img: (B, C, H, W) NCHW; gx/gy: (B, 1, N) normalized coords in [-1, 1].
    b, c, h, w = img.shape
    ix = ((gx + 1.0) * w - 1.0) * 0.5
    iy = ((gy + 1.0) * h - 1.0) * 0.5
    ix0, iy0 = jnp.floor(ix), jnp.floor(iy)
    ix1, iy1 = ix0 + 1.0, iy0 + 1.0
    wx1, wy1 = ix - ix0, iy - iy0
    wx0, wy0 = 1.0 - wx1, 1.0 - wy1
    flat = img.reshape(b, c, h * w)

    def tap(ixs, iys):
        valid = (ixs >= 0) & (ixs <= w - 1) & (iys >= 0) & (iys <= h - 1)
        ixc = jnp.clip(ixs, 0, w - 1).astype(jnp.int32)
        iyc = jnp.clip(iys, 0, h - 1).astype(jnp.int32)
        idx = (iyc * w + ixc).reshape(b, 1, -1)
        idx = jnp.broadcast_to(idx, (b, c, idx.shape[-1]))
        vals = jnp.take_along_axis(flat, idx, axis=2).reshape(b, c, *ixs.shape[1:])
        return vals * valid[:, None, ...].astype(img.dtype)

    return (tap(ix0, iy0) * (wx0 * wy0)[:, None, ...]
            + tap(ix1, iy0) * (wx1 * wy0)[:, None, ...]
            + tap(ix0, iy1) * (wx0 * wy1)[:, None, ...]
            + tap(ix1, iy1) * (wx1 * wy1)[:, None, ...])


def kpconv_preprocess(feats, pxyz, pknn, kernel_points):
    # feats: (B, N, C_IN); pxyz: (B, N, 3); pknn: (B, N, K_NB) int32 in [0, N]
    # Emits kernel-ready, point-minor layouts directly (single transpose each):
    #   aw: (K_KP, K_NB, B*N) influence weights; nx: (K_NB, C_IN, B*N) features.
    b, n, c = feats.shape
    dt = feats.dtype
    # shadow support point at 1e6 / zero shadow feature (KPConv semantics)
    s_pts = jnp.concatenate([pxyz, jnp.full((b, 1, 3), 1e6, dtype=dt)], axis=1)
    f_pad = jnp.concatenate([feats, jnp.zeros((b, 1, c), dtype=dt)], axis=1)
    gather = jax.vmap(lambda a, i: a[i])
    neighbors = gather(s_pts, pknn)                       # (B, N, K_NB, 3)
    neighb_x = gather(f_pad, pknn)                        # (B, N, K_NB, C_IN)
    centered = neighbors - pxyz[:, :, None, :]            # center on query points
    cent_t = jnp.transpose(centered, (2, 0, 1, 3))        # (K_NB, B, N, 3)
    diff = cent_t[None, ...] - kernel_points[:, None, None, None, :]
    sq_d = jnp.sum(diff * diff, axis=-1)                  # (K_KP, K_NB, B, N)
    aw = jnp.maximum(1.0 - jnp.sqrt(sq_d) / KP_EXTENT, 0.0)   # linear influence
    aw = aw.reshape(K_KP, K_NB, b * n)
    nx = jnp.transpose(neighb_x, (2, 3, 0, 1)).reshape(K_NB, c, b * n)
    return aw, nx


def kp_classifier_forward(x, px, py, pxyz, pknn, params):
    # resample_grid(x, px, py): the helper's parameter names are swapped, so the
    # grid_sample x-coordinate is the caller's `py` and the y-coordinate is `px`.
    sampled = grid_sample_bilinear(x, py, px)              # (B, C_IN, 1, N)
    # x[i].transpose(0, 2).squeeze() -> (N, C_IN); batched: (B, N, C_IN)
    feats = jnp.transpose(sampled[:, :, 0, :], (0, 2, 1))
    aw, nx = kpconv_preprocess(feats, pxyz, pknn, params["kernel_points"])
    # Weights presented once as a 2-D, output-major, bf16 slab:
    # W2d[co, k*C_IN + ci] = kp_weights[k, ci, co]
    w2d = jnp.transpose(params["kp_weights"], (2, 0, 1)).reshape(C_OUT, K_KP * C_IN)
    w2d = w2d.astype(jnp.bfloat16)
    y = kpclassifier_fused_pallas(aw, nx, w2d,
                                  params["bn_gamma"][:, None],
                                  params["bn_beta"][:, None])   # (B, C_OUT, N)
    # already channel-major: PyTorch NCHW output layout (B, C_OUT, 1, N)
    return y[:, :, None, :]


def reference_forward(x, px, py, pxyz, pknn, params):
    # pure-JAX f32 (HIGHEST-precision matmul) reference, independent layout path
    sampled = grid_sample_bilinear(x, py, px)
    feats = jnp.transpose(sampled[:, :, 0, :], (0, 2, 1))       # (B, N, C_IN)
    b, n, c = feats.shape
    dt = feats.dtype
    s_pts = jnp.concatenate([pxyz, jnp.full((b, 1, 3), 1e6, dtype=dt)], axis=1)
    f_pad = jnp.concatenate([feats, jnp.zeros((b, 1, c), dtype=dt)], axis=1)
    gather = jax.vmap(lambda a, i: a[i])
    neighbors = gather(s_pts, pknn)
    neighb_x = gather(f_pad, pknn)
    centered = neighbors - pxyz[:, :, None, :]
    diff = centered[:, :, :, None, :] - params["kernel_points"][None, None, None, :, :]
    sq_d = jnp.sum(diff * diff, axis=-1)                        # (B, N, K_NB, K_KP)
    aw = jnp.maximum(1.0 - jnp.sqrt(sq_d) / KP_EXTENT, 0.0)
    aw = jnp.transpose(aw, (0, 1, 3, 2))                        # (B, N, K_KP, K_NB)
    conv = jnp.einsum("bnkm,bnmc,kco->bno", aw, neighb_x, params["kp_weights"],
                      precision=jax.lax.Precision.HIGHEST)
    mean = jnp.mean(conv, axis=(0, 1))
    var = jnp.var(conv, axis=(0, 1))
    y = jnp.maximum((conv - mean) / jnp.sqrt(var + BN_EPS)
                    * params["bn_gamma"] + params["bn_beta"], 0.0)
    return jnp.transpose(y, (0, 2, 1))[:, :, None, :]


if __name__ == "__main__":
    key = jax.random.PRNGKey(0)
    kx, kpx, kpy, kxyz, kknn, kw, kkp = jax.random.split(key, 7)

    x = jax.random.normal(kx, (B, C_IN, H, W), jnp.float32)
    px = jax.random.uniform(kpx, (B, 1, N_PTS), jnp.float32, -1.0, 1.0)
    py = jax.random.uniform(kpy, (B, 1, N_PTS), jnp.float32, -1.0, 1.0)
    pxyz = jax.random.uniform(kxyz, (B, N_PTS, 3), jnp.float32, -1.0, 1.0)
    # neighbor index == N_PTS refers to the KPConv shadow point
    pknn = jax.random.randint(kknn, (B, N_PTS, K_NB), 0, N_PTS + 1, jnp.int32)

    params = dict(
        kp_weights=(jax.random.normal(kw, (K_KP, C_IN, C_OUT), jnp.float32)
                    * (2.0 / (K_KP * C_IN)) ** 0.5),
        # TODO(synk): real KPConv loads an optimized kernel-point disposition file;
        # deterministic synthetic kernel points are used here instead.
        kernel_points=jax.random.uniform(kkp, (K_KP, 3), jnp.float32, -RADIUS, RADIUS),
        bn_gamma=jnp.ones((C_OUT,), jnp.float32),
        bn_beta=jnp.zeros((C_OUT,), jnp.float32),
    )

    out = jax.jit(kp_classifier_forward)(x, px, py, pxyz, pknn, params)
    out = jax.block_until_ready(out)

    assert out.shape == (B, C_OUT, 1, N_PTS), out.shape
    assert bool(jnp.all(jnp.isfinite(out)))
    ref = reference_forward(x, px, py, pxyz, pknn, params)
    err = float(jnp.max(jnp.abs(out - ref)))
    # bf16 MXU inputs (weights + fk slab) with f32 accumulation vs. an exact-f32
    # reference on a unit-variance (post-BN) output: tolerance sized accordingly.
    if err > 2e-2:
        raise AssertionError(f"mismatch vs pure-JAX reference: max abs err {err}")
    print("KERNEL_OK")
</pallas_src>

<mosaic_0001>
module attributes {stable_mosaic.version = 11 : i64} {
  func.func @kpclassifier_fused_kernel(%arg0: i32, %arg1: memref<15x8x256xf32, #tpu.memory_space<vmem>>, %arg2: memref<8x32x256xf32, #tpu.memory_space<vmem>>, %arg3: memref<256x480xbf16, #tpu.memory_space<vmem>>, %arg4: memref<256x1xf32, #tpu.memory_space<vmem>>, %arg5: memref<256x1xf32, #tpu.memory_space<vmem>>, %arg6: memref<2x256x128xf32, #tpu.memory_space<vmem>>, %arg7: memref<480x256xbf16, #tpu.memory_space<vmem>>, %arg8: memref<256x256xf32, #tpu.memory_space<vmem>>) attributes {dimension_semantics = [#tpu.dimension_semantics<arbitrary>], iteration_bounds = array<i64: 1>, scalar_prefetch = 0 : i64, scratch_operands = 2 : i64, tpu.core_type = #tpu.core_type<tc>, window_params = [{pipeline_mode = #tpu.pipeline_mode<synchronous>, transform_indices = @transform_0, window_bounds = array<i64: 15, 8, 256>}, {pipeline_mode = #tpu.pipeline_mode<synchronous>, transform_indices = @transform_1, window_bounds = array<i64: 8, 32, 256>}, {pipeline_mode = #tpu.pipeline_mode<synchronous>, transform_indices = @transform_2, window_bounds = array<i64: 256, 480>}, {pipeline_mode = #tpu.pipeline_mode<synchronous>, transform_indices = @transform_3, window_bounds = array<i64: 256, 1>}, {pipeline_mode = #tpu.pipeline_mode<synchronous>, transform_indices = @transform_4, window_bounds = array<i64: 256, 1>}, {pipeline_mode = #tpu.pipeline_mode<synchronous>, transform_indices = @transform_5, window_bounds = array<i64: 2, 256, 128>}]} {
    %c0 = arith.constant 0 : index
    %c0_0 = arith.constant 0 : index
    %c0_1 = arith.constant 0 : index
    %0 = vector.load %arg1[%c0, %c0_0, %c0_1] : memref<15x8x256xf32, #tpu.memory_space<vmem>>, vector<1x8x256xf32>
    %1 = vector.shape_cast %0 : vector<1x8x256xf32> to vector<8x256xf32>
    %2 = vector.extract_strided_slice %1 {offsets = [0, 0], sizes = [1, 256], strides = [1, 1]} : vector<8x256xf32> to vector<1x256xf32>
    %c0_2 = arith.constant 0 : index
    %c0_3 = arith.constant 0 : index
    %c0_4 = arith.constant 0 : index
    %3 = vector.load %arg2[%c0_2, %c0_3, %c0_4] : memref<8x32x256xf32, #tpu.memory_space<vmem>>, vector<1x32x256xf32>
    %4 = vector.shape_cast %3 : vector<1x32x256xf32> to vector<32x256xf32>
    %5 = vector.broadcast %2 : vector<1x256xf32> to vector<32x256xf32>
    %6 = arith.mulf %5, %4 : vector<32x256xf32>
    %7 = vector.extract_strided_slice %1 {offsets = [1, 0], sizes = [1, 256], strides = [1, 1]} : vector<8x256xf32> to vector<1x256xf32>
    %c1 = arith.constant 1 : index
    %c0_5 = arith.constant 0 : index
    %c0_6 = arith.constant 0 : index
    %8 = vector.load %arg2[%c1, %c0_5, %c0_6] : memref<8x32x256xf32, #tpu.memory_space<vmem>>, vector<1x32x256xf32>
    %9 = vector.shape_cast %8 : vector<1x32x256xf32> to vector<32x256xf32>
    %10 = vector.broadcast %7 : vector<1x256xf32> to vector<32x256xf32>
    %11 = arith.mulf %10, %9 : vector<32x256xf32>
    %12 = arith.addf %6, %11 : vector<32x256xf32>
    %13 = vector.extract_strided_slice %1 {offsets = [2, 0], sizes = [1, 256], strides = [1, 1]} : vector<8x256xf32> to vector<1x256xf32>
    %c2 = arith.constant 2 : index
    %c0_7 = arith.constant 0 : index
    %c0_8 = arith.constant 0 : index
    %14 = vector.load %arg2[%c2, %c0_7, %c0_8] : memref<8x32x256xf32, #tpu.memory_space<vmem>>, vector<1x32x256xf32>
    %15 = vector.shape_cast %14 : vector<1x32x256xf32> to vector<32x256xf32>
    %16 = vector.broadcast %13 : vector<1x256xf32> to vector<32x256xf32>
    %17 = arith.mulf %16, %15 : vector<32x256xf32>
    %18 = arith.addf %12, %17 : vector<32x256xf32>
    %19 = vector.extract_strided_slice %1 {offsets = [3, 0], sizes = [1, 256], strides = [1, 1]} : vector<8x256xf32> to vector<1x256xf32>
    %c3 = arith.constant 3 : index
    %c0_9 = arith.constant 0 : index
    %c0_10 = arith.constant 0 : index
    %20 = vector.load %arg2[%c3, %c0_9, %c0_10] : memref<8x32x256xf32, #tpu.memory_space<vmem>>, vector<1x32x256xf32>
    %21 = vector.shape_cast %20 : vector<1x32x256xf32> to vector<32x256xf32>
    %22 = vector.broadcast %19 : vector<1x256xf32> to vector<32x256xf32>
    %23 = arith.mulf %22, %21 : vector<32x256xf32>
    %24 = arith.addf %18, %23 : vector<32x256xf32>
    %25 = vector.extract_strided_slice %1 {offsets = [4, 0], sizes = [1, 256], strides = [1, 1]} : vector<8x256xf32> to vector<1x256xf32>
    %c4 = arith.constant 4 : index
    %c0_11 = arith.constant 0 : index
    %c0_12 = arith.constant 0 : index
    %26 = vector.load %arg2[%c4, %c0_11, %c0_12] : memref<8x32x256xf32, #tpu.memory_space<vmem>>, vector<1x32x256xf32>
    %27 = vector.shape_cast %26 : vector<1x32x256xf32> to vector<32x256xf32>
    %28 = vector.broadcast %25 : vector<1x256xf32> to vector<32x256xf32>
    %29 = arith.mulf %28, %27 : vector<32x256xf32>
    %30 = arith.addf %24, %29 : vector<32x256xf32>
    %31 = vector.extract_strided_slice %1 {offsets = [5, 0], sizes = [1, 256], strides = [1, 1]} : vector<8x256xf32> to vector<1x256xf32>
    %c5 = arith.constant 5 : index
    %c0_13 = arith.constant 0 : index
    %c0_14 = arith.constant 0 : index
    %32 = vector.load %arg2[%c5, %c0_13, %c0_14] : memref<8x32x256xf32, #tpu.memory_space<vmem>>, vector<1x32x256xf32>
    %33 = vector.shape_cast %32 : vector<1x32x256xf32> to vector<32x256xf32>
    %34 = vector.broadcast %31 : vector<1x256xf32> to vector<32x256xf32>
    %35 = arith.mulf %34, %33 : vector<32x256xf32>
    %36 = arith.addf %30, %35 : vector<32x256xf32>
    %37 = vector.extract_strided_slice %1 {offsets = [6, 0], sizes = [1, 256], strides = [1, 1]} : vector<8x256xf32> to vector<1x256xf32>
    %c6 = arith.constant 6 : index
    %c0_15 = arith.constant 0 : index
    %c0_16 = arith.constant 0 : index
    %38 = vector.load %arg2[%c6, %c0_15, %c0_16] : memref<8x32x256xf32, #tpu.memory_space<vmem>>, vector<1x32x256xf32>
    %39 = vector.shape_cast %38 : vector<1x32x256xf32> to vector<32x256xf32>
    %40 = vector.broadcast %37 : vector<1x256xf32> to vector<32x256xf32>
    %41 = arith.mulf %40, %39 : vector<32x256xf32>
    %42 = arith.addf %36, %41 : vector<32x256xf32>
    %43 = vector.extract_strided_slice %1 {offsets = [7, 0], sizes = [1, 256], strides = [1, 1]} : vector<8x256xf32> to vector<1x256xf32>
    %c7 = arith.constant 7 : index
    %c0_17 = arith.constant 0 : index
    %c0_18 = arith.constant 0 : index
    %44 = vector.load %arg2[%c7, %c0_17, %c0_18] : memref<8x32x256xf32, #tpu.memory_space<vmem>>, vector<1x32x256xf32>
    %45 = vector.shape_cast %44 : vector<1x32x256xf32> to vector<32x256xf32>
    %46 = vector.broadcast %43 : vector<1x256xf32> to vector<32x256xf32>
    %47 = arith.mulf %46, %45 : vector<32x256xf32>
    %48 = arith.addf %42, %47 : vector<32x256xf32>
    %49 = arith.truncf %48 : vector<32x256xf32> to vector<32x256xbf16>
    %c0_19 = arith.constant 0 : index
    %c0_20 = arith.constant 0 : index
    %50 = vector.load %arg7[%c0_19, %c0_20] : memref<480x256xbf16, #tpu.memory_space<vmem>>, vector<32x256xbf16>
    tpu.vector_store %arg7[%c0_19, %c0_20], %49 {strides = array<i32>} : memref<480x256xbf16, #tpu.memory_space<vmem>>, vector<32x256xbf16>,
    %c1_21 = arith.constant 1 : index
    %c0_22 = arith.constant 0 : index
    %c0_23 = arith.constant 0 : index
    %51 = vector.load %arg1[%c1_21, %c0_22, %c0_23] : memref<15x8x256xf32, #tpu.memory_space<vmem>>, vector<1x8x256xf32>
    %52 = vector.shape_cast %51 : vector<1x8x256xf32> to vector<8x256xf32>
    %53 = vector.extract_strided_slice %52 {offsets = [0, 0], sizes = [1, 256], strides = [1, 1]} : vector<8x256xf32> to vector<1x256xf32>
    %c0_24 = arith.constant 0 : index
    %c0_25 = arith.constant 0 : index
    %c0_26 = arith.constant 0 : index
    %54 = vector.load %arg2[%c0_24, %c0_25, %c0_26] : memref<8x32x256xf32, #tpu.memory_space<vmem>>, vector<1x32x256xf32>
    %55 = vector.shape_cast %54 : vector<1x32x256xf32> to vector<32x256xf32>
    %56 = vector.broadcast %53 : vector<1x256xf32> to vector<32x256xf32>
    %57 = arith.mulf %56, %55 : vector<32x256xf32>
    %58 = vector.extract_strided_slice %52 {offsets = [1, 0], sizes = [1, 256], strides = [1, 1]} : vector<8x256xf32> to vector<1x256xf32>
    %c1_27 = arith.constant 1 : index
    %c0_28 = arith.constant 0 : index
    %c0_29 = arith.constant 0 : index
    %59 = vector.load %arg2[%c1_27, %c0_28, %c0_29] : memref<8x32x256xf32, #tpu.memory_space<vmem>>, vector<1x32x256xf32>
    %60 = vector.shape_cast %59 : vector<1x32x256xf32> to vector<32x256xf32>
    %61 = vector.broadcast %58 : vector<1x256xf32> to vector<32x256xf32>
    %62 = arith.mulf %61, %60 : vector<32x256xf32>
    %63 = arith.addf %57, %62 : vector<32x256xf32>
    %64 = vector.extract_strided_slice %52 {offsets = [2, 0], sizes = [1, 256], strides = [1, 1]} : vector<8x256xf32> to vector<1x256xf32>
    %c2_30 = arith.constant 2 : index
    %c0_31 = arith.constant 0 : index
    %c0_32 = arith.constant 0 : index
    %65 = vector.load %arg2[%c2_30, %c0_31, %c0_32] : memref<8x32x256xf32, #tpu.memory_space<vmem>>, vector<1x32x256xf32>
    %66 = vector.shape_cast %65 : vector<1x32x256xf32> to vector<32x256xf32>
    %67 = vector.broadcast %64 : vector<1x256xf32> to vector<32x256xf32>
    %68 = arith.mulf %67, %66 : vector<32x256xf32>
    %69 = arith.addf %63, %68 : vector<32x256xf32>
    %70 = vector.extract_strided_slice %52 {offsets = [3, 0], sizes = [1, 256], strides = [1, 1]} : vector<8x256xf32> to vector<1x256xf32>
    %c3_33 = arith.constant 3 : index
    %c0_34 = arith.constant 0 : index
    %c0_35 = arith.constant 0 : index
    %71 = vector.load %arg2[%c3_33, %c0_34, %c0_35] : memref<8x32x256xf32, #tpu.memory_space<vmem>>, vector<1x32x256xf32>
    %72 = vector.shape_cast %71 : vector<1x32x256xf32> to vector<32x256xf32>
    %73 = vector.broadcast %70 : vector<1x256xf32> to vector<32x256xf32>
    %74 = arith.mulf %73, %72 : vector<32x256xf32>
    %75 = arith.addf %69, %74 : vector<32x256xf32>
    %76 = vector.extract_strided_slice %52 {offsets = [4, 0], sizes = [1, 256], strides = [1, 1]} : vector<8x256xf32> to vector<1x256xf32>
    %c4_36 = arith.constant 4 : index
    %c0_37 = arith.constant 0 : index
    %c0_38 = arith.constant 0 : index
    %77 = vector.load %arg2[%c4_36, %c0_37, %c0_38] : memref<8x32x256xf32, #tpu.memory_space<vmem>>, vector<1x32x256xf32>
    %78 = vector.shape_cast %77 : vector<1x32x256xf32> to vector<32x256xf32>
    %79 = vector.broadcast %76 : vector<1x256xf32> to vector<32x256xf32>
    %80 = arith.mulf %79, %78 : vector<32x256xf32>
    %81 = arith.addf %75, %80 : vector<32x256xf32>
    %82 = vector.extract_strided_slice %52 {offsets = [5, 0], sizes = [1, 256], strides = [1, 1]} : vector<8x256xf32> to vector<1x256xf32>
    %c5_39 = arith.constant 5 : index
    %c0_40 = arith.constant 0 : index
    %c0_41 = arith.constant 0 : index
    %83 = vector.load %arg2[%c5_39, %c0_40, %c0_41] : memref<8x32x256xf32, #tpu.memory_space<vmem>>, vector<1x32x256xf32>
    %84 = vector.shape_cast %83 : vector<1x32x256xf32> to vector<32x256xf32>
    %85 = vector.broadcast %82 : vector<1x256xf32> to vector<32x256xf32>
    %86 = arith.mulf %85, %84 : vector<32x256xf32>
    %87 = arith.addf %81, %86 : vector<32x256xf32>
    %88 = vector.extract_strided_slice %52 {offsets = [6, 0], sizes = [1, 256], strides = [1, 1]} : vector<8x256xf32> to vector<1x256xf32>
    %c6_42 = arith.constant 6 : index
    %c0_43 = arith.constant 0 : index
    %c0_44 = arith.constant 0 : index
    %89 = vector.load %arg2[%c6_42, %c0_43, %c0_44] : memref<8x32x256xf32, #tpu.memory_space<vmem>>, vector<1x32x256xf32>
    %90 = vector.shape_cast %89 : vector<1x32x256xf32> to vector<32x256xf32>
    %91 = vector.broadcast %88 : vector<1x256xf32> to vector<32x256xf32>
    %92 = arith.mulf %91, %90 : vector<32x256xf32>
    %93 = arith.addf %87, %92 : vector<32x256xf32>
    %94 = vector.extract_strided_slice %52 {offsets = [7, 0], sizes = [1, 256], strides = [1, 1]} : vector<8x256xf32> to vector<1x256xf32>
    %c7_45 = arith.constant 7 : index
    %c0_46 = arith.constant 0 : index
    %c0_47 = arith.constant 0 : index
    %95 = vector.load %arg2[%c7_45, %c0_46, %c0_47] : memref<8x32x256xf32, #tpu.memory_space<vmem>>, vector<1x32x256xf32>
    %96 = vector.shape_cast %95 : vector<1x32x256xf32> to vector<32x256xf32>
    %97 = vector.broadcast %94 : vector<1x256xf32> to vector<32x256xf32>
    %98 = arith.mulf %97, %96 : vector<32x256xf32>
    %99 = arith.addf %93, %98 : vector<32x256xf32>
    %100 = arith.truncf %99 : vector<32x256xf32> to vector<32x256xbf16>
    %c32 = arith.constant 32 : index
    %c0_48 = arith.constant 0 : index
    %101 = vector.load %arg7[%c32, %c0_48] : memref<480x256xbf16, #tpu.memory_space<vmem>>, vector<32x256xbf16>
    tpu.vector_store %arg7[%c32, %c0_48], %100 {strides = array<i32>} : memref<480x256xbf16, #tpu.memory_space<vmem>>, vector<32x256xbf16>,
    %c2_49 = arith.constant 2 : index
    %c0_50 = arith.constant 0 : index
    %c0_51 = arith.constant 0 : index
    %102 = vector.load %arg1[%c2_49, %c0_50, %c0_51] : memref<15x8x256xf32, #tpu.memory_space<vmem>>, vector<1x8x256xf32>
    %103 = vector.shape_cast %102 : vector<1x8x256xf32> to vector<8x256xf32>
    %104 = vector.extract_strided_slice %103 {offsets = [0, 0], sizes = [1, 256], strides = [1, 1]} : vector<8x256xf32> to vector<1x256xf32>
    %c0_52 = arith.constant 0 : index
    %c0_53 = arith.constant 0 : index
    %c0_54 = arith.constant 0 : index
    %105 = vector.load %arg2[%c0_52, %c0_53, %c0_54] : memref<8x32x256xf32, #tpu.memory_space<vmem>>, vector<1x32x256xf32>
    %106 = vector.shape_cast %105 : vector<1x32x256xf32> to vector<32x256xf32>
    %107 = vector.broadcast %104 : vector<1x256xf32> to vector<32x256xf32>
    %108 = arith.mulf %107, %106 : vector<32x256xf32>
    %109 = vector.extract_strided_slice %103 {offsets = [1, 0], sizes = [1, 256], strides = [1, 1]} : vector<8x256xf32> to vector<1x256xf32>
    %c1_55 = arith.constant 1 : index
    %c0_56 = arith.constant 0 : index
    %c0_57 = arith.constant 0 : index
    %110 = vector.load %arg2[%c1_55, %c0_56, %c0_57] : memref<8x32x256xf32, #tpu.memory_space<vmem>>, vector<1x32x256xf32>
    %111 = vector.shape_cast %110 : vector<1x32x256xf32> to vector<32x256xf32>
    %112 = vector.broadcast %109 : vector<1x256xf32> to vector<32x256xf32>
    %113 = arith.mulf %112, %111 : vector<32x256xf32>
    %114 = arith.addf %108, %113 : vector<32x256xf32>
    %115 = vector.extract_strided_slice %103 {offsets = [2, 0], sizes = [1, 256], strides = [1, 1]} : vector<8x256xf32> to vector<1x256xf32>
    %c2_58 = arith.constant 2 : index
    %c0_59 = arith.constant 0 : index
    %c0_60 = arith.constant 0 : index
    %116 = vector.load %arg2[%c2_58, %c0_59, %c0_60] : memref<8x32x256xf32, #tpu.memory_space<vmem>>, vector<1x32x256xf32>
    %117 = vector.shape_cast %116 : vector<1x32x256xf32> to vector<32x256xf32>
    %118 = vector.broadcast %115 : vector<1x256xf32> to vector<32x256xf32>
    %119 = arith.mulf %118, %117 : vector<32x256xf32>
    %120 = arith.addf %114, %119 : vector<32x256xf32>
    %121 = vector.extract_strided_slice %103 {offsets = [3, 0], sizes = [1, 256], strides = [1, 1]} : vector<8x256xf32> to vector<1x256xf32>
    %c3_61 = arith.constant 3 : index
    %c0_62 = arith.constant 0 : index
    %c0_63 = arith.constant 0 : index
    %122 = vector.load %arg2[%c3_61, %c0_62, %c0_63] : memref<8x32x256xf32, #tpu.memory_space<vmem>>, vector<1x32x256xf32>
    %123 = vector.shape_cast %122 : vector<1x32x256xf32> to vector<32x256xf32>
    %124 = vector.broadcast %121 : vector<1x256xf32> to vector<32x256xf32>
    %125 = arith.mulf %124, %123 : vector<32x256xf32>
    %126 = arith.addf %120, %125 : vector<32x256xf32>
    %127 = vector.extract_strided_slice %103 {offsets = [4, 0], sizes = [1, 256], strides = [1, 1]} : vector<8x256xf32> to vector<1x256xf32>
    %c4_64 = arith.constant 4 : index
    %c0_65 = arith.constant 0 : index
    %c0_66 = arith.constant 0 : index
    %128 = vector.load %arg2[%c4_64, %c0_65, %c0_66] : memref<8x32x256xf32, #tpu.memory_space<vmem>>, vector<1x32x256xf32>
    %129 = vector.shape_cast %128 : vector<1x32x256xf32> to vector<32x256xf32>
    %130 = vector.broadcast %127 : vector<1x256xf32> to vector<32x256xf32>
    %131 = arith.mulf %130, %129 : vector<32x256xf32>
    %132 = arith.addf %126, %131 : vector<32x256xf32>
    %133 = vector.extract_strided_slice %103 {offsets = [5, 0], sizes = [1, 256], strides = [1, 1]} : vector<8x256xf32> to vector<1x256xf32>
    %c5_67 = arith.constant 5 : index
    %c0_68 = arith.constant 0 : index
    %c0_69 = arith.constant 0 : index
    %134 = vector.load %arg2[%c5_67, %c0_68, %c0_69] : memref<8x32x256xf32, #tpu.memory_space<vmem>>, vector<1x32x256xf32>
    %135 = vector.shape_cast %134 : vector<1x32x256xf32> to vector<32x256xf32>
    %136 = vector.broadcast %133 : vector<1x256xf32> to vector<32x256xf32>
    %137 = arith.mulf %136, %135 : vector<32x256xf32>
    %138 = arith.addf %132, %137 : vector<32x256xf32>
    %139 = vector.extract_strided_slice %103 {offsets = [6, 0], sizes = [1, 256], strides = [1, 1]} : vector<8x256xf32> to vector<1x256xf32>
    %c6_70 = arith.constant 6 : index
    %c0_71 = arith.constant 0 : index
    %c0_72 = arith.constant 0 : index
    %140 = vector.load %arg2[%c6_70, %c0_71, %c0_72] : memref<8x32x256xf32, #tpu.memory_space<vmem>>, vector<1x32x256xf32>
    %141 = vector.shape_cast %140 : vector<1x32x256xf32> to vector<32x256xf32>
    %142 = vector.broadcast %139 : vector<1x256xf32> to vector<32x256xf32>
    %143 = arith.mulf %142, %141 : vector<32x256xf32>
    %144 = arith.addf %138, %143 : vector<32x256xf32>
    %145 = vector.extract_strided_slice %103 {offsets = [7, 0], sizes = [1, 256], strides = [1, 1]} : vector<8x256xf32> to vector<1x256xf32>
    %c7_73 = arith.constant 7 : index
    %c0_74 = arith.constant 0 : index
    %c0_75 = arith.constant 0 : index
    %146 = vector.load %arg2[%c7_73, %c0_74, %c0_75] : memref<8x32x256xf32, #tpu.memory_space<vmem>>, vector<1x32x256xf32>
    %147 = vector.shape_cast %146 : vector<1x32x256xf32> to vector<32x256xf32>
    %148 = vector.broadcast %145 : vector<1x256xf32> to vector<32x256xf32>
    %149 = arith.mulf %148, %147 : vector<32x256xf32>
    %150 = arith.addf %144, %149 : vector<32x256xf32>
    %151 = arith.truncf %150 : vector<32x256xf32> to vector<32x256xbf16>
    %c64 = arith.constant 64 : index
    %c0_76 = arith.constant 0 : index
    %152 = vector.load %arg7[%c64, %c0_76] : memref<480x256xbf16, #tpu.memory_space<vmem>>, vector<32x256xbf16>
    tpu.vector_store %arg7[%c64, %c0_76], %151 {strides = array<i32>} : memref<480x256xbf16, #tpu.memory_space<vmem>>, vector<32x256xbf16>,
    %c3_77 = arith.constant 3 : index
    %c0_78 = arith.constant 0 : index
    %c0_79 = arith.constant 0 : index
    %153 = vector.load %arg1[%c3_77, %c0_78, %c0_79] : memref<15x8x256xf32, #tpu.memory_space<vmem>>, vector<1x8x256xf32>
    %154 = vector.shape_cast %153 : vector<1x8x256xf32> to vector<8x256xf32>
    %155 = vector.extract_strided_slice %154 {offsets = [0, 0], sizes = [1, 256], strides = [1, 1]} : vector<8x256xf32> to vector<1x256xf32>
    %c0_80 = arith.constant 0 : index
    %c0_81 = arith.constant 0 : index
    %c0_82 = arith.constant 0 : index
    %156 = vector.load %arg2[%c0_80, %c0_81, %c0_82] : memref<8x32x256xf32, #tpu.memory_space<vmem>>, vector<1x32x256xf32>
    %157 = vector.shape_cast %156 : vector<1x32x256xf32> to vector<32x256xf32>
    %158 = vector.broadcast %155 : vector<1x256xf32> to vector<32x256xf32>
    %159 = arith.mulf %158, %157 : vector<32x256xf32>
    %160 = vector.extract_strided_slice %154 {offsets = [1, 0], sizes = [1, 256], strides = [1, 1]} : vector<8x256xf32> to vector<1x256xf32>
    %c1_83 = arith.constant 1 : index
    %c0_84 = arith.constant 0 : index
    %c0_85 = arith.constant 0 : index
    %161 = vector.load %arg2[%c1_83, %c0_84, %c0_85] : memref<8x32x256xf32, #tpu.memory_space<vmem>>, vector<1x32x256xf32>
    %162 = vector.shape_cast %161 : vector<1x32x256xf32> to vector<32x256xf32>
    %163 = vector.broadcast %160 : vector<1x256xf32> to vector<32x256xf32>
    %164 = arith.mulf %163, %162 : vector<32x256xf32>
    %165 = arith.addf %159, %164 : vector<32x256xf32>
    %166 = vector.extract_strided_slice %154 {offsets = [2, 0], sizes = [1, 256], strides = [1, 1]} : vector<8x256xf32> to vector<1x256xf32>
    %c2_86 = arith.constant 2 : index
    %c0_87 = arith.constant 0 : index
    %c0_88 = arith.constant 0 : index
    %167 = vector.load %arg2[%c2_86, %c0_87, %c0_88] : memref<8x32x256xf32, #tpu.memory_space<vmem>>, vector<1x32x256xf32>
    %168 = vector.shape_cast %167 : vector<1x32x256xf32> to vector<32x256xf32>
    %169 = vector.broadcast %166 : vector<1x256xf32> to vector<32x256xf32>
    %170 = arith.mulf %169, %168 : vector<32x256xf32>
    %171 = arith.addf %165, %170 : vector<32x256xf32>
    %172 = vector.extract_strided_slice %154 {offsets = [3, 0], sizes = [1, 256], strides = [1, 1]} : vector<8x256xf32> to vector<1x256xf32>
    %c3_89 = arith.constant 3 : index
    %c0_90 = arith.constant 0 : index
    %c0_91 = arith.constant 0 : index
    %173 = vector.load %arg2[%c3_89, %c0_90, %c0_91] : memref<8x32x256xf32, #tpu.memory_space<vmem>>, vector<1x32x256xf32>
    %174 = vector.shape_cast %173 : vector<1x32x256xf32> to vector<32x256xf32>
    %175 = vector.broadcast %172 : vector<1x256xf32> to vector<32x256xf32>
    %176 = arith.mulf %175, %174 : vector<32x256xf32>
    %177 = arith.addf %171, %176 : vector<32x256xf32>
    %178 = vector.extract_strided_slice %154 {offsets = [4, 0], sizes = [1, 256], strides = [1, 1]} : vector<8x256xf32> to vector<1x256xf32>
    %c4_92 = arith.constant 4 : index
    %c0_93 = arith.constant 0 : index
    %c0_94 = arith.constant 0 : index
    %179 = vector.load %arg2[%c4_92, %c0_93, %c0_94] : memref<8x32x256xf32, #tpu.memory_space<vmem>>, vector<1x32x256xf32>
    %180 = vector.shape_cast %179 : vector<1x32x256xf32> to vector<32x256xf32>
    %181 = vector.broadcast %178 : vector<1x256xf32> to vector<32x256xf32>
    %182 = arith.mulf %181, %180 : vector<32x256xf32>
    %183 = arith.addf %177, %182 : vector<32x256xf32>
    %184 = vector.extract_strided_slice %154 {offsets = [5, 0], sizes = [1, 256], strides = [1, 1]} : vector<8x256xf32> to vector<1x256xf32>
    %c5_95 = arith.constant 5 : index
    %c0_96 = arith.constant 0 : index
    %c0_97 = arith.constant 0 : index
    %185 = vector.load %arg2[%c5_95, %c0_96, %c0_97] : memref<8x32x256xf32, #tpu.memory_space<vmem>>, vector<1x32x256xf32>
    %186 = vector.shape_cast %185 : vector<1x32x256xf32> to vector<32x256xf32>
    %187 = vector.broadcast %184 : vector<1x256xf32> to vector<32x256xf32>
    %188 = arith.mulf %187, %186 : vector<32x256xf32>
    %189 = arith.addf %183, %188 : vector<32x256xf32>
    %190 = vector.extract_strided_slice %154 {offsets = [6, 0], sizes = [1, 256], strides = [1, 1]} : vector<8x256xf32> to vector<1x256xf32>
    %c6_98 = arith.constant 6 : index
    %c0_99 = arith.constant 0 : index
    %c0_100 = arith.constant 0 : index
    %191 = vector.load %arg2[%c6_98, %c0_99, %c0_100] : memref<8x32x256xf32, #tpu.memory_space<vmem>>, vector<1x32x256xf32>
    %192 = vector.shape_cast %191 : vector<1x32x256xf32> to vector<32x256xf32>
    %193 = vector.broadcast %190 : vector<1x256xf32> to vector<32x256xf32>
    %194 = arith.mulf %193, %192 : vector<32x256xf32>
    %195 = arith.addf %189, %194 : vector<32x256xf32>
    %196 = vector.extract_strided_slice %154 {offsets = [7, 0], sizes = [1, 256], strides = [1, 1]} : vector<8x256xf32> to vector<1x256xf32>
    %c7_101 = arith.constant 7 : index
    %c0_102 = arith.constant 0 : index
    %c0_103 = arith.constant 0 : index
    %197 = vector.load %arg2[%c7_101, %c0_102, %c0_103] : memref<8x32x256xf32, #tpu.memory_space<vmem>>, vector<1x32x256xf32>
    %198 = vector.shape_cast %197 : vector<1x32x256xf32> to vector<32x256xf32>
    %199 = vector.broadcast %196 : vector<1x256xf32> to vector<32x256xf32>
    %200 = arith.mulf %199, %198 : vector<32x256xf32>
    %201 = arith.addf %195, %200 : vector<32x256xf32>
    %202 = arith.truncf %201 : vector<32x256xf32> to vector<32x256xbf16>
    %c96 = arith.constant 96 : index
    %c0_104 = arith.constant 0 : index
    %203 = vector.load %arg7[%c96, %c0_104] : memref<480x256xbf16, #tpu.memory_space<vmem>>, vector<32x256xbf16>
    tpu.vector_store %arg7[%c96, %c0_104], %202 {strides = array<i32>} : memref<480x256xbf16, #tpu.memory_space<vmem>>, vector<32x256xbf16>,
    %c4_105 = arith.constant 4 : index
    %c0_106 = arith.constant 0 : index
    %c0_107 = arith.constant 0 : index
    %204 = vector.load %arg1[%c4_105, %c0_106, %c0_107] : memref<15x8x256xf32, #tpu.memory_space<vmem>>, vector<1x8x256xf32>
    %205 = vector.shape_cast %204 : vector<1x8x256xf32> to vector<8x256xf32>
    %206 = vector.extract_strided_slice %205 {offsets = [0, 0], sizes = [1, 256], strides = [1, 1]} : vector<8x256xf32> to vector<1x256xf32>
    %c0_108 = arith.constant 0 : index
    %c0_109 = arith.constant 0 : index
    %c0_110 = arith.constant 0 : index
    %207 = vector.load %arg2[%c0_108, %c0_109, %c0_110] : memref<8x32x256xf32, #tpu.memory_space<vmem>>, vector<1x32x256xf32>
    %208 = vector.shape_cast %207 : vector<1x32x256xf32> to vector<32x256xf32>
    %209 = vector.broadcast %206 : vector<1x256xf32> to vector<32x256xf32>
    %210 = arith.mulf %209, %208 : vector<32x256xf32>
    %211 = vector.extract_strided_slice %205 {offsets = [1, 0], sizes = [1, 256], strides = [1, 1]} : vector<8x256xf32> to vector<1x256xf32>
    %c1_111 = arith.constant 1 : index
    %c0_112 = arith.constant 0 : index
    %c0_113 = arith.constant 0 : index
    %212 = vector.load %arg2[%c1_111, %c0_112, %c0_113] : memref<8x32x256xf32, #tpu.memory_space<vmem>>, vector<1x32x256xf32>
    %213 = vector.shape_cast %212 : vector<1x32x256xf32> to vector<32x256xf32>
    %214 = vector.broadcast %211 : vector<1x256xf32> to vector<32x256xf32>
    %215 = arith.mulf %214, %213 : vector<32x256xf32>
    %216 = arith.addf %210, %215 : vector<32x256xf32>
    %217 = vector.extract_strided_slice %205 {offsets = [2, 0], sizes = [1, 256], strides = [1, 1]} : vector<8x256xf32> to vector<1x256xf32>
    %c2_114 = arith.constant 2 : index
    %c0_115 = arith.constant 0 : index
    %c0_116 = arith.constant 0 : index
    %218 = vector.load %arg2[%c2_114, %c0_115, %c0_116] : memref<8x32x256xf32, #tpu.memory_space<vmem>>, vector<1x32x256xf32>
    %219 = vector.shape_cast %218 : vector<1x32x256xf32> to vector<32x256xf32>
    %220 = vector.broadcast %217 : vector<1x256xf32> to vector<32x256xf32>
    %221 = arith.mulf %220, %219 : vector<32x256xf32>
    %222 = arith.addf %216, %221 : vector<32x256xf32>
    %223 = vector.extract_strided_slice %205 {offsets = [3, 0], sizes = [1, 256], strides = [1, 1]} : vector<8x256xf32> to vector<1x256xf32>
    %c3_117 = arith.constant 3 : index
    %c0_118 = arith.constant 0 : index
    %c0_119 = arith.constant 0 : index
    %224 = vector.load %arg2[%c3_117, %c0_118, %c0_119] : memref<8x32x256xf32, #tpu.memory_space<vmem>>, vector<1x32x256xf32>
    %225 = vector.shape_cast %224 : vector<1x32x256xf32> to vector<32x256xf32>
    %226 = vector.broadcast %223 : vector<1x256xf32> to vector<32x256xf32>
    %227 = arith.mulf %226, %225 : vector<32x256xf32>
    %228 = arith.addf %222, %227 : vector<32x256xf32>
    %229 = vector.extract_strided_slice %205 {offsets = [4, 0], sizes = [1, 256], strides = [1, 1]} : vector<8x256xf32> to vector<1x256xf32>
    %c4_120 = arith.constant 4 : index
    %c0_121 = arith.constant 0 : index
    %c0_122 = arith.constant 0 : index
    %230 = vector.load %arg2[%c4_120, %c0_121, %c0_122] : memref<8x32x256xf32, #tpu.memory_space<vmem>>, vector<1x32x256xf32>
    %231 = vector.shape_cast %230 : vector<1x32x256xf32> to vector<32x256xf32>
    %232 = vector.broadcast %229 : vector<1x256xf32> to vector<32x256xf32>
    %233 = arith.mulf %232, %231 : vector<32x256xf32>
    %234 = arith.addf %228, %233 : vector<32x256xf32>
    %235 = vector.extract_strided_slice %205 {offsets = [5, 0], sizes = [1, 256], strides = [1, 1]} : vector<8x256xf32> to vector<1x256xf32>
    %c5_123 = arith.constant 5 : index
    %c0_124 = arith.constant 0 : index
    %c0_125 = arith.constant 0 : index
    %236 = vector.load %arg2[%c5_123, %c0_124, %c0_125] : memref<8x32x256xf32, #tpu.memory_space<vmem>>, vector<1x32x256xf32>
    %237 = vector.shape_cast %236 : vector<1x32x256xf32> to vector<32x256xf32>
    %238 = vector.broadcast %235 : vector<1x256xf32> to vector<32x256xf32>
    %239 = arith.mulf %238, %237 : vector<32x256xf32>
    %240 = arith.addf %234, %239 : vector<32x256xf32>
    %241 = vector.extract_strided_slice %205 {offsets = [6, 0], sizes = [1, 256], strides = [1, 1]} : vector<8x256xf32> to vector<1x256xf32>
    %c6_126 = arith.constant 6 : index
    %c0_127 = arith.constant 0 : index
    %c0_128 = arith.constant 0 : index
    %242 = vector.load %arg2[%c6_126, %c0_127, %c0_128] : memref<8x32x256xf32, #tpu.memory_space<vmem>>, vector<1x32x256xf32>
    %243 = vector.shape_cast %242 : vector<1x32x256xf32> to vector<32x256xf32>
    %244 = vector.broadcast %241 : vector<1x256xf32> to vector<32x256xf32>
    %245 = arith.mulf %244, %243 : vector<32x256xf32>
    %246 = arith.addf %240, %245 : vector<32x256xf32>
    %247 = vector.extract_strided_slice %205 {offsets = [7, 0], sizes = [1, 256], strides = [1, 1]} : vector<8x256xf32> to vector<1x256xf32>
    %c7_129 = arith.constant 7 : index
    %c0_130 = arith.constant 0 : index
    %c0_131 = arith.constant 0 : index
    %248 = vector.load %arg2[%c7_129, %c0_130, %c0_131] : memref<8x32x256xf32, #tpu.memory_space<vmem>>, vector<1x32x256xf32>
    %249 = vector.shape_cast %248 : vector<1x32x256xf32> to vector<32x256xf32>
    %250 = vector.broadcast %247 : vector<1x256xf32> to vector<32x256xf32>
    %251 = arith.mulf %250, %249 : vector<32x256xf32>
    %252 = arith.addf %246, %251 : vector<32x256xf32>
    %253 = arith.truncf %252 : vector<32x256xf32> to vector<32x256xbf16>
    %c128 = arith.constant 128 : index
    %c0_132 = arith.constant 0 : index
    %254 = vector.load %arg7[%c128, %c0_132] : memref<480x256xbf16, #tpu.memory_space<vmem>>, vector<32x256xbf16>
    tpu.vector_store %arg7[%c128, %c0_132], %253 {strides = array<i32>} : memref<480x256xbf16, #tpu.memory_space<vmem>>, vector<32x256xbf16>,
    %c5_133 = arith.constant 5 : index
    %c0_134 = arith.constant 0 : index
    %c0_135 = arith.constant 0 : index
    %255 = vector.load %arg1[%c5_133, %c0_134, %c0_135] : memref<15x8x256xf32, #tpu.memory_space<vmem>>, vector<1x8x256xf32>
    %256 = vector.shape_cast %255 : vector<1x8x256xf32> to vector<8x256xf32>
    %257 = vector.extract_strided_slice %256 {offsets = [0, 0], sizes = [1, 256], strides = [1, 1]} : vector<8x256xf32> to vector<1x256xf32>
    %c0_136 = arith.constant 0 : index
    %c0_137 = arith.constant 0 : index
    %c0_138 = arith.constant 0 : index
    %258 = vector.load %arg2[%c0_136, %c0_137, %c0_138] : memref<8x32x256xf32, #tpu.memory_space<vmem>>, vector<1x32x256xf32>
    %259 = vector.shape_cast %258 : vector<1x32x256xf32> to vector<32x256xf32>
    %260 = vector.broadcast %257 : vector<1x256xf32> to vector<32x256xf32>
    %261 = arith.mulf %260, %259 : vector<32x256xf32>
    %262 = vector.extract_strided_slice %256 {offsets = [1, 0], sizes = [1, 256], strides = [1, 1]} : vector<8x256xf32> to vector<1x256xf32>
    %c1_139 = arith.constant 1 : index
    %c0_140 = arith.constant 0 : index
    %c0_141 = arith.constant 0 : index
    %263 = vector.load %arg2[%c1_139, %c0_140, %c0_141] : memref<8x32x256xf32, #tpu.memory_space<vmem>>, vector<1x32x256xf32>
    %264 = vector.shape_cast %263 : vector<1x32x256xf32> to vector<32x256xf32>
    %265 = vector.broadcast %262 : vector<1x256xf32> to vector<32x256xf32>
    %266 = arith.mulf %265, %264 : vector<32x256xf32>
    %267 = arith.addf %261, %266 : vector<32x256xf32>
    %268 = vector.extract_strided_slice %256 {offsets = [2, 0], sizes = [1, 256], strides = [1, 1]} : vector<8x256xf32> to vector<1x256xf32>
    %c2_142 = arith.constant 2 : index
    %c0_143 = arith.constant 0 : index
    %c0_144 = arith.constant 0 : index
    %269 = vector.load %arg2[%c2_142, %c0_143, %c0_144] : memref<8x32x256xf32, #tpu.memory_space<vmem>>, vector<1x32x256xf32>
    %270 = vector.shape_cast %269 : vector<1x32x256xf32> to vector<32x256xf32>
    %271 = vector.broadcast %268 : vector<1x256xf32> to vector<32x256xf32>
    %272 = arith.mulf %271, %270 : vector<32x256xf32>
    %273 = arith.addf %267, %272 : vector<32x256xf32>
    %274 = vector.extract_strided_slice %256 {offsets = [3, 0], sizes = [1, 256], strides = [1, 1]} : vector<8x256xf32> to vector<1x256xf32>
    %c3_145 = arith.constant 3 : index
    %c0_146 = arith.constant 0 : index
    %c0_147 = arith.constant 0 : index
    %275 = vector.load %arg2[%c3_145, %c0_146, %c0_147] : memref<8x32x256xf32, #tpu.memory_space<vmem>>, vector<1x32x256xf32>
    %276 = vector.shape_cast %275 : vector<1x32x256xf32> to vector<32x256xf32>
    %277 = vector.broadcast %274 : vector<1x256xf32> to vector<32x256xf32>
    %278 = arith.mulf %277, %276 : vector<32x256xf32>
    %279 = arith.addf %273, %278 : vector<32x256xf32>
    %280 = vector.extract_strided_slice %256 {offsets = [4, 0], sizes = [1, 256], strides = [1, 1]} : vector<8x256xf32> to vector<1x256xf32>
    %c4_148 = arith.constant 4 : index
    %c0_149 = arith.constant 0 : index
    %c0_150 = arith.constant 0 : index
    %281 = vector.load %arg2[%c4_148, %c0_149, %c0_150] : memref<8x32x256xf32, #tpu.memory_space<vmem>>, vector<1x32x256xf32>
    %282 = vector.shape_cast %281 : vector<1x32x256xf32> to vector<32x256xf32>
    %283 = vector.broadcast %280 : vector<1x256xf32> to vector<32x256xf32>
    %284 = arith.mulf %283, %282 : vector<32x256xf32>
    %285 = arith.addf %279, %284 : vector<32x256xf32>
    %286 = vector.extract_strided_slice %256 {offsets = [5, 0], sizes = [1, 256], strides = [1, 1]} : vector<8x256xf32> to vector<1x256xf32>
    %c5_151 = arith.constant 5 : index
    %c0_152 = arith.constant 0 : index
    %c0_153 = arith.constant 0 : index
    %287 = vector.load %arg2[%c5_151, %c0_152, %c0_153] : memref<8x32x256xf32, #tpu.memory_space<vmem>>, vector<1x32x256xf32>
    %288 = vector.shape_cast %287 : vector<1x32x256xf32> to vector<32x256xf32>
    %289 = vector.broadcast %286 : vector<1x256xf32> to vector<32x256xf32>
    %290 = arith.mulf %289, %288 : vector<32x256xf32>
    %291 = arith.addf %285, %290 : vector<32x256xf32>
    %292 = vector.extract_strided_slice %256 {offsets = [6, 0], sizes = [1, 256], strides = [1, 1]} : vector<8x256xf32> to vector<1x256xf32>
    %c6_154 = arith.constant 6 : index
    %c0_155 = arith.constant 0 : index
    %c0_156 = arith.constant 0 : index
    %293 = vector.load %arg2[%c6_154, %c0_155, %c0_156] : memref<8x32x256xf32, #tpu.memory_space<vmem>>, vector<1x32x256xf32>
    %294 = vector.shape_cast %293 : vector<1x32x256xf32> to vector<32x256xf32>
    %295 = vector.broadcast %292 : vector<1x256xf32> to vector<32x256xf32>
    %296 = arith.mulf %295, %294 : vector<32x256xf32>
    %297 = arith.addf %291, %296 : vector<32x256xf32>
    %298 = vector.extract_strided_slice %256 {offsets = [7, 0], sizes = [1, 256], strides = [1, 1]} : vector<8x256xf32> to vector<1x256xf32>
    %c7_157 = arith.constant 7 : index
    %c0_158 = arith.constant 0 : index
    %c0_159 = arith.constant 0 : index
    %299 = vector.load %arg2[%c7_157, %c0_158, %c0_159] : memref<8x32x256xf32, #tpu.memory_space<vmem>>, vector<1x32x256xf32>
    %300 = vector.shape_cast %299 : vector<1x32x256xf32> to vector<32x256xf32>
    %301 = vector.broadcast %298 : vector<1x256xf32> to vector<32x256xf32>
    %302 = arith.mulf %301, %300 : vector<32x256xf32>
    %303 = arith.addf %297, %302 : vector<32x256xf32>
    %304 = arith.truncf %303 : vector<32x256xf32> to vector<32x256xbf16>
    %c160 = arith.constant 160 : index
    %c0_160 = arith.constant 0 : index
    %305 = vector.load %arg7[%c160, %c0_160] : memref<480x256xbf16, #tpu.memory_space<vmem>>, vector<32x256xbf16>
    tpu.vector_store %arg7[%c160, %c0_160], %304 {strides = array<i32>} : memref<480x256xbf16, #tpu.memory_space<vmem>>, vector<32x256xbf16>,
    %c6_161 = arith.constant 6 : index
    %c0_162 = arith.constant 0 : index
    %c0_163 = arith.constant 0 : index
    %306 = vector.load %arg1[%c6_161, %c0_162, %c0_163] : memref<15x8x256xf32, #tpu.memory_space<vmem>>, vector<1x8x256xf32>
    %307 = vector.shape_cast %306 : vector<1x8x256xf32> to vector<8x256xf32>
    %308 = vector.extract_strided_slice %307 {offsets = [0, 0], sizes = [1, 256], strides = [1, 1]} : vector<8x256xf32> to vector<1x256xf32>
    %c0_164 = arith.constant 0 : index
    %c0_165 = arith.constant 0 : index
    %c0_166 = arith.constant 0 : index
    %309 = vector.load %arg2[%c0_164, %c0_165, %c0_166] : memref<8x32x256xf32, #tpu.memory_space<vmem>>, vector<1x32x256xf32>
    %310 = vector.shape_cast %309 : vector<1x32x256xf32> to vector<32x256xf32>
    %311 = vector.broadcast %308 : vector<1x256xf32> to vector<32x256xf32>
    %312 = arith.mulf %311, %310 : vector<32x256xf32>
    %313 = vector.extract_strided_slice %307 {offsets = [1, 0], sizes = [1, 256], strides = [1, 1]} : vector<8x256xf32> to vector<1x256xf32>
    %c1_167 = arith.constant 1 : index
    %c0_168 = arith.constant 0 : index
    %c0_169 = arith.constant 0 : index
    %314 = vector.load %arg2[%c1_167, %c0_168, %c0_169] : memref<8x32x256xf32, #tpu.memory_space<vmem>>, vector<1x32x256xf32>
    %315 = vector.shape_cast %314 : vector<1x32x256xf32> to vector<32x256xf32>
    %316 = vector.broadcast %313 : vector<1x256xf32> to vector<32x256xf32>
    %317 = arith.mulf %316, %315 : vector<32x256xf32>
    %318 = arith.addf %312, %317 : vector<32x256xf32>
    %319 = vector.extract_strided_slice %307 {offsets = [2, 0], sizes = [1, 256], strides = [1, 1]} : vector<8x256xf32> to vector<1x256xf32>
    %c2_170 = arith.constant 2 : index
    %c0_171 = arith.constant 0 : index
    %c0_172 = arith.constant 0 : index
    %320 = vector.load %arg2[%c2_170, %c0_171, %c0_172] : memref<8x32x256xf32, #tpu.memory_space<vmem>>, vector<1x32x256xf32>
    %321 = vector.shape_cast %320 : vector<1x32x256xf32> to vector<32x256xf32>
    %322 = vector.broadcast %319 : vector<1x256xf32> to vector<32x256xf32>
    %323 = arith.mulf %322, %321 : vector<32x256xf32>
    %324 = arith.addf %318, %323 : vector<32x256xf32>
    %325 = vector.extract_strided_slice %307 {offsets = [3, 0], sizes = [1, 256], strides = [1, 1]} : vector<8x256xf32> to vector<1x256xf32>
    %c3_173 = arith.constant 3 : index
    %c0_174 = arith.constant 0 : index
    %c0_175 = arith.constant 0 : index
    %326 = vector.load %arg2[%c3_173, %c0_174, %c0_175] : memref<8x32x256xf32, #tpu.memory_space<vmem>>, vector<1x32x256xf32>
    %327 = vector.shape_cast %326 : vector<1x32x256xf32> to vector<32x256xf32>
    %328 = vector.broadcast %325 : vector<1x256xf32> to vector<32x256xf32>
    %329 = arith.mulf %328, %327 : vector<32x256xf32>
    %330 = arith.addf %324, %329 : vector<32x256xf32>
    %331 = vector.extract_strided_slice %307 {offsets = [4, 0], sizes = [1, 256], strides = [1, 1]} : vector<8x256xf32> to vector<1x256xf32>
    %c4_176 = arith.constant 4 : index
    %c0_177 = arith.constant 0 : index
    %c0_178 = arith.constant 0 : index
    %332 = vector.load %arg2[%c4_176, %c0_177, %c0_178] : memref<8x32x256xf32, #tpu.memory_space<vmem>>, vector<1x32x256xf32>
    %333 = vector.shape_cast %332 : vector<1x32x256xf32> to vector<32x256xf32>
    %334 = vector.broadcast %331 : vector<1x256xf32> to vector<32x256xf32>
    %335 = arith.mulf %334, %333 : vector<32x256xf32>
    %336 = arith.addf %330, %335 : vector<32x256xf32>
    %337 = vector.extract_strided_slice %307 {offsets = [5, 0], sizes = [1, 256], strides = [1, 1]} : vector<8x256xf32> to vector<1x256xf32>
    %c5_179 = arith.constant 5 : index
    %c0_180 = arith.constant 0 : index
    %c0_181 = arith.constant 0 : index
    %338 = vector.load %arg2[%c5_179, %c0_180, %c0_181] : memref<8x32x256xf32, #tpu.memory_space<vmem>>, vector<1x32x256xf32>
    %339 = vector.shape_cast %338 : vector<1x32x256xf32> to vector<32x256xf32>
    %340 = vector.broadcast %337 : vector<1x256xf32> to vector<32x256xf32>
    %341 = arith.mulf %340, %339 : vector<32x256xf32>
    %342 = arith.addf %336, %341 : vector<32x256xf32>
    %343 = vector.extract_strided_slice %307 {offsets = [6, 0], sizes = [1, 256], strides = [1, 1]} : vector<8x256xf32> to vector<1x256xf32>
    %c6_182 = arith.constant 6 : index
    %c0_183 = arith.constant 0 : index
    %c0_184 = arith.constant 0 : index
    %344 = vector.load %arg2[%c6_182, %c0_183, %c0_184] : memref<8x32x256xf32, #tpu.memory_space<vmem>>, vector<1x32x256xf32>
    %345 = vector.shape_cast %344 : vector<1x32x256xf32> to vector<32x256xf32>
    %346 = vector.broadcast %343 : vector<1x256xf32> to vector<32x256xf32>
    %347 = arith.mulf %346, %345 : vector<32x256xf32>
    %348 = arith.addf %342, %347 : vector<32x256xf32>
    %349 = vector.extract_strided_slice %307 {offsets = [7, 0], sizes = [1, 256], strides = [1, 1]} : vector<8x256xf32> to vector<1x256xf32>
    %c7_185 = arith.constant 7 : index
    %c0_186 = arith.constant 0 : index
    %c0_187 = arith.constant 0 : index
    %350 = vector.load %arg2[%c7_185, %c0_186, %c0_187] : memref<8x32x256xf32, #tpu.memory_space<vmem>>, vector<1x32x256xf32>
    %351 = vector.shape_cast %350 : vector<1x32x256xf32> to vector<32x256xf32>
    %352 = vector.broadcast %349 : vector<1x256xf32> to vector<32x256xf32>
    %353 = arith.mulf %352, %351 : vector<32x256xf32>
    %354 = arith.addf %348, %353 : vector<32x256xf32>
    %355 = arith.truncf %354 : vector<32x256xf32> to vector<32x256xbf16>
    %c192 = arith.constant 192 : index
    %c0_188 = arith.constant 0 : index
    %356 = vector.load %arg7[%c192, %c0_188] : memref<480x256xbf16, #tpu.memory_space<vmem>>, vector<32x256xbf16>
    tpu.vector_store %arg7[%c192, %c0_188], %355 {strides = array<i32>} : memref<480x256xbf16, #tpu.memory_space<vmem>>, vector<32x256xbf16>,
    %c7_189 = arith.constant 7 : index
    %c0_190 = arith.constant 0 : index
    %c0_191 = arith.constant 0 : index
    %357 = vector.load %arg1[%c7_189, %c0_190, %c0_191] : memref<15x8x256xf32, #tpu.memory_space<vmem>>, vector<1x8x256xf32>
    %358 = vector.shape_cast %357 : vector<1x8x256xf32> to vector<8x256xf32>
    %359 = vector.extract_strided_slice %358 {offsets = [0, 0], sizes = [1, 256], strides = [1, 1]} : vector<8x256xf32> to vector<1x256xf32>
    %c0_192 = arith.constant 0 : index
    %c0_193 = arith.constant 0 : index
    %c0_194 = arith.constant 0 : index
    %360 = vector.load %arg2[%c0_192, %c0_193, %c0_194] : memref<8x32x256xf32, #tpu.memory_space<vmem>>, vector<1x32x256xf32>
    %361 = vector.shape_cast %360 : vector<1x32x256xf32> to vector<32x256xf32>
    %362 = vector.broadcast %359 : vector<1x256xf32> to vector<32x256xf32>
    %363 = arith.mulf %362, %361 : vector<32x256xf32>
    %364 = vector.extract_strided_slice %358 {offsets = [1, 0], sizes = [1, 256], strides = [1, 1]} : vector<8x256xf32> to vector<1x256xf32>
    %c1_195 = arith.constant 1 : index
    %c0_196 = arith.constant 0 : index
    %c0_197 = arith.constant 0 : index
    %365 = vector.load %arg2[%c1_195, %c0_196, %c0_197] : memref<8x32x256xf32, #tpu.memory_space<vmem>>, vector<1x32x256xf32>
    %366 = vector.shape_cast %365 : vector<1x32x256xf32> to vector<32x256xf32>
    %367 = vector.broadcast %364 : vector<1x256xf32> to vector<32x256xf32>
    %368 = arith.mulf %367, %366 : vector<32x256xf32>
    %369 = arith.addf %363, %368 : vector<32x256xf32>
    %370 = vector.extract_strided_slice %358 {offsets = [2, 0], sizes = [1, 256], strides = [1, 1]} : vector<8x256xf32> to vector<1x256xf32>
    %c2_198 = arith.constant 2 : index
    %c0_199 = arith.constant 0 : index
    %c0_200 = arith.constant 0 : index
    %371 = vector.load %arg2[%c2_198, %c0_199, %c0_200] : memref<8x32x256xf32, #tpu.memory_space<vmem>>, vector<1x32x256xf32>
    %372 = vector.shape_cast %371 : vector<1x32x256xf32> to vector<32x256xf32>
    %373 = vector.broadcast %370 : vector<1x256xf32> to vector<32x256xf32>
    %374 = arith.mulf %373, %372 : vector<32x256xf32>
    %375 = arith.addf %369, %374 : vector<32x256xf32>
    %376 = vector.extract_strided_slice %358 {offsets = [3, 0], sizes = [1, 256], strides = [1, 1]} : vector<8x256xf32> to vector<1x256xf32>
    %c3_201 = arith.constant 3 : index
    %c0_202 = arith.constant 0 : index
    %c0_203 = arith.constant 0 : index
    %377 = vector.load %arg2[%c3_201, %c0_202, %c0_203] : memref<8x32x256xf32, #tpu.memory_space<vmem>>, vector<1x32x256xf32>
    %378 = vector.shape_cast %377 : vector<1x32x256xf32> to vector<32x256xf32>
    %379 = vector.broadcast %376 : vector<1x256xf32> to vector<32x256xf32>
    %380 = arith.mulf %379, %378 : vector<32x256xf32>
    %381 = arith.addf %375, %380 : vector<32x256xf32>
    %382 = vector.extract_strided_slice %358 {offsets = [4, 0], sizes = [1, 256], strides = [1, 1]} : vector<8x256xf32> to vector<1x256xf32>
    %c4_204 = arith.constant 4 : index
    %c0_205 = arith.constant 0 : index
    %c0_206 = arith.constant 0 : index
    %383 = vector.load %arg2[%c4_204, %c0_205, %c0_206] : memref<8x32x256xf32, #tpu.memory_space<vmem>>, vector<1x32x256xf32>
    %384 = vector.shape_cast %383 : vector<1x32x256xf32> to vector<32x256xf32>
    %385 = vector.broadcast %382 : vector<1x256xf32> to vector<32x256xf32>
    %386 = arith.mulf %385, %384 : vector<32x256xf32>
    %387 = arith.addf %381, %386 : vector<32x256xf32>
    %388 = vector.extract_strided_slice %358 {offsets = [5, 0], sizes = [1, 256], strides = [1, 1]} : vector<8x256xf32> to vector<1x256xf32>
    %c5_207 = arith.constant 5 : index
    %c0_208 = arith.constant 0 : index
    %c0_209 = arith.constant 0 : index
    %389 = vector.load %arg2[%c5_207, %c0_208, %c0_209] : memref<8x32x256xf32, #tpu.memory_space<vmem>>, vector<1x32x256xf32>
    %390 = vector.shape_cast %389 : vector<1x32x256xf32> to vector<32x256xf32>
    %391 = vector.broadcast %388 : vector<1x256xf32> to vector<32x256xf32>
    %392 = arith.mulf %391, %390 : vector<32x256xf32>
    %393 = arith.addf %387, %392 : vector<32x256xf32>
    %394 = vector.extract_strided_slice %358 {offsets = [6, 0], sizes = [1, 256], strides = [1, 1]} : vector<8x256xf32> to vector<1x256xf32>
    %c6_210 = arith.constant 6 : index
    %c0_211 = arith.constant 0 : index
    %c0_212 = arith.constant 0 : index
    %395 = vector.load %arg2[%c6_210, %c0_211, %c0_212] : memref<8x32x256xf32, #tpu.memory_space<vmem>>, vector<1x32x256xf32>
    %396 = vector.shape_cast %395 : vector<1x32x256xf32> to vector<32x256xf32>
    %397 = vector.broadcast %394 : vector<1x256xf32> to vector<32x256xf32>
    %398 = arith.mulf %397, %396 : vector<32x256xf32>
    %399 = arith.addf %393, %398 : vector<32x256xf32>
    %400 = vector.extract_strided_slice %358 {offsets = [7, 0], sizes = [1, 256], strides = [1, 1]} : vector<8x256xf32> to vector<1x256xf32>
    %c7_213 = arith.constant 7 : index
    %c0_214 = arith.constant 0 : index
    %c0_215 = arith.constant 0 : index
    %401 = vector.load %arg2[%c7_213, %c0_214, %c0_215] : memref<8x32x256xf32, #tpu.memory_space<vmem>>, vector<1x32x256xf32>
    %402 = vector.shape_cast %401 : vector<1x32x256xf32> to vector<32x256xf32>
    %403 = vector.broadcast %400 : vector<1x256xf32> to vector<32x256xf32>
    %404 = arith.mulf %403, %402 : vector<32x256xf32>
    %405 = arith.addf %399, %404 : vector<32x256xf32>
    %406 = arith.truncf %405 : vector<32x256xf32> to vector<32x256xbf16>
    %c224 = arith.constant 224 : index
    %c0_216 = arith.constant 0 : index
    %407 = vector.load %arg7[%c224, %c0_216] : memref<480x256xbf16, #tpu.memory_space<vmem>>, vector<32x256xbf16>
    tpu.vector_store %arg7[%c224, %c0_216], %406 {strides = array<i32>} : memref<480x256xbf16, #tpu.memory_space<vmem>>, vector<32x256xbf16>,
    %c8 = arith.constant 8 : index
    %c0_217 = arith.constant 0 : index
    %c0_218 = arith.constant 0 : index
    %408 = vector.load %arg1[%c8, %c0_217, %c0_218] : memref<15x8x256xf32, #tpu.memory_space<vmem>>, vector<1x8x256xf32>
    %409 = vector.shape_cast %408 : vector<1x8x256xf32> to vector<8x256xf32>
    %410 = vector.extract_strided_slice %409 {offsets = [0, 0], sizes = [1, 256], strides = [1, 1]} : vector<8x256xf32> to vector<1x256xf32>
    %c0_219 = arith.constant 0 : index
    %c0_220 = arith.constant 0 : index
    %c0_221 = arith.constant 0 : index
    %411 = vector.load %arg2[%c0_219, %c0_220, %c0_221] : memref<8x32x256xf32, #tpu.memory_space<vmem>>, vector<1x32x256xf32>
    %412 = vector.shape_cast %411 : vector<1x32x256xf32> to vector<32x256xf32>
    %413 = vector.broadcast %410 : vector<1x256xf32> to vector<32x256xf32>
    %414 = arith.mulf %413, %412 : vector<32x256xf32>
    %415 = vector.extract_strided_slice %409 {offsets = [1, 0], sizes = [1, 256], strides = [1, 1]} : vector<8x256xf32> to vector<1x256xf32>
    %c1_222 = arith.constant 1 : index
    %c0_223 = arith.constant 0 : index
    %c0_224 = arith.constant 0 : index
    %416 = vector.load %arg2[%c1_222, %c0_223, %c0_224] : memref<8x32x256xf32, #tpu.memory_space<vmem>>, vector<1x32x256xf32>
    %417 = vector.shape_cast %416 : vector<1x32x256xf32> to vector<32x256xf32>
    %418 = vector.broadcast %415 : vector<1x256xf32> to vector<32x256xf32>
    %419 = arith.mulf %418, %417 : vector<32x256xf32>
    %420 = arith.addf %414, %419 : vector<32x256xf32>
    %421 = vector.extract_strided_slice %409 {offsets = [2, 0], sizes = [1, 256], strides = [1, 1]} : vector<8x256xf32> to vector<1x256xf32>
    %c2_225 = arith.constant 2 : index
    %c0_226 = arith.constant 0 : index
    %c0_227 = arith.constant 0 : index
    %422 = vector.load %arg2[%c2_225, %c0_226, %c0_227] : memref<8x32x256xf32, #tpu.memory_space<vmem>>, vector<1x32x256xf32>
    %423 = vector.shape_cast %422 : vector<1x32x256xf32> to vector<32x256xf32>
    %424 = vector.broadcast %421 : vector<1x256xf32> to vector<32x256xf32>
    %425 = arith.mulf %424, %423 : vector<32x256xf32>
    %426 = arith.addf %420, %425 : vector<32x256xf32>
    %427 = vector.extract_strided_slice %409 {offsets = [3, 0], sizes = [1, 256], strides = [1, 1]} : vector<8x256xf32> to vector<1x256xf32>
    %c3_228 = arith.constant 3 : index
    %c0_229 = arith.constant 0 : index
    %c0_230 = arith.constant 0 : index
    %428 = vector.load %arg2[%c3_228, %c0_229, %c0_230] : memref<8x32x256xf32, #tpu.memory_space<vmem>>, vector<1x32x256xf32>
    %429 = vector.shape_cast %428 : vector<1x32x256xf32> to vector<32x256xf32>
    %430 = vector.broadcast %427 : vector<1x256xf32> to vector<32x256xf32>
    %431 = arith.mulf %430, %429 : vector<32x256xf32>
    %432 = arith.addf %426, %431 : vector<32x256xf32>
    %433 = vector.extract_strided_slice %409 {offsets = [4, 0], sizes = [1, 256], strides = [1, 1]} : vector<8x256xf32> to vector<1x256xf32>
    %c4_231 = arith.constant 4 : index
    %c0_232 = arith.constant 0 : index
    %c0_233 = arith.constant 0 : index
    %434 = vector.load %arg2[%c4_231, %c0_232, %c0_233] : memref<8x32x256xf32, #tpu.memory_space<vmem>>, vector<1x32x256xf32>
    %435 = vector.shape_cast %434 : vector<1x32x256xf32> to vector<32x256xf32>
    %436 = vector.broadcast %433 : vector<1x256xf32> to vector<32x256xf32>
    %437 = arith.mulf %436, %435 : vector<32x256xf32>
    %438 = arith.addf %432, %437 : vector<32x256xf32>
    %439 = vector.extract_strided_slice %409 {offsets = [5, 0], sizes = [1, 256], strides = [1, 1]} : vector<8x256xf32> to vector<1x256xf32>
    %c5_234 = arith.constant 5 : index
    %c0_235 = arith.constant 0 : index
    %c0_236 = arith.constant 0 : index
    %440 = vector.load %arg2[%c5_234, %c0_235, %c0_236] : memref<8x32x256xf32, #tpu.memory_space<vmem>>, vector<1x32x256xf32>
    %441 = vector.shape_cast %440 : vector<1x32x256xf32> to vector<32x256xf32>
    %442 = vector.broadcast %439 : vector<1x256xf32> to vector<32x256xf32>
    %443 = arith.mulf %442, %441 : vector<32x256xf32>
    %444 = arith.addf %438, %443 : vector<32x256xf32>
    %445 = vector.extract_strided_slice %409 {offsets = [6, 0], sizes = [1, 256], strides = [1, 1]} : vector<8x256xf32> to vector<1x256xf32>
    %c6_237 = arith.constant 6 : index
    %c0_238 = arith.constant 0 : index
    %c0_239 = arith.constant 0 : index
    %446 = vector.load %arg2[%c6_237, %c0_238, %c0_239] : memref<8x32x256xf32, #tpu.memory_space<vmem>>, vector<1x32x256xf32>
    %447 = vector.shape_cast %446 : vector<1x32x256xf32> to vector<32x256xf32>
    %448 = vector.broadcast %445 : vector<1x256xf32> to vector<32x256xf32>
    %449 = arith.mulf %448, %447 : vector<32x256xf32>
    %450 = arith.addf %444, %449 : vector<32x256xf32>
    %451 = vector.extract_strided_slice %409 {offsets = [7, 0], sizes = [1, 256], strides = [1, 1]} : vector<8x256xf32> to vector<1x256xf32>
    %c7_240 = arith.constant 7 : index
    %c0_241 = arith.constant 0 : index
    %c0_242 = arith.constant 0 : index
    %452 = vector.load %arg2[%c7_240, %c0_241, %c0_242] : memref<8x32x256xf32, #tpu.memory_space<vmem>>, vector<1x32x256xf32>
    %453 = vector.shape_cast %452 : vector<1x32x256xf32> to vector<32x256xf32>
    %454 = vector.broadcast %451 : vector<1x256xf32> to vector<32x256xf32>
    %455 = arith.mulf %454, %453 : vector<32x256xf32>
    %456 = arith.addf %450, %455 : vector<32x256xf32>
    %457 = arith.truncf %456 : vector<32x256xf32> to vector<32x256xbf16>
    %c256 = arith.constant 256 : index
    %c0_243 = arith.constant 0 : index
    %458 = vector.load %arg7[%c256, %c0_243] : memref<480x256xbf16, #tpu.memory_space<vmem>>, vector<32x256xbf16>
    tpu.vector_store %arg7[%c256, %c0_243], %457 {strides = array<i32>} : memref<480x256xbf16, #tpu.memory_space<vmem>>, vector<32x256xbf16>,
    %c9 = arith.constant 9 : index
    %c0_244 = arith.constant 0 : index
    %c0_245 = arith.constant 0 : index
    %459 = vector.load %arg1[%c9, %c0_244, %c0_245] : memref<15x8x256xf32, #tpu.memory_space<vmem>>, vector<1x8x256xf32>
    %460 = vector.shape_cast %459 : vector<1x8x256xf32> to vector<8x256xf32>
    %461 = vector.extract_strided_slice %460 {offsets = [0, 0], sizes = [1, 256], strides = [1, 1]} : vector<8x256xf32> to vector<1x256xf32>
    %c0_246 = arith.constant 0 : index
    %c0_247 = arith.constant 0 : index
    %c0_248 = arith.constant 0 : index
    %462 = vector.load %arg2[%c0_246, %c0_247, %c0_248] : memref<8x32x256xf32, #tpu.memory_space<vmem>>, vector<1x32x256xf32>
    %463 = vector.shape_cast %462 : vector<1x32x256xf32> to vector<32x256xf32>
    %464 = vector.broadcast %461 : vector<1x256xf32> to vector<32x256xf32>
    %465 = arith.mulf %464, %463 : vector<32x256xf32>
    %466 = vector.extract_strided_slice %460 {offsets = [1, 0], sizes = [1, 256], strides = [1, 1]} : vector<8x256xf32> to vector<1x256xf32>
    %c1_249 = arith.constant 1 : index
    %c0_250 = arith.constant 0 : index
    %c0_251 = arith.constant 0 : index
    %467 = vector.load %arg2[%c1_249, %c0_250, %c0_251] : memref<8x32x256xf32, #tpu.memory_space<vmem>>, vector<1x32x256xf32>
    %468 = vector.shape_cast %467 : vector<1x32x256xf32> to vector<32x256xf32>
    %469 = vector.broadcast %466 : vector<1x256xf32> to vector<32x256xf32>
    %470 = arith.mulf %469, %468 : vector<32x256xf32>
    %471 = arith.addf %465, %470 : vector<32x256xf32>
    %472 = vector.extract_strided_slice %460 {offsets = [2, 0], sizes = [1, 256], strides = [1, 1]} : vector<8x256xf32> to vector<1x256xf32>
    %c2_252 = arith.constant 2 : index
    %c0_253 = arith.constant 0 : index
    %c0_254 = arith.constant 0 : index
    %473 = vector.load %arg2[%c2_252, %c0_253, %c0_254] : memref<8x32x256xf32, #tpu.memory_space<vmem>>, vector<1x32x256xf32>
    %474 = vector.shape_cast %473 : vector<1x32x256xf32> to vector<32x256xf32>
    %475 = vector.broadcast %472 : vector<1x256xf32> to vector<32x256xf32>
    %476 = arith.mulf %475, %474 : vector<32x256xf32>
    %477 = arith.addf %471, %476 : vector<32x256xf32>
    %478 = vector.extract_strided_slice %460 {offsets = [3, 0], sizes = [1, 256], strides = [1, 1]} : vector<8x256xf32> to vector<1x256xf32>
    %c3_255 = arith.constant 3 : index
    %c0_256 = arith.constant 0 : index
    %c0_257 = arith.constant 0 : index
    %479 = vector.load %arg2[%c3_255, %c0_256, %c0_257] : memref<8x32x256xf32, #tpu.memory_space<vmem>>, vector<1x32x256xf32>
    %480 = vector.shape_cast %479 : vector<1x32x256xf32> to vector<32x256xf32>
    %481 = vector.broadcast %478 : vector<1x256xf32> to vector<32x256xf32>
    %482 = arith.mulf %481, %480 : vector<32x256xf32>
    %483 = arith.addf %477, %482 : vector<32x256xf32>
    %484 = vector.extract_strided_slice %460 {offsets = [4, 0], sizes = [1, 256], strides = [1, 1]} : vector<8x256xf32> to vector<1x256xf32>
    %c4_258 = arith.constant 4 : index
    %c0_259 = arith.constant 0 : index
    %c0_260 = arith.constant 0 : index
    %485 = vector.load %arg2[%c4_258, %c0_259, %c0_260] : memref<8x32x256xf32, #tpu.memory_space<vmem>>, vector<1x32x256xf32>
    %486 = vector.shape_cast %485 : vector<1x32x256xf32> to vector<32x256xf32>
    %487 = vector.broadcast %484 : vector<1x256xf32> to vector<32x256xf32>
    %488 = arith.mulf %487, %486 : vector<32x256xf32>
    %489 = arith.addf %483, %488 : vector<32x256xf32>
    %490 = vector.extract_strided_slice %460 {offsets = [5, 0], sizes = [1, 256], strides = [1, 1]} : vector<8x256xf32> to vector<1x256xf32>
    %c5_261 = arith.constant 5 : index
    %c0_262 = arith.constant 0 : index
    %c0_263 = arith.constant 0 : index
    %491 = vector.load %arg2[%c5_261, %c0_262, %c0_263] : memref<8x32x256xf32, #tpu.memory_space<vmem>>, vector<1x32x256xf32>
    %492 = vector.shape_cast %491 : vector<1x32x256xf32> to vector<32x256xf32>
    %493 = vector.broadcast %490 : vector<1x256xf32> to vector<32x256xf32>
    %494 = arith.mulf %493, %492 : vector<32x256xf32>
    %495 = arith.addf %489, %494 : vector<32x256xf32>
    %496 = vector.extract_strided_slice %460 {offsets = [6, 0], sizes = [1, 256], strides = [1, 1]} : vector<8x256xf32> to vector<1x256xf32>
    %c6_264 = arith.constant 6 : index
    %c0_265 = arith.constant 0 : index
    %c0_266 = arith.constant 0 : index
    %497 = vector.load %arg2[%c6_264, %c0_265, %c0_266] : memref<8x32x256xf32, #tpu.memory_space<vmem>>, vector<1x32x256xf32>
    %498 = vector.shape_cast %497 : vector<1x32x256xf32> to vector<32x256xf32>
    %499 = vector.broadcast %496 : vector<1x256xf32> to vector<32x256xf32>
    %500 = arith.mulf %499, %498 : vector<32x256xf32>
    %501 = arith.addf %495, %500 : vector<32x256xf32>
    %502 = vector.extract_strided_slice %460 {offsets = [7, 0], sizes = [1, 256], strides = [1, 1]} : vector<8x256xf32> to vector<1x256xf32>
    %c7_267 = arith.constant 7 : index
    %c0_268 = arith.constant 0 : index
    %c0_269 = arith.constant 0 : index
    %503 = vector.load %arg2[%c7_267, %c0_268, %c0_269] : memref<8x32x256xf32, #tpu.memory_space<vmem>>, vector<1x32x256xf32>
    %504 = vector.shape_cast %503 : vector<1x32x256xf32> to vector<32x256xf32>
    %505 = vector.broadcast %502 : vector<1x256xf32> to vector<32x256xf32>
    %506 = arith.mulf %505, %504 : vector<32x256xf32>
    %507 = arith.addf %501, %506 : vector<32x256xf32>
    %508 = arith.truncf %507 : vector<32x256xf32> to vector<32x256xbf16>
    %c288 = arith.constant 288 : index
    %c0_270 = arith.constant 0 : index
    %509 = vector.load %arg7[%c288, %c0_270] : memref<480x256xbf16, #tpu.memory_space<vmem>>, vector<32x256xbf16>
    tpu.vector_store %arg7[%c288, %c0_270], %508 {strides = array<i32>} : memref<480x256xbf16, #tpu.memory_space<vmem>>, vector<32x256xbf16>,
    %c10 = arith.constant 10 : index
    %c0_271 = arith.constant 0 : index
    %c0_272 = arith.constant 0 : index
    %510 = vector.load %arg1[%c10, %c0_271, %c0_272] : memref<15x8x256xf32, #tpu.memory_space<vmem>>, vector<1x8x256xf32>
    %511 = vector.shape_cast %510 : vector<1x8x256xf32> to vector<8x256xf32>
    %512 = vector.extract_strided_slice %511 {offsets = [0, 0], sizes = [1, 256], strides = [1, 1]} : vector<8x256xf32> to vector<1x256xf32>
    %c0_273 = arith.constant 0 : index
    %c0_274 = arith.constant 0 : index
    %c0_275 = arith.constant 0 : index
    %513 = vector.load %arg2[%c0_273, %c0_274, %c0_275] : memref<8x32x256xf32, #tpu.memory_space<vmem>>, vector<1x32x256xf32>
    %514 = vector.shape_cast %513 : vector<1x32x256xf32> to vector<32x256xf32>
    %515 = vector.broadcast %512 : vector<1x256xf32> to vector<32x256xf32>
    %516 = arith.mulf %515, %514 : vector<32x256xf32>
    %517 = vector.extract_strided_slice %511 {offsets = [1, 0], sizes = [1, 256], strides = [1, 1]} : vector<8x256xf32> to vector<1x256xf32>
    %c1_276 = arith.constant 1 : index
    %c0_277 = arith.constant 0 : index
    %c0_278 = arith.constant 0 : index
    %518 = vector.load %arg2[%c1_276, %c0_277, %c0_278] : memref<8x32x256xf32, #tpu.memory_space<vmem>>, vector<1x32x256xf32>
    %519 = vector.shape_cast %518 : vector<1x32x256xf32> to vector<32x256xf32>
    %520 = vector.broadcast %517 : vector<1x256xf32> to vector<32x256xf32>
    %521 = arith.mulf %520, %519 : vector<32x256xf32>
    %522 = arith.addf %516, %521 : vector<32x256xf32>
    %523 = vector.extract_strided_slice %511 {offsets = [2, 0], sizes = [1, 256], strides = [1, 1]} : vector<8x256xf32> to vector<1x256xf32>
    %c2_279 = arith.constant 2 : index
    %c0_280 = arith.constant 0 : index
    %c0_281 = arith.constant 0 : index
    %524 = vector.load %arg2[%c2_279, %c0_280, %c0_281] : memref<8x32x256xf32, #tpu.memory_space<vmem>>, vector<1x32x256xf32>
    %525 = vector.shape_cast %524 : vector<1x32x256xf32> to vector<32x256xf32>
    %526 = vector.broadcast %523 : vector<1x256xf32> to vector<32x256xf32>
    %527 = arith.mulf %526, %525 : vector<32x256xf32>
    %528 = arith.addf %522, %527 : vector<32x256xf32>
    %529 = vector.extract_strided_slice %511 {offsets = [3, 0], sizes = [1, 256], strides = [1, 1]} : vector<8x256xf32> to vector<1x256xf32>
    %c3_282 = arith.constant 3 : index
    %c0_283 = arith.constant 0 : index
    %c0_284 = arith.constant 0 : index
    %530 = vector.load %arg2[%c3_282, %c0_283, %c0_284] : memref<8x32x256xf32, #tpu.memory_space<vmem>>, vector<1x32x256xf32>
    %531 = vector.shape_cast %530 : vector<1x32x256xf32> to vector<32x256xf32>
    %532 = vector.broadcast %529 : vector<1x256xf32> to vector<32x256xf32>
    %533 = arith.mulf %532, %531 : vector<32x256xf32>
    %534 = arith.addf %528, %533 : vector<32x256xf32>
    %535 = vector.extract_strided_slice %511 {offsets = [4, 0], sizes = [1, 256], strides = [1, 1]} : vector<8x256xf32> to vector<1x256xf32>
    %c4_285 = arith.constant 4 : index
    %c0_286 = arith.constant 0 : index
    %c0_287 = arith.constant 0 : index
    %536 = vector.load %arg2[%c4_285, %c0_286, %c0_287] : memref<8x32x256xf32, #tpu.memory_space<vmem>>, vector<1x32x256xf32>
    %537 = vector.shape_cast %536 : vector<1x32x256xf32> to vector<32x256xf32>
    %538 = vector.broadcast %535 : vector<1x256xf32> to vector<32x256xf32>
    %539 = arith.mulf %538, %537 : vector<32x256xf32>
    %540 = arith.addf %534, %539 : vector<32x256xf32>
    %541 = vector.extract_strided_slice %511 {offsets = [5, 0], sizes = [1, 256], strides = [1, 1]} : vector<8x256xf32> to vector<1x256xf32>
    %c5_288 = arith.constant 5 : index
    %c0_289 = arith.constant 0 : index
    %c0_290 = arith.constant 0 : index
    %542 = vector.load %arg2[%c5_288, %c0_289, %c0_290] : memref<8x32x256xf32, #tpu.memory_space<vmem>>, vector<1x32x256xf32>
    %543 = vector.shape_cast %542 : vector<1x32x256xf32> to vector<32x256xf32>
    %544 = vector.broadcast %541 : vector<1x256xf32> to vector<32x256xf32>
    %545 = arith.mulf %544, %543 : vector<32x256xf32>
    %546 = arith.addf %540, %545 : vector<32x256xf32>
    %547 = vector.extract_strided_slice %511 {offsets = [6, 0], sizes = [1, 256], strides = [1, 1]} : vector<8x256xf32> to vector<1x256xf32>
    %c6_291 = arith.constant 6 : index
    %c0_292 = arith.constant 0 : index
    %c0_293 = arith.constant 0 : index
    %548 = vector.load %arg2[%c6_291, %c0_292, %c0_293] : memref<8x32x256xf32, #tpu.memory_space<vmem>>, vector<1x32x256xf32>
    %549 = vector.shape_cast %548 : vector<1x32x256xf32> to vector<32x256xf32>
    %550 = vector.broadcast %547 : vector<1x256xf32> to vector<32x256xf32>
    %551 = arith.mulf %550, %549 : vector<32x256xf32>
    %552 = arith.addf %546, %551 : vector<32x256xf32>
    %553 = vector.extract_strided_slice %511 {offsets = [7, 0], sizes = [1, 256], strides = [1, 1]} : vector<8x256xf32> to vector<1x256xf32>
    %c7_294 = arith.constant 7 : index
    %c0_295 = arith.constant 0 : index
    %c0_296 = arith.constant 0 : index
    %554 = vector.load %arg2[%c7_294, %c0_295, %c0_296] : memref<8x32x256xf32, #tpu.memory_space<vmem>>, vector<1x32x256xf32>
    %555 = vector.shape_cast %554 : vector<1x32x256xf32> to vector<32x256xf32>
    %556 = vector.broadcast %553 : vector<1x256xf32> to vector<32x256xf32>
    %557 = arith.mulf %556, %555 : vector<32x256xf32>
    %558 = arith.addf %552, %557 : vector<32x256xf32>
    %559 = arith.truncf %558 : vector<32x256xf32> to vector<32x256xbf16>
    %c320 = arith.constant 320 : index
    %c0_297 = arith.constant 0 : index
    %560 = vector.load %arg7[%c320, %c0_297] : memref<480x256xbf16, #tpu.memory_space<vmem>>, vector<32x256xbf16>
    tpu.vector_store %arg7[%c320, %c0_297], %559 {strides = array<i32>} : memref<480x256xbf16, #tpu.memory_space<vmem>>, vector<32x256xbf16>,
    %c11 = arith.constant 11 : index
    %c0_298 = arith.constant 0 : index
    %c0_299 = arith.constant 0 : index
    %561 = vector.load %arg1[%c11, %c0_298, %c0_299] : memref<15x8x256xf32, #tpu.memory_space<vmem>>, vector<1x8x256xf32>
    %562 = vector.shape_cast %561 : vector<1x8x256xf32> to vector<8x256xf32>
    %563 = vector.extract_strided_slice %562 {offsets = [0, 0], sizes = [1, 256], strides = [1, 1]} : vector<8x256xf32> to vector<1x256xf32>
    %c0_300 = arith.constant 0 : index
    %c0_301 = arith.constant 0 : index
    %c0_302 = arith.constant 0 : index
    %564 = vector.load %arg2[%c0_300, %c0_301, %c0_302] : memref<8x32x256xf32, #tpu.memory_space<vmem>>, vector<1x32x256xf32>
    %565 = vector.shape_cast %564 : vector<1x32x256xf32> to vector<32x256xf32>
    %566 = vector.broadcast %563 : vector<1x256xf32> to vector<32x256xf32>
    %567 = arith.mulf %566, %565 : vector<32x256xf32>
    %568 = vector.extract_strided_slice %562 {offsets = [1, 0], sizes = [1, 256], strides = [1, 1]} : vector<8x256xf32> to vector<1x256xf32>
    %c1_303 = arith.constant 1 : index
    %c0_304 = arith.constant 0 : index
    %c0_305 = arith.constant 0 : index
    %569 = vector.load %arg2[%c1_303, %c0_304, %c0_305] : memref<8x32x256xf32, #tpu.memory_space<vmem>>, vector<1x32x256xf32>
    %570 = vector.shape_cast %569 : vector<1x32x256xf32> to vector<32x256xf32>
    %571 = vector.broadcast %568 : vector<1x256xf32> to vector<32x256xf32>
    %572 = arith.mulf %571, %570 : vector<32x256xf32>
    %573 = arith.addf %567, %572 : vector<32x256xf32>
    %574 = vector.extract_strided_slice %562 {offsets = [2, 0], sizes = [1, 256], strides = [1, 1]} : vector<8x256xf32> to vector<1x256xf32>
    %c2_306 = arith.constant 2 : index
    %c0_307 = arith.constant 0 : index
    %c0_308 = arith.constant 0 : index
    %575 = vector.load %arg2[%c2_306, %c0_307, %c0_308] : memref<8x32x256xf32, #tpu.memory_space<vmem>>, vector<1x32x256xf32>
    %576 = vector.shape_cast %575 : vector<1x32x256xf32> to vector<32x256xf32>
    %577 = vector.broadcast %574 : vector<1x256xf32> to vector<32x256xf32>
    %578 = arith.mulf %577, %576 : vector<32x256xf32>
    %579 = arith.addf %573, %578 : vector<32x256xf32>
    %580 = vector.extract_strided_slice %562 {offsets = [3, 0], sizes = [1, 256], strides = [1, 1]} : vector<8x256xf32> to vector<1x256xf32>
    %c3_309 = arith.constant 3 : index
    %c0_310 = arith.constant 0 : index
    %c0_311 = arith.constant 0 : index
    %581 = vector.load %arg2[%c3_309, %c0_310, %c0_311] : memref<8x32x256xf32, #tpu.memory_space<vmem>>, vector<1x32x256xf32>
    %582 = vector.shape_cast %581 : vector<1x32x256xf32> to vector<32x256xf32>
    %583 = vector.broadcast %580 : vector<1x256xf32> to vector<32x256xf32>
    %584 = arith.mulf %583, %582 : vector<32x256xf32>
    %585 = arith.addf %579, %584 : vector<32x256xf32>
    %586 = vector.extract_strided_slice %562 {offsets = [4, 0], sizes = [1, 256], strides = [1, 1]} : vector<8x256xf32> to vector<1x256xf32>
    %c4_312 = arith.constant 4 : index
    %c0_313 = arith.constant 0 : index
    %c0_314 = arith.constant 0 : index
    %587 = vector.load %arg2[%c4_312, %c0_313, %c0_314] : memref<8x32x256xf32, #tpu.memory_space<vmem>>, vector<1x32x256xf32>
    %588 = vector.shape_cast %587 : vector<1x32x256xf32> to vector<32x256xf32>
    %589 = vector.broadcast %586 : vector<1x256xf32> to vector<32x256xf32>
    %590 = arith.mulf %589, %588 : vector<32x256xf32>
    %591 = arith.addf %585, %590 : vector<32x256xf32>
    %592 = vector.extract_strided_slice %562 {offsets = [5, 0], sizes = [1, 256], strides = [1, 1]} : vector<8x256xf32> to vector<1x256xf32>
    %c5_315 = arith.constant 5 : index
    %c0_316 = arith.constant 0 : index
    %c0_317 = arith.constant 0 : index
    %593 = vector.load %arg2[%c5_315, %c0_316, %c0_317] : memref<8x32x256xf32, #tpu.memory_space<vmem>>, vector<1x32x256xf32>
    %594 = vector.shape_cast %593 : vector<1x32x256xf32> to vector<32x256xf32>
    %595 = vector.broadcast %592 : vector<1x256xf32> to vector<32x256xf32>
    %596 = arith.mulf %595, %594 : vector<32x256xf32>
    %597 = arith.addf %591, %596 : vector<32x256xf32>
    %598 = vector.extract_strided_slice %562 {offsets = [6, 0], sizes = [1, 256], strides = [1, 1]} : vector<8x256xf32> to vector<1x256xf32>
    %c6_318 = arith.constant 6 : index
    %c0_319 = arith.constant 0 : index
    %c0_320 = arith.constant 0 : index
    %599 = vector.load %arg2[%c6_318, %c0_319, %c0_320] : memref<8x32x256xf32, #tpu.memory_space<vmem>>, vector<1x32x256xf32>
    %600 = vector.shape_cast %599 : vector<1x32x256xf32> to vector<32x256xf32>
    %601 = vector.broadcast %598 : vector<1x256xf32> to vector<32x256xf32>
    %602 = arith.mulf %601, %600 : vector<32x256xf32>
    %603 = arith.addf %597, %602 : vector<32x256xf32>
    %604 = vector.extract_strided_slice %562 {offsets = [7, 0], sizes = [1, 256], strides = [1, 1]} : vector<8x256xf32> to vector<1x256xf32>
    %c7_321 = arith.constant 7 : index
    %c0_322 = arith.constant 0 : index
    %c0_323 = arith.constant 0 : index
    %605 = vector.load %arg2[%c7_321, %c0_322, %c0_323] : memref<8x32x256xf32, #tpu.memory_space<vmem>>, vector<1x32x256xf32>
    %606 = vector.shape_cast %605 : vector<1x32x256xf32> to vector<32x256xf32>
    %607 = vector.broadcast %604 : vector<1x256xf32> to vector<32x256xf32>
    %608 = arith.mulf %607, %606 : vector<32x256xf32>
    %609 = arith.addf %603, %608 : vector<32x256xf32>
    %610 = arith.truncf %609 : vector<32x256xf32> to vector<32x256xbf16>
    %c352 = arith.constant 352 : index
    %c0_324 = arith.constant 0 : index
    %611 = vector.load %arg7[%c352, %c0_324] : memref<480x256xbf16, #tpu.memory_space<vmem>>, vector<32x256xbf16>
    tpu.vector_store %arg7[%c352, %c0_324], %610 {strides = array<i32>} : memref<480x256xbf16, #tpu.memory_space<vmem>>, vector<32x256xbf16>,
    %c12 = arith.constant 12 : index
    %c0_325 = arith.constant 0 : index
    %c0_326 = arith.constant 0 : index
    %612 = vector.load %arg1[%c12, %c0_325, %c0_326] : memref<15x8x256xf32, #tpu.memory_space<vmem>>, vector<1x8x256xf32>
    %613 = vector.shape_cast %612 : vector<1x8x256xf32> to vector<8x256xf32>
    %614 = vector.extract_strided_slice %613 {offsets = [0, 0], sizes = [1, 256], strides = [1, 1]} : vector<8x256xf32> to vector<1x256xf32>
    %c0_327 = arith.constant 0 : index
    %c0_328 = arith.constant 0 : index
    %c0_329 = arith.constant 0 : index
    %615 = vector.load %arg2[%c0_327, %c0_328, %c0_329] : memref<8x32x256xf32, #tpu.memory_space<vmem>>, vector<1x32x256xf32>
    %616 = vector.shape_cast %615 : vector<1x32x256xf32> to vector<32x256xf32>
    %617 = vector.broadcast %614 : vector<1x256xf32> to vector<32x256xf32>
    %618 = arith.mulf %617, %616 : vector<32x256xf32>
    %619 = vector.extract_strided_slice %613 {offsets = [1, 0], sizes = [1, 256], strides = [1, 1]} : vector<8x256xf32> to vector<1x256xf32>
    %c1_330 = arith.constant 1 : index
    %c0_331 = arith.constant 0 : index
    %c0_332 = arith.constant 0 : index
    %620 = vector.load %arg2[%c1_330, %c0_331, %c0_332] : memref<8x32x256xf32, #tpu.memory_space<vmem>>, vector<1x32x256xf32>
    %621 = vector.shape_cast %620 : vector<1x32x256xf32> to vector<32x256xf32>
    %622 = vector.broadcast %619 : vector<1x256xf32> to vector<32x256xf32>
    %623 = arith.mulf %622, %621 : vector<32x256xf32>
    %624 = arith.addf %618, %623 : vector<32x256xf32>
    %625 = vector.extract_strided_slice %613 {offsets = [2, 0], sizes = [1, 256], strides = [1, 1]} : vector<8x256xf32> to vector<1x256xf32>
    %c2_333 = arith.constant 2 : index
    %c0_334 = arith.constant 0 : index
    %c0_335 = arith.constant 0 : index
    %626 = vector.load %arg2[%c2_333, %c0_334, %c0_335] : memref<8x32x256xf32, #tpu.memory_space<vmem>>, vector<1x32x256xf32>
    %627 = vector.shape_cast %626 : vector<1x32x256xf32> to vector<32x256xf32>
    %628 = vector.broadcast %625 : vector<1x256xf32> to vector<32x256xf32>
    %629 = arith.mulf %628, %627 : vector<32x256xf32>
    %630 = arith.addf %624, %629 : vector<32x256xf32>
    %631 = vector.extract_strided_slice %613 {offsets = [3, 0], sizes = [1, 256], strides = [1, 1]} : vector<8x256xf32> to vector<1x256xf32>
    %c3_336 = arith.constant 3 : index
    %c0_337 = arith.constant 0 : index
    %c0_338 = arith.constant 0 : index
    %632 = vector.load %arg2[%c3_336, %c0_337, %c0_338] : memref<8x32x256xf32, #tpu.memory_space<vmem>>, vector<1x32x256xf32>
    %633 = vector.shape_cast %632 : vector<1x32x256xf32> to vector<32x256xf32>
    %634 = vector.broadcast %631 : vector<1x256xf32> to vector<32x256xf32>
    %635 = arith.mulf %634, %633 : vector<32x256xf32>
    %636 = arith.addf %630, %635 : vector<32x256xf32>
    %637 = vector.extract_strided_slice %613 {offsets = [4, 0], sizes = [1, 256], strides = [1, 1]} : vector<8x256xf32> to vector<1x256xf32>
    %c4_339 = arith.constant 4 : index
    %c0_340 = arith.constant 0 : index
    %c0_341 = arith.constant 0 : index
    %638 = vector.load %arg2[%c4_339, %c0_340, %c0_341] : memref<8x32x256xf32, #tpu.memory_space<vmem>>, vector<1x32x256xf32>
    %639 = vector.shape_cast %638 : vector<1x32x256xf32> to vector<32x256xf32>
    %640 = vector.broadcast %637 : vector<1x256xf32> to vector<32x256xf32>
    %641 = arith.mulf %640, %639 : vector<32x256xf32>
    %642 = arith.addf %636, %641 : vector<32x256xf32>
    %643 = vector.extract_strided_slice %613 {offsets = [5, 0], sizes = [1, 256], strides = [1, 1]} : vector<8x256xf32> to vector<1x256xf32>
    %c5_342 = arith.constant 5 : index
    %c0_343 = arith.constant 0 : index
    %c0_344 = arith.constant 0 : index
    %644 = vector.load %arg2[%c5_342, %c0_343, %c0_344] : memref<8x32x256xf32, #tpu.memory_space<vmem>>, vector<1x32x256xf32>
    %645 = vector.shape_cast %644 : vector<1x32x256xf32> to vector<32x256xf32>
    %646 = vector.broadcast %643 : vector<1x256xf32> to vector<32x256xf32>
    %647 = arith.mulf %646, %645 : vector<32x256xf32>
    %648 = arith.addf %642, %647 : vector<32x256xf32>
    %649 = vector.extract_strided_slice %613 {offsets = [6, 0], sizes = [1, 256], strides = [1, 1]} : vector<8x256xf32> to vector<1x256xf32>
    %c6_345 = arith.constant 6 : index
    %c0_346 = arith.constant 0 : index
    %c0_347 = arith.constant 0 : index
    %650 = vector.load %arg2[%c6_345, %c0_346, %c0_347] : memref<8x32x256xf32, #tpu.memory_space<vmem>>, vector<1x32x256xf32>
    %651 = vector.shape_cast %650 : vector<1x32x256xf32> to vector<32x256xf32>
    %652 = vector.broadcast %649 : vector<1x256xf32> to vector<32x256xf32>
    %653 = arith.mulf %652, %651 : vector<32x256xf32>
    %654 = arith.addf %648, %653 : vector<32x256xf32>
    %655 = vector.extract_strided_slice %613 {offsets = [7, 0], sizes = [1, 256], strides = [1, 1]} : vector<8x256xf32> to vector<1x256xf32>
    %c7_348 = arith.constant 7 : index
    %c0_349 = arith.constant 0 : index
    %c0_350 = arith.constant 0 : index
    %656 = vector.load %arg2[%c7_348, %c0_349, %c0_350] : memref<8x32x256xf32, #tpu.memory_space<vmem>>, vector<1x32x256xf32>
    %657 = vector.shape_cast %656 : vector<1x32x256xf32> to vector<32x256xf32>
    %658 = vector.broadcast %655 : vector<1x256xf32> to vector<32x256xf32>
    %659 = arith.mulf %658, %657 : vector<32x256xf32>
    %660 = arith.addf %654, %659 : vector<32x256xf32>
    %661 = arith.truncf %660 : vector<32x256xf32> to vector<32x256xbf16>
    %c384 = arith.constant 384 : index
    %c0_351 = arith.constant 0 : index
    %662 = vector.load %arg7[%c384, %c0_351] : memref<480x256xbf16, #tpu.memory_space<vmem>>, vector<32x256xbf16>
    tpu.vector_store %arg7[%c384, %c0_351], %661 {strides = array<i32>} : memref<480x256xbf16, #tpu.memory_space<vmem>>, vector<32x256xbf16>,
    %c13 = arith.constant 13 : index
    %c0_352 = arith.constant 0 : index
    %c0_353 = arith.constant 0 : index
    %663 = vector.load %arg1[%c13, %c0_352, %c0_353] : memref<15x8x256xf32, #tpu.memory_space<vmem>>, vector<1x8x256xf32>
    %664 = vector.shape_cast %663 : vector<1x8x256xf32> to vector<8x256xf32>
    %665 = vector.extract_strided_slice %664 {offsets = [0, 0], sizes = [1, 256], strides = [1, 1]} : vector<8x256xf32> to vector<1x256xf32>
    %c0_354 = arith.constant 0 : index
    %c0_355 = arith.constant 0 : index
    %c0_356 = arith.constant 0 : index
    %666 = vector.load %arg2[%c0_354, %c0_355, %c0_356] : memref<8x32x256xf32, #tpu.memory_space<vmem>>, vector<1x32x256xf32>
    %667 = vector.shape_cast %666 : vector<1x32x256xf32> to vector<32x256xf32>
    %668 = vector.broadcast %665 : vector<1x256xf32> to vector<32x256xf32>
    %669 = arith.mulf %668, %667 : vector<32x256xf32>
    %670 = vector.extract_strided_slice %664 {offsets = [1, 0], sizes = [1, 256], strides = [1, 1]} : vector<8x256xf32> to vector<1x256xf32>
    %c1_357 = arith.constant 1 : index
    %c0_358 = arith.constant 0 : index
    %c0_359 = arith.constant 0 : index
    %671 = vector.load %arg2[%c1_357, %c0_358, %c0_359] : memref<8x32x256xf32, #tpu.memory_space<vmem>>, vector<1x32x256xf32>
    %672 = vector.shape_cast %671 : vector<1x32x256xf32> to vector<32x256xf32>
    %673 = vector.broadcast %670 : vector<1x256xf32> to vector<32x256xf32>
    %674 = arith.mulf %673, %672 : vector<32x256xf32>
    %675 = arith.addf %669, %674 : vector<32x256xf32>
    %676 = vector.extract_strided_slice %664 {offsets = [2, 0], sizes = [1, 256], strides = [1, 1]} : vector<8x256xf32> to vector<1x256xf32>
    %c2_360 = arith.constant 2 : index
    %c0_361 = arith.constant 0 : index
    %c0_362 = arith.constant 0 : index
    %677 = vector.load %arg2[%c2_360, %c0_361, %c0_362] : memref<8x32x256xf32, #tpu.memory_space<vmem>>, vector<1x32x256xf32>
    %678 = vector.shape_cast %677 : vector<1x32x256xf32> to vector<32x256xf32>
    %679 = vector.broadcast %676 : vector<1x256xf32> to vector<32x256xf32>
    %680 = arith.mulf %679, %678 : vector<32x256xf32>
    %681 = arith.addf %675, %680 : vector<32x256xf32>
    %682 = vector.extract_strided_slice %664 {offsets = [3, 0], sizes = [1, 256], strides = [1, 1]} : vector<8x256xf32> to vector<1x256xf32>
    %c3_363 = arith.constant 3 : index
    %c0_364 = arith.constant 0 : index
    %c0_365 = arith.constant 0 : index
    %683 = vector.load %arg2[%c3_363, %c0_364, %c0_365] : memref<8x32x256xf32, #tpu.memory_space<vmem>>, vector<1x32x256xf32>
    %684 = vector.shape_cast %683 : vector<1x32x256xf32> to vector<32x256xf32>
    %685 = vector.broadcast %682 : vector<1x256xf32> to vector<32x256xf32>
    %686 = arith.mulf %685, %684 : vector<32x256xf32>
    %687 = arith.addf %681, %686 : vector<32x256xf32>
    %688 = vector.extract_strided_slice %664 {offsets = [4, 0], sizes = [1, 256], strides = [1, 1]} : vector<8x256xf32> to vector<1x256xf32>
    %c4_366 = arith.constant 4 : index
    %c0_367 = arith.constant 0 : index
    %c0_368 = arith.constant 0 : index
    %689 = vector.load %arg2[%c4_366, %c0_367, %c0_368] : memref<8x32x256xf32, #tpu.memory_space<vmem>>, vector<1x32x256xf32>
    %690 = vector.shape_cast %689 : vector<1x32x256xf32> to vector<32x256xf32>
    %691 = vector.broadcast %688 : vector<1x256xf32> to vector<32x256xf32>
    %692 = arith.mulf %691, %690 : vector<32x256xf32>
    %693 = arith.addf %687, %692 : vector<32x256xf32>
    %694 = vector.extract_strided_slice %664 {offsets = [5, 0], sizes = [1, 256], strides = [1, 1]} : vector<8x256xf32> to vector<1x256xf32>
    %c5_369 = arith.constant 5 : index
    %c0_370 = arith.constant 0 : index
    %c0_371 = arith.constant 0 : index
    %695 = vector.load %arg2[%c5_369, %c0_370, %c0_371] : memref<8x32x256xf32, #tpu.memory_space<vmem>>, vector<1x32x256xf32>
    %696 = vector.shape_cast %695 : vector<1x32x256xf32> to vector<32x256xf32>
    %697 = vector.broadcast %694 : vector<1x256xf32> to vector<32x256xf32>
    %698 = arith.mulf %697, %696 : vector<32x256xf32>
    %699 = arith.addf %693, %698 : vector<32x256xf32>
    %700 = vector.extract_strided_slice %664 {offsets = [6, 0], sizes = [1, 256], strides = [1, 1]} : vector<8x256xf32> to vector<1x256xf32>
    %c6_372 = arith.constant 6 : index
    %c0_373 = arith.constant 0 : index
    %c0_374 = arith.constant 0 : index
    %701 = vector.load %arg2[%c6_372, %c0_373, %c0_374] : memref<8x32x256xf32, #tpu.memory_space<vmem>>, vector<1x32x256xf32>
    %702 = vector.shape_cast %701 : vector<1x32x256xf32> to vector<32x256xf32>
    %703 = vector.broadcast %700 : vector<1x256xf32> to vector<32x256xf32>
    %704 = arith.mulf %703, %702 : vector<32x256xf32>
    %705 = arith.addf %699, %704 : vector<32x256xf32>
    %706 = vector.extract_strided_slice %664 {offsets = [7, 0], sizes = [1, 256], strides = [1, 1]} : vector<8x256xf32> to vector<1x256xf32>
    %c7_375 = arith.constant 7 : index
    %c0_376 = arith.constant 0 : index
    %c0_377 = arith.constant 0 : index
    %707 = vector.load %arg2[%c7_375, %c0_376, %c0_377] : memref<8x32x256xf32, #tpu.memory_space<vmem>>, vector<1x32x256xf32>
    %708 = vector.shape_cast %707 : vector<1x32x256xf32> to vector<32x256xf32>
    %709 = vector.broadcast %706 : vector<1x256xf32> to vector<32x256xf32>
    %710 = arith.mulf %709, %708 : vector<32x256xf32>
    %711 = arith.addf %705, %710 : vector<32x256xf32>
    %712 = arith.truncf %711 : vector<32x256xf32> to vector<32x256xbf16>
    %c416 = arith.constant 416 : index
    %c0_378 = arith.constant 0 : index
    %713 = vector.load %arg7[%c416, %c0_378] : memref<480x256xbf16, #tpu.memory_space<vmem>>, vector<32x256xbf16>
    tpu.vector_store %arg7[%c416, %c0_378], %712 {strides = array<i32>} : memref<480x256xbf16, #tpu.memory_space<vmem>>, vector<32x256xbf16>,
    %c14 = arith.constant 14 : index
    %c0_379 = arith.constant 0 : index
    %c0_380 = arith.constant 0 : index
    %714 = vector.load %arg1[%c14, %c0_379, %c0_380] : memref<15x8x256xf32, #tpu.memory_space<vmem>>, vector<1x8x256xf32>
    %715 = vector.shape_cast %714 : vector<1x8x256xf32> to vector<8x256xf32>
    %716 = vector.extract_strided_slice %715 {offsets = [0, 0], sizes = [1, 256], strides = [1, 1]} : vector<8x256xf32> to vector<1x256xf32>
    %c0_381 = arith.constant 0 : index
    %c0_382 = arith.constant 0 : index
    %c0_383 = arith.constant 0 : index
    %717 = vector.load %arg2[%c0_381, %c0_382, %c0_383] : memref<8x32x256xf32, #tpu.memory_space<vmem>>, vector<1x32x256xf32>
    %718 = vector.shape_cast %717 : vector<1x32x256xf32> to vector<32x256xf32>
    %719 = vector.broadcast %716 : vector<1x256xf32> to vector<32x256xf32>
    %720 = arith.mulf %719, %718 : vector<32x256xf32>
    %721 = vector.extract_strided_slice %715 {offsets = [1, 0], sizes = [1, 256], strides = [1, 1]} : vector<8x256xf32> to vector<1x256xf32>
    %c1_384 = arith.constant 1 : index
    %c0_385 = arith.constant 0 : index
    %c0_386 = arith.constant 0 : index
    %722 = vector.load %arg2[%c1_384, %c0_385, %c0_386] : memref<8x32x256xf32, #tpu.memory_space<vmem>>, vector<1x32x256xf32>
    %723 = vector.shape_cast %722 : vector<1x32x256xf32> to vector<32x256xf32>
    %724 = vector.broadcast %721 : vector<1x256xf32> to vector<32x256xf32>
    %725 = arith.mulf %724, %723 : vector<32x256xf32>
    %726 = arith.addf %720, %725 : vector<32x256xf32>
    %727 = vector.extract_strided_slice %715 {offsets = [2, 0], sizes = [1, 256], strides = [1, 1]} : vector<8x256xf32> to vector<1x256xf32>
    %c2_387 = arith.constant 2 : index
    %c0_388 = arith.constant 0 : index
    %c0_389 = arith.constant 0 : index
    %728 = vector.load %arg2[%c2_387, %c0_388, %c0_389] : memref<8x32x256xf32, #tpu.memory_space<vmem>>, vector<1x32x256xf32>
    %729 = vector.shape_cast %728 : vector<1x32x256xf32> to vector<32x256xf32>
    %730 = vector.broadcast %727 : vector<1x256xf32> to vector<32x256xf32>
    %731 = arith.mulf %730, %729 : vector<32x256xf32>
    %732 = arith.addf %726, %731 : vector<32x256xf32>
    %733 = vector.extract_strided_slice %715 {offsets = [3, 0], sizes = [1, 256], strides = [1, 1]} : vector<8x256xf32> to vector<1x256xf32>
    %c3_390 = arith.constant 3 : index
    %c0_391 = arith.constant 0 : index
    %c0_392 = arith.constant 0 : index
    %734 = vector.load %arg2[%c3_390, %c0_391, %c0_392] : memref<8x32x256xf32, #tpu.memory_space<vmem>>, vector<1x32x256xf32>
    %735 = vector.shape_cast %734 : vector<1x32x256xf32> to vector<32x256xf32>
    %736 = vector.broadcast %733 : vector<1x256xf32> to vector<32x256xf32>
    %737 = arith.mulf %736, %735 : vector<32x256xf32>
    %738 = arith.addf %732, %737 : vector<32x256xf32>
    %739 = vector.extract_strided_slice %715 {offsets = [4, 0], sizes = [1, 256], strides = [1, 1]} : vector<8x256xf32> to vector<1x256xf32>
    %c4_393 = arith.constant 4 : index
    %c0_394 = arith.constant 0 : index
    %c0_395 = arith.constant 0 : index
    %740 = vector.load %arg2[%c4_393, %c0_394, %c0_395] : memref<8x32x256xf32, #tpu.memory_space<vmem>>, vector<1x32x256xf32>
    %741 = vector.shape_cast %740 : vector<1x32x256xf32> to vector<32x256xf32>
    %742 = vector.broadcast %739 : vector<1x256xf32> to vector<32x256xf32>
    %743 = arith.mulf %742, %741 : vector<32x256xf32>
    %744 = arith.addf %738, %743 : vector<32x256xf32>
    %745 = vector.extract_strided_slice %715 {offsets = [5, 0], sizes = [1, 256], strides = [1, 1]} : vector<8x256xf32> to vector<1x256xf32>
    %c5_396 = arith.constant 5 : index
    %c0_397 = arith.constant 0 : index
    %c0_398 = arith.constant 0 : index
    %746 = vector.load %arg2[%c5_396, %c0_397, %c0_398] : memref<8x32x256xf32, #tpu.memory_space<vmem>>, vector<1x32x256xf32>
    %747 = vector.shape_cast %746 : vector<1x32x256xf32> to vector<32x256xf32>
    %748 = vector.broadcast %745 : vector<1x256xf32> to vector<32x256xf32>
    %749 = arith.mulf %748, %747 : vector<32x256xf32>
    %750 = arith.addf %744, %749 : vector<32x256xf32>
    %751 = vector.extract_strided_slice %715 {offsets = [6, 0], sizes = [1, 256], strides = [1, 1]} : vector<8x256xf32> to vector<1x256xf32>
    %c6_399 = arith.constant 6 : index
    %c0_400 = arith.constant 0 : index
    %c0_401 = arith.constant 0 : index
    %752 = vector.load %arg2[%c6_399, %c0_400, %c0_401] : memref<8x32x256xf32, #tpu.memory_space<vmem>>, vector<1x32x256xf32>
    %753 = vector.shape_cast %752 : vector<1x32x256xf32> to vector<32x256xf32>
    %754 = vector.broadcast %751 : vector<1x256xf32> to vector<32x256xf32>
    %755 = arith.mulf %754, %753 : vector<32x256xf32>
    %756 = arith.addf %750, %755 : vector<32x256xf32>
    %757 = vector.extract_strided_slice %715 {offsets = [7, 0], sizes = [1, 256], strides = [1, 1]} : vector<8x256xf32> to vector<1x256xf32>
    %c7_402 = arith.constant 7 : index
    %c0_403 = arith.constant 0 : index
    %c0_404 = arith.constant 0 : index
    %758 = vector.load %arg2[%c7_402, %c0_403, %c0_404] : memref<8x32x256xf32, #tpu.memory_space<vmem>>, vector<1x32x256xf32>
    %759 = vector.shape_cast %758 : vector<1x32x256xf32> to vector<32x256xf32>
    %760 = vector.broadcast %757 : vector<1x256xf32> to vector<32x256xf32>
    %761 = arith.mulf %760, %759 : vector<32x256xf32>
    %762 = arith.addf %756, %761 : vector<32x256xf32>
    %763 = arith.truncf %762 : vector<32x256xf32> to vector<32x256xbf16>
    %c448 = arith.constant 448 : index
    %c0_405 = arith.constant 0 : index
    %764 = vector.load %arg7[%c448, %c0_405] : memref<480x256xbf16, #tpu.memory_space<vmem>>, vector<32x256xbf16>
    tpu.vector_store %arg7[%c448, %c0_405], %763 {strides = array<i32>} : memref<480x256xbf16, #tpu.memory_space<vmem>>, vector<32x256xbf16>,
    %c0_406 = arith.constant 0 : index
    %c0_407 = arith.constant 0 : index
    %765 = vector.load %arg3[%c0_406, %c0_407] : memref<256x480xbf16, #tpu.memory_space<vmem>>, vector<256x480xbf16>
    %c0_408 = arith.constant 0 : index
    %c0_409 = arith.constant 0 : index
    %766 = vector.load %arg7[%c0_408, %c0_409] : memref<480x256xbf16, #tpu.memory_space<vmem>>, vector<480x256xbf16>
    %cst = arith.constant dense<0.000000e+00> : vector<256x256xf32>
    %767 = tpu.matmul %765, %766, %cst {dimension_numbers = #tpu.dot_dimension_numbers<[1], [0], [0], [1], [0, 0, 1, 1], [], []>} : vector<256x480xbf16>, vector<480x256xbf16>, vector<256x256xf32> -> vector<256x256xf32>
    %c0_410 = arith.constant 0 : index
    %c0_411 = arith.constant 0 : index
    %768 = vector.load %arg8[%c0_410, %c0_411] : memref<256x256xf32, #tpu.memory_space<vmem>>, vector<256x256xf32>
    tpu.vector_store %arg8[%c0_410, %c0_411], %767 {strides = array<i32>} : memref<256x256xf32, #tpu.memory_space<vmem>>, vector<256x256xf32>,
    %c0_412 = arith.constant 0 : index
    %c0_413 = arith.constant 0 : index
    %769 = vector.load %arg8[%c0_412, %c0_413] : memref<256x256xf32, #tpu.memory_space<vmem>>, vector<64x256xf32>
    %cst_414 = arith.constant dense<0.000000e+00> : vector<64xf32>
    %770 = vector.multi_reduction <add>, %769, %cst_414 [1] : vector<64x256xf32> to vector<64xf32>
    %771 = vector.shape_cast %770 : vector<64xf32> to vector<64x1xf32>
    %cst_415 = arith.constant 3.906250e-03 : f32
    %772 = vector.broadcast %cst_415 : f32 to vector<64x1xf32>
    %773 = arith.mulf %771, %772 : vector<64x1xf32>
    %774 = arith.mulf %769, %769 : vector<64x256xf32>
    %cst_416 = arith.constant dense<0.000000e+00> : vector<64xf32>
    %775 = vector.multi_reduction <add>, %774, %cst_416 [1] : vector<64x256xf32> to vector<64xf32>
    %776 = vector.shape_cast %775 : vector<64xf32> to vector<64x1xf32>
    %cst_417 = arith.constant 3.906250e-03 : f32
    %777 = vector.broadcast %cst_417 : f32 to vector<64x1xf32>
    %778 = arith.mulf %776, %777 : vector<64x1xf32>
    %779 = arith.mulf %773, %773 : vector<64x1xf32>
    %780 = arith.subf %778, %779 : vector<64x1xf32>
    %cst_418 = arith.constant 0.000000e+00 : f32
    %781 = vector.broadcast %cst_418 : f32 to vector<64x1xf32>
    %782 = arith.maximumf %780, %781 : vector<64x1xf32>
    %c0_419 = arith.constant 0 : index
    %c0_420 = arith.constant 0 : index
    %783 = vector.load %arg4[%c0_419, %c0_420] : memref<256x1xf32, #tpu.memory_space<vmem>>, vector<64x1xf32>
    %cst_421 = arith.constant 9.99999974E-6 : f32
    %784 = vector.broadcast %cst_421 : f32 to vector<64x1xf32>
    %785 = arith.addf %782, %784 : vector<64x1xf32>
    %786 = math.rsqrt %785 : vector<64x1xf32>
    %787 = arith.mulf %783, %786 : vector<64x1xf32>
    %c0_422 = arith.constant 0 : index
    %c0_423 = arith.constant 0 : index
    %788 = vector.load %arg5[%c0_422, %c0_423] : memref<256x1xf32, #tpu.memory_space<vmem>>, vector<64x1xf32>
    %789 = arith.mulf %773, %787 : vector<64x1xf32>
    %790 = arith.subf %788, %789 : vector<64x1xf32>
    %791 = vector.broadcast %787 : vector<64x1xf32> to vector<64x256xf32>
    %792 = arith.mulf %769, %791 : vector<64x256xf32>
    %793 = vector.broadcast %790 : vector<64x1xf32> to vector<64x256xf32>
    %794 = arith.addf %792, %793 : vector<64x256xf32>
    %cst_424 = arith.constant 0.000000e+00 : f32
    %795 = vector.broadcast %cst_424 : f32 to vector<64x256xf32>
    %796 = arith.maximumf %794, %795 : vector<64x256xf32>
    %797 = vector.extract_strided_slice %796 {offsets = [0, 0], sizes = [64, 128], strides = [1, 1]} : vector<64x256xf32> to vector<64x128xf32>
    %c0_425 = arith.constant 0 : index
    %c0_426 = arith.constant 0 : index
    %c0_427 = arith.constant 0 : index
    %798 = vector.load %arg6[%c0_425, %c0_426, %c0_427] : memref<2x256x128xf32, #tpu.memory_space<vmem>>, vector<1x64x128xf32>
    %799 = vector.shape_cast %798 : vector<1x64x128xf32> to vector<64x128xf32>
    %800 = vector.shape_cast %797 : vector<64x128xf32> to vector<1x64x128xf32>
    tpu.vector_store %arg6[%c0_425, %c0_426, %c0_427], %800 {strides = array<i32>} : memref<2x256x128xf32, #tpu.memory_space<vmem>>, vector<1x64x128xf32>,
    %801 = vector.extract_strided_slice %796 {offsets = [0, 128], sizes = [64, 128], strides = [1, 1]} : vector<64x256xf32> to vector<64x128xf32>
    %c1_428 = arith.constant 1 : index
    %c0_429 = arith.constant 0 : index
    %c0_430 = arith.constant 0 : index
    %802 = vector.load %arg6[%c1_428, %c0_429, %c0_430] : memref<2x256x128xf32, #tpu.memory_space<vmem>>, vector<1x64x128xf32>
    %803 = vector.shape_cast %802 : vector<1x64x128xf32> to vector<64x128xf32>
    %804 = vector.shape_cast %801 : vector<64x128xf32> to vector<1x64x128xf32>
    tpu.vector_store %arg6[%c1_428, %c0_429, %c0_430], %804 {strides = array<i32>} : memref<2x256x128xf32, #tpu.memory_space<vmem>>, vector<1x64x128xf32>,
    %c64_431 = arith.constant 64 : index
    %c0_432 = arith.constant 0 : index
    %805 = vector.load %arg8[%c64_431, %c0_432] : memref<256x256xf32, #tpu.memory_space<vmem>>, vector<64x256xf32>
    %cst_433 = arith.constant dense<0.000000e+00> : vector<64xf32>
    %806 = vector.multi_reduction <add>, %805, %cst_433 [1] : vector<64x256xf32> to vector<64xf32>
    %807 = vector.shape_cast %806 : vector<64xf32> to vector<64x1xf32>
    %cst_434 = arith.constant 3.906250e-03 : f32
    %808 = vector.broadcast %cst_434 : f32 to vector<64x1xf32>
    %809 = arith.mulf %807, %808 : vector<64x1xf32>
    %810 = arith.mulf %805, %805 : vector<64x256xf32>
    %cst_435 = arith.constant dense<0.000000e+00> : vector<64xf32>
    %811 = vector.multi_reduction <add>, %810, %cst_435 [1] : vector<64x256xf32> to vector<64xf32>
    %812 = vector.shape_cast %811 : vector<64xf32> to vector<64x1xf32>
    %cst_436 = arith.constant 3.906250e-03 : f32
    %813 = vector.broadcast %cst_436 : f32 to vector<64x1xf32>
    %814 = arith.mulf %812, %813 : vector<64x1xf32>
    %815 = arith.mulf %809, %809 : vector<64x1xf32>
    %816 = arith.subf %814, %815 : vector<64x1xf32>
    %cst_437 = arith.constant 0.000000e+00 : f32
    %817 = vector.broadcast %cst_437 : f32 to vector<64x1xf32>
    %818 = arith.maximumf %816, %817 : vector<64x1xf32>
    %c64_438 = arith.constant 64 : index
    %c0_439 = arith.constant 0 : index
    %819 = vector.load %arg4[%c64_438, %c0_439] : memref<256x1xf32, #tpu.memory_space<vmem>>, vector<64x1xf32>
    %cst_440 = arith.constant 9.99999974E-6 : f32
    %820 = vector.broadcast %cst_440 : f32 to vector<64x1xf32>
    %821 = arith.addf %818, %820 : vector<64x1xf32>
    %822 = math.rsqrt %821 : vector<64x1xf32>
    %823 = arith.mulf %819, %822 : vector<64x1xf32>
    %c64_441 = arith.constant 64 : index
    %c0_442 = arith.constant 0 : index
    %824 = vector.load %arg5[%c64_441, %c0_442] : memref<256x1xf32, #tpu.memory_space<vmem>>, vector<64x1xf32>
    %825 = arith.mulf %809, %823 : vector<64x1xf32>
    %826 = arith.subf %824, %825 : vector<64x1xf32>
    %827 = vector.broadcast %823 : vector<64x1xf32> to vector<64x256xf32>
    %828 = arith.mulf %805, %827 : vector<64x256xf32>
    %829 = vector.broadcast %826 : vector<64x1xf32> to vector<64x256xf32>
    %830 = arith.addf %828, %829 : vector<64x256xf32>
    %cst_443 = arith.constant 0.000000e+00 : f32
    %831 = vector.broadcast %cst_443 : f32 to vector<64x256xf32>
    %832 = arith.maximumf %830, %831 : vector<64x256xf32>
    %833 = vector.extract_strided_slice %832 {offsets = [0, 0], sizes = [64, 128], strides = [1, 1]} : vector<64x256xf32> to vector<64x128xf32>
    %c0_444 = arith.constant 0 : index
    %c64_445 = arith.constant 64 : index
    %c0_446 = arith.constant 0 : index
    %834 = vector.load %arg6[%c0_444, %c64_445, %c0_446] : memref<2x256x128xf32, #tpu.memory_space<vmem>>, vector<1x64x128xf32>
    %835 = vector.shape_cast %834 : vector<1x64x128xf32> to vector<64x128xf32>
    %836 = vector.shape_cast %833 : vector<64x128xf32> to vector<1x64x128xf32>
    tpu.vector_store %arg6[%c0_444, %c64_445, %c0_446], %836 {strides = array<i32>} : memref<2x256x128xf32, #tpu.memory_space<vmem>>, vector<1x64x128xf32>,
    %837 = vector.extract_strided_slice %832 {offsets = [0, 128], sizes = [64, 128], strides = [1, 1]} : vector<64x256xf32> to vector<64x128xf32>
    %c1_447 = arith.constant 1 : index
    %c64_448 = arith.constant 64 : index
    %c0_449 = arith.constant 0 : index
    %838 = vector.load %arg6[%c1_447, %c64_448, %c0_449] : memref<2x256x128xf32, #tpu.memory_space<vmem>>, vector<1x64x128xf32>
    %839 = vector.shape_cast %838 : vector<1x64x128xf32> to vector<64x128xf32>
    %840 = vector.shape_cast %837 : vector<64x128xf32> to vector<1x64x128xf32>
    tpu.vector_store %arg6[%c1_447, %c64_448, %c0_449], %840 {strides = array<i32>} : memref<2x256x128xf32, #tpu.memory_space<vmem>>, vector<1x64x128xf32>,
    %c128_450 = arith.constant 128 : index
    %c0_451 = arith.constant 0 : index
    %841 = vector.load %arg8[%c128_450, %c0_451] : memref<256x256xf32, #tpu.memory_space<vmem>>, vector<64x256xf32>
    %cst_452 = arith.constant dense<0.000000e+00> : vector<64xf32>
    %842 = vector.multi_reduction <add>, %841, %cst_452 [1] : vector<64x256xf32> to vector<64xf32>
    %843 = vector.shape_cast %842 : vector<64xf32> to vector<64x1xf32>
    %cst_453 = arith.constant 3.906250e-03 : f32
    %844 = vector.broadcast %cst_453 : f32 to vector<64x1xf32>
    %845 = arith.mulf %843, %844 : vector<64x1xf32>
    %846 = arith.mulf %841, %841 : vector<64x256xf32>
    %cst_454 = arith.constant dense<0.000000e+00> : vector<64xf32>
    %847 = vector.multi_reduction <add>, %846, %cst_454 [1] : vector<64x256xf32> to vector<64xf32>
    %848 = vector.shape_cast %847 : vector<64xf32> to vector<64x1xf32>
    %cst_455 = arith.constant 3.906250e-03 : f32
    %849 = vector.broadcast %cst_455 : f32 to vector<64x1xf32>
    %850 = arith.mulf %848, %849 : vector<64x1xf32>
    %851 = arith.mulf %845, %845 : vector<64x1xf32>
    %852 = arith.subf %850, %851 : vector<64x1xf32>
    %cst_456 = arith.constant 0.000000e+00 : f32
    %853 = vector.broadcast %cst_456 : f32 to vector<64x1xf32>
    %854 = arith.maximumf %852, %853 : vector<64x1xf32>
    %c128_457 = arith.constant 128 : index
    %c0_458 = arith.constant 0 : index
    %855 = vector.load %arg4[%c128_457, %c0_458] : memref<256x1xf32, #tpu.memory_space<vmem>>, vector<64x1xf32>
    %cst_459 = arith.constant 9.99999974E-6 : f32
    %856 = vector.broadcast %cst_459 : f32 to vector<64x1xf32>
    %857 = arith.addf %854, %856 : vector<64x1xf32>
    %858 = math.rsqrt %857 : vector<64x1xf32>
    %859 = arith.mulf %855, %858 : vector<64x1xf32>
    %c128_460 = arith.constant 128 : index
    %c0_461 = arith.constant 0 : index
    %860 = vector.load %arg5[%c128_460, %c0_461] : memref<256x1xf32, #tpu.memory_space<vmem>>, vector<64x1xf32>
    %861 = arith.mulf %845, %859 : vector<64x1xf32>
    %862 = arith.subf %860, %861 : vector<64x1xf32>
    %863 = vector.broadcast %859 : vector<64x1xf32> to vector<64x256xf32>
    %864 = arith.mulf %841, %863 : vector<64x256xf32>
    %865 = vector.broadcast %862 : vector<64x1xf32> to vector<64x256xf32>
    %866 = arith.addf %864, %865 : vector<64x256xf32>
    %cst_462 = arith.constant 0.000000e+00 : f32
    %867 = vector.broadcast %cst_462 : f32 to vector<64x256xf32>
    %868 = arith.maximumf %866, %867 : vector<64x256xf32>
    %869 = vector.extract_strided_slice %868 {offsets = [0, 0], sizes = [64, 128], strides = [1, 1]} : vector<64x256xf32> to vector<64x128xf32>
    %c0_463 = arith.constant 0 : index
    %c128_464 = arith.constant 128 : index
    %c0_465 = arith.constant 0 : index
    %870 = vector.load %arg6[%c0_463, %c128_464, %c0_465] : memref<2x256x128xf32, #tpu.memory_space<vmem>>, vector<1x64x128xf32>
    %871 = vector.shape_cast %870 : vector<1x64x128xf32> to vector<64x128xf32>
    %872 = vector.shape_cast %869 : vector<64x128xf32> to vector<1x64x128xf32>
    tpu.vector_store %arg6[%c0_463, %c128_464, %c0_465], %872 {strides = array<i32>} : memref<2x256x128xf32, #tpu.memory_space<vmem>>, vector<1x64x128xf32>,
    %873 = vector.extract_strided_slice %868 {offsets = [0, 128], sizes = [64, 128], strides = [1, 1]} : vector<64x256xf32> to vector<64x128xf32>
    %c1_466 = arith.constant 1 : index
    %c128_467 = arith.constant 128 : index
    %c0_468 = arith.constant 0 : index
    %874 = vector.load %arg6[%c1_466, %c128_467, %c0_468] : memref<2x256x128xf32, #tpu.memory_space<vmem>>, vector<1x64x128xf32>
    %875 = vector.shape_cast %874 : vector<1x64x128xf32> to vector<64x128xf32>
    %876 = vector.shape_cast %873 : vector<64x128xf32> to vector<1x64x128xf32>
    tpu.vector_store %arg6[%c1_466, %c128_467, %c0_468], %876 {strides = array<i32>} : memref<2x256x128xf32, #tpu.memory_space<vmem>>, vector<1x64x128xf32>,
    %c192_469 = arith.constant 192 : index
    %c0_470 = arith.constant 0 : index
    %877 = vector.load %arg8[%c192_469, %c0_470] : memref<256x256xf32, #tpu.memory_space<vmem>>, vector<64x256xf32>
    %cst_471 = arith.constant dense<0.000000e+00> : vector<64xf32>
    %878 = vector.multi_reduction <add>, %877, %cst_471 [1] : vector<64x256xf32> to vector<64xf32>
    %879 = vector.shape_cast %878 : vector<64xf32> to vector<64x1xf32>
    %cst_472 = arith.constant 3.906250e-03 : f32
    %880 = vector.broadcast %cst_472 : f32 to vector<64x1xf32>
    %881 = arith.mulf %879, %880 : vector<64x1xf32>
    %882 = arith.mulf %877, %877 : vector<64x256xf32>
    %cst_473 = arith.constant dense<0.000000e+00> : vector<64xf32>
    %883 = vector.multi_reduction <add>, %882, %cst_473 [1] : vector<64x256xf32> to vector<64xf32>
    %884 = vector.shape_cast %883 : vector<64xf32> to vector<64x1xf32>
    %cst_474 = arith.constant 3.906250e-03 : f32
    %885 = vector.broadcast %cst_474 : f32 to vector<64x1xf32>
    %886 = arith.mulf %884, %885 : vector<64x1xf32>
    %887 = arith.mulf %881, %881 : vector<64x1xf32>
    %888 = arith.subf %886, %887 : vector<64x1xf32>
    %cst_475 = arith.constant 0.000000e+00 : f32
    %889 = vector.broadcast %cst_475 : f32 to vector<64x1xf32>
    %890 = arith.maximumf %888, %889 : vector<64x1xf32>
    %c192_476 = arith.constant 192 : index
    %c0_477 = arith.constant 0 : index
    %891 = vector.load %arg4[%c192_476, %c0_477] : memref<256x1xf32, #tpu.memory_space<vmem>>, vector<64x1xf32>
    %cst_478 = arith.constant 9.99999974E-6 : f32
    %892 = vector.broadcast %cst_478 : f32 to vector<64x1xf32>
    %893 = arith.addf %890, %892 : vector<64x1xf32>
    %894 = math.rsqrt %893 : vector<64x1xf32>
    %895 = arith.mulf %891, %894 : vector<64x1xf32>
    %c192_479 = arith.constant 192 : index
    %c0_480 = arith.constant 0 : index
    %896 = vector.load %arg5[%c192_479, %c0_480] : memref<256x1xf32, #tpu.memory_space<vmem>>, vector<64x1xf32>
    %897 = arith.mulf %881, %895 : vector<64x1xf32>
    %898 = arith.subf %896, %897 : vector<64x1xf32>
    %899 = vector.broadcast %895 : vector<64x1xf32> to vector<64x256xf32>
    %900 = arith.mulf %877, %899 : vector<64x256xf32>
    %901 = vector.broadcast %898 : vector<64x1xf32> to vector<64x256xf32>
    %902 = arith.addf %900, %901 : vector<64x256xf32>
    %cst_481 = arith.constant 0.000000e+00 : f32
    %903 = vector.broadcast %cst_481 : f32 to vector<64x256xf32>
    %904 = arith.maximumf %902, %903 : vector<64x256xf32>
    %905 = vector.extract_strided_slice %904 {offsets = [0, 0], sizes = [64, 128], strides = [1, 1]} : vector<64x256xf32> to vector<64x128xf32>
    %c0_482 = arith.constant 0 : index
    %c192_483 = arith.constant 192 : index
    %c0_484 = arith.constant 0 : index
    %906 = vector.load %arg6[%c0_482, %c192_483, %c0_484] : memref<2x256x128xf32, #tpu.memory_space<vmem>>, vector<1x64x128xf32>
    %907 = vector.shape_cast %906 : vector<1x64x128xf32> to vector<64x128xf32>
    %908 = vector.shape_cast %905 : vector<64x128xf32> to vector<1x64x128xf32>
    tpu.vector_store %arg6[%c0_482, %c192_483, %c0_484], %908 {strides = array<i32>} : memref<2x256x128xf32, #tpu.memory_space<vmem>>, vector<1x64x128xf32>,
    %909 = vector.extract_strided_slice %904 {offsets = [0, 128], sizes = [64, 128], strides = [1, 1]} : vector<64x256xf32> to vector<64x128xf32>
    %c1_485 = arith.constant 1 : index
    %c192_486 = arith.constant 192 : index
    %c0_487 = arith.constant 0 : index
    %910 = vector.load %arg6[%c1_485, %c192_486, %c0_487] : memref<2x256x128xf32, #tpu.memory_space<vmem>>, vector<1x64x128xf32>
    %911 = vector.shape_cast %910 : vector<1x64x128xf32> to vector<64x128xf32>
    %912 = vector.shape_cast %909 : vector<64x128xf32> to vector<1x64x128xf32>
    tpu.vector_store %arg6[%c1_485, %c192_486, %c0_487], %912 {strides = array<i32>} : memref<2x256x128xf32, #tpu.memory_space<vmem>>, vector<1x64x128xf32>,
    return
  }
  func.func @transform_0(%arg0: i32) -> (i32, i32, i32) {
    %c0_i32 = arith.constant 0 : i32
    %c0_i32_0 = arith.constant 0 : i32
    %c0_i32_1 = arith.constant 0 : i32
    %c0_i32_2 = arith.constant 0 : i32
    return %c0_i32, %c0_i32_0, %c0_i32_1 : i32, i32, i32
  }
  func.func @transform_1(%arg0: i32) -> (i32, i32, i32) {
    %c0_i32 = arith.constant 0 : i32
    %c0_i32_0 = arith.constant 0 : i32
    %c0_i32_1 = arith.constant 0 : i32
    %c0_i32_2 = arith.constant 0 : i32
    return %c0_i32, %c0_i32_0, %c0_i32_1 : i32, i32, i32
  }
  func.func @transform_2(%arg0: i32) -> (i32, i32) {
    %c0_i32 = arith.constant 0 : i32
    %c0_i32_0 = arith.constant 0 : i32
    %c0_i32_1 = arith.constant 0 : i32
    return %c0_i32, %c0_i32_0 : i32, i32
  }
  func.func @transform_3(%arg0: i32) -> (i32, i32) {
    %c0_i32 = arith.constant 0 : i32
    %c0_i32_0 = arith.constant 0 : i32
    %c0_i32_1 = arith.constant 0 : i32
    return %c0_i32, %c0_i32_0 : i32, i32
  }
  func.func @transform_4(%arg0: i32) -> (i32, i32) {
    %c0_i32 = arith.constant 0 : i32
    %c0_i32_0 = arith.constant 0 : i32
    %c0_i32_1 = arith.constant 0 : i32
    return %c0_i32, %c0_i32_0 : i32, i32
  }
  func.func @transform_5(%arg0: i32) -> (i32, i32, i32) {
    %c0_i32 = arith.constant 0 : i32
    %c0_i32_0 = arith.constant 0 : i32
    %c0_i32_1 = arith.constant 0 : i32
    %c0_i32_2 = arith.constant 0 : i32
    return %c0_i32, %c0_i32_0, %c0_i32_1 : i32, i32, i32
  }
}

</mosaic_0001>

<llo_original>
// kernel: kp_classifier_forward.1
$region0: #{kp_classifier_forward.1}
  #allocation0 [shape = 'u32[]', space=smem, size = 0x4, offset = 0x4, fixed_abs, tag = 'smem constant byte address 0x4 - core index']
  #allocation1 [shape = 'u32[72,128]{1,0:T(1,128)}', space=vmem, size = 0x9000, scoped, tag = 'internal scratch']
  #allocation2 [shape = 'bf16[480,256]{1,0:T(8,128)(2,1)}', space=vmem, size = 0x3c000, scoped, tag = 'scratch operand']
  #allocation3 [shape = 'f32[256,256]{1,0:T(8,128)}', space=vmem, size = 0x40000, scoped, tag = 'scratch operand']
  %s0 = inlined_call_operand.vmem [shape: f32[15,8,256], index: 0, kind: input, shape index: {}]
  %s1 = inlined_call_operand.vmem [shape: f32[8,32,256], index: 1, kind: input, shape index: {}]
  %s2 = inlined_call_operand.vmem [shape: bf16[256,480], index: 2, kind: input, shape index: {}]
  %s3 = inlined_call_operand.vmem [shape: f32[256,1], index: 3, kind: input, shape index: {}]
  %s4 = inlined_call_operand.vmem [shape: f32[256,1], index: 4, kind: input, shape index: {}]
  %s5 = inlined_call_operand.hbm [shape: f32[2,256,128], index: 5, kind: output, shape index: {}]
  %s6 = sld [smem:[#allocation0]]
  $region30: #{kp_classifier_forward.1} parent=0
    _
  %s8 = ssub.s32 1, %s6
  %s9 = scalar_select 0, %s8, %s6
  $region1: #{kp_classifier_forward.1} parent=0
    #allocation4 [shape = 'u8[262144]{0}', space=vmem, size = 0x40000, scoped, tag = 'output window, operand 0, single buffered']
    #allocation5 [shape = 's32[1]{0}', space=sflag, size = 0x4, scoped, tag = 'scoped memory for kp_classifier_forward.1']
    %10 = vsyncpa [#allocation5], 0
    // Predicated region
    $region2: #{kp_classifier_forward.1} parent=1 // pred_check
      _
    $region3: #{kp_classifier_forward.1} parent=1 // pred_check_branch
      %12 = sbr.rel (0) target = $region5
    $region4: #{kp_classifier_forward.1} parent=1 // pred_region
      _
    $region5: #{kp_classifier_forward.1} parent=1 // pred_fallthru
      _
    // Predicated region
    $region6: #{kp_classifier_forward.1} parent=1 // pred_check
      _
    $region7: #{kp_classifier_forward.1} parent=1 // pred_check_branch
      %14 = sbr.rel (0) target = $region9
    $region8: #{kp_classifier_forward.1} parent=1 // pred_region
      _
    $region9: #{kp_classifier_forward.1} parent=1 // pred_fallthru
      _
    // Predicated region
    $region10: #{kp_classifier_forward.1} parent=1 // pred_check
      _
    $region11: #{kp_classifier_forward.1} parent=1 // pred_check_branch
      %16 = sbr.rel (0) target = $region13
    $region12: #{kp_classifier_forward.1} parent=1 // pred_region
      _
    $region13: #{kp_classifier_forward.1} parent=1 // pred_fallthru
      _
    // Predicated region
    $region14: #{kp_classifier_forward.1} parent=1 // pred_check
      _
    $region15: #{kp_classifier_forward.1} parent=1 // pred_check_branch
      %18 = sbr.rel (0) target = $region17
    $region16: #{kp_classifier_forward.1} parent=1 // pred_region
      _
    $region17: #{kp_classifier_forward.1} parent=1 // pred_fallthru
      _
    // Predicated region
    $region18: #{kp_classifier_forward.1} parent=1 // pred_check
      _
    $region19: #{kp_classifier_forward.1} parent=1 // pred_check_branch
      %20 = sbr.rel (0) target = $region21
    $region20: #{kp_classifier_forward.1} parent=1 // pred_region
      _
    $region21: #{kp_classifier_forward.1} parent=1 // pred_fallthru
      _
    %v22 = vld [vmem:[%s0] sm:$0xff]
    %v23 = vld [vmem:[%s0 + $0x8] sm:$0xff]
    %v24 = vld [vmem:[%s1] sm:$0xff]
    %v25 = vld [vmem:[%s1 + $0x8] sm:$0xff]
    %v26 = vld [vmem:[%s1 + $0x10] sm:$0xff]
    %v27 = vld [vmem:[%s1 + $0x18] sm:$0xff]
    %v28 = vld [vmem:[%s1 + $0x20] sm:$0xff]
    %v29 = vld [vmem:[%s1 + $0x28] sm:$0xff]
    %v30 = vld [vmem:[%s1 + $0x30] sm:$0xff]
    %v31 = vld [vmem:[%s1 + $0x38] sm:$0xff]
    %v32 = vperm.slane %v22, 0
    %v33 = vperm.slane %v23, 0
    %v34 = vmul.f32 %v32, %v24
    %v35 = vmul.f32 %v33, %v25
    %v36 = vmul.f32 %v32, %v26
    %v37 = vmul.f32 %v33, %v27
    %v38 = vmul.f32 %v32, %v28
    %v39 = vmul.f32 %v33, %v29
    %v40 = vmul.f32 %v32, %v30
    %v41 = vmul.f32 %v33, %v31
    %s42 = scalar_lea.vmem %s1, 64
    %v43 = vld [vmem:[%s42] sm:$0xff]
    %v44 = vld [vmem:[%s42 + $0x8] sm:$0xff]
    %v45 = vld [vmem:[%s42 + $0x10] sm:$0xff]
    %v46 = vld [vmem:[%s42 + $0x18] sm:$0xff]
    %v47 = vld [vmem:[%s42 + $0x20] sm:$0xff]
    %v48 = vld [vmem:[%s42 + $0x28] sm:$0xff]
    %v49 = vld [vmem:[%s42 + $0x30] sm:$0xff]
    %v50 = vld [vmem:[%s42 + $0x38] sm:$0xff]
    %v51 = vperm.slane %v22, 1
    %v52 = vperm.slane %v23, 1
    %v53 = vmul.f32 %v51, %v43
    %v54 = vmul.f32 %v52, %v44
    %v55 = vmul.f32 %v51, %v45
    %v56 = vmul.f32 %v52, %v46
    %v57 = vmul.f32 %v51, %v47
    %v58 = vmul.f32 %v52, %v48
    %v59 = vmul.f32 %v51, %v49
    %v60 = vmul.f32 %v52, %v50
    %v61 = vadd.f32 %v34, %v53
    %v62 = vadd.f32 %v35, %v54
    %v63 = vadd.f32 %v36, %v55
    %v64 = vadd.f32 %v37, %v56
    %v65 = vadd.f32 %v38, %v57
    %v66 = vadd.f32 %v39, %v58
    %v67 = vadd.f32 %v40, %v59
    %v68 = vadd.f32 %v41, %v60
    %s69 = scalar_lea.vmem %s1, 128
    %v70 = vld [vmem:[%s69] sm:$0xff]
    %v71 = vld [vmem:[%s69 + $0x8] sm:$0xff]
    %v72 = vld [vmem:[%s69 + $0x10] sm:$0xff]
    %v73 = vld [vmem:[%s69 + $0x18] sm:$0xff]
    %v74 = vld [vmem:[%s69 + $0x20] sm:$0xff]
    %v75 = vld [vmem:[%s69 + $0x28] sm:$0xff]
    %v76 = vld [vmem:[%s69 + $0x30] sm:$0xff]
    %v77 = vld [vmem:[%s69 + $0x38] sm:$0xff]
    %v78 = vperm.slane %v22, 2
    %v79 = vperm.slane %v23, 2
    %v80 = vmul.f32 %v78, %v70
    %v81 = vmul.f32 %v79, %v71
    %v82 = vmul.f32 %v78, %v72
    %v83 = vmul.f32 %v79, %v73
    %v84 = vmul.f32 %v78, %v74
    %v85 = vmul.f32 %v79, %v75
    %v86 = vmul.f32 %v78, %v76
    %v87 = vmul.f32 %v79, %v77
    %v88 = vadd.f32 %v61, %v80
    %v89 = vadd.f32 %v62, %v81
    %v90 = vadd.f32 %v63, %v82
    %v91 = vadd.f32 %v64, %v83
    %v92 = vadd.f32 %v65, %v84
    %v93 = vadd.f32 %v66, %v85
    %v94 = vadd.f32 %v67, %v86
    %v95 = vadd.f32 %v68, %v87
    %s96 = scalar_lea.vmem %s1, 192
    %v97 = vld [vmem:[%s96] sm:$0xff]
    %v98 = vld [vmem:[%s96 + $0x8] sm:$0xff]
    %v99 = vld [vmem:[%s96 + $0x10] sm:$0xff]
    %v100 = vld [vmem:[%s96 + $0x18] sm:$0xff]
    %v101 = vld [vmem:[%s96 + $0x20] sm:$0xff]
    %v102 = vld [vmem:[%s96 + $0x28] sm:$0xff]
    %v103 = vld [vmem:[%s96 + $0x30] sm:$0xff]
    %v104 = vld [vmem:[%s96 + $0x38] sm:$0xff]
    %v105 = vperm.slane %v22, 3
    %v106 = vperm.slane %v23, 3
    %v107 = vmul.f32 %v105, %v97
    %v108 = vmul.f32 %v106, %v98
    %v109 = vmul.f32 %v105, %v99
    %v110 = vmul.f32 %v106, %v100
    %v111 = vmul.f32 %v105, %v101
    %v112 = vmul.f32 %v106, %v102
    %v113 = vmul.f32 %v105, %v103
    %v114 = vmul.f32 %v106, %v104
    %v115 = vadd.f32 %v88, %v107
    %v116 = vadd.f32 %v89, %v108
    %v117 = vadd.f32 %v90, %v109
    %v118 = vadd.f32 %v91, %v110
    %v119 = vadd.f32 %v92, %v111
    %v120 = vadd.f32 %v93, %v112
    %v121 = vadd.f32 %v94, %v113
    %v122 = vadd.f32 %v95, %v114
    %s123 = scalar_lea.vmem %s1, 256
    %v124 = vld [vmem:[%s123] sm:$0xff]
    %v125 = vld [vmem:[%s123 + $0x8] sm:$0xff]
    %v126 = vld [vmem:[%s123 + $0x10] sm:$0xff]
    %v127 = vld [vmem:[%s123 + $0x18] sm:$0xff]
    %v128 = vld [vmem:[%s123 + $0x20] sm:$0xff]
    %v129 = vld [vmem:[%s123 + $0x28] sm:$0xff]
    %v130 = vld [vmem:[%s123 + $0x30] sm:$0xff]
    %v131 = vld [vmem:[%s123 + $0x38] sm:$0xff]
    %v132 = vperm.slane %v22, 4
    %v133 = vperm.slane %v23, 4
    %v134 = vmul.f32 %v132, %v124
    %v135 = vmul.f32 %v133, %v125
    %v136 = vmul.f32 %v132, %v126
    %v137 = vmul.f32 %v133, %v127
    %v138 = vmul.f32 %v132, %v128
    %v139 = vmul.f32 %v133, %v129
    %v140 = vmul.f32 %v132, %v130
    %v141 = vmul.f32 %v133, %v131
    %v142 = vadd.f32 %v115, %v134
    %v143 = vadd.f32 %v116, %v135
    %v144 = vadd.f32 %v117, %v136
    %v145 = vadd.f32 %v118, %v137
    %v146 = vadd.f32 %v119, %v138
    %v147 = vadd.f32 %v120, %v139
    %v148 = vadd.f32 %v121, %v140
    %v149 = vadd.f32 %v122, %v141
    %s150 = scalar_lea.vmem %s1, 320
    %v151 = vld [vmem:[%s150] sm:$0xff]
    %v152 = vld [vmem:[%s150 + $0x8] sm:$0xff]
    %v153 = vld [vmem:[%s150 + $0x10] sm:$0xff]
    %v154 = vld [vmem:[%s150 + $0x18] sm:$0xff]
    %v155 = vld [vmem:[%s150 + $0x20] sm:$0xff]
    %v156 = vld [vmem:[%s150 + $0x28] sm:$0xff]
    %v157 = vld [vmem:[%s150 + $0x30] sm:$0xff]
    %v158 = vld [vmem:[%s150 + $0x38] sm:$0xff]
    %v159 = vperm.slane %v22, 5
    %v160 = vperm.slane %v23, 5
    %v161 = vmul.f32 %v159, %v151
    %v162 = vmul.f32 %v160, %v152
    %v163 = vmul.f32 %v159, %v153
    %v164 = vmul.f32 %v160, %v154
    %v165 = vmul.f32 %v159, %v155
    %v166 = vmul.f32 %v160, %v156
    %v167 = vmul.f32 %v159, %v157
    %v168 = vmul.f32 %v160, %v158
    %v169 = vadd.f32 %v142, %v161
    %v170 = vadd.f32 %v143, %v162
    %v171 = vadd.f32 %v144, %v163
    %v172 = vadd.f32 %v145, %v164
    %v173 = vadd.f32 %v146, %v165
    %v174 = vadd.f32 %v147, %v166
    %v175 = vadd.f32 %v148, %v167
    %v176 = vadd.f32 %v149, %v168
    %s177 = scalar_lea.vmem %s1, 384
    %v178 = vld [vmem:[%s177] sm:$0xff]
    %v179 = vld [vmem:[%s177 + $0x8] sm:$0xff]
    %v180 = vld [vmem:[%s177 + $0x10] sm:$0xff]
    %v181 = vld [vmem:[%s177 + $0x18] sm:$0xff]
    %v182 = vld [vmem:[%s177 + $0x20] sm:$0xff]
    %v183 = vld [vmem:[%s177 + $0x28] sm:$0xff]
    %v184 = vld [vmem:[%s177 + $0x30] sm:$0xff]
    %v185 = vld [vmem:[%s177 + $0x38] sm:$0xff]
    %v186 = vperm.slane %v22, 6
    %v187 = vperm.slane %v23, 6
    %v188 = vmul.f32 %v186, %v178
    %v189 = vmul.f32 %v187, %v179
    %v190 = vmul.f32 %v186, %v180
    %v191 = vmul.f32 %v187, %v181
    %v192 = vmul.f32 %v186, %v182
    %v193 = vmul.f32 %v187, %v183
    %v194 = vmul.f32 %v186, %v184
    %v195 = vmul.f32 %v187, %v185
    %v196 = vadd.f32 %v169, %v188
    %v197 = vadd.f32 %v170, %v189
    %v198 = vadd.f32 %v171, %v190
    %v199 = vadd.f32 %v172, %v191
    %v200 = vadd.f32 %v173, %v192
    %v201 = vadd.f32 %v174, %v193
    %v202 = vadd.f32 %v175, %v194
    %v203 = vadd.f32 %v176, %v195
    %s204 = scalar_lea.vmem %s1, 448
    %v205 = vld [vmem:[%s204] sm:$0xff]
    %v206 = vld [vmem:[%s204 + $0x8] sm:$0xff]
    %v207 = vld [vmem:[%s204 + $0x10] sm:$0xff]
    %v208 = vld [vmem:[%s204 + $0x18] sm:$0xff]
    %v209 = vld [vmem:[%s204 + $0x20] sm:$0xff]
    %v210 = vld [vmem:[%s204 + $0x28] sm:$0xff]
    %v211 = vld [vmem:[%s204 + $0x30] sm:$0xff]
    %v212 = vld [vmem:[%s204 + $0x38] sm:$0xff]
    %v213 = vperm.slane %v22, 7
    %v214 = vperm.slane %v23, 7
    %v215 = vmul.f32 %v213, %v205
    %v216 = vmul.f32 %v214, %v206
    %v217 = vmul.f32 %v213, %v207
    %v218 = vmul.f32 %v214, %v208
    %v219 = vmul.f32 %v213, %v209
    %v220 = vmul.f32 %v214, %v210
    %v221 = vmul.f32 %v213, %v211
    %v222 = vmul.f32 %v214, %v212
    %v223 = vadd.f32 %v196, %v215
    %v224 = vadd.f32 %v197, %v216
    %v225 = vadd.f32 %v198, %v217
    %v226 = vadd.f32 %v199, %v218
    %v227 = vadd.f32 %v200, %v219
    %v228 = vadd.f32 %v201, %v220
    %v229 = vadd.f32 %v202, %v221
    %v230 = vadd.f32 %v203, %v222
    %v231 = vpack.c.bf16 %v224, %v223
    %v232 = vpack.c.bf16 %v226, %v225
    %v233 = vpack.c.bf16 %v228, %v227
    %v234 = vpack.c.bf16 %v230, %v229
    %235 = vst [vmem:[#allocation2] sm:$0xff] %v231
    %236 = vst [vmem:[#allocation2 + $0x8] sm:$0xff] %v232
    %237 = vst [vmem:[#allocation2 + $0x10] sm:$0xff] %v233
    %238 = vst [vmem:[#allocation2 + $0x18] sm:$0xff] %v234
    %s239 = scalar_lea.vmem %s0, 16
    %v240 = vld [vmem:[%s239] sm:$0xff]
    %v241 = vld [vmem:[%s239 + $0x8] sm:$0xff]
    %v242 = vld [vmem:[%s1] sm:$0xff]
    %v243 = vld [vmem:[%s1 + $0x8] sm:$0xff]
    %v244 = vld [vmem:[%s1 + $0x10] sm:$0xff]
    %v245 = vld [vmem:[%s1 + $0x18] sm:$0xff]
    %v246 = vld [vmem:[%s1 + $0x20] sm:$0xff]
    %v247 = vld [vmem:[%s1 + $0x28] sm:$0xff]
    %v248 = vld [vmem:[%s1 + $0x30] sm:$0xff]
    %v249 = vld [vmem:[%s1 + $0x38] sm:$0xff]
    %v250 = vperm.slane %v240, 0
    %v251 = vperm.slane %v241, 0
    %v252 = vmul.f32 %v250, %v242
    %v253 = vmul.f32 %v251, %v243
    %v254 = vmul.f32 %v250, %v244
    %v255 = vmul.f32 %v251, %v245
    %v256 = vmul.f32 %v250, %v246
    %v257 = vmul.f32 %v251, %v247
    %v258 = vmul.f32 %v250, %v248
    %v259 = vmul.f32 %v251, %v249
    %v260 = vld [vmem:[%s42] sm:$0xff]
    %v261 = vld [vmem:[%s42 + $0x8] sm:$0xff]
    %v262 = vld [vmem:[%s42 + $0x10] sm:$0xff]
    %v263 = vld [vmem:[%s42 + $0x18] sm:$0xff]
    %v264 = vld [vmem:[%s42 + $0x20] sm:$0xff]
    %v265 = vld [vmem:[%s42 + $0x28] sm:$0xff]
    %v266 = vld [vmem:[%s42 + $0x30] sm:$0xff]
    %v267 = vld [vmem:[%s42 + $0x38] sm:$0xff]
    %v268 = vperm.slane %v240, 1
    %v269 = vperm.slane %v241, 1
    %v270 = vmul.f32 %v268, %v260
    %v271 = vmul.f32 %v269, %v261
    %v272 = vmul.f32 %v268, %v262
    %v273 = vmul.f32 %v269, %v263
    %v274 = vmul.f32 %v268, %v264
    %v275 = vmul.f32 %v269, %v265
    %v276 = vmul.f32 %v268, %v266
    %v277 = vmul.f32 %v269, %v267
    %v278 = vadd.f32 %v252, %v270
    %v279 = vadd.f32 %v253, %v271
    %v280 = vadd.f32 %v254, %v272
    %v281 = vadd.f32 %v255, %v273
    %v282 = vadd.f32 %v256, %v274
    %v283 = vadd.f32 %v257, %v275
    %v284 = vadd.f32 %v258, %v276
    %v285 = vadd.f32 %v259, %v277
    %v286 = vld [vmem:[%s69] sm:$0xff]
    %v287 = vld [vmem:[%s69 + $0x8] sm:$0xff]
    %v288 = vld [vmem:[%s69 + $0x10] sm:$0xff]
    %v289 = vld [vmem:[%s69 + $0x18] sm:$0xff]
    %v290 = vld [vmem:[%s69 + $0x20] sm:$0xff]
    %v291 = vld [vmem:[%s69 + $0x28] sm:$0xff]
    %v292 = vld [vmem:[%s69 + $0x30] sm:$0xff]
    %v293 = vld [vmem:[%s69 + $0x38] sm:$0xff]
    %v294 = vperm.slane %v240, 2
    %v295 = vperm.slane %v241, 2
    %v296 = vmul.f32 %v294, %v286
    %v297 = vmul.f32 %v295, %v287
    %v298 = vmul.f32 %v294, %v288
    %v299 = vmul.f32 %v295, %v289
    %v300 = vmul.f32 %v294, %v290
    %v301 = vmul.f32 %v295, %v291
    %v302 = vmul.f32 %v294, %v292
    %v303 = vmul.f32 %v295, %v293
    %v304 = vadd.f32 %v278, %v296
    %v305 = vadd.f32 %v279, %v297
    %v306 = vadd.f32 %v280, %v298
    %v307 = vadd.f32 %v281, %v299
    %v308 = vadd.f32 %v282, %v300
    %v309 = vadd.f32 %v283, %v301
    %v310 = vadd.f32 %v284, %v302
    %v311 = vadd.f32 %v285, %v303
    %v312 = vld [vmem:[%s96] sm:$0xff]
    %v313 = vld [vmem:[%s96 + $0x8] sm:$0xff]
    %v314 = vld [vmem:[%s96 + $0x10] sm:$0xff]
    %v315 = vld [vmem:[%s96 + $0x18] sm:$0xff]
    %v316 = vld [vmem:[%s96 + $0x20] sm:$0xff]
    %v317 = vld [vmem:[%s96 + $0x28] sm:$0xff]
    %v318 = vld [vmem:[%s96 + $0x30] sm:$0xff]
    %v319 = vld [vmem:[%s96 + $0x38] sm:$0xff]
    %v320 = vperm.slane %v240, 3
    %v321 = vperm.slane %v241, 3
    %v322 = vmul.f32 %v320, %v312
    %v323 = vmul.f32 %v321, %v313
    %v324 = vmul.f32 %v320, %v314
    %v325 = vmul.f32 %v321, %v315
    %v326 = vmul.f32 %v320, %v316
    %v327 = vmul.f32 %v321, %v317
    %v328 = vmul.f32 %v320, %v318
    %v329 = vmul.f32 %v321, %v319
    %v330 = vadd.f32 %v304, %v322
    %v331 = vadd.f32 %v305, %v323
    %v332 = vadd.f32 %v306, %v324
    %v333 = vadd.f32 %v307, %v325
    %v334 = vadd.f32 %v308, %v326
    %v335 = vadd.f32 %v309, %v327
    %v336 = vadd.f32 %v310, %v328
    %v337 = vadd.f32 %v311, %v329
    %v338 = vld [vmem:[%s123] sm:$0xff]
    %v339 = vld [vmem:[%s123 + $0x8] sm:$0xff]
    %v340 = vld [vmem:[%s123 + $0x10] sm:$0xff]
    %v341 = vld [vmem:[%s123 + $0x18] sm:$0xff]
    %v342 = vld [vmem:[%s123 + $0x20] sm:$0xff]
    %v343 = vld [vmem:[%s123 + $0x28] sm:$0xff]
    %v344 = vld [vmem:[%s123 + $0x30] sm:$0xff]
    %v345 = vld [vmem:[%s123 + $0x38] sm:$0xff]
    %v346 = vperm.slane %v240, 4
    %v347 = vperm.slane %v241, 4
    %v348 = vmul.f32 %v346, %v338
    %v349 = vmul.f32 %v347, %v339
    %v350 = vmul.f32 %v346, %v340
    %v351 = vmul.f32 %v347, %v341
    %v352 = vmul.f32 %v346, %v342
    %v353 = vmul.f32 %v347, %v343
    %v354 = vmul.f32 %v346, %v344
    %v355 = vmul.f32 %v347, %v345
    %v356 = vadd.f32 %v330, %v348
    %v357 = vadd.f32 %v331, %v349
    %v358 = vadd.f32 %v332, %v350
    %v359 = vadd.f32 %v333, %v351
    %v360 = vadd.f32 %v334, %v352
    %v361 = vadd.f32 %v335, %v353
    %v362 = vadd.f32 %v336, %v354
    %v363 = vadd.f32 %v337, %v355
    %v364 = vld [vmem:[%s150] sm:$0xff]
    %v365 = vld [vmem:[%s150 + $0x8] sm:$0xff]
    %v366 = vld [vmem:[%s150 + $0x10] sm:$0xff]
    %v367 = vld [vmem:[%s150 + $0x18] sm:$0xff]
    %v368 = vld [vmem:[%s150 + $0x20] sm:$0xff]
    %v369 = vld [vmem:[%s150 + $0x28] sm:$0xff]
    %v370 = vld [vmem:[%s150 + $0x30] sm:$0xff]
    %v371 = vld [vmem:[%s150 + $0x38] sm:$0xff]
    %v372 = vperm.slane %v240, 5
    %v373 = vperm.slane %v241, 5
    %v374 = vmul.f32 %v372, %v364
    %v375 = vmul.f32 %v373, %v365
    %v376 = vmul.f32 %v372, %v366
    %v377 = vmul.f32 %v373, %v367
    %v378 = vmul.f32 %v372, %v368
    %v379 = vmul.f32 %v373, %v369
    %v380 = vmul.f32 %v372, %v370
    %v381 = vmul.f32 %v373, %v371
    %v382 = vadd.f32 %v356, %v374
    %v383 = vadd.f32 %v357, %v375
    %v384 = vadd.f32 %v358, %v376
    %v385 = vadd.f32 %v359, %v377
    %v386 = vadd.f32 %v360, %v378
    %v387 = vadd.f32 %v361, %v379
    %v388 = vadd.f32 %v362, %v380
    %v389 = vadd.f32 %v363, %v381
    %v390 = vld [vmem:[%s177] sm:$0xff]
    %v391 = vld [vmem:[%s177 + $0x8] sm:$0xff]
    %v392 = vld [vmem:[%s177 + $0x10] sm:$0xff]
    %v393 = vld [vmem:[%s177 + $0x18] sm:$0xff]
    %v394 = vld [vmem:[%s177 + $0x20] sm:$0xff]
    %v395 = vld [vmem:[%s177 + $0x28] sm:$0xff]
    %v396 = vld [vmem:[%s177 + $0x30] sm:$0xff]
    %v397 = vld [vmem:[%s177 + $0x38] sm:$0xff]
    %v398 = vperm.slane %v240, 6
    %v399 = vperm.slane %v241, 6
    %v400 = vmul.f32 %v398, %v390
    %v401 = vmul.f32 %v399, %v391
    %v402 = vmul.f32 %v398, %v392
    %v403 = vmul.f32 %v399, %v393
    %v404 = vmul.f32 %v398, %v394
    %v405 = vmul.f32 %v399, %v395
    %v406 = vmul.f32 %v398, %v396
    %v407 = vmul.f32 %v399, %v397
    %v408 = vadd.f32 %v382, %v400
    %v409 = vadd.f32 %v383, %v401
    %v410 = vadd.f32 %v384, %v402
    %v411 = vadd.f32 %v385, %v403
    %v412 = vadd.f32 %v386, %v404
    %v413 = vadd.f32 %v387, %v405
    %v414 = vadd.f32 %v388, %v406
    %v415 = vadd.f32 %v389, %v407
    %v416 = vld [vmem:[%s204] sm:$0xff]
    %v417 = vld [vmem:[%s204 + $0x8] sm:$0xff]
    %v418 = vld [vmem:[%s204 + $0x10] sm:$0xff]
    %v419 = vld [vmem:[%s204 + $0x18] sm:$0xff]
    %v420 = vld [vmem:[%s204 + $0x20] sm:$0xff]
    %v421 = vld [vmem:[%s204 + $0x28] sm:$0xff]
    %v422 = vld [vmem:[%s204 + $0x30] sm:$0xff]
    %v423 = vld [vmem:[%s204 + $0x38] sm:$0xff]
    %v424 = vperm.slane %v240, 7
    %v425 = vperm.slane %v241, 7
    %v426 = vmul.f32 %v424, %v416
    %v427 = vmul.f32 %v425, %v417
    %v428 = vmul.f32 %v424, %v418
    %v429 = vmul.f32 %v425, %v419
    %v430 = vmul.f32 %v424, %v420
    %v431 = vmul.f32 %v425, %v421
    %v432 = vmul.f32 %v424, %v422
    %v433 = vmul.f32 %v425, %v423
    %v434 = vadd.f32 %v408, %v426
    %v435 = vadd.f32 %v409, %v427
    %v436 = vadd.f32 %v410, %v428
    %v437 = vadd.f32 %v411, %v429
    %v438 = vadd.f32 %v412, %v430
    %v439 = vadd.f32 %v413, %v431
    %v440 = vadd.f32 %v414, %v432
    %v441 = vadd.f32 %v415, %v433
    %v442 = vpack.c.bf16 %v435, %v434
    %v443 = vpack.c.bf16 %v437, %v436
    %v444 = vpack.c.bf16 %v439, %v438
    %v445 = vpack.c.bf16 %v441, %v440
    %446 = vst [vmem:[#allocation2 + $0x20] sm:$0xff] %v442
    %447 = vst [vmem:[#allocation2 + $0x28] sm:$0xff] %v443
    %448 = vst [vmem:[#allocation2 + $0x30] sm:$0xff] %v444
    %449 = vst [vmem:[#allocation2 + $0x38] sm:$0xff] %v445
    %s450 = scalar_lea.vmem %s0, 32
    %v451 = vld [vmem:[%s450] sm:$0xff]
    %v452 = vld [vmem:[%s450 + $0x8] sm:$0xff]
    %v453 = vld [vmem:[%s1] sm:$0xff]
    %v454 = vld [vmem:[%s1 + $0x8] sm:$0xff]
    %v455 = vld [vmem:[%s1 + $0x10] sm:$0xff]
    %v456 = vld [vmem:[%s1 + $0x18] sm:$0xff]
    %v457 = vld [vmem:[%s1 + $0x20] sm:$0xff]
    %v458 = vld [vmem:[%s1 + $0x28] sm:$0xff]
    %v459 = vld [vmem:[%s1 + $0x30] sm:$0xff]
    %v460 = vld [vmem:[%s1 + $0x38] sm:$0xff]
    %v461 = vperm.slane %v451, 0
    %v462 = vperm.slane %v452, 0
    %v463 = vmul.f32 %v461, %v453
    %v464 = vmul.f32 %v462, %v454
    %v465 = vmul.f32 %v461, %v455
    %v466 = vmul.f32 %v462, %v456
    %v467 = vmul.f32 %v461, %v457
    %v468 = vmul.f32 %v462, %v458
    %v469 = vmul.f32 %v461, %v459
    %v470 = vmul.f32 %v462, %v460
    %v471 = vld [vmem:[%s42] sm:$0xff]
    %v472 = vld [vmem:[%s42 + $0x8] sm:$0xff]
    %v473 = vld [vmem:[%s42 + $0x10] sm:$0xff]
    %v474 = vld [vmem:[%s42 + $0x18] sm:$0xff]
    %v475 = vld [vmem:[%s42 + $0x20] sm:$0xff]
    %v476 = vld [vmem:[%s42 + $0x28] sm:$0xff]
    %v477 = vld [vmem:[%s42 + $0x30] sm:$0xff]
    %v478 = vld [vmem:[%s42 + $0x38] sm:$0xff]
    %v479 = vperm.slane %v451, 1
    %v480 = vperm.slane %v452, 1
    %v481 = vmul.f32 %v479, %v471
    %v482 = vmul.f32 %v480, %v472
    %v483 = vmul.f32 %v479, %v473
    %v484 = vmul.f32 %v480, %v474
    %v485 = vmul.f32 %v479, %v475
    %v486 = vmul.f32 %v480, %v476
    %v487 = vmul.f32 %v479, %v477
    %v488 = vmul.f32 %v480, %v478
    %v489 = vadd.f32 %v463, %v481
    %v490 = vadd.f32 %v464, %v482
    %v491 = vadd.f32 %v465, %v483
    %v492 = vadd.f32 %v466, %v484
    %v493 = vadd.f32 %v467, %v485
    %v494 = vadd.f32 %v468, %v486
    %v495 = vadd.f32 %v469, %v487
    %v496 = vadd.f32 %v470, %v488
    %v497 = vld [vmem:[%s69] sm:$0xff]
    %v498 = vld [vmem:[%s69 + $0x8] sm:$0xff]
    %v499 = vld [vmem:[%s69 + $0x10] sm:$0xff]
    %v500 = vld [vmem:[%s69 + $0x18] sm:$0xff]
    %v501 = vld [vmem:[%s69 + $0x20] sm:$0xff]
    %v502 = vld [vmem:[%s69 + $0x28] sm:$0xff]
    %v503 = vld [vmem:[%s69 + $0x30] sm:$0xff]
    %v504 = vld [vmem:[%s69 + $0x38] sm:$0xff]
    %v505 = vperm.slane %v451, 2
    %v506 = vperm.slane %v452, 2
    %v507 = vmul.f32 %v505, %v497
    %v508 = vmul.f32 %v506, %v498
    %v509 = vmul.f32 %v505, %v499
    %v510 = vmul.f32 %v506, %v500
    %v511 = vmul.f32 %v505, %v501
    %v512 = vmul.f32 %v506, %v502
    %v513 = vmul.f32 %v505, %v503
    %v514 = vmul.f32 %v506, %v504
    %v515 = vadd.f32 %v489, %v507
    %v516 = vadd.f32 %v490, %v508
    %v517 = vadd.f32 %v491, %v509
    %v518 = vadd.f32 %v492, %v510
    %v519 = vadd.f32 %v493, %v511
    %v520 = vadd.f32 %v494, %v512
    %v521 = vadd.f32 %v495, %v513
    %v522 = vadd.f32 %v496, %v514
    %v523 = vld [vmem:[%s96] sm:$0xff]
    %v524 = vld [vmem:[%s96 + $0x8] sm:$0xff]
    %v525 = vld [vmem:[%s96 + $0x10] sm:$0xff]
    %v526 = vld [vmem:[%s96 + $0x18] sm:$0xff]
    %v527 = vld [vmem:[%s96 + $0x20] sm:$0xff]
    %v528 = vld [vmem:[%s96 + $0x28] sm:$0xff]
    %v529 = vld [vmem:[%s96 + $0x30] sm:$0xff]
    %v530 = vld [vmem:[%s96 + $0x38] sm:$0xff]
    %v531 = vperm.slane %v451, 3
    %v532 = vperm.slane %v452, 3
    %v533 = vmul.f32 %v531, %v523
    %v534 = vmul.f32 %v532, %v524
    %v535 = vmul.f32 %v531, %v525
    %v536 = vmul.f32 %v532, %v526
    %v537 = vmul.f32 %v531, %v527
    %v538 = vmul.f32 %v532, %v528
    %v539 = vmul.f32 %v531, %v529
    %v540 = vmul.f32 %v532, %v530
    %v541 = vadd.f32 %v515, %v533
    %v542 = vadd.f32 %v516, %v534
    %v543 = vadd.f32 %v517, %v535
    %v544 = vadd.f32 %v518, %v536
    %v545 = vadd.f32 %v519, %v537
    %v546 = vadd.f32 %v520, %v538
    %v547 = vadd.f32 %v521, %v539
    %v548 = vadd.f32 %v522, %v540
    %v549 = vld [vmem:[%s123] sm:$0xff]
    %v550 = vld [vmem:[%s123 + $0x8] sm:$0xff]
    %v551 = vld [vmem:[%s123 + $0x10] sm:$0xff]
    %v552 = vld [vmem:[%s123 + $0x18] sm:$0xff]
    %v553 = vld [vmem:[%s123 + $0x20] sm:$0xff]
    %v554 = vld [vmem:[%s123 + $0x28] sm:$0xff]
    %v555 = vld [vmem:[%s123 + $0x30] sm:$0xff]
    %v556 = vld [vmem:[%s123 + $0x38] sm:$0xff]
    %v557 = vperm.slane %v451, 4
    %v558 = vperm.slane %v452, 4
    %v559 = vmul.f32 %v557, %v549
    %v560 = vmul.f32 %v558, %v550
    %v561 = vmul.f32 %v557, %v551
    %v562 = vmul.f32 %v558, %v552
    %v563 = vmul.f32 %v557, %v553
    %v564 = vmul.f32 %v558, %v554
    %v565 = vmul.f32 %v557, %v555
    %v566 = vmul.f32 %v558, %v556
    %v567 = vadd.f32 %v541, %v559
    %v568 = vadd.f32 %v542, %v560
    %v569 = vadd.f32 %v543, %v561
    %v570 = vadd.f32 %v544, %v562
    %v571 = vadd.f32 %v545, %v563
    %v572 = vadd.f32 %v546, %v564
    %v573 = vadd.f32 %v547, %v565
    %v574 = vadd.f32 %v548, %v566
    %v575 = vld [vmem:[%s150] sm:$0xff]
    %v576 = vld [vmem:[%s150 + $0x8] sm:$0xff]
    %v577 = vld [vmem:[%s150 + $0x10] sm:$0xff]
    %v578 = vld [vmem:[%s150 + $0x18] sm:$0xff]
    %v579 = vld [vmem:[%s150 + $0x20] sm:$0xff]
    %v580 = vld [vmem:[%s150 + $0x28] sm:$0xff]
    %v581 = vld [vmem:[%s150 + $0x30] sm:$0xff]
    %v582 = vld [vmem:[%s150 + $0x38] sm:$0xff]
    %v583 = vperm.slane %v451, 5
    %v584 = vperm.slane %v452, 5
    %v585 = vmul.f32 %v583, %v575
    %v586 = vmul.f32 %v584, %v576
    %v587 = vmul.f32 %v583, %v577
    %v588 = vmul.f32 %v584, %v578
    %v589 = vmul.f32 %v583, %v579
    %v590 = vmul.f32 %v584, %v580
    %v591 = vmul.f32 %v583, %v581
    %v592 = vmul.f32 %v584, %v582
    %v593 = vadd.f32 %v567, %v585
    %v594 = vadd.f32 %v568, %v586
    %v595 = vadd.f32 %v569, %v587
    %v596 = vadd.f32 %v570, %v588
    %v597 = vadd.f32 %v571, %v589
    %v598 = vadd.f32 %v572, %v590
    %v599 = vadd.f32 %v573, %v591
    %v600 = vadd.f32 %v574, %v592
    %v601 = vld [vmem:[%s177] sm:$0xff]
    %v602 = vld [vmem:[%s177 + $0x8] sm:$0xff]
    %v603 = vld [vmem:[%s177 + $0x10] sm:$0xff]
    %v604 = vld [vmem:[%s177 + $0x18] sm:$0xff]
    %v605 = vld [vmem:[%s177 + $0x20] sm:$0xff]
    %v606 = vld [vmem:[%s177 + $0x28] sm:$0xff]
    %v607 = vld [vmem:[%s177 + $0x30] sm:$0xff]
    %v608 = vld [vmem:[%s177 + $0x38] sm:$0xff]
    %v609 = vperm.slane %v451, 6
    %v610 = vperm.slane %v452, 6
    %v611 = vmul.f32 %v609, %v601
    %v612 = vmul.f32 %v610, %v602
    %v613 = vmul.f32 %v609, %v603
    %v614 = vmul.f32 %v610, %v604
    %v615 = vmul.f32 %v609, %v605
    %v616 = vmul.f32 %v610, %v606
    %v617 = vmul.f32 %v609, %v607
    %v618 = vmul.f32 %v610, %v608
    %v619 = vadd.f32 %v593, %v611
    %v620 = vadd.f32 %v594, %v612
    %v621 = vadd.f32 %v595, %v613
    %v622 = vadd.f32 %v596, %v614
    %v623 = vadd.f32 %v597, %v615
    %v624 = vadd.f32 %v598, %v616
    %v625 = vadd.f32 %v599, %v617
    %v626 = vadd.f32 %v600, %v618
    %v627 = vld [vmem:[%s204] sm:$0xff]
    %v628 = vld [vmem:[%s204 + $0x8] sm:$0xff]
    %v629 = vld [vmem:[%s204 + $0x10] sm:$0xff]
    %v630 = vld [vmem:[%s204 + $0x18] sm:$0xff]
    %v631 = vld [vmem:[%s204 + $0x20] sm:$0xff]
    %v632 = vld [vmem:[%s204 + $0x28] sm:$0xff]
    %v633 = vld [vmem:[%s204 + $0x30] sm:$0xff]
    %v634 = vld [vmem:[%s204 + $0x38] sm:$0xff]
    %v635 = vperm.slane %v451, 7
    %v636 = vperm.slane %v452, 7
    %v637 = vmul.f32 %v635, %v627
    %v638 = vmul.f32 %v636, %v628
    %v639 = vmul.f32 %v635, %v629
    %v640 = vmul.f32 %v636, %v630
    %v641 = vmul.f32 %v635, %v631
    %v642 = vmul.f32 %v636, %v632
    %v643 = vmul.f32 %v635, %v633
    %v644 = vmul.f32 %v636, %v634
    %v645 = vadd.f32 %v619, %v637
    %v646 = vadd.f32 %v620, %v638
    %v647 = vadd.f32 %v621, %v639
    %v648 = vadd.f32 %v622, %v640
    %v649 = vadd.f32 %v623, %v641
    %v650 = vadd.f32 %v624, %v642
    %v651 = vadd.f32 %v625, %v643
    %v652 = vadd.f32 %v626, %v644
    %v653 = vpack.c.bf16 %v646, %v645
    %v654 = vpack.c.bf16 %v648, %v647
    %v655 = vpack.c.bf16 %v650, %v649
    %v656 = vpack.c.bf16 %v652, %v651
    %657 = vst [vmem:[#allocation2 + $0x40] sm:$0xff] %v653
    %658 = vst [vmem:[#allocation2 + $0x48] sm:$0xff] %v654
    %659 = vst [vmem:[#allocation2 + $0x50] sm:$0xff] %v655
    %660 = vst [vmem:[#allocation2 + $0x58] sm:$0xff] %v656
    %s661 = scalar_lea.vmem %s0, 48
    %v662 = vld [vmem:[%s661] sm:$0xff]
    %v663 = vld [vmem:[%s661 + $0x8] sm:$0xff]
    %v664 = vld [vmem:[%s1] sm:$0xff]
    %v665 = vld [vmem:[%s1 + $0x8] sm:$0xff]
    %v666 = vld [vmem:[%s1 + $0x10] sm:$0xff]
    %v667 = vld [vmem:[%s1 + $0x18] sm:$0xff]
    %v668 = vld [vmem:[%s1 + $0x20] sm:$0xff]
    %v669 = vld [vmem:[%s1 + $0x28] sm:$0xff]
    %v670 = vld [vmem:[%s1 + $0x30] sm:$0xff]
    %v671 = vld [vmem:[%s1 + $0x38] sm:$0xff]
    %v672 = vperm.slane %v662, 0
    %v673 = vperm.slane %v663, 0
    %v674 = vmul.f32 %v672, %v664
    %v675 = vmul.f32 %v673, %v665
    %v676 = vmul.f32 %v672, %v666
    %v677 = vmul.f32 %v673, %v667
    %v678 = vmul.f32 %v672, %v668
    %v679 = vmul.f32 %v673, %v669
    %v680 = vmul.f32 %v672, %v670
    %v681 = vmul.f32 %v673, %v671
    %v682 = vld [vmem:[%s42] sm:$0xff]
    %v683 = vld [vmem:[%s42 + $0x8] sm:$0xff]
    %v684 = vld [vmem:[%s42 + $0x10] sm:$0xff]
    %v685 = vld [vmem:[%s42 + $0x18] sm:$0xff]
    %v686 = vld [vmem:[%s42 + $0x20] sm:$0xff]
    %v687 = vld [vmem:[%s42 + $0x28] sm:$0xff]
    %v688 = vld [vmem:[%s42 + $0x30] sm:$0xff]
    %v689 = vld [vmem:[%s42 + $0x38] sm:$0xff]
    %v690 = vperm.slane %v662, 1
    %v691 = vperm.slane %v663, 1
    %v692 = vmul.f32 %v690, %v682
    %v693 = vmul.f32 %v691, %v683
    %v694 = vmul.f32 %v690, %v684
    %v695 = vmul.f32 %v691, %v685
    %v696 = vmul.f32 %v690, %v686
    %v697 = vmul.f32 %v691, %v687
    %v698 = vmul.f32 %v690, %v688
    %v699 = vmul.f32 %v691, %v689
    %v700 = vadd.f32 %v674, %v692
    %v701 = vadd.f32 %v675, %v693
    %v702 = vadd.f32 %v676, %v694
    %v703 = vadd.f32 %v677, %v695
    %v704 = vadd.f32 %v678, %v696
    %v705 = vadd.f32 %v679, %v697
    %v706 = vadd.f32 %v680, %v698
    %v707 = vadd.f32 %v681, %v699
    %v708 = vld [vmem:[%s69] sm:$0xff]
    %v709 = vld [vmem:[%s69 + $0x8] sm:$0xff]
    %v710 = vld [vmem:[%s69 + $0x10] sm:$0xff]
    %v711 = vld [vmem:[%s69 + $0x18] sm:$0xff]
    %v712 = vld [vmem:[%s69 + $0x20] sm:$0xff]
    %v713 = vld [vmem:[%s69 + $0x28] sm:$0xff]
    %v714 = vld [vmem:[%s69 + $0x30] sm:$0xff]
    %v715 = vld [vmem:[%s69 + $0x38] sm:$0xff]
    %v716 = vperm.slane %v662, 2
    %v717 = vperm.slane %v663, 2
    %v718 = vmul.f32 %v716, %v708
    %v719 = vmul.f32 %v717, %v709
    %v720 = vmul.f32 %v716, %v710
    %v721 = vmul.f32 %v717, %v711
    %v722 = vmul.f32 %v716, %v712
    %v723 = vmul.f32 %v717, %v713
    %v724 = vmul.f32 %v716, %v714
    %v725 = vmul.f32 %v717, %v715
    %v726 = vadd.f32 %v700, %v718
    %v727 = vadd.f32 %v701, %v719
    %v728 = vadd.f32 %v702, %v720
    %v729 = vadd.f32 %v703, %v721
    %v730 = vadd.f32 %v704, %v722
    %v731 = vadd.f32 %v705, %v723
    %v732 = vadd.f32 %v706, %v724
    %v733 = vadd.f32 %v707, %v725
    %v734 = vld [vmem:[%s96] sm:$0xff]
    %v735 = vld [vmem:[%s96 + $0x8] sm:$0xff]
    %v736 = vld [vmem:[%s96 + $0x10] sm:$0xff]
    %v737 = vld [vmem:[%s96 + $0x18] sm:$0xff]
    %v738 = vld [vmem:[%s96 + $0x20] sm:$0xff]
    %v739 = vld [vmem:[%s96 + $0x28] sm:$0xff]
    %v740 = vld [vmem:[%s96 + $0x30] sm:$0xff]
    %v741 = vld [vmem:[%s96 + $0x38] sm:$0xff]
    %v742 = vperm.slane %v662, 3
    %v743 = vperm.slane %v663, 3
    %v744 = vmul.f32 %v742, %v734
    %v745 = vmul.f32 %v743, %v735
    %v746 = vmul.f32 %v742, %v736
    %v747 = vmul.f32 %v743, %v737
    %v748 = vmul.f32 %v742, %v738
    %v749 = vmul.f32 %v743, %v739
    %v750 = vmul.f32 %v742, %v740
    %v751 = vmul.f32 %v743, %v741
    %v752 = vadd.f32 %v726, %v744
    %v753 = vadd.f32 %v727, %v745
    %v754 = vadd.f32 %v728, %v746
    %v755 = vadd.f32 %v729, %v747
    %v756 = vadd.f32 %v730, %v748
    %v757 = vadd.f32 %v731, %v749
    %v758 = vadd.f32 %v732, %v750
    %v759 = vadd.f32 %v733, %v751
    %v760 = vld [vmem:[%s123] sm:$0xff]
    %v761 = vld [vmem:[%s123 + $0x8] sm:$0xff]
    %v762 = vld [vmem:[%s123 + $0x10] sm:$0xff]
    %v763 = vld [vmem:[%s123 + $0x18] sm:$0xff]
    %v764 = vld [vmem:[%s123 + $0x20] sm:$0xff]
    %v765 = vld [vmem:[%s123 + $0x28] sm:$0xff]
    %v766 = vld [vmem:[%s123 + $0x30] sm:$0xff]
    %v767 = vld [vmem:[%s123 + $0x38] sm:$0xff]
    %v768 = vperm.slane %v662, 4
    %v769 = vperm.slane %v663, 4
    %v770 = vmul.f32 %v768, %v760
    %v771 = vmul.f32 %v769, %v761
    %v772 = vmul.f32 %v768, %v762
    %v773 = vmul.f32 %v769, %v763
    %v774 = vmul.f32 %v768, %v764
    %v775 = vmul.f32 %v769, %v765
    %v776 = vmul.f32 %v768, %v766
    %v777 = vmul.f32 %v769, %v767
    %v778 = vadd.f32 %v752, %v770
    %v779 = vadd.f32 %v753, %v771
    %v780 = vadd.f32 %v754, %v772
    %v781 = vadd.f32 %v755, %v773
    %v782 = vadd.f32 %v756, %v774
    %v783 = vadd.f32 %v757, %v775
    %v784 = vadd.f32 %v758, %v776
    %v785 = vadd.f32 %v759, %v777
    %v786 = vld [vmem:[%s150] sm:$0xff]
    %v787 = vld [vmem:[%s150 + $0x8] sm:$0xff]
    %v788 = vld [vmem:[%s150 + $0x10] sm:$0xff]
    %v789 = vld [vmem:[%s150 + $0x18] sm:$0xff]
    %v790 = vld [vmem:[%s150 + $0x20] sm:$0xff]
    %v791 = vld [vmem:[%s150 + $0x28] sm:$0xff]
    %v792 = vld [vmem:[%s150 + $0x30] sm:$0xff]
    %v793 = vld [vmem:[%s150 + $0x38] sm:$0xff]
    %v794 = vperm.slane %v662, 5
    %v795 = vperm.slane %v663, 5
    %v796 = vmul.f32 %v794, %v786
    %v797 = vmul.f32 %v795, %v787
    %v798 = vmul.f32 %v794, %v788
    %v799 = vmul.f32 %v795, %v789
    %v800 = vmul.f32 %v794, %v790
    %v801 = vmul.f32 %v795, %v791
    %v802 = vmul.f32 %v794, %v792
    %v803 = vmul.f32 %v795, %v793
    %v804 = vadd.f32 %v778, %v796
    %v805 = vadd.f32 %v779, %v797
    %v806 = vadd.f32 %v780, %v798
    %v807 = vadd.f32 %v781, %v799
    %v808 = vadd.f32 %v782, %v800
    %v809 = vadd.f32 %v783, %v801
    %v810 = vadd.f32 %v784, %v802
    %v811 = vadd.f32 %v785, %v803
    %v812 = vld [vmem:[%s177] sm:$0xff]
    %v813 = vld [vmem:[%s177 + $0x8] sm:$0xff]
    %v814 = vld [vmem:[%s177 + $0x10] sm:$0xff]
    %v815 = vld [vmem:[%s177 + $0x18] sm:$0xff]
    %v816 = vld [vmem:[%s177 + $0x20] sm:$0xff]
    %v817 = vld [vmem:[%s177 + $0x28] sm:$0xff]
    %v818 = vld [vmem:[%s177 + $0x30] sm:$0xff]
    %v819 = vld [vmem:[%s177 + $0x38] sm:$0xff]
    %v820 = vperm.slane %v662, 6
    %v821 = vperm.slane %v663, 6
    %v822 = vmul.f32 %v820, %v812
    %v823 = vmul.f32 %v821, %v813
    %v824 = vmul.f32 %v820, %v814
    %v825 = vmul.f32 %v821, %v815
    %v826 = vmul.f32 %v820, %v816
    %v827 = vmul.f32 %v821, %v817
    %v828 = vmul.f32 %v820, %v818
    %v829 = vmul.f32 %v821, %v819
    %v830 = vadd.f32 %v804, %v822
    %v831 = vadd.f32 %v805, %v823
    %v832 = vadd.f32 %v806, %v824
    %v833 = vadd.f32 %v807, %v825
    %v834 = vadd.f32 %v808, %v826
    %v835 = vadd.f32 %v809, %v827
    %v836 = vadd.f32 %v810, %v828
    %v837 = vadd.f32 %v811, %v829
    %v838 = vld [vmem:[%s204] sm:$0xff]
    %v839 = vld [vmem:[%s204 + $0x8] sm:$0xff]
    %v840 = vld [vmem:[%s204 + $0x10] sm:$0xff]
    %v841 = vld [vmem:[%s204 + $0x18] sm:$0xff]
    %v842 = vld [vmem:[%s204 + $0x20] sm:$0xff]
    %v843 = vld [vmem:[%s204 + $0x28] sm:$0xff]
    %v844 = vld [vmem:[%s204 + $0x30] sm:$0xff]
    %v845 = vld [vmem:[%s204 + $0x38] sm:$0xff]
    %v846 = vperm.slane %v662, 7
    %v847 = vperm.slane %v663, 7
    %v848 = vmul.f32 %v846, %v838
    %v849 = vmul.f32 %v847, %v839
    %v850 = vmul.f32 %v846, %v840
    %v851 = vmul.f32 %v847, %v841
    %v852 = vmul.f32 %v846, %v842
    %v853 = vmul.f32 %v847, %v843
    %v854 = vmul.f32 %v846, %v844
    %v855 = vmul.f32 %v847, %v845
    %v856 = vadd.f32 %v830, %v848
    %v857 = vadd.f32 %v831, %v849
    %v858 = vadd.f32 %v832, %v850
    %v859 = vadd.f32 %v833, %v851
    %v860 = vadd.f32 %v834, %v852
    %v861 = vadd.f32 %v835, %v853
    %v862 = vadd.f32 %v836, %v854
    %v863 = vadd.f32 %v837, %v855
    %v864 = vpack.c.bf16 %v857, %v856
    %v865 = vpack.c.bf16 %v859, %v858
    %v866 = vpack.c.bf16 %v861, %v860
    %v867 = vpack.c.bf16 %v863, %v862
    %868 = vst [vmem:[#allocation2 + $0x60] sm:$0xff] %v864
    %869 = vst [vmem:[#allocation2 + $0x68] sm:$0xff] %v865
    %870 = vst [vmem:[#allocation2 + $0x70] sm:$0xff] %v866
    %871 = vst [vmem:[#allocation2 + $0x78] sm:$0xff] %v867
    %s872 = scalar_lea.vmem %s0, 64
    %v873 = vld [vmem:[%s872] sm:$0xff]
    %v874 = vld [vmem:[%s872 + $0x8] sm:$0xff]
    %v875 = vld [vmem:[%s1] sm:$0xff]
    %v876 = vld [vmem:[%s1 + $0x8] sm:$0xff]
    %v877 = vld [vmem:[%s1 + $0x10] sm:$0xff]
    %v878 = vld [vmem:[%s1 + $0x18] sm:$0xff]
    %v879 = vld [vmem:[%s1 + $0x20] sm:$0xff]
    %v880 = vld [vmem:[%s1 + $0x28] sm:$0xff]
    %v881 = vld [vmem:[%s1 + $0x30] sm:$0xff]
    %v882 = vld [vmem:[%s1 + $0x38] sm:$0xff]
    %v883 = vperm.slane %v873, 0
    %v884 = vperm.slane %v874, 0
    %v885 = vmul.f32 %v883, %v875
    %v886 = vmul.f32 %v884, %v876
    %v887 = vmul.f32 %v883, %v877
    %v888 = vmul.f32 %v884, %v878
    %v889 = vmul.f32 %v883, %v879
    %v890 = vmul.f32 %v884, %v880
    %v891 = vmul.f32 %v883, %v881
    %v892 = vmul.f32 %v884, %v882
    %v893 = vld [vmem:[%s42] sm:$0xff]
    %v894 = vld [vmem:[%s42 + $0x8] sm:$0xff]
    %v895 = vld [vmem:[%s42 + $0x10] sm:$0xff]
    %v896 = vld [vmem:[%s42 + $0x18] sm:$0xff]
    %v897 = vld [vmem:[%s42 + $0x20] sm:$0xff]
    %v898 = vld [vmem:[%s42 + $0x28] sm:$0xff]
    %v899 = vld [vmem:[%s42 + $0x30] sm:$0xff]
    %v900 = vld [vmem:[%s42 + $0x38] sm:$0xff]
    %v901 = vperm.slane %v873, 1
    %v902 = vperm.slane %v874, 1
    %v903 = vmul.f32 %v901, %v893
    %v904 = vmul.f32 %v902, %v894
    %v905 = vmul.f32 %v901, %v895
    %v906 = vmul.f32 %v902, %v896
    %v907 = vmul.f32 %v901, %v897
    %v908 = vmul.f32 %v902, %v898
    %v909 = vmul.f32 %v901, %v899
    %v910 = vmul.f32 %v902, %v900
    %v911 = vadd.f32 %v885, %v903
    %v912 = vadd.f32 %v886, %v904
    %v913 = vadd.f32 %v887, %v905
    %v914 = vadd.f32 %v888, %v906
    %v915 = vadd.f32 %v889, %v907
    %v916 = vadd.f32 %v890, %v908
    %v917 = vadd.f32 %v891, %v909
    %v918 = vadd.f32 %v892, %v910
    %v919 = vld [vmem:[%s69] sm:$0xff]
    %v920 = vld [vmem:[%s69 + $0x8] sm:$0xff]
    %v921 = vld [vmem:[%s69 + $0x10] sm:$0xff]
    %v922 = vld [vmem:[%s69 + $0x18] sm:$0xff]
    %v923 = vld [vmem:[%s69 + $0x20] sm:$0xff]
    %v924 = vld [vmem:[%s69 + $0x28] sm:$0xff]
    %v925 = vld [vmem:[%s69 + $0x30] sm:$0xff]
    %v926 = vld [vmem:[%s69 + $0x38] sm:$0xff]
    %v927 = vperm.slane %v873, 2
    %v928 = vperm.slane %v874, 2
    %v929 = vmul.f32 %v927, %v919
    %v930 = vmul.f32 %v928, %v920
    %v931 = vmul.f32 %v927, %v921
    %v932 = vmul.f32 %v928, %v922
    %v933 = vmul.f32 %v927, %v923
    %v934 = vmul.f32 %v928, %v924
    %v935 = vmul.f32 %v927, %v925
    %v936 = vmul.f32 %v928, %v926
    %v937 = vadd.f32 %v911, %v929
    %v938 = vadd.f32 %v912, %v930
    %v939 = vadd.f32 %v913, %v931
    %v940 = vadd.f32 %v914, %v932
    %v941 = vadd.f32 %v915, %v933
    %v942 = vadd.f32 %v916, %v934
    %v943 = vadd.f32 %v917, %v935
    %v944 = vadd.f32 %v918, %v936
    %v945 = vld [vmem:[%s96] sm:$0xff]
    %v946 = vld [vmem:[%s96 + $0x8] sm:$0xff]
    %v947 = vld [vmem:[%s96 + $0x10] sm:$0xff]
    %v948 = vld [vmem:[%s96 + $0x18] sm:$0xff]
    %v949 = vld [vmem:[%s96 + $0x20] sm:$0xff]
    %v950 = vld [vmem:[%s96 + $0x28] sm:$0xff]
    %v951 = vld [vmem:[%s96 + $0x30] sm:$0xff]
    %v952 = vld [vmem:[%s96 + $0x38] sm:$0xff]
    %v953 = vperm.slane %v873, 3
    %v954 = vperm.slane %v874, 3
    %v955 = vmul.f32 %v953, %v945
    %v956 = vmul.f32 %v954, %v946
    %v957 = vmul.f32 %v953, %v947
    %v958 = vmul.f32 %v954, %v948
    %v959 = vmul.f32 %v953, %v949
    %v960 = vmul.f32 %v954, %v950
    %v961 = vmul.f32 %v953, %v951
    %v962 = vmul.f32 %v954, %v952
    %v963 = vadd.f32 %v937, %v955
    %v964 = vadd.f32 %v938, %v956
    %v965 = vadd.f32 %v939, %v957
    %v966 = vadd.f32 %v940, %v958
    %v967 = vadd.f32 %v941, %v959
    %v968 = vadd.f32 %v942, %v960
    %v969 = vadd.f32 %v943, %v961
    %v970 = vadd.f32 %v944, %v962
    %v971 = vld [vmem:[%s123] sm:$0xff]
    %v972 = vld [vmem:[%s123 + $0x8] sm:$0xff]
    %v973 = vld [vmem:[%s123 + $0x10] sm:$0xff]
    %v974 = vld [vmem:[%s123 + $0x18] sm:$0xff]
    %v975 = vld [vmem:[%s123 + $0x20] sm:$0xff]
    %v976 = vld [vmem:[%s123 + $0x28] sm:$0xff]
    %v977 = vld [vmem:[%s123 + $0x30] sm:$0xff]
    %v978 = vld [vmem:[%s123 + $0x38] sm:$0xff]
    %v979 = vperm.slane %v873, 4
    %v980 = vperm.slane %v874, 4
    %v981 = vmul.f32 %v979, %v971
    %v982 = vmul.f32 %v980, %v972
    %v983 = vmul.f32 %v979, %v973
    %v984 = vmul.f32 %v980, %v974
    %v985 = vmul.f32 %v979, %v975
    %v986 = vmul.f32 %v980, %v976
    %v987 = vmul.f32 %v979, %v977
    %v988 = vmul.f32 %v980, %v978
    %v989 = vadd.f32 %v963, %v981
    %v990 = vadd.f32 %v964, %v982
    %v991 = vadd.f32 %v965, %v983
    %v992 = vadd.f32 %v966, %v984
    %v993 = vadd.f32 %v967, %v985
    %v994 = vadd.f32 %v968, %v986
    %v995 = vadd.f32 %v969, %v987
    %v996 = vadd.f32 %v970, %v988
    %v997 = vld [vmem:[%s150] sm:$0xff]
    %v998 = vld [vmem:[%s150 + $0x8] sm:$0xff]
    %v999 = vld [vmem:[%s150 + $0x10] sm:$0xff]
    %v1000 = vld [vmem:[%s150 + $0x18] sm:$0xff]
    %v1001 = vld [vmem:[%s150 + $0x20] sm:$0xff]
    %v1002 = vld [vmem:[%s150 + $0x28] sm:$0xff]
    %v1003 = vld [vmem:[%s150 + $0x30] sm:$0xff]
    %v1004 = vld [vmem:[%s150 + $0x38] sm:$0xff]
    %v1005 = vperm.slane %v873, 5
    %v1006 = vperm.slane %v874, 5
    %v1007 = vmul.f32 %v1005, %v997
    %v1008 = vmul.f32 %v1006, %v998
    %v1009 = vmul.f32 %v1005, %v999
    %v1010 = vmul.f32 %v1006, %v1000
    %v1011 = vmul.f32 %v1005, %v1001
    %v1012 = vmul.f32 %v1006, %v1002
    %v1013 = vmul.f32 %v1005, %v1003
    %v1014 = vmul.f32 %v1006, %v1004
    %v1015 = vadd.f32 %v989, %v1007
    %v1016 = vadd.f32 %v990, %v1008
    %v1017 = vadd.f32 %v991, %v1009
    %v1018 = vadd.f32 %v992, %v1010
    %v1019 = vadd.f32 %v993, %v1011
    %v1020 = vadd.f32 %v994, %v1012
    %v1021 = vadd.f32 %v995, %v1013
    %v1022 = vadd.f32 %v996, %v1014
    %v1023 = vld [vmem:[%s177] sm:$0xff]
    %v1024 = vld [vmem:[%s177 + $0x8] sm:$0xff]
    %v1025 = vld [vmem:[%s177 + $0x10] sm:$0xff]
    %v1026 = vld [vmem:[%s177 + $0x18] sm:$0xff]
    %v1027 = vld [vmem:[%s177 + $0x20] sm:$0xff]
    %v1028 = vld [vmem:[%s177 + $0x28] sm:$0xff]
    %v1029 = vld [vmem:[%s177 + $0x30] sm:$0xff]
    %v1030 = vld [vmem:[%s177 + $0x38] sm:$0xff]
    %v1031 = vperm.slane %v873, 6
    %v1032 = vperm.slane %v874, 6
    %v1033 = vmul.f32 %v1031, %v1023
    %v1034 = vmul.f32 %v1032, %v1024
    %v1035 = vmul.f32 %v1031, %v1025
    %v1036 = vmul.f32 %v1032, %v1026
    %v1037 = vmul.f32 %v1031, %v1027
    %v1038 = vmul.f32 %v1032, %v1028
    %v1039 = vmul.f32 %v1031, %v1029
    %v1040 = vmul.f32 %v1032, %v1030
    %v1041 = vadd.f32 %v1015, %v1033
    %v1042 = vadd.f32 %v1016, %v1034
    %v1043 = vadd.f32 %v1017, %v1035
    %v1044 = vadd.f32 %v1018, %v1036
    %v1045 = vadd.f32 %v1019, %v1037
    %v1046 = vadd.f32 %v1020, %v1038
    %v1047 = vadd.f32 %v1021, %v1039
    %v1048 = vadd.f32 %v1022, %v1040
    %v1049 = vld [vmem:[%s204] sm:$0xff]
    %v1050 = vld [vmem:[%s204 + $0x8] sm:$0xff]
    %v1051 = vld [vmem:[%s204 + $0x10] sm:$0xff]
    %v1052 = vld [vmem:[%s204 + $0x18] sm:$0xff]
    %v1053 = vld [vmem:[%s204 + $0x20] sm:$0xff]
    %v1054 = vld [vmem:[%s204 + $0x28] sm:$0xff]
    %v1055 = vld [vmem:[%s204 + $0x30] sm:$0xff]
    %v1056 = vld [vmem:[%s204 + $0x38] sm:$0xff]
    %v1057 = vperm.slane %v873, 7
    %v1058 = vperm.slane %v874, 7
    %v1059 = vmul.f32 %v1057, %v1049
    %v1060 = vmul.f32 %v1058, %v1050
    %v1061 = vmul.f32 %v1057, %v1051
    %v1062 = vmul.f32 %v1058, %v1052
    %v1063 = vmul.f32 %v1057, %v1053
    %v1064 = vmul.f32 %v1058, %v1054
    %v1065 = vmul.f32 %v1057, %v1055
    %v1066 = vmul.f32 %v1058, %v1056
    %v1067 = vadd.f32 %v1041, %v1059
    %v1068 = vadd.f32 %v1042, %v1060
    %v1069 = vadd.f32 %v1043, %v1061
    %v1070 = vadd.f32 %v1044, %v1062
    %v1071 = vadd.f32 %v1045, %v1063
    %v1072 = vadd.f32 %v1046, %v1064
    %v1073 = vadd.f32 %v1047, %v1065
    %v1074 = vadd.f32 %v1048, %v1066
    %v1075 = vpack.c.bf16 %v1068, %v1067
    %v1076 = vpack.c.bf16 %v1070, %v1069
    %v1077 = vpack.c.bf16 %v1072, %v1071
    %v1078 = vpack.c.bf16 %v1074, %v1073
    %1079 = vst [vmem:[#allocation2 + $0x80] sm:$0xff] %v1075
    %1080 = vst [vmem:[#allocation2 + $0x88] sm:$0xff] %v1076
    %1081 = vst [vmem:[#allocation2 + $0x90] sm:$0xff] %v1077
    %1082 = vst [vmem:[#allocation2 + $0x98] sm:$0xff] %v1078
    %s1083 = scalar_lea.vmem %s0, 80
    %v1084 = vld [vmem:[%s1083] sm:$0xff]
    %v1085 = vld [vmem:[%s1083 + $0x8] sm:$0xff]
    %v1086 = vld [vmem:[%s1] sm:$0xff]
    %v1087 = vld [vmem:[%s1 + $0x8] sm:$0xff]
    %v1088 = vld [vmem:[%s1 + $0x10] sm:$0xff]
    %v1089 = vld [vmem:[%s1 + $0x18] sm:$0xff]
    %v1090 = vld [vmem:[%s1 + $0x20] sm:$0xff]
    %v1091 = vld [vmem:[%s1 + $0x28] sm:$0xff]
    %v1092 = vld [vmem:[%s1 + $0x30] sm:$0xff]
    %v1093 = vld [vmem:[%s1 + $0x38] sm:$0xff]
    %v1094 = vperm.slane %v1084, 0
    %v1095 = vperm.slane %v1085, 0
    %v1096 = vmul.f32 %v1094, %v1086
    %v1097 = vmul.f32 %v1095, %v1087
    %v1098 = vmul.f32 %v1094, %v1088
    %v1099 = vmul.f32 %v1095, %v1089
    %v1100 = vmul.f32 %v1094, %v1090
    %v1101 = vmul.f32 %v1095, %v1091
    %v1102 = vmul.f32 %v1094, %v1092
    %v1103 = vmul.f32 %v1095, %v1093
    %v1104 = vld [vmem:[%s42] sm:$0xff]
    %v1105 = vld [vmem:[%s42 + $0x8] sm:$0xff]
    %v1106 = vld [vmem:[%s42 + $0x10] sm:$0xff]
    %v1107 = vld [vmem:[%s42 + $0x18] sm:$0xff]
    %v1108 = vld [vmem:[%s42 + $0x20] sm:$0xff]
    %v1109 = vld [vmem:[%s42 + $0x28] sm:$0xff]
    %v1110 = vld [vmem:[%s42 + $0x30] sm:$0xff]
    %v1111 = vld [vmem:[%s42 + $0x38] sm:$0xff]
    %v1112 = vperm.slane %v1084, 1
    %v1113 = vperm.slane %v1085, 1
    %v1114 = vmul.f32 %v1112, %v1104
    %v1115 = vmul.f32 %v1113, %v1105
    %v1116 = vmul.f32 %v1112, %v1106
    %v1117 = vmul.f32 %v1113, %v1107
    %v1118 = vmul.f32 %v1112, %v1108
    %v1119 = vmul.f32 %v1113, %v1109
    %v1120 = vmul.f32 %v1112, %v1110
    %v1121 = vmul.f32 %v1113, %v1111
    %v1122 = vadd.f32 %v1096, %v1114
    %v1123 = vadd.f32 %v1097, %v1115
    %v1124 = vadd.f32 %v1098, %v1116
    %v1125 = vadd.f32 %v1099, %v1117
    %v1126 = vadd.f32 %v1100, %v1118
    %v1127 = vadd.f32 %v1101, %v1119
    %v1128 = vadd.f32 %v1102, %v1120
    %v1129 = vadd.f32 %v1103, %v1121
    %v1130 = vld [vmem:[%s69] sm:$0xff]
    %v1131 = vld [vmem:[%s69 + $0x8] sm:$0xff]
    %v1132 = vld [vmem:[%s69 + $0x10] sm:$0xff]
    %v1133 = vld [vmem:[%s69 + $0x18] sm:$0xff]
    %v1134 = vld [vmem:[%s69 + $0x20] sm:$0xff]
    %v1135 = vld [vmem:[%s69 + $0x28] sm:$0xff]
    %v1136 = vld [vmem:[%s69 + $0x30] sm:$0xff]
    %v1137 = vld [vmem:[%s69 + $0x38] sm:$0xff]
    %v1138 = vperm.slane %v1084, 2
    %v1139 = vperm.slane %v1085, 2
    %v1140 = vmul.f32 %v1138, %v1130
    %v1141 = vmul.f32 %v1139, %v1131
    %v1142 = vmul.f32 %v1138, %v1132
    %v1143 = vmul.f32 %v1139, %v1133
    %v1144 = vmul.f32 %v1138, %v1134
    %v1145 = vmul.f32 %v1139, %v1135
    %v1146 = vmul.f32 %v1138, %v1136
    %v1147 = vmul.f32 %v1139, %v1137
    %v1148 = vadd.f32 %v1122, %v1140
    %v1149 = vadd.f32 %v1123, %v1141
    %v1150 = vadd.f32 %v1124, %v1142
    %v1151 = vadd.f32 %v1125, %v1143
    %v1152 = vadd.f32 %v1126, %v1144
    %v1153 = vadd.f32 %v1127, %v1145
    %v1154 = vadd.f32 %v1128, %v1146
    %v1155 = vadd.f32 %v1129, %v1147
    %v1156 = vld [vmem:[%s96] sm:$0xff]
    %v1157 = vld [vmem:[%s96 + $0x8] sm:$0xff]
    %v1158 = vld [vmem:[%s96 + $0x10] sm:$0xff]
    %v1159 = vld [vmem:[%s96 + $0x18] sm:$0xff]
    %v1160 = vld [vmem:[%s96 + $0x20] sm:$0xff]
    %v1161 = vld [vmem:[%s96 + $0x28] sm:$0xff]
    %v1162 = vld [vmem:[%s96 + $0x30] sm:$0xff]
    %v1163 = vld [vmem:[%s96 + $0x38] sm:$0xff]
    %v1164 = vperm.slane %v1084, 3
    %v1165 = vperm.slane %v1085, 3
    %v1166 = vmul.f32 %v1164, %v1156
    %v1167 = vmul.f32 %v1165, %v1157
    %v1168 = vmul.f32 %v1164, %v1158
    %v1169 = vmul.f32 %v1165, %v1159
    %v1170 = vmul.f32 %v1164, %v1160
    %v1171 = vmul.f32 %v1165, %v1161
    %v1172 = vmul.f32 %v1164, %v1162
    %v1173 = vmul.f32 %v1165, %v1163
    %v1174 = vadd.f32 %v1148, %v1166
    %v1175 = vadd.f32 %v1149, %v1167
    %v1176 = vadd.f32 %v1150, %v1168
    %v1177 = vadd.f32 %v1151, %v1169
    %v1178 = vadd.f32 %v1152, %v1170
    %v1179 = vadd.f32 %v1153, %v1171
    %v1180 = vadd.f32 %v1154, %v1172
    %v1181 = vadd.f32 %v1155, %v1173
    %v1182 = vld [vmem:[%s123] sm:$0xff]
    %v1183 = vld [vmem:[%s123 + $0x8] sm:$0xff]
    %v1184 = vld [vmem:[%s123 + $0x10] sm:$0xff]
    %v1185 = vld [vmem:[%s123 + $0x18] sm:$0xff]
    %v1186 = vld [vmem:[%s123 + $0x20] sm:$0xff]
    %v1187 = vld [vmem:[%s123 + $0x28] sm:$0xff]
    %v1188 = vld [vmem:[%s123 + $0x30] sm:$0xff]
    %v1189 = vld [vmem:[%s123 + $0x38] sm:$0xff]
    %v1190 = vperm.slane %v1084, 4
    %v1191 = vperm.slane %v1085, 4
    %v1192 = vmul.f32 %v1190, %v1182
    %v1193 = vmul.f32 %v1191, %v1183
    %v1194 = vmul.f32 %v1190, %v1184
    %v1195 = vmul.f32 %v1191, %v1185
    %v1196 = vmul.f32 %v1190, %v1186
    %v1197 = vmul.f32 %v1191, %v1187
    %v1198 = vmul.f32 %v1190, %v1188
    %v1199 = vmul.f32 %v1191, %v1189
    %v1200 = vadd.f32 %v1174, %v1192
    %v1201 = vadd.f32 %v1175, %v1193
    %v1202 = vadd.f32 %v1176, %v1194
    %v1203 = vadd.f32 %v1177, %v1195
    %v1204 = vadd.f32 %v1178, %v1196
    %v1205 = vadd.f32 %v1179, %v1197
    %v1206 = vadd.f32 %v1180, %v1198
    %v1207 = vadd.f32 %v1181, %v1199
    %v1208 = vld [vmem:[%s150] sm:$0xff]
    %v1209 = vld [vmem:[%s150 + $0x8] sm:$0xff]
    %v1210 = vld [vmem:[%s150 + $0x10] sm:$0xff]
    %v1211 = vld [vmem:[%s150 + $0x18] sm:$0xff]
    %v1212 = vld [vmem:[%s150 + $0x20] sm:$0xff]
    %v1213 = vld [vmem:[%s150 + $0x28] sm:$0xff]
    %v1214 = vld [vmem:[%s150 + $0x30] sm:$0xff]
    %v1215 = vld [vmem:[%s150 + $0x38] sm:$0xff]
    %v1216 = vperm.slane %v1084, 5
    %v1217 = vperm.slane %v1085, 5
    %v1218 = vmul.f32 %v1216, %v1208
    %v1219 = vmul.f32 %v1217, %v1209
    %v1220 = vmul.f32 %v1216, %v1210
    %v1221 = vmul.f32 %v1217, %v1211
    %v1222 = vmul.f32 %v1216, %v1212
    %v1223 = vmul.f32 %v1217, %v1213
    %v1224 = vmul.f32 %v1216, %v1214
    %v1225 = vmul.f32 %v1217, %v1215
    %v1226 = vadd.f32 %v1200, %v1218
    %v1227 = vadd.f32 %v1201, %v1219
    %v1228 = vadd.f32 %v1202, %v1220
    %v1229 = vadd.f32 %v1203, %v1221
    %v1230 = vadd.f32 %v1204, %v1222
    %v1231 = vadd.f32 %v1205, %v1223
    %v1232 = vadd.f32 %v1206, %v1224
    %v1233 = vadd.f32 %v1207, %v1225
    %v1234 = vld [vmem:[%s177] sm:$0xff]
    %v1235 = vld [vmem:[%s177 + $0x8] sm:$0xff]
    %v1236 = vld [vmem:[%s177 + $0x10] sm:$0xff]
    %v1237 = vld [vmem:[%s177 + $0x18] sm:$0xff]
    %v1238 = vld [vmem:[%s177 + $0x20] sm:$0xff]
    %v1239 = vld [vmem:[%s177 + $0x28] sm:$0xff]
    %v1240 = vld [vmem:[%s177 + $0x30] sm:$0xff]
    %v1241 = vld [vmem:[%s177 + $0x38] sm:$0xff]
    %v1242 = vperm.slane %v1084, 6
    %v1243 = vperm.slane %v1085, 6
    %v1244 = vmul.f32 %v1242, %v1234
    %v1245 = vmul.f32 %v1243, %v1235
    %v1246 = vmul.f32 %v1242, %v1236
    %v1247 = vmul.f32 %v1243, %v1237
    %v1248 = vmul.f32 %v1242, %v1238
    %v1249 = vmul.f32 %v1243, %v1239
    %v1250 = vmul.f32 %v1242, %v1240
    %v1251 = vmul.f32 %v1243, %v1241
    %v1252 = vadd.f32 %v1226, %v1244
    %v1253 = vadd.f32 %v1227, %v1245
    %v1254 = vadd.f32 %v1228, %v1246
    %v1255 = vadd.f32 %v1229, %v1247
    %v1256 = vadd.f32 %v1230, %v1248
    %v1257 = vadd.f32 %v1231, %v1249
    %v1258 = vadd.f32 %v1232, %v1250
    %v1259 = vadd.f32 %v1233, %v1251
    %v1260 = vld [vmem:[%s204] sm:$0xff]
    %v1261 = vld [vmem:[%s204 + $0x8] sm:$0xff]
    %v1262 = vld [vmem:[%s204 + $0x10] sm:$0xff]
    %v1263 = vld [vmem:[%s204 + $0x18] sm:$0xff]
    %v1264 = vld [vmem:[%s204 + $0x20] sm:$0xff]
    %v1265 = vld [vmem:[%s204 + $0x28] sm:$0xff]
    %v1266 = vld [vmem:[%s204 + $0x30] sm:$0xff]
    %v1267 = vld [vmem:[%s204 + $0x38] sm:$0xff]
    %v1268 = vperm.slane %v1084, 7
    %v1269 = vperm.slane %v1085, 7
    %v1270 = vmul.f32 %v1268, %v1260
    %v1271 = vmul.f32 %v1269, %v1261
    %v1272 = vmul.f32 %v1268, %v1262
    %v1273 = vmul.f32 %v1269, %v1263
    %v1274 = vmul.f32 %v1268, %v1264
    %v1275 = vmul.f32 %v1269, %v1265
    %v1276 = vmul.f32 %v1268, %v1266
    %v1277 = vmul.f32 %v1269, %v1267
    %v1278 = vadd.f32 %v1252, %v1270
    %v1279 = vadd.f32 %v1253, %v1271
    %v1280 = vadd.f32 %v1254, %v1272
    %v1281 = vadd.f32 %v1255, %v1273
    %v1282 = vadd.f32 %v1256, %v1274
    %v1283 = vadd.f32 %v1257, %v1275
    %v1284 = vadd.f32 %v1258, %v1276
    %v1285 = vadd.f32 %v1259, %v1277
    %v1286 = vpack.c.bf16 %v1279, %v1278
    %v1287 = vpack.c.bf16 %v1281, %v1280
    %v1288 = vpack.c.bf16 %v1283, %v1282
    %v1289 = vpack.c.bf16 %v1285, %v1284
    %1290 = vst [vmem:[#allocation2 + $0xa0] sm:$0xff] %v1286
    %1291 = vst [vmem:[#allocation2 + $0xa8] sm:$0xff] %v1287
    %1292 = vst [vmem:[#allocation2 + $0xb0] sm:$0xff] %v1288
    %1293 = vst [vmem:[#allocation2 + $0xb8] sm:$0xff] %v1289
    %s1294 = scalar_lea.vmem %s0, 96
    %v1295 = vld [vmem:[%s1294] sm:$0xff]
    %v1296 = vld [vmem:[%s1294 + $0x8] sm:$0xff]
    %v1297 = vld [vmem:[%s1] sm:$0xff]
    %v1298 = vld [vmem:[%s1 + $0x8] sm:$0xff]
    %v1299 = vld [vmem:[%s1 + $0x10] sm:$0xff]
    %v1300 = vld [vmem:[%s1 + $0x18] sm:$0xff]
    %v1301 = vld [vmem:[%s1 + $0x20] sm:$0xff]
    %v1302 = vld [vmem:[%s1 + $0x28] sm:$0xff]
    %v1303 = vld [vmem:[%s1 + $0x30] sm:$0xff]
    %v1304 = vld [vmem:[%s1 + $0x38] sm:$0xff]
    %v1305 = vperm.slane %v1295, 0
    %v1306 = vperm.slane %v1296, 0
    %v1307 = vmul.f32 %v1305, %v1297
    %v1308 = vmul.f32 %v1306, %v1298
    %v1309 = vmul.f32 %v1305, %v1299
    %v1310 = vmul.f32 %v1306, %v1300
    %v1311 = vmul.f32 %v1305, %v1301
    %v1312 = vmul.f32 %v1306, %v1302
    %v1313 = vmul.f32 %v1305, %v1303
    %v1314 = vmul.f32 %v1306, %v1304
    %v1315 = vld [vmem:[%s42] sm:$0xff]
    %v1316 = vld [vmem:[%s42 + $0x8] sm:$0xff]
    %v1317 = vld [vmem:[%s42 + $0x10] sm:$0xff]
    %v1318 = vld [vmem:[%s42 + $0x18] sm:$0xff]
    %v1319 = vld [vmem:[%s42 + $0x20] sm:$0xff]
    %v1320 = vld [vmem:[%s42 + $0x28] sm:$0xff]
    %v1321 = vld [vmem:[%s42 + $0x30] sm:$0xff]
    %v1322 = vld [vmem:[%s42 + $0x38] sm:$0xff]
    %v1323 = vperm.slane %v1295, 1
    %v1324 = vperm.slane %v1296, 1
    %v1325 = vmul.f32 %v1323, %v1315
    %v1326 = vmul.f32 %v1324, %v1316
    %v1327 = vmul.f32 %v1323, %v1317
    %v1328 = vmul.f32 %v1324, %v1318
    %v1329 = vmul.f32 %v1323, %v1319
    %v1330 = vmul.f32 %v1324, %v1320
    %v1331 = vmul.f32 %v1323, %v1321
    %v1332 = vmul.f32 %v1324, %v1322
    %v1333 = vadd.f32 %v1307, %v1325
    %v1334 = vadd.f32 %v1308, %v1326
    %v1335 = vadd.f32 %v1309, %v1327
    %v1336 = vadd.f32 %v1310, %v1328
    %v1337 = vadd.f32 %v1311, %v1329
    %v1338 = vadd.f32 %v1312, %v1330
    %v1339 = vadd.f32 %v1313, %v1331
    %v1340 = vadd.f32 %v1314, %v1332
    %v1341 = vld [vmem:[%s69] sm:$0xff]
    %v1342 = vld [vmem:[%s69 + $0x8] sm:$0xff]
    %v1343 = vld [vmem:[%s69 + $0x10] sm:$0xff]
    %v1344 = vld [vmem:[%s69 + $0x18] sm:$0xff]
    %v1345 = vld [vmem:[%s69 + $0x20] sm:$0xff]
    %v1346 = vld [vmem:[%s69 + $0x28] sm:$0xff]
    %v1347 = vld [vmem:[%s69 + $0x30] sm:$0xff]
    %v1348 = vld [vmem:[%s69 + $0x38] sm:$0xff]
    %v1349 = vperm.slane %v1295, 2
    %v1350 = vperm.slane %v1296, 2
    %v1351 = vmul.f32 %v1349, %v1341
    %v1352 = vmul.f32 %v1350, %v1342
    %v1353 = vmul.f32 %v1349, %v1343
    %v1354 = vmul.f32 %v1350, %v1344
    %v1355 = vmul.f32 %v1349, %v1345
    %v1356 = vmul.f32 %v1350, %v1346
    %v1357 = vmul.f32 %v1349, %v1347
    %v1358 = vmul.f32 %v1350, %v1348
    %v1359 = vadd.f32 %v1333, %v1351
    %v1360 = vadd.f32 %v1334, %v1352
    %v1361 = vadd.f32 %v1335, %v1353
    %v1362 = vadd.f32 %v1336, %v1354
    %v1363 = vadd.f32 %v1337, %v1355
    %v1364 = vadd.f32 %v1338, %v1356
    %v1365 = vadd.f32 %v1339, %v1357
    %v1366 = vadd.f32 %v1340, %v1358
    %v1367 = vld [vmem:[%s96] sm:$0xff]
    %v1368 = vld [vmem:[%s96 + $0x8] sm:$0xff]
    %v1369 = vld [vmem:[%s96 + $0x10] sm:$0xff]
    %v1370 = vld [vmem:[%s96 + $0x18] sm:$0xff]
    %v1371 = vld [vmem:[%s96 + $0x20] sm:$0xff]
    %v1372 = vld [vmem:[%s96 + $0x28] sm:$0xff]
    %v1373 = vld [vmem:[%s96 + $0x30] sm:$0xff]
    %v1374 = vld [vmem:[%s96 + $0x38] sm:$0xff]
    %v1375 = vperm.slane %v1295, 3
    %v1376 = vperm.slane %v1296, 3
    %v1377 = vmul.f32 %v1375, %v1367
    %v1378 = vmul.f32 %v1376, %v1368
    %v1379 = vmul.f32 %v1375, %v1369
    %v1380 = vmul.f32 %v1376, %v1370
    %v1381 = vmul.f32 %v1375, %v1371
    %v1382 = vmul.f32 %v1376, %v1372
    %v1383 = vmul.f32 %v1375, %v1373
    %v1384 = vmul.f32 %v1376, %v1374
    %v1385 = vadd.f32 %v1359, %v1377
    %v1386 = vadd.f32 %v1360, %v1378
    %v1387 = vadd.f32 %v1361, %v1379
    %v1388 = vadd.f32 %v1362, %v1380
    %v1389 = vadd.f32 %v1363, %v1381
    %v1390 = vadd.f32 %v1364, %v1382
    %v1391 = vadd.f32 %v1365, %v1383
    %v1392 = vadd.f32 %v1366, %v1384
    %v1393 = vld [vmem:[%s123] sm:$0xff]
    %v1394 = vld [vmem:[%s123 + $0x8] sm:$0xff]
    %v1395 = vld [vmem:[%s123 + $0x10] sm:$0xff]
    %v1396 = vld [vmem:[%s123 + $0x18] sm:$0xff]
    %v1397 = vld [vmem:[%s123 + $0x20] sm:$0xff]
    %v1398 = vld [vmem:[%s123 + $0x28] sm:$0xff]
    %v1399 = vld [vmem:[%s123 + $0x30] sm:$0xff]
    %v1400 = vld [vmem:[%s123 + $0x38] sm:$0xff]
    %v1401 = vperm.slane %v1295, 4
    %v1402 = vperm.slane %v1296, 4
    %v1403 = vmul.f32 %v1401, %v1393
    %v1404 = vmul.f32 %v1402, %v1394
    %v1405 = vmul.f32 %v1401, %v1395
    %v1406 = vmul.f32 %v1402, %v1396
    %v1407 = vmul.f32 %v1401, %v1397
    %v1408 = vmul.f32 %v1402, %v1398
    %v1409 = vmul.f32 %v1401, %v1399
    %v1410 = vmul.f32 %v1402, %v1400
    %v1411 = vadd.f32 %v1385, %v1403
    %v1412 = vadd.f32 %v1386, %v1404
    %v1413 = vadd.f32 %v1387, %v1405
    %v1414 = vadd.f32 %v1388, %v1406
    %v1415 = vadd.f32 %v1389, %v1407
    %v1416 = vadd.f32 %v1390, %v1408
    %v1417 = vadd.f32 %v1391, %v1409
    %v1418 = vadd.f32 %v1392, %v1410
    %v1419 = vld [vmem:[%s150] sm:$0xff]
    %v1420 = vld [vmem:[%s150 + $0x8] sm:$0xff]
    %v1421 = vld [vmem:[%s150 + $0x10] sm:$0xff]
    %v1422 = vld [vmem:[%s150 + $0x18] sm:$0xff]
    %v1423 = vld [vmem:[%s150 + $0x20] sm:$0xff]
    %v1424 = vld [vmem:[%s150 + $0x28] sm:$0xff]
    %v1425 = vld [vmem:[%s150 + $0x30] sm:$0xff]
    %v1426 = vld [vmem:[%s150 + $0x38] sm:$0xff]
    %v1427 = vperm.slane %v1295, 5
    %v1428 = vperm.slane %v1296, 5
    %v1429 = vmul.f32 %v1427, %v1419
    %v1430 = vmul.f32 %v1428, %v1420
    %v1431 = vmul.f32 %v1427, %v1421
    %v1432 = vmul.f32 %v1428, %v1422
    %v1433 = vmul.f32 %v1427, %v1423
    %v1434 = vmul.f32 %v1428, %v1424
    %v1435 = vmul.f32 %v1427, %v1425
    %v1436 = vmul.f32 %v1428, %v1426
    %v1437 = vadd.f32 %v1411, %v1429
    %v1438 = vadd.f32 %v1412, %v1430
    %v1439 = vadd.f32 %v1413, %v1431
    %v1440 = vadd.f32 %v1414, %v1432
    %v1441 = vadd.f32 %v1415, %v1433
    %v1442 = vadd.f32 %v1416, %v1434
    %v1443 = vadd.f32 %v1417, %v1435
    %v1444 = vadd.f32 %v1418, %v1436
    %v1445 = vld [vmem:[%s177] sm:$0xff]
    %v1446 = vld [vmem:[%s177 + $0x8] sm:$0xff]
    %v1447 = vld [vmem:[%s177 + $0x10] sm:$0xff]
    %v1448 = vld [vmem:[%s177 + $0x18] sm:$0xff]
    %v1449 = vld [vmem:[%s177 + $0x20] sm:$0xff]
    %v1450 = vld [vmem:[%s177 + $0x28] sm:$0xff]
    %v1451 = vld [vmem:[%s177 + $0x30] sm:$0xff]
    %v1452 = vld [vmem:[%s177 + $0x38] sm:$0xff]
    %v1453 = vperm.slane %v1295, 6
    %v1454 = vperm.slane %v1296, 6
    %v1455 = vmul.f32 %v1453, %v1445
    %v1456 = vmul.f32 %v1454, %v1446
    %v1457 = vmul.f32 %v1453, %v1447
    %v1458 = vmul.f32 %v1454, %v1448
    %v1459 = vmul.f32 %v1453, %v1449
    %v1460 = vmul.f32 %v1454, %v1450
    %v1461 = vmul.f32 %v1453, %v1451
    %v1462 = vmul.f32 %v1454, %v1452
    %v1463 = vadd.f32 %v1437, %v1455
    %v1464 = vadd.f32 %v1438, %v1456
    %v1465 = vadd.f32 %v1439, %v1457
    %v1466 = vadd.f32 %v1440, %v1458
    %v1467 = vadd.f32 %v1441, %v1459
    %v1468 = vadd.f32 %v1442, %v1460
    %v1469 = vadd.f32 %v1443, %v1461
    %v1470 = vadd.f32 %v1444, %v1462
    %v1471 = vld [vmem:[%s204] sm:$0xff]
    %v1472 = vld [vmem:[%s204 + $0x8] sm:$0xff]
    %v1473 = vld [vmem:[%s204 + $0x10] sm:$0xff]
    %v1474 = vld [vmem:[%s204 + $0x18] sm:$0xff]
    %v1475 = vld [vmem:[%s204 + $0x20] sm:$0xff]
    %v1476 = vld [vmem:[%s204 + $0x28] sm:$0xff]
    %v1477 = vld [vmem:[%s204 + $0x30] sm:$0xff]
    %v1478 = vld [vmem:[%s204 + $0x38] sm:$0xff]
    %v1479 = vperm.slane %v1295, 7
    %v1480 = vperm.slane %v1296, 7
    %v1481 = vmul.f32 %v1479, %v1471
    %v1482 = vmul.f32 %v1480, %v1472
    %v1483 = vmul.f32 %v1479, %v1473
    %v1484 = vmul.f32 %v1480, %v1474
    %v1485 = vmul.f32 %v1479, %v1475
    %v1486 = vmul.f32 %v1480, %v1476
    %v1487 = vmul.f32 %v1479, %v1477
    %v1488 = vmul.f32 %v1480, %v1478
    %v1489 = vadd.f32 %v1463, %v1481
    %v1490 = vadd.f32 %v1464, %v1482
    %v1491 = vadd.f32 %v1465, %v1483
    %v1492 = vadd.f32 %v1466, %v1484
    %v1493 = vadd.f32 %v1467, %v1485
    %v1494 = vadd.f32 %v1468, %v1486
    %v1495 = vadd.f32 %v1469, %v1487
    %v1496 = vadd.f32 %v1470, %v1488
    %v1497 = vpack.c.bf16 %v1490, %v1489
    %v1498 = vpack.c.bf16 %v1492, %v1491
    %v1499 = vpack.c.bf16 %v1494, %v1493
    %v1500 = vpack.c.bf16 %v1496, %v1495
    %1501 = vst [vmem:[#allocation2 + $0xc0] sm:$0xff] %v1497
    %1502 = vst [vmem:[#allocation2 + $0xc8] sm:$0xff] %v1498
    %1503 = vst [vmem:[#allocation2 + $0xd0] sm:$0xff] %v1499
    %1504 = vst [vmem:[#allocation2 + $0xd8] sm:$0xff] %v1500
    %s1505 = scalar_lea.vmem %s0, 112
    %v1506 = vld [vmem:[%s1505] sm:$0xff]
    %v1507 = vld [vmem:[%s1505 + $0x8] sm:$0xff]
    %v1508 = vld [vmem:[%s1] sm:$0xff]
    %v1509 = vld [vmem:[%s1 + $0x8] sm:$0xff]
    %v1510 = vld [vmem:[%s1 + $0x10] sm:$0xff]
    %v1511 = vld [vmem:[%s1 + $0x18] sm:$0xff]
    %v1512 = vld [vmem:[%s1 + $0x20] sm:$0xff]
    %v1513 = vld [vmem:[%s1 + $0x28] sm:$0xff]
    %v1514 = vld [vmem:[%s1 + $0x30] sm:$0xff]
    %v1515 = vld [vmem:[%s1 + $0x38] sm:$0xff]
    %v1516 = vperm.slane %v1506, 0
    %v1517 = vperm.slane %v1507, 0
    %v1518 = vmul.f32 %v1516, %v1508
    %v1519 = vmul.f32 %v1517, %v1509
    %v1520 = vmul.f32 %v1516, %v1510
    %v1521 = vmul.f32 %v1517, %v1511
    %v1522 = vmul.f32 %v1516, %v1512
    %v1523 = vmul.f32 %v1517, %v1513
    %v1524 = vmul.f32 %v1516, %v1514
    %v1525 = vmul.f32 %v1517, %v1515
    %v1526 = vld [vmem:[%s42] sm:$0xff]
    %v1527 = vld [vmem:[%s42 + $0x8] sm:$0xff]
    %v1528 = vld [vmem:[%s42 + $0x10] sm:$0xff]
    %v1529 = vld [vmem:[%s42 + $0x18] sm:$0xff]
    %v1530 = vld [vmem:[%s42 + $0x20] sm:$0xff]
    %v1531 = vld [vmem:[%s42 + $0x28] sm:$0xff]
    %v1532 = vld [vmem:[%s42 + $0x30] sm:$0xff]
    %v1533 = vld [vmem:[%s42 + $0x38] sm:$0xff]
    %v1534 = vperm.slane %v1506, 1
    %v1535 = vperm.slane %v1507, 1
    %v1536 = vmul.f32 %v1534, %v1526
    %v1537 = vmul.f32 %v1535, %v1527
    %v1538 = vmul.f32 %v1534, %v1528
    %v1539 = vmul.f32 %v1535, %v1529
    %v1540 = vmul.f32 %v1534, %v1530
    %v1541 = vmul.f32 %v1535, %v1531
    %v1542 = vmul.f32 %v1534, %v1532
    %v1543 = vmul.f32 %v1535, %v1533
    %v1544 = vadd.f32 %v1518, %v1536
    %v1545 = vadd.f32 %v1519, %v1537
    %v1546 = vadd.f32 %v1520, %v1538
    %v1547 = vadd.f32 %v1521, %v1539
    %v1548 = vadd.f32 %v1522, %v1540
    %v1549 = vadd.f32 %v1523, %v1541
    %v1550 = vadd.f32 %v1524, %v1542
    %v1551 = vadd.f32 %v1525, %v1543
    %v1552 = vld [vmem:[%s69] sm:$0xff]
    %v1553 = vld [vmem:[%s69 + $0x8] sm:$0xff]
    %v1554 = vld [vmem:[%s69 + $0x10] sm:$0xff]
    %v1555 = vld [vmem:[%s69 + $0x18] sm:$0xff]
    %v1556 = vld [vmem:[%s69 + $0x20] sm:$0xff]
    %v1557 = vld [vmem:[%s69 + $0x28] sm:$0xff]
    %v1558 = vld [vmem:[%s69 + $0x30] sm:$0xff]
    %v1559 = vld [vmem:[%s69 + $0x38] sm:$0xff]
    %v1560 = vperm.slane %v1506, 2
    %v1561 = vperm.slane %v1507, 2
    %v1562 = vmul.f32 %v1560, %v1552
    %v1563 = vmul.f32 %v1561, %v1553
    %v1564 = vmul.f32 %v1560, %v1554
    %v1565 = vmul.f32 %v1561, %v1555
    %v1566 = vmul.f32 %v1560, %v1556
    %v1567 = vmul.f32 %v1561, %v1557
    %v1568 = vmul.f32 %v1560, %v1558
    %v1569 = vmul.f32 %v1561, %v1559
    %v1570 = vadd.f32 %v1544, %v1562
    %v1571 = vadd.f32 %v1545, %v1563
    %v1572 = vadd.f32 %v1546, %v1564
    %v1573 = vadd.f32 %v1547, %v1565
    %v1574 = vadd.f32 %v1548, %v1566
    %v1575 = vadd.f32 %v1549, %v1567
    %v1576 = vadd.f32 %v1550, %v1568
    %v1577 = vadd.f32 %v1551, %v1569
    %v1578 = vld [vmem:[%s96] sm:$0xff]
    %v1579 = vld [vmem:[%s96 + $0x8] sm:$0xff]
    %v1580 = vld [vmem:[%s96 + $0x10] sm:$0xff]
    %v1581 = vld [vmem:[%s96 + $0x18] sm:$0xff]
    %v1582 = vld [vmem:[%s96 + $0x20] sm:$0xff]
    %v1583 = vld [vmem:[%s96 + $0x28] sm:$0xff]
    %v1584 = vld [vmem:[%s96 + $0x30] sm:$0xff]
    %v1585 = vld [vmem:[%s96 + $0x38] sm:$0xff]
    %v1586 = vperm.slane %v1506, 3
    %v1587 = vperm.slane %v1507, 3
    %v1588 = vmul.f32 %v1586, %v1578
    %v1589 = vmul.f32 %v1587, %v1579
    %v1590 = vmul.f32 %v1586, %v1580
    %v1591 = vmul.f32 %v1587, %v1581
    %v1592 = vmul.f32 %v1586, %v1582
    %v1593 = vmul.f32 %v1587, %v1583
    %v1594 = vmul.f32 %v1586, %v1584
    %v1595 = vmul.f32 %v1587, %v1585
    %v1596 = vadd.f32 %v1570, %v1588
    %v1597 = vadd.f32 %v1571, %v1589
    %v1598 = vadd.f32 %v1572, %v1590
    %v1599 = vadd.f32 %v1573, %v1591
    %v1600 = vadd.f32 %v1574, %v1592
    %v1601 = vadd.f32 %v1575, %v1593
    %v1602 = vadd.f32 %v1576, %v1594
    %v1603 = vadd.f32 %v1577, %v1595
    %v1604 = vld [vmem:[%s123] sm:$0xff]
    %v1605 = vld [vmem:[%s123 + $0x8] sm:$0xff]
    %v1606 = vld [vmem:[%s123 + $0x10] sm:$0xff]
    %v1607 = vld [vmem:[%s123 + $0x18] sm:$0xff]
    %v1608 = vld [vmem:[%s123 + $0x20] sm:$0xff]
    %v1609 = vld [vmem:[%s123 + $0x28] sm:$0xff]
    %v1610 = vld [vmem:[%s123 + $0x30] sm:$0xff]
    %v1611 = vld [vmem:[%s123 + $0x38] sm:$0xff]
    %v1612 = vperm.slane %v1506, 4
    %v1613 = vperm.slane %v1507, 4
    %v1614 = vmul.f32 %v1612, %v1604
    %v1615 = vmul.f32 %v1613, %v1605
    %v1616 = vmul.f32 %v1612, %v1606
    %v1617 = vmul.f32 %v1613, %v1607
    %v1618 = vmul.f32 %v1612, %v1608
    %v1619 = vmul.f32 %v1613, %v1609
    %v1620 = vmul.f32 %v1612, %v1610
    %v1621 = vmul.f32 %v1613, %v1611
    %v1622 = vadd.f32 %v1596, %v1614
    %v1623 = vadd.f32 %v1597, %v1615
    %v1624 = vadd.f32 %v1598, %v1616
    %v1625 = vadd.f32 %v1599, %v1617
    %v1626 = vadd.f32 %v1600, %v1618
    %v1627 = vadd.f32 %v1601, %v1619
    %v1628 = vadd.f32 %v1602, %v1620
    %v1629 = vadd.f32 %v1603, %v1621
    %v1630 = vld [vmem:[%s150] sm:$0xff]
    %v1631 = vld [vmem:[%s150 + $0x8] sm:$0xff]
    %v1632 = vld [vmem:[%s150 + $0x10] sm:$0xff]
    %v1633 = vld [vmem:[%s150 + $0x18] sm:$0xff]
    %v1634 = vld [vmem:[%s150 + $0x20] sm:$0xff]
    %v1635 = vld [vmem:[%s150 + $0x28] sm:$0xff]
    %v1636 = vld [vmem:[%s150 + $0x30] sm:$0xff]
    %v1637 = vld [vmem:[%s150 + $0x38] sm:$0xff]
    %v1638 = vperm.slane %v1506, 5
    %v1639 = vperm.slane %v1507, 5
    %v1640 = vmul.f32 %v1638, %v1630
    %v1641 = vmul.f32 %v1639, %v1631
    %v1642 = vmul.f32 %v1638, %v1632
    %v1643 = vmul.f32 %v1639, %v1633
    %v1644 = vmul.f32 %v1638, %v1634
    %v1645 = vmul.f32 %v1639, %v1635
    %v1646 = vmul.f32 %v1638, %v1636
    %v1647 = vmul.f32 %v1639, %v1637
    %v1648 = vadd.f32 %v1622, %v1640
    %v1649 = vadd.f32 %v1623, %v1641
    %v1650 = vadd.f32 %v1624, %v1642
    %v1651 = vadd.f32 %v1625, %v1643
    %v1652 = vadd.f32 %v1626, %v1644
    %v1653 = vadd.f32 %v1627, %v1645
    %v1654 = vadd.f32 %v1628, %v1646
    %v1655 = vadd.f32 %v1629, %v1647
    %v1656 = vld [vmem:[%s177] sm:$0xff]
    %v1657 = vld [vmem:[%s177 + $0x8] sm:$0xff]
    %v1658 = vld [vmem:[%s177 + $0x10] sm:$0xff]
    %v1659 = vld [vmem:[%s177 + $0x18] sm:$0xff]
    %v1660 = vld [vmem:[%s177 + $0x20] sm:$0xff]
    %v1661 = vld [vmem:[%s177 + $0x28] sm:$0xff]
    %v1662 = vld [vmem:[%s177 + $0x30] sm:$0xff]
    %v1663 = vld [vmem:[%s177 + $0x38] sm:$0xff]
    %v1664 = vperm.slane %v1506, 6
    %v1665 = vperm.slane %v1507, 6
    %v1666 = vmul.f32 %v1664, %v1656
    %v1667 = vmul.f32 %v1665, %v1657
    %v1668 = vmul.f32 %v1664, %v1658
    %v1669 = vmul.f32 %v1665, %v1659
    %v1670 = vmul.f32 %v1664, %v1660
    %v1671 = vmul.f32 %v1665, %v1661
    %v1672 = vmul.f32 %v1664, %v1662
    %v1673 = vmul.f32 %v1665, %v1663
    %v1674 = vadd.f32 %v1648, %v1666
    %v1675 = vadd.f32 %v1649, %v1667
    %v1676 = vadd.f32 %v1650, %v1668
    %v1677 = vadd.f32 %v1651, %v1669
    %v1678 = vadd.f32 %v1652, %v1670
    %v1679 = vadd.f32 %v1653, %v1671
    %v1680 = vadd.f32 %v1654, %v1672
    %v1681 = vadd.f32 %v1655, %v1673
    %v1682 = vld [vmem:[%s204] sm:$0xff]
    %v1683 = vld [vmem:[%s204 + $0x8] sm:$0xff]
    %v1684 = vld [vmem:[%s204 + $0x10] sm:$0xff]
    %v1685 = vld [vmem:[%s204 + $0x18] sm:$0xff]
    %v1686 = vld [vmem:[%s204 + $0x20] sm:$0xff]
    %v1687 = vld [vmem:[%s204 + $0x28] sm:$0xff]
    %v1688 = vld [vmem:[%s204 + $0x30] sm:$0xff]
    %v1689 = vld [vmem:[%s204 + $0x38] sm:$0xff]
    %v1690 = vperm.slane %v1506, 7
    %v1691 = vperm.slane %v1507, 7
    %v1692 = vmul.f32 %v1690, %v1682
    %v1693 = vmul.f32 %v1691, %v1683
    %v1694 = vmul.f32 %v1690, %v1684
    %v1695 = vmul.f32 %v1691, %v1685
    %v1696 = vmul.f32 %v1690, %v1686
    %v1697 = vmul.f32 %v1691, %v1687
    %v1698 = vmul.f32 %v1690, %v1688
    %v1699 = vmul.f32 %v1691, %v1689
    %v1700 = vadd.f32 %v1674, %v1692
    %v1701 = vadd.f32 %v1675, %v1693
    %v1702 = vadd.f32 %v1676, %v1694
    %v1703 = vadd.f32 %v1677, %v1695
    %v1704 = vadd.f32 %v1678, %v1696
    %v1705 = vadd.f32 %v1679, %v1697
    %v1706 = vadd.f32 %v1680, %v1698
    %v1707 = vadd.f32 %v1681, %v1699
    %v1708 = vpack.c.bf16 %v1701, %v1700
    %v1709 = vpack.c.bf16 %v1703, %v1702
    %v1710 = vpack.c.bf16 %v1705, %v1704
    %v1711 = vpack.c.bf16 %v1707, %v1706
    %1712 = vst [vmem:[#allocation2 + $0xe0] sm:$0xff] %v1708
    %1713 = vst [vmem:[#allocation2 + $0xe8] sm:$0xff] %v1709
    %1714 = vst [vmem:[#allocation2 + $0xf0] sm:$0xff] %v1710
    %1715 = vst [vmem:[#allocation2 + $0xf8] sm:$0xff] %v1711
    %s1716 = scalar_lea.vmem %s0, 128
    %v1717 = vld [vmem:[%s1716] sm:$0xff]
    %v1718 = vld [vmem:[%s1716 + $0x8] sm:$0xff]
    %v1719 = vld [vmem:[%s1] sm:$0xff]
    %v1720 = vld [vmem:[%s1 + $0x8] sm:$0xff]
    %v1721 = vld [vmem:[%s1 + $0x10] sm:$0xff]
    %v1722 = vld [vmem:[%s1 + $0x18] sm:$0xff]
    %v1723 = vld [vmem:[%s1 + $0x20] sm:$0xff]
    %v1724 = vld [vmem:[%s1 + $0x28] sm:$0xff]
    %v1725 = vld [vmem:[%s1 + $0x30] sm:$0xff]
    %v1726 = vld [vmem:[%s1 + $0x38] sm:$0xff]
    %v1727 = vperm.slane %v1717, 0
    %v1728 = vperm.slane %v1718, 0
    %v1729 = vmul.f32 %v1727, %v1719
    %v1730 = vmul.f32 %v1728, %v1720
    %v1731 = vmul.f32 %v1727, %v1721
    %v1732 = vmul.f32 %v1728, %v1722
    %v1733 = vmul.f32 %v1727, %v1723
    %v1734 = vmul.f32 %v1728, %v1724
    %v1735 = vmul.f32 %v1727, %v1725
    %v1736 = vmul.f32 %v1728, %v1726
    %v1737 = vld [vmem:[%s42] sm:$0xff]
    %v1738 = vld [vmem:[%s42 + $0x8] sm:$0xff]
    %v1739 = vld [vmem:[%s42 + $0x10] sm:$0xff]
    %v1740 = vld [vmem:[%s42 + $0x18] sm:$0xff]
    %v1741 = vld [vmem:[%s42 + $0x20] sm:$0xff]
    %v1742 = vld [vmem:[%s42 + $0x28] sm:$0xff]
    %v1743 = vld [vmem:[%s42 + $0x30] sm:$0xff]
    %v1744 = vld [vmem:[%s42 + $0x38] sm:$0xff]
    %v1745 = vperm.slane %v1717, 1
    %v1746 = vperm.slane %v1718, 1
    %v1747 = vmul.f32 %v1745, %v1737
    %v1748 = vmul.f32 %v1746, %v1738
    %v1749 = vmul.f32 %v1745, %v1739
    %v1750 = vmul.f32 %v1746, %v1740
    %v1751 = vmul.f32 %v1745, %v1741
    %v1752 = vmul.f32 %v1746, %v1742
    %v1753 = vmul.f32 %v1745, %v1743
    %v1754 = vmul.f32 %v1746, %v1744
    %v1755 = vadd.f32 %v1729, %v1747
    %v1756 = vadd.f32 %v1730, %v1748
    %v1757 = vadd.f32 %v1731, %v1749
    %v1758 = vadd.f32 %v1732, %v1750
    %v1759 = vadd.f32 %v1733, %v1751
    %v1760 = vadd.f32 %v1734, %v1752
    %v1761 = vadd.f32 %v1735, %v1753
    %v1762 = vadd.f32 %v1736, %v1754
    %v1763 = vld [vmem:[%s69] sm:$0xff]
    %v1764 = vld [vmem:[%s69 + $0x8] sm:$0xff]
    %v1765 = vld [vmem:[%s69 + $0x10] sm:$0xff]
    %v1766 = vld [vmem:[%s69 + $0x18] sm:$0xff]
    %v1767 = vld [vmem:[%s69 + $0x20] sm:$0xff]
    %v1768 = vld [vmem:[%s69 + $0x28] sm:$0xff]
    %v1769 = vld [vmem:[%s69 + $0x30] sm:$0xff]
    %v1770 = vld [vmem:[%s69 + $0x38] sm:$0xff]
    %v1771 = vperm.slane %v1717, 2
    %v1772 = vperm.slane %v1718, 2
    %v1773 = vmul.f32 %v1771, %v1763
    %v1774 = vmul.f32 %v1772, %v1764
    %v1775 = vmul.f32 %v1771, %v1765
    %v1776 = vmul.f32 %v1772, %v1766
    %v1777 = vmul.f32 %v1771, %v1767
    %v1778 = vmul.f32 %v1772, %v1768
    %v1779 = vmul.f32 %v1771, %v1769
    %v1780 = vmul.f32 %v1772, %v1770
    %v1781 = vadd.f32 %v1755, %v1773
    %v1782 = vadd.f32 %v1756, %v1774
    %v1783 = vadd.f32 %v1757, %v1775
    %v1784 = vadd.f32 %v1758, %v1776
    %v1785 = vadd.f32 %v1759, %v1777
    %v1786 = vadd.f32 %v1760, %v1778
    %v1787 = vadd.f32 %v1761, %v1779
    %v1788 = vadd.f32 %v1762, %v1780
    %v1789 = vld [vmem:[%s96] sm:$0xff]
    %v1790 = vld [vmem:[%s96 + $0x8] sm:$0xff]
    %v1791 = vld [vmem:[%s96 + $0x10] sm:$0xff]
    %v1792 = vld [vmem:[%s96 + $0x18] sm:$0xff]
    %v1793 = vld [vmem:[%s96 + $0x20] sm:$0xff]
    %v1794 = vld [vmem:[%s96 + $0x28] sm:$0xff]
    %v1795 = vld [vmem:[%s96 + $0x30] sm:$0xff]
    %v1796 = vld [vmem:[%s96 + $0x38] sm:$0xff]
    %v1797 = vperm.slane %v1717, 3
    %v1798 = vperm.slane %v1718, 3
    %v1799 = vmul.f32 %v1797, %v1789
    %v1800 = vmul.f32 %v1798, %v1790
    %v1801 = vmul.f32 %v1797, %v1791
    %v1802 = vmul.f32 %v1798, %v1792
    %v1803 = vmul.f32 %v1797, %v1793
    %v1804 = vmul.f32 %v1798, %v1794
    %v1805 = vmul.f32 %v1797, %v1795
    %v1806 = vmul.f32 %v1798, %v1796
    %v1807 = vadd.f32 %v1781, %v1799
    %v1808 = vadd.f32 %v1782, %v1800
    %v1809 = vadd.f32 %v1783, %v1801
    %v1810 = vadd.f32 %v1784, %v1802
    %v1811 = vadd.f32 %v1785, %v1803
    %v1812 = vadd.f32 %v1786, %v1804
    %v1813 = vadd.f32 %v1787, %v1805
    %v1814 = vadd.f32 %v1788, %v1806
    %v1815 = vld [vmem:[%s123] sm:$0xff]
    %v1816 = vld [vmem:[%s123 + $0x8] sm:$0xff]
    %v1817 = vld [vmem:[%s123 + $0x10] sm:$0xff]
    %v1818 = vld [vmem:[%s123 + $0x18] sm:$0xff]
    %v1819 = vld [vmem:[%s123 + $0x20] sm:$0xff]
    %v1820 = vld [vmem:[%s123 + $0x28] sm:$0xff]
    %v1821 = vld [vmem:[%s123 + $0x30] sm:$0xff]
    %v1822 = vld [vmem:[%s123 + $0x38] sm:$0xff]
    %v1823 = vperm.slane %v1717, 4
    %v1824 = vperm.slane %v1718, 4
    %v1825 = vmul.f32 %v1823, %v1815
    %v1826 = vmul.f32 %v1824, %v1816
    %v1827 = vmul.f32 %v1823, %v1817
    %v1828 = vmul.f32 %v1824, %v1818
    %v1829 = vmul.f32 %v1823, %v1819
    %v1830 = vmul.f32 %v1824, %v1820
    %v1831 = vmul.f32 %v1823, %v1821
    %v1832 = vmul.f32 %v1824, %v1822
    %v1833 = vadd.f32 %v1807, %v1825
    %v1834 = vadd.f32 %v1808, %v1826
    %v1835 = vadd.f32 %v1809, %v1827
    %v1836 = vadd.f32 %v1810, %v1828
    %v1837 = vadd.f32 %v1811, %v1829
    %v1838 = vadd.f32 %v1812, %v1830
    %v1839 = vadd.f32 %v1813, %v1831
    %v1840 = vadd.f32 %v1814, %v1832
    %v1841 = vld [vmem:[%s150] sm:$0xff]
    %v1842 = vld [vmem:[%s150 + $0x8] sm:$0xff]
    %v1843 = vld [vmem:[%s150 + $0x10] sm:$0xff]
    %v1844 = vld [vmem:[%s150 + $0x18] sm:$0xff]
    %v1845 = vld [vmem:[%s150 + $0x20] sm:$0xff]
    %v1846 = vld [vmem:[%s150 + $0x28] sm:$0xff]
    %v1847 = vld [vmem:[%s150 + $0x30] sm:$0xff]
    %v1848 = vld [vmem:[%s150 + $0x38] sm:$0xff]
    %v1849 = vperm.slane %v1717, 5
    %v1850 = vperm.slane %v1718, 5
    %v1851 = vmul.f32 %v1849, %v1841
    %v1852 = vmul.f32 %v1850, %v1842
    %v1853 = vmul.f32 %v1849, %v1843
    %v1854 = vmul.f32 %v1850, %v1844
    %v1855 = vmul.f32 %v1849, %v1845
    %v1856 = vmul.f32 %v1850, %v1846
    %v1857 = vmul.f32 %v1849, %v1847
    %v1858 = vmul.f32 %v1850, %v1848
    %v1859 = vadd.f32 %v1833, %v1851
    %v1860 = vadd.f32 %v1834, %v1852
    %v1861 = vadd.f32 %v1835, %v1853
    %v1862 = vadd.f32 %v1836, %v1854
    %v1863 = vadd.f32 %v1837, %v1855
    %v1864 = vadd.f32 %v1838, %v1856
    %v1865 = vadd.f32 %v1839, %v1857
    %v1866 = vadd.f32 %v1840, %v1858
    %v1867 = vld [vmem:[%s177] sm:$0xff]
    %v1868 = vld [vmem:[%s177 + $0x8] sm:$0xff]
    %v1869 = vld [vmem:[%s177 + $0x10] sm:$0xff]
    %v1870 = vld [vmem:[%s177 + $0x18] sm:$0xff]
    %v1871 = vld [vmem:[%s177 + $0x20] sm:$0xff]
    %v1872 = vld [vmem:[%s177 + $0x28] sm:$0xff]
    %v1873 = vld [vmem:[%s177 + $0x30] sm:$0xff]
    %v1874 = vld [vmem:[%s177 + $0x38] sm:$0xff]
    %v1875 = vperm.slane %v1717, 6
    %v1876 = vperm.slane %v1718, 6
    %v1877 = vmul.f32 %v1875, %v1867
    %v1878 = vmul.f32 %v1876, %v1868
    %v1879 = vmul.f32 %v1875, %v1869
    %v1880 = vmul.f32 %v1876, %v1870
    %v1881 = vmul.f32 %v1875, %v1871
    %v1882 = vmul.f32 %v1876, %v1872
    %v1883 = vmul.f32 %v1875, %v1873
    %v1884 = vmul.f32 %v1876, %v1874
    %v1885 = vadd.f32 %v1859, %v1877
    %v1886 = vadd.f32 %v1860, %v1878
    %v1887 = vadd.f32 %v1861, %v1879
    %v1888 = vadd.f32 %v1862, %v1880
    %v1889 = vadd.f32 %v1863, %v1881
    %v1890 = vadd.f32 %v1864, %v1882
    %v1891 = vadd.f32 %v1865, %v1883
    %v1892 = vadd.f32 %v1866, %v1884
    %v1893 = vld [vmem:[%s204] sm:$0xff]
    %v1894 = vld [vmem:[%s204 + $0x8] sm:$0xff]
    %v1895 = vld [vmem:[%s204 + $0x10] sm:$0xff]
    %v1896 = vld [vmem:[%s204 + $0x18] sm:$0xff]
    %v1897 = vld [vmem:[%s204 + $0x20] sm:$0xff]
    %v1898 = vld [vmem:[%s204 + $0x28] sm:$0xff]
    %v1899 = vld [vmem:[%s204 + $0x30] sm:$0xff]
    %v1900 = vld [vmem:[%s204 + $0x38] sm:$0xff]
    %v1901 = vperm.slane %v1717, 7
    %v1902 = vperm.slane %v1718, 7
    %v1903 = vmul.f32 %v1901, %v1893
    %v1904 = vmul.f32 %v1902, %v1894
    %v1905 = vmul.f32 %v1901, %v1895
    %v1906 = vmul.f32 %v1902, %v1896
    %v1907 = vmul.f32 %v1901, %v1897
    %v1908 = vmul.f32 %v1902, %v1898
    %v1909 = vmul.f32 %v1901, %v1899
    %v1910 = vmul.f32 %v1902, %v1900
    %v1911 = vadd.f32 %v1885, %v1903
    %v1912 = vadd.f32 %v1886, %v1904
    %v1913 = vadd.f32 %v1887, %v1905
    %v1914 = vadd.f32 %v1888, %v1906
    %v1915 = vadd.f32 %v1889, %v1907
    %v1916 = vadd.f32 %v1890, %v1908
    %v1917 = vadd.f32 %v1891, %v1909
    %v1918 = vadd.f32 %v1892, %v1910
    %v1919 = vpack.c.bf16 %v1912, %v1911
    %v1920 = vpack.c.bf16 %v1914, %v1913
    %v1921 = vpack.c.bf16 %v1916, %v1915
    %v1922 = vpack.c.bf16 %v1918, %v1917
    %1923 = vst [vmem:[#allocation2 + $0x100] sm:$0xff] %v1919
    %1924 = vst [vmem:[#allocation2 + $0x108] sm:$0xff] %v1920
    %1925 = vst [vmem:[#allocation2 + $0x110] sm:$0xff] %v1921
    %1926 = vst [vmem:[#allocation2 + $0x118] sm:$0xff] %v1922
    %s1927 = scalar_lea.vmem %s0, 144
    %v1928 = vld [vmem:[%s1927] sm:$0xff]
    %v1929 = vld [vmem:[%s1927 + $0x8] sm:$0xff]
    %v1930 = vld [vmem:[%s1] sm:$0xff]
    %v1931 = vld [vmem:[%s1 + $0x8] sm:$0xff]
    %v1932 = vld [vmem:[%s1 + $0x10] sm:$0xff]
    %v1933 = vld [vmem:[%s1 + $0x18] sm:$0xff]
    %v1934 = vld [vmem:[%s1 + $0x20] sm:$0xff]
    %v1935 = vld [vmem:[%s1 + $0x28] sm:$0xff]
    %v1936 = vld [vmem:[%s1 + $0x30] sm:$0xff]
    %v1937 = vld [vmem:[%s1 + $0x38] sm:$0xff]
    %v1938 = vperm.slane %v1928, 0
    %v1939 = vperm.slane %v1929, 0
    %v1940 = vmul.f32 %v1938, %v1930
    %v1941 = vmul.f32 %v1939, %v1931
    %v1942 = vmul.f32 %v1938, %v1932
    %v1943 = vmul.f32 %v1939, %v1933
    %v1944 = vmul.f32 %v1938, %v1934
    %v1945 = vmul.f32 %v1939, %v1935
    %v1946 = vmul.f32 %v1938, %v1936
    %v1947 = vmul.f32 %v1939, %v1937
    %v1948 = vld [vmem:[%s42] sm:$0xff]
    %v1949 = vld [vmem:[%s42 + $0x8] sm:$0xff]
    %v1950 = vld [vmem:[%s42 + $0x10] sm:$0xff]
    %v1951 = vld [vmem:[%s42 + $0x18] sm:$0xff]
    %v1952 = vld [vmem:[%s42 + $0x20] sm:$0xff]
    %v1953 = vld [vmem:[%s42 + $0x28] sm:$0xff]
    %v1954 = vld [vmem:[%s42 + $0x30] sm:$0xff]
    %v1955 = vld [vmem:[%s42 + $0x38] sm:$0xff]
    %v1956 = vperm.slane %v1928, 1
    %v1957 = vperm.slane %v1929, 1
    %v1958 = vmul.f32 %v1956, %v1948
    %v1959 = vmul.f32 %v1957, %v1949
    %v1960 = vmul.f32 %v1956, %v1950
    %v1961 = vmul.f32 %v1957, %v1951
    %v1962 = vmul.f32 %v1956, %v1952
    %v1963 = vmul.f32 %v1957, %v1953
    %v1964 = vmul.f32 %v1956, %v1954
    %v1965 = vmul.f32 %v1957, %v1955
    %v1966 = vadd.f32 %v1940, %v1958
    %v1967 = vadd.f32 %v1941, %v1959
    %v1968 = vadd.f32 %v1942, %v1960
    %v1969 = vadd.f32 %v1943, %v1961
    %v1970 = vadd.f32 %v1944, %v1962
    %v1971 = vadd.f32 %v1945, %v1963
    %v1972 = vadd.f32 %v1946, %v1964
    %v1973 = vadd.f32 %v1947, %v1965
    %v1974 = vld [vmem:[%s69] sm:$0xff]
    %v1975 = vld [vmem:[%s69 + $0x8] sm:$0xff]
    %v1976 = vld [vmem:[%s69 + $0x10] sm:$0xff]
    %v1977 = vld [vmem:[%s69 + $0x18] sm:$0xff]
    %v1978 = vld [vmem:[%s69 + $0x20] sm:$0xff]
    %v1979 = vld [vmem:[%s69 + $0x28] sm:$0xff]
    %v1980 = vld [vmem:[%s69 + $0x30] sm:$0xff]
    %v1981 = vld [vmem:[%s69 + $0x38] sm:$0xff]
    %v1982 = vperm.slane %v1928, 2
    %v1983 = vperm.slane %v1929, 2
    %v1984 = vmul.f32 %v1982, %v1974
    %v1985 = vmul.f32 %v1983, %v1975
    %v1986 = vmul.f32 %v1982, %v1976
    %v1987 = vmul.f32 %v1983, %v1977
    %v1988 = vmul.f32 %v1982, %v1978
    %v1989 = vmul.f32 %v1983, %v1979
    %v1990 = vmul.f32 %v1982, %v1980
    %v1991 = vmul.f32 %v1983, %v1981
    %v1992 = vadd.f32 %v1966, %v1984
    %v1993 = vadd.f32 %v1967, %v1985
    %v1994 = vadd.f32 %v1968, %v1986
    %v1995 = vadd.f32 %v1969, %v1987
    %v1996 = vadd.f32 %v1970, %v1988
    %v1997 = vadd.f32 %v1971, %v1989
    %v1998 = vadd.f32 %v1972, %v1990
    %v1999 = vadd.f32 %v1973, %v1991
    %v2000 = vld [vmem:[%s96] sm:$0xff]
    %v2001 = vld [vmem:[%s96 + $0x8] sm:$0xff]
    %v2002 = vld [vmem:[%s96 + $0x10] sm:$0xff]
    %v2003 = vld [vmem:[%s96 + $0x18] sm:$0xff]
    %v2004 = vld [vmem:[%s96 + $0x20] sm:$0xff]
    %v2005 = vld [vmem:[%s96 + $0x28] sm:$0xff]
    %v2006 = vld [vmem:[%s96 + $0x30] sm:$0xff]
    %v2007 = vld [vmem:[%s96 + $0x38] sm:$0xff]
    %v2008 = vperm.slane %v1928, 3
    %v2009 = vperm.slane %v1929, 3
    %v2010 = vmul.f32 %v2008, %v2000
    %v2011 = vmul.f32 %v2009, %v2001
    %v2012 = vmul.f32 %v2008, %v2002
    %v2013 = vmul.f32 %v2009, %v2003
    %v2014 = vmul.f32 %v2008, %v2004
    %v2015 = vmul.f32 %v2009, %v2005
    %v2016 = vmul.f32 %v2008, %v2006
    %v2017 = vmul.f32 %v2009, %v2007
    %v2018 = vadd.f32 %v1992, %v2010
    %v2019 = vadd.f32 %v1993, %v2011
    %v2020 = vadd.f32 %v1994, %v2012
    %v2021 = vadd.f32 %v1995, %v2013
    %v2022 = vadd.f32 %v1996, %v2014
    %v2023 = vadd.f32 %v1997, %v2015
    %v2024 = vadd.f32 %v1998, %v2016
    %v2025 = vadd.f32 %v1999, %v2017
    %v2026 = vld [vmem:[%s123] sm:$0xff]
    %v2027 = vld [vmem:[%s123 + $0x8] sm:$0xff]
    %v2028 = vld [vmem:[%s123 + $0x10] sm:$0xff]
    %v2029 = vld [vmem:[%s123 + $0x18] sm:$0xff]
    %v2030 = vld [vmem:[%s123 + $0x20] sm:$0xff]
    %v2031 = vld [vmem:[%s123 + $0x28] sm:$0xff]
    %v2032 = vld [vmem:[%s123 + $0x30] sm:$0xff]
    %v2033 = vld [vmem:[%s123 + $0x38] sm:$0xff]
    %v2034 = vperm.slane %v1928, 4
    %v2035 = vperm.slane %v1929, 4
    %v2036 = vmul.f32 %v2034, %v2026
    %v2037 = vmul.f32 %v2035, %v2027
    %v2038 = vmul.f32 %v2034, %v2028
    %v2039 = vmul.f32 %v2035, %v2029
    %v2040 = vmul.f32 %v2034, %v2030
    %v2041 = vmul.f32 %v2035, %v2031
    %v2042 = vmul.f32 %v2034, %v2032
    %v2043 = vmul.f32 %v2035, %v2033
    %v2044 = vadd.f32 %v2018, %v2036
    %v2045 = vadd.f32 %v2019, %v2037
    %v2046 = vadd.f32 %v2020, %v2038
    %v2047 = vadd.f32 %v2021, %v2039
    %v2048 = vadd.f32 %v2022, %v2040
    %v2049 = vadd.f32 %v2023, %v2041
    %v2050 = vadd.f32 %v2024, %v2042
    %v2051 = vadd.f32 %v2025, %v2043
    %v2052 = vld [vmem:[%s150] sm:$0xff]
    %v2053 = vld [vmem:[%s150 + $0x8] sm:$0xff]
    %v2054 = vld [vmem:[%s150 + $0x10] sm:$0xff]
    %v2055 = vld [vmem:[%s150 + $0x18] sm:$0xff]
    %v2056 = vld [vmem:[%s150 + $0x20] sm:$0xff]
    %v2057 = vld [vmem:[%s150 + $0x28] sm:$0xff]
    %v2058 = vld [vmem:[%s150 + $0x30] sm:$0xff]
    %v2059 = vld [vmem:[%s150 + $0x38] sm:$0xff]
    %v2060 = vperm.slane %v1928, 5
    %v2061 = vperm.slane %v1929, 5
    %v2062 = vmul.f32 %v2060, %v2052
    %v2063 = vmul.f32 %v2061, %v2053
    %v2064 = vmul.f32 %v2060, %v2054
    %v2065 = vmul.f32 %v2061, %v2055
    %v2066 = vmul.f32 %v2060, %v2056
    %v2067 = vmul.f32 %v2061, %v2057
    %v2068 = vmul.f32 %v2060, %v2058
    %v2069 = vmul.f32 %v2061, %v2059
    %v2070 = vadd.f32 %v2044, %v2062
    %v2071 = vadd.f32 %v2045, %v2063
    %v2072 = vadd.f32 %v2046, %v2064
    %v2073 = vadd.f32 %v2047, %v2065
    %v2074 = vadd.f32 %v2048, %v2066
    %v2075 = vadd.f32 %v2049, %v2067
    %v2076 = vadd.f32 %v2050, %v2068
    %v2077 = vadd.f32 %v2051, %v2069
    %v2078 = vld [vmem:[%s177] sm:$0xff]
    %v2079 = vld [vmem:[%s177 + $0x8] sm:$0xff]
    %v2080 = vld [vmem:[%s177 + $0x10] sm:$0xff]
    %v2081 = vld [vmem:[%s177 + $0x18] sm:$0xff]
    %v2082 = vld [vmem:[%s177 + $0x20] sm:$0xff]
    %v2083 = vld [vmem:[%s177 + $0x28] sm:$0xff]
    %v2084 = vld [vmem:[%s177 + $0x30] sm:$0xff]
    %v2085 = vld [vmem:[%s177 + $0x38] sm:$0xff]
    %v2086 = vperm.slane %v1928, 6
    %v2087 = vperm.slane %v1929, 6
    %v2088 = vmul.f32 %v2086, %v2078
    %v2089 = vmul.f32 %v2087, %v2079
    %v2090 = vmul.f32 %v2086, %v2080
    %v2091 = vmul.f32 %v2087, %v2081
    %v2092 = vmul.f32 %v2086, %v2082
    %v2093 = vmul.f32 %v2087, %v2083
    %v2094 = vmul.f32 %v2086, %v2084
    %v2095 = vmul.f32 %v2087, %v2085
    %v2096 = vadd.f32 %v2070, %v2088
    %v2097 = vadd.f32 %v2071, %v2089
    %v2098 = vadd.f32 %v2072, %v2090
    %v2099 = vadd.f32 %v2073, %v2091
    %v2100 = vadd.f32 %v2074, %v2092
    %v2101 = vadd.f32 %v2075, %v2093
    %v2102 = vadd.f32 %v2076, %v2094
    %v2103 = vadd.f32 %v2077, %v2095
    %v2104 = vld [vmem:[%s204] sm:$0xff]
    %v2105 = vld [vmem:[%s204 + $0x8] sm:$0xff]
    %v2106 = vld [vmem:[%s204 + $0x10] sm:$0xff]
    %v2107 = vld [vmem:[%s204 + $0x18] sm:$0xff]
    %v2108 = vld [vmem:[%s204 + $0x20] sm:$0xff]
    %v2109 = vld [vmem:[%s204 + $0x28] sm:$0xff]
    %v2110 = vld [vmem:[%s204 + $0x30] sm:$0xff]
    %v2111 = vld [vmem:[%s204 + $0x38] sm:$0xff]
    %v2112 = vperm.slane %v1928, 7
    %v2113 = vperm.slane %v1929, 7
    %v2114 = vmul.f32 %v2112, %v2104
    %v2115 = vmul.f32 %v2113, %v2105
    %v2116 = vmul.f32 %v2112, %v2106
    %v2117 = vmul.f32 %v2113, %v2107
    %v2118 = vmul.f32 %v2112, %v2108
    %v2119 = vmul.f32 %v2113, %v2109
    %v2120 = vmul.f32 %v2112, %v2110
    %v2121 = vmul.f32 %v2113, %v2111
    %v2122 = vadd.f32 %v2096, %v2114
    %v2123 = vadd.f32 %v2097, %v2115
    %v2124 = vadd.f32 %v2098, %v2116
    %v2125 = vadd.f32 %v2099, %v2117
    %v2126 = vadd.f32 %v2100, %v2118
    %v2127 = vadd.f32 %v2101, %v2119
    %v2128 = vadd.f32 %v2102, %v2120
    %v2129 = vadd.f32 %v2103, %v2121
    %v2130 = vpack.c.bf16 %v2123, %v2122
    %v2131 = vpack.c.bf16 %v2125, %v2124
    %v2132 = vpack.c.bf16 %v2127, %v2126
    %v2133 = vpack.c.bf16 %v2129, %v2128
    %2134 = vst [vmem:[#allocation2 + $0x120] sm:$0xff] %v2130
    %2135 = vst [vmem:[#allocation2 + $0x128] sm:$0xff] %v2131
    %2136 = vst [vmem:[#allocation2 + $0x130] sm:$0xff] %v2132
    %2137 = vst [vmem:[#allocation2 + $0x138] sm:$0xff] %v2133
    %s2138 = scalar_lea.vmem %s0, 160
    %v2139 = vld [vmem:[%s2138] sm:$0xff]
    %v2140 = vld [vmem:[%s2138 + $0x8] sm:$0xff]
    %v2141 = vld [vmem:[%s1] sm:$0xff]
    %v2142 = vld [vmem:[%s1 + $0x8] sm:$0xff]
    %v2143 = vld [vmem:[%s1 + $0x10] sm:$0xff]
    %v2144 = vld [vmem:[%s1 + $0x18] sm:$0xff]
    %v2145 = vld [vmem:[%s1 + $0x20] sm:$0xff]
    %v2146 = vld [vmem:[%s1 + $0x28] sm:$0xff]
    %v2147 = vld [vmem:[%s1 + $0x30] sm:$0xff]
    %v2148 = vld [vmem:[%s1 + $0x38] sm:$0xff]
    %v2149 = vperm.slane %v2139, 0
    %v2150 = vperm.slane %v2140, 0
    %v2151 = vmul.f32 %v2149, %v2141
    %v2152 = vmul.f32 %v2150, %v2142
    %v2153 = vmul.f32 %v2149, %v2143
    %v2154 = vmul.f32 %v2150, %v2144
    %v2155 = vmul.f32 %v2149, %v2145
    %v2156 = vmul.f32 %v2150, %v2146
    %v2157 = vmul.f32 %v2149, %v2147
    %v2158 = vmul.f32 %v2150, %v2148
    %v2159 = vld [vmem:[%s42] sm:$0xff]
    %v2160 = vld [vmem:[%s42 + $0x8] sm:$0xff]
    %v2161 = vld [vmem:[%s42 + $0x10] sm:$0xff]
    %v2162 = vld [vmem:[%s42 + $0x18] sm:$0xff]
    %v2163 = vld [vmem:[%s42 + $0x20] sm:$0xff]
    %v2164 = vld [vmem:[%s42 + $0x28] sm:$0xff]
    %v2165 = vld [vmem:[%s42 + $0x30] sm:$0xff]
    %v2166 = vld [vmem:[%s42 + $0x38] sm:$0xff]
    %v2167 = vperm.slane %v2139, 1
    %v2168 = vperm.slane %v2140, 1
    %v2169 = vmul.f32 %v2167, %v2159
    %v2170 = vmul.f32 %v2168, %v2160
    %v2171 = vmul.f32 %v2167, %v2161
    %v2172 = vmul.f32 %v2168, %v2162
    %v2173 = vmul.f32 %v2167, %v2163
    %v2174 = vmul.f32 %v2168, %v2164
    %v2175 = vmul.f32 %v2167, %v2165
    %v2176 = vmul.f32 %v2168, %v2166
    %v2177 = vadd.f32 %v2151, %v2169
    %v2178 = vadd.f32 %v2152, %v2170
    %v2179 = vadd.f32 %v2153, %v2171
    %v2180 = vadd.f32 %v2154, %v2172
    %v2181 = vadd.f32 %v2155, %v2173
    %v2182 = vadd.f32 %v2156, %v2174
    %v2183 = vadd.f32 %v2157, %v2175
    %v2184 = vadd.f32 %v2158, %v2176
    %v2185 = vld [vmem:[%s69] sm:$0xff]
    %v2186 = vld [vmem:[%s69 + $0x8] sm:$0xff]
    %v2187 = vld [vmem:[%s69 + $0x10] sm:$0xff]
    %v2188 = vld [vmem:[%s69 + $0x18] sm:$0xff]
    %v2189 = vld [vmem:[%s69 + $0x20] sm:$0xff]
    %v2190 = vld [vmem:[%s69 + $0x28] sm:$0xff]
    %v2191 = vld [vmem:[%s69 + $0x30] sm:$0xff]
    %v2192 = vld [vmem:[%s69 + $0x38] sm:$0xff]
    %v2193 = vperm.slane %v2139, 2
    %v2194 = vperm.slane %v2140, 2
    %v2195 = vmul.f32 %v2193, %v2185
    %v2196 = vmul.f32 %v2194, %v2186
    %v2197 = vmul.f32 %v2193, %v2187
    %v2198 = vmul.f32 %v2194, %v2188
    %v2199 = vmul.f32 %v2193, %v2189
    %v2200 = vmul.f32 %v2194, %v2190
    %v2201 = vmul.f32 %v2193, %v2191
    %v2202 = vmul.f32 %v2194, %v2192
    %v2203 = vadd.f32 %v2177, %v2195
    %v2204 = vadd.f32 %v2178, %v2196
    %v2205 = vadd.f32 %v2179, %v2197
    %v2206 = vadd.f32 %v2180, %v2198
    %v2207 = vadd.f32 %v2181, %v2199
    %v2208 = vadd.f32 %v2182, %v2200
    %v2209 = vadd.f32 %v2183, %v2201
    %v2210 = vadd.f32 %v2184, %v2202
    %v2211 = vld [vmem:[%s96] sm:$0xff]
    %v2212 = vld [vmem:[%s96 + $0x8] sm:$0xff]
    %v2213 = vld [vmem:[%s96 + $0x10] sm:$0xff]
    %v2214 = vld [vmem:[%s96 + $0x18] sm:$0xff]
    %v2215 = vld [vmem:[%s96 + $0x20] sm:$0xff]
    %v2216 = vld [vmem:[%s96 + $0x28] sm:$0xff]
    %v2217 = vld [vmem:[%s96 + $0x30] sm:$0xff]
    %v2218 = vld [vmem:[%s96 + $0x38] sm:$0xff]
    %v2219 = vperm.slane %v2139, 3
    %v2220 = vperm.slane %v2140, 3
    %v2221 = vmul.f32 %v2219, %v2211
    %v2222 = vmul.f32 %v2220, %v2212
    %v2223 = vmul.f32 %v2219, %v2213
    %v2224 = vmul.f32 %v2220, %v2214
    %v2225 = vmul.f32 %v2219, %v2215
    %v2226 = vmul.f32 %v2220, %v2216
    %v2227 = vmul.f32 %v2219, %v2217
    %v2228 = vmul.f32 %v2220, %v2218
    %v2229 = vadd.f32 %v2203, %v2221
    %v2230 = vadd.f32 %v2204, %v2222
    %v2231 = vadd.f32 %v2205, %v2223
    %v2232 = vadd.f32 %v2206, %v2224
    %v2233 = vadd.f32 %v2207, %v2225
    %v2234 = vadd.f32 %v2208, %v2226
    %v2235 = vadd.f32 %v2209, %v2227
    %v2236 = vadd.f32 %v2210, %v2228
    %v2237 = vld [vmem:[%s123] sm:$0xff]
    %v2238 = vld [vmem:[%s123 + $0x8] sm:$0xff]
    %v2239 = vld [vmem:[%s123 + $0x10] sm:$0xff]
    %v2240 = vld [vmem:[%s123 + $0x18] sm:$0xff]
    %v2241 = vld [vmem:[%s123 + $0x20] sm:$0xff]
    %v2242 = vld [vmem:[%s123 + $0x28] sm:$0xff]
    %v2243 = vld [vmem:[%s123 + $0x30] sm:$0xff]
    %v2244 = vld [vmem:[%s123 + $0x38] sm:$0xff]
    %v2245 = vperm.slane %v2139, 4
    %v2246 = vperm.slane %v2140, 4
    %v2247 = vmul.f32 %v2245, %v2237
    %v2248 = vmul.f32 %v2246, %v2238
    %v2249 = vmul.f32 %v2245, %v2239
    %v2250 = vmul.f32 %v2246, %v2240
    %v2251 = vmul.f32 %v2245, %v2241
    %v2252 = vmul.f32 %v2246, %v2242
    %v2253 = vmul.f32 %v2245, %v2243
    %v2254 = vmul.f32 %v2246, %v2244
    %v2255 = vadd.f32 %v2229, %v2247
    %v2256 = vadd.f32 %v2230, %v2248
    %v2257 = vadd.f32 %v2231, %v2249
    %v2258 = vadd.f32 %v2232, %v2250
    %v2259 = vadd.f32 %v2233, %v2251
    %v2260 = vadd.f32 %v2234, %v2252
    %v2261 = vadd.f32 %v2235, %v2253
    %v2262 = vadd.f32 %v2236, %v2254
    %v2263 = vld [vmem:[%s150] sm:$0xff]
    %v2264 = vld [vmem:[%s150 + $0x8] sm:$0xff]
    %v2265 = vld [vmem:[%s150 + $0x10] sm:$0xff]
    %v2266 = vld [vmem:[%s150 + $0x18] sm:$0xff]
    %v2267 = vld [vmem:[%s150 + $0x20] sm:$0xff]
    %v2268 = vld [vmem:[%s150 + $0x28] sm:$0xff]
    %v2269 = vld [vmem:[%s150 + $0x30] sm:$0xff]
    %v2270 = vld [vmem:[%s150 + $0x38] sm:$0xff]
    %v2271 = vperm.slane %v2139, 5
    %v2272 = vperm.slane %v2140, 5
    %v2273 = vmul.f32 %v2271, %v2263
    %v2274 = vmul.f32 %v2272, %v2264
    %v2275 = vmul.f32 %v2271, %v2265
    %v2276 = vmul.f32 %v2272, %v2266
    %v2277 = vmul.f32 %v2271, %v2267
    %v2278 = vmul.f32 %v2272, %v2268
    %v2279 = vmul.f32 %v2271, %v2269
    %v2280 = vmul.f32 %v2272, %v2270
    %v2281 = vadd.f32 %v2255, %v2273
    %v2282 = vadd.f32 %v2256, %v2274
    %v2283 = vadd.f32 %v2257, %v2275
    %v2284 = vadd.f32 %v2258, %v2276
    %v2285 = vadd.f32 %v2259, %v2277
    %v2286 = vadd.f32 %v2260, %v2278
    %v2287 = vadd.f32 %v2261, %v2279
    %v2288 = vadd.f32 %v2262, %v2280
    %v2289 = vld [vmem:[%s177] sm:$0xff]
    %v2290 = vld [vmem:[%s177 + $0x8] sm:$0xff]
    %v2291 = vld [vmem:[%s177 + $0x10] sm:$0xff]
    %v2292 = vld [vmem:[%s177 + $0x18] sm:$0xff]
    %v2293 = vld [vmem:[%s177 + $0x20] sm:$0xff]
    %v2294 = vld [vmem:[%s177 + $0x28] sm:$0xff]
    %v2295 = vld [vmem:[%s177 + $0x30] sm:$0xff]
    %v2296 = vld [vmem:[%s177 + $0x38] sm:$0xff]
    %v2297 = vperm.slane %v2139, 6
    %v2298 = vperm.slane %v2140, 6
    %v2299 = vmul.f32 %v2297, %v2289
    %v2300 = vmul.f32 %v2298, %v2290
    %v2301 = vmul.f32 %v2297, %v2291
    %v2302 = vmul.f32 %v2298, %v2292
    %v2303 = vmul.f32 %v2297, %v2293
    %v2304 = vmul.f32 %v2298, %v2294
    %v2305 = vmul.f32 %v2297, %v2295
    %v2306 = vmul.f32 %v2298, %v2296
    %v2307 = vadd.f32 %v2281, %v2299
    %v2308 = vadd.f32 %v2282, %v2300
    %v2309 = vadd.f32 %v2283, %v2301
    %v2310 = vadd.f32 %v2284, %v2302
    %v2311 = vadd.f32 %v2285, %v2303
    %v2312 = vadd.f32 %v2286, %v2304
    %v2313 = vadd.f32 %v2287, %v2305
    %v2314 = vadd.f32 %v2288, %v2306
    %v2315 = vld [vmem:[%s204] sm:$0xff]
    %v2316 = vld [vmem:[%s204 + $0x8] sm:$0xff]
    %v2317 = vld [vmem:[%s204 + $0x10] sm:$0xff]
    %v2318 = vld [vmem:[%s204 + $0x18] sm:$0xff]
    %v2319 = vld [vmem:[%s204 + $0x20] sm:$0xff]
    %v2320 = vld [vmem:[%s204 + $0x28] sm:$0xff]
    %v2321 = vld [vmem:[%s204 + $0x30] sm:$0xff]
    %v2322 = vld [vmem:[%s204 + $0x38] sm:$0xff]
    %v2323 = vperm.slane %v2139, 7
    %v2324 = vperm.slane %v2140, 7
    %v2325 = vmul.f32 %v2323, %v2315
    %v2326 = vmul.f32 %v2324, %v2316
    %v2327 = vmul.f32 %v2323, %v2317
    %v2328 = vmul.f32 %v2324, %v2318
    %v2329 = vmul.f32 %v2323, %v2319
    %v2330 = vmul.f32 %v2324, %v2320
    %v2331 = vmul.f32 %v2323, %v2321
    %v2332 = vmul.f32 %v2324, %v2322
    %v2333 = vadd.f32 %v2307, %v2325
    %v2334 = vadd.f32 %v2308, %v2326
    %v2335 = vadd.f32 %v2309, %v2327
    %v2336 = vadd.f32 %v2310, %v2328
    %v2337 = vadd.f32 %v2311, %v2329
    %v2338 = vadd.f32 %v2312, %v2330
    %v2339 = vadd.f32 %v2313, %v2331
    %v2340 = vadd.f32 %v2314, %v2332
    %v2341 = vpack.c.bf16 %v2334, %v2333
    %v2342 = vpack.c.bf16 %v2336, %v2335
    %v2343 = vpack.c.bf16 %v2338, %v2337
    %v2344 = vpack.c.bf16 %v2340, %v2339
    %2345 = vst [vmem:[#allocation2 + $0x140] sm:$0xff] %v2341
    %2346 = vst [vmem:[#allocation2 + $0x148] sm:$0xff] %v2342
    %2347 = vst [vmem:[#allocation2 + $0x150] sm:$0xff] %v2343
    %2348 = vst [vmem:[#allocation2 + $0x158] sm:$0xff] %v2344
    %s2349 = scalar_lea.vmem %s0, 176
    %v2350 = vld [vmem:[%s2349] sm:$0xff]
    %v2351 = vld [vmem:[%s2349 + $0x8] sm:$0xff]
    %v2352 = vld [vmem:[%s1] sm:$0xff]
    %v2353 = vld [vmem:[%s1 + $0x8] sm:$0xff]
    %v2354 = vld [vmem:[%s1 + $0x10] sm:$0xff]
    %v2355 = vld [vmem:[%s1 + $0x18] sm:$0xff]
    %v2356 = vld [vmem:[%s1 + $0x20] sm:$0xff]
    %v2357 = vld [vmem:[%s1 + $0x28] sm:$0xff]
    %v2358 = vld [vmem:[%s1 + $0x30] sm:$0xff]
    %v2359 = vld [vmem:[%s1 + $0x38] sm:$0xff]
    %v2360 = vperm.slane %v2350, 0
    %v2361 = vperm.slane %v2351, 0
    %v2362 = vmul.f32 %v2360, %v2352
    %v2363 = vmul.f32 %v2361, %v2353
    %v2364 = vmul.f32 %v2360, %v2354
    %v2365 = vmul.f32 %v2361, %v2355
    %v2366 = vmul.f32 %v2360, %v2356
    %v2367 = vmul.f32 %v2361, %v2357
    %v2368 = vmul.f32 %v2360, %v2358
    %v2369 = vmul.f32 %v2361, %v2359
    %v2370 = vld [vmem:[%s42] sm:$0xff]
    %v2371 = vld [vmem:[%s42 + $0x8] sm:$0xff]
    %v2372 = vld [vmem:[%s42 + $0x10] sm:$0xff]
    %v2373 = vld [vmem:[%s42 + $0x18] sm:$0xff]
    %v2374 = vld [vmem:[%s42 + $0x20] sm:$0xff]
    %v2375 = vld [vmem:[%s42 + $0x28] sm:$0xff]
    %v2376 = vld [vmem:[%s42 + $0x30] sm:$0xff]
    %v2377 = vld [vmem:[%s42 + $0x38] sm:$0xff]
    %v2378 = vperm.slane %v2350, 1
    %v2379 = vperm.slane %v2351, 1
    %v2380 = vmul.f32 %v2378, %v2370
    %v2381 = vmul.f32 %v2379, %v2371
    %v2382 = vmul.f32 %v2378, %v2372
    %v2383 = vmul.f32 %v2379, %v2373
    %v2384 = vmul.f32 %v2378, %v2374
    %v2385 = vmul.f32 %v2379, %v2375
    %v2386 = vmul.f32 %v2378, %v2376
    %v2387 = vmul.f32 %v2379, %v2377
    %v2388 = vadd.f32 %v2362, %v2380
    %v2389 = vadd.f32 %v2363, %v2381
    %v2390 = vadd.f32 %v2364, %v2382
    %v2391 = vadd.f32 %v2365, %v2383
    %v2392 = vadd.f32 %v2366, %v2384
    %v2393 = vadd.f32 %v2367, %v2385
    %v2394 = vadd.f32 %v2368, %v2386
    %v2395 = vadd.f32 %v2369, %v2387
    %v2396 = vld [vmem:[%s69] sm:$0xff]
    %v2397 = vld [vmem:[%s69 + $0x8] sm:$0xff]
    %v2398 = vld [vmem:[%s69 + $0x10] sm:$0xff]
    %v2399 = vld [vmem:[%s69 + $0x18] sm:$0xff]
    %v2400 = vld [vmem:[%s69 + $0x20] sm:$0xff]
    %v2401 = vld [vmem:[%s69 + $0x28] sm:$0xff]
    %v2402 = vld [vmem:[%s69 + $0x30] sm:$0xff]
    %v2403 = vld [vmem:[%s69 + $0x38] sm:$0xff]
    %v2404 = vperm.slane %v2350, 2
    %v2405 = vperm.slane %v2351, 2
    %v2406 = vmul.f32 %v2404, %v2396
    %v2407 = vmul.f32 %v2405, %v2397
    %v2408 = vmul.f32 %v2404, %v2398
    %v2409 = vmul.f32 %v2405, %v2399
    %v2410 = vmul.f32 %v2404, %v2400
    %v2411 = vmul.f32 %v2405, %v2401
    %v2412 = vmul.f32 %v2404, %v2402
    %v2413 = vmul.f32 %v2405, %v2403
    %v2414 = vadd.f32 %v2388, %v2406
    %v2415 = vadd.f32 %v2389, %v2407
    %v2416 = vadd.f32 %v2390, %v2408
    %v2417 = vadd.f32 %v2391, %v2409
    %v2418 = vadd.f32 %v2392, %v2410
    %v2419 = vadd.f32 %v2393, %v2411
    %v2420 = vadd.f32 %v2394, %v2412
    %v2421 = vadd.f32 %v2395, %v2413
    %v2422 = vld [vmem:[%s96] sm:$0xff]
    %v2423 = vld [vmem:[%s96 + $0x8] sm:$0xff]
    %v2424 = vld [vmem:[%s96 + $0x10] sm:$0xff]
    %v2425 = vld [vmem:[%s96 + $0x18] sm:$0xff]
    %v2426 = vld [vmem:[%s96 + $0x20] sm:$0xff]
    %v2427 = vld [vmem:[%s96 + $0x28] sm:$0xff]
    %v2428 = vld [vmem:[%s96 + $0x30] sm:$0xff]
    %v2429 = vld [vmem:[%s96 + $0x38] sm:$0xff]
    %v2430 = vperm.slane %v2350, 3
    %v2431 = vperm.slane %v2351, 3
    %v2432 = vmul.f32 %v2430, %v2422
    %v2433 = vmul.f32 %v2431, %v2423
    %v2434 = vmul.f32 %v2430, %v2424
    %v2435 = vmul.f32 %v2431, %v2425
    %v2436 = vmul.f32 %v2430, %v2426
    %v2437 = vmul.f32 %v2431, %v2427
    %v2438 = vmul.f32 %v2430, %v2428
    %v2439 = vmul.f32 %v2431, %v2429
    %v2440 = vadd.f32 %v2414, %v2432
    %v2441 = vadd.f32 %v2415, %v2433
    %v2442 = vadd.f32 %v2416, %v2434
    %v2443 = vadd.f32 %v2417, %v2435
    %v2444 = vadd.f32 %v2418, %v2436
    %v2445 = vadd.f32 %v2419, %v2437
    %v2446 = vadd.f32 %v2420, %v2438
    %v2447 = vadd.f32 %v2421, %v2439
    %v2448 = vld [vmem:[%s123] sm:$0xff]
    %v2449 = vld [vmem:[%s123 + $0x8] sm:$0xff]
    %v2450 = vld [vmem:[%s123 + $0x10] sm:$0xff]
    %v2451 = vld [vmem:[%s123 + $0x18] sm:$0xff]
    %v2452 = vld [vmem:[%s123 + $0x20] sm:$0xff]
    %v2453 = vld [vmem:[%s123 + $0x28] sm:$0xff]
    %v2454 = vld [vmem:[%s123 + $0x30] sm:$0xff]
    %v2455 = vld [vmem:[%s123 + $0x38] sm:$0xff]
    %v2456 = vperm.slane %v2350, 4
    %v2457 = vperm.slane %v2351, 4
    %v2458 = vmul.f32 %v2456, %v2448
    %v2459 = vmul.f32 %v2457, %v2449
    %v2460 = vmul.f32 %v2456, %v2450
    %v2461 = vmul.f32 %v2457, %v2451
    %v2462 = vmul.f32 %v2456, %v2452
    %v2463 = vmul.f32 %v2457, %v2453
    %v2464 = vmul.f32 %v2456, %v2454
    %v2465 = vmul.f32 %v2457, %v2455
    %v2466 = vadd.f32 %v2440, %v2458
    %v2467 = vadd.f32 %v2441, %v2459
    %v2468 = vadd.f32 %v2442, %v2460
    %v2469 = vadd.f32 %v2443, %v2461
    %v2470 = vadd.f32 %v2444, %v2462
    %v2471 = vadd.f32 %v2445, %v2463
    %v2472 = vadd.f32 %v2446, %v2464
    %v2473 = vadd.f32 %v2447, %v2465
    %v2474 = vld [vmem:[%s150] sm:$0xff]
    %v2475 = vld [vmem:[%s150 + $0x8] sm:$0xff]
    %v2476 = vld [vmem:[%s150 + $0x10] sm:$0xff]
    %v2477 = vld [vmem:[%s150 + $0x18] sm:$0xff]
    %v2478 = vld [vmem:[%s150 + $0x20] sm:$0xff]
    %v2479 = vld [vmem:[%s150 + $0x28] sm:$0xff]
    %v2480 = vld [vmem:[%s150 + $0x30] sm:$0xff]
    %v2481 = vld [vmem:[%s150 + $0x38] sm:$0xff]
    %v2482 = vperm.slane %v2350, 5
    %v2483 = vperm.slane %v2351, 5
    %v2484 = vmul.f32 %v2482, %v2474
    %v2485 = vmul.f32 %v2483, %v2475
    %v2486 = vmul.f32 %v2482, %v2476
    %v2487 = vmul.f32 %v2483, %v2477
    %v2488 = vmul.f32 %v2482, %v2478
    %v2489 = vmul.f32 %v2483, %v2479
    %v2490 = vmul.f32 %v2482, %v2480
    %v2491 = vmul.f32 %v2483, %v2481
    %v2492 = vadd.f32 %v2466, %v2484
    %v2493 = vadd.f32 %v2467, %v2485
    %v2494 = vadd.f32 %v2468, %v2486
    %v2495 = vadd.f32 %v2469, %v2487
    %v2496 = vadd.f32 %v2470, %v2488
    %v2497 = vadd.f32 %v2471, %v2489
    %v2498 = vadd.f32 %v2472, %v2490
    %v2499 = vadd.f32 %v2473, %v2491
    %v2500 = vld [vmem:[%s177] sm:$0xff]
    %v2501 = vld [vmem:[%s177 + $0x8] sm:$0xff]
    %v2502 = vld [vmem:[%s177 + $0x10] sm:$0xff]
    %v2503 = vld [vmem:[%s177 + $0x18] sm:$0xff]
    %v2504 = vld [vmem:[%s177 + $0x20] sm:$0xff]
    %v2505 = vld [vmem:[%s177 + $0x28] sm:$0xff]
    %v2506 = vld [vmem:[%s177 + $0x30] sm:$0xff]
    %v2507 = vld [vmem:[%s177 + $0x38] sm:$0xff]
    %v2508 = vperm.slane %v2350, 6
    %v2509 = vperm.slane %v2351, 6
    %v2510 = vmul.f32 %v2508, %v2500
    %v2511 = vmul.f32 %v2509, %v2501
    %v2512 = vmul.f32 %v2508, %v2502
    %v2513 = vmul.f32 %v2509, %v2503
    %v2514 = vmul.f32 %v2508, %v2504
    %v2515 = vmul.f32 %v2509, %v2505
    %v2516 = vmul.f32 %v2508, %v2506
    %v2517 = vmul.f32 %v2509, %v2507
    %v2518 = vadd.f32 %v2492, %v2510
    %v2519 = vadd.f32 %v2493, %v2511
    %v2520 = vadd.f32 %v2494, %v2512
    %v2521 = vadd.f32 %v2495, %v2513
    %v2522 = vadd.f32 %v2496, %v2514
    %v2523 = vadd.f32 %v2497, %v2515
    %v2524 = vadd.f32 %v2498, %v2516
    %v2525 = vadd.f32 %v2499, %v2517
    %v2526 = vld [vmem:[%s204] sm:$0xff]
    %v2527 = vld [vmem:[%s204 + $0x8] sm:$0xff]
    %v2528 = vld [vmem:[%s204 + $0x10] sm:$0xff]
    %v2529 = vld [vmem:[%s204 + $0x18] sm:$0xff]
    %v2530 = vld [vmem:[%s204 + $0x20] sm:$0xff]
    %v2531 = vld [vmem:[%s204 + $0x28] sm:$0xff]
    %v2532 = vld [vmem:[%s204 + $0x30] sm:$0xff]
    %v2533 = vld [vmem:[%s204 + $0x38] sm:$0xff]
    %v2534 = vperm.slane %v2350, 7
    %v2535 = vperm.slane %v2351, 7
    %v2536 = vmul.f32 %v2534, %v2526
    %v2537 = vmul.f32 %v2535, %v2527
    %v2538 = vmul.f32 %v2534, %v2528
    %v2539 = vmul.f32 %v2535, %v2529
    %v2540 = vmul.f32 %v2534, %v2530
    %v2541 = vmul.f32 %v2535, %v2531
    %v2542 = vmul.f32 %v2534, %v2532
    %v2543 = vmul.f32 %v2535, %v2533
    %v2544 = vadd.f32 %v2518, %v2536
    %v2545 = vadd.f32 %v2519, %v2537
    %v2546 = vadd.f32 %v2520, %v2538
    %v2547 = vadd.f32 %v2521, %v2539
    %v2548 = vadd.f32 %v2522, %v2540
    %v2549 = vadd.f32 %v2523, %v2541
    %v2550 = vadd.f32 %v2524, %v2542
    %v2551 = vadd.f32 %v2525, %v2543
    %v2552 = vpack.c.bf16 %v2545, %v2544
    %v2553 = vpack.c.bf16 %v2547, %v2546
    %v2554 = vpack.c.bf16 %v2549, %v2548
    %v2555 = vpack.c.bf16 %v2551, %v2550
    %2556 = vst [vmem:[#allocation2 + $0x160] sm:$0xff] %v2552
    %2557 = vst [vmem:[#allocation2 + $0x168] sm:$0xff] %v2553
    %2558 = vst [vmem:[#allocation2 + $0x170] sm:$0xff] %v2554
    %2559 = vst [vmem:[#allocation2 + $0x178] sm:$0xff] %v2555
    %s2560 = scalar_lea.vmem %s0, 192
    %v2561 = vld [vmem:[%s2560] sm:$0xff]
    %v2562 = vld [vmem:[%s2560 + $0x8] sm:$0xff]
    %v2563 = vld [vmem:[%s1] sm:$0xff]
    %v2564 = vld [vmem:[%s1 + $0x8] sm:$0xff]
    %v2565 = vld [vmem:[%s1 + $0x10] sm:$0xff]
    %v2566 = vld [vmem:[%s1 + $0x18] sm:$0xff]
    %v2567 = vld [vmem:[%s1 + $0x20] sm:$0xff]
    %v2568 = vld [vmem:[%s1 + $0x28] sm:$0xff]
    %v2569 = vld [vmem:[%s1 + $0x30] sm:$0xff]
    %v2570 = vld [vmem:[%s1 + $0x38] sm:$0xff]
    %v2571 = vperm.slane %v2561, 0
    %v2572 = vperm.slane %v2562, 0
    %v2573 = vmul.f32 %v2571, %v2563
    %v2574 = vmul.f32 %v2572, %v2564
    %v2575 = vmul.f32 %v2571, %v2565
    %v2576 = vmul.f32 %v2572, %v2566
    %v2577 = vmul.f32 %v2571, %v2567
    %v2578 = vmul.f32 %v2572, %v2568
    %v2579 = vmul.f32 %v2571, %v2569
    %v2580 = vmul.f32 %v2572, %v2570
    %v2581 = vld [vmem:[%s42] sm:$0xff]
    %v2582 = vld [vmem:[%s42 + $0x8] sm:$0xff]
    %v2583 = vld [vmem:[%s42 + $0x10] sm:$0xff]
    %v2584 = vld [vmem:[%s42 + $0x18] sm:$0xff]
    %v2585 = vld [vmem:[%s42 + $0x20] sm:$0xff]
    %v2586 = vld [vmem:[%s42 + $0x28] sm:$0xff]
    %v2587 = vld [vmem:[%s42 + $0x30] sm:$0xff]
    %v2588 = vld [vmem:[%s42 + $0x38] sm:$0xff]
    %v2589 = vperm.slane %v2561, 1
    %v2590 = vperm.slane %v2562, 1
    %v2591 = vmul.f32 %v2589, %v2581
    %v2592 = vmul.f32 %v2590, %v2582
    %v2593 = vmul.f32 %v2589, %v2583
    %v2594 = vmul.f32 %v2590, %v2584
    %v2595 = vmul.f32 %v2589, %v2585
    %v2596 = vmul.f32 %v2590, %v2586
    %v2597 = vmul.f32 %v2589, %v2587
    %v2598 = vmul.f32 %v2590, %v2588
    %v2599 = vadd.f32 %v2573, %v2591
    %v2600 = vadd.f32 %v2574, %v2592
    %v2601 = vadd.f32 %v2575, %v2593
    %v2602 = vadd.f32 %v2576, %v2594
    %v2603 = vadd.f32 %v2577, %v2595
    %v2604 = vadd.f32 %v2578, %v2596
    %v2605 = vadd.f32 %v2579, %v2597
    %v2606 = vadd.f32 %v2580, %v2598
    %v2607 = vld [vmem:[%s69] sm:$0xff]
    %v2608 = vld [vmem:[%s69 + $0x8] sm:$0xff]
    %v2609 = vld [vmem:[%s69 + $0x10] sm:$0xff]
    %v2610 = vld [vmem:[%s69 + $0x18] sm:$0xff]
    %v2611 = vld [vmem:[%s69 + $0x20] sm:$0xff]
    %v2612 = vld [vmem:[%s69 + $0x28] sm:$0xff]
    %v2613 = vld [vmem:[%s69 + $0x30] sm:$0xff]
    %v2614 = vld [vmem:[%s69 + $0x38] sm:$0xff]
    %v2615 = vperm.slane %v2561, 2
    %v2616 = vperm.slane %v2562, 2
    %v2617 = vmul.f32 %v2615, %v2607
    %v2618 = vmul.f32 %v2616, %v2608
    %v2619 = vmul.f32 %v2615, %v2609
    %v2620 = vmul.f32 %v2616, %v2610
    %v2621 = vmul.f32 %v2615, %v2611
    %v2622 = vmul.f32 %v2616, %v2612
    %v2623 = vmul.f32 %v2615, %v2613
    %v2624 = vmul.f32 %v2616, %v2614
    %v2625 = vadd.f32 %v2599, %v2617
    %v2626 = vadd.f32 %v2600, %v2618
    %v2627 = vadd.f32 %v2601, %v2619
    %v2628 = vadd.f32 %v2602, %v2620
    %v2629 = vadd.f32 %v2603, %v2621
    %v2630 = vadd.f32 %v2604, %v2622
    %v2631 = vadd.f32 %v2605, %v2623
    %v2632 = vadd.f32 %v2606, %v2624
    %v2633 = vld [vmem:[%s96] sm:$0xff]
    %v2634 = vld [vmem:[%s96 + $0x8] sm:$0xff]
    %v2635 = vld [vmem:[%s96 + $0x10] sm:$0xff]
    %v2636 = vld [vmem:[%s96 + $0x18] sm:$0xff]
    %v2637 = vld [vmem:[%s96 + $0x20] sm:$0xff]
    %v2638 = vld [vmem:[%s96 + $0x28] sm:$0xff]
    %v2639 = vld [vmem:[%s96 + $0x30] sm:$0xff]
    %v2640 = vld [vmem:[%s96 + $0x38] sm:$0xff]
    %v2641 = vperm.slane %v2561, 3
    %v2642 = vperm.slane %v2562, 3
    %v2643 = vmul.f32 %v2641, %v2633
    %v2644 = vmul.f32 %v2642, %v2634
    %v2645 = vmul.f32 %v2641, %v2635
    %v2646 = vmul.f32 %v2642, %v2636
    %v2647 = vmul.f32 %v2641, %v2637
    %v2648 = vmul.f32 %v2642, %v2638
    %v2649 = vmul.f32 %v2641, %v2639
    %v2650 = vmul.f32 %v2642, %v2640
    %v2651 = vadd.f32 %v2625, %v2643
    %v2652 = vadd.f32 %v2626, %v2644
    %v2653 = vadd.f32 %v2627, %v2645
    %v2654 = vadd.f32 %v2628, %v2646
    %v2655 = vadd.f32 %v2629, %v2647
    %v2656 = vadd.f32 %v2630, %v2648
    %v2657 = vadd.f32 %v2631, %v2649
    %v2658 = vadd.f32 %v2632, %v2650
    %v2659 = vld [vmem:[%s123] sm:$0xff]
    %v2660 = vld [vmem:[%s123 + $0x8] sm:$0xff]
    %v2661 = vld [vmem:[%s123 + $0x10] sm:$0xff]
    %v2662 = vld [vmem:[%s123 + $0x18] sm:$0xff]
    %v2663 = vld [vmem:[%s123 + $0x20] sm:$0xff]
    %v2664 = vld [vmem:[%s123 + $0x28] sm:$0xff]
    %v2665 = vld [vmem:[%s123 + $0x30] sm:$0xff]
    %v2666 = vld [vmem:[%s123 + $0x38] sm:$0xff]
    %v2667 = vperm.slane %v2561, 4
    %v2668 = vperm.slane %v2562, 4
    %v2669 = vmul.f32 %v2667, %v2659
    %v2670 = vmul.f32 %v2668, %v2660
    %v2671 = vmul.f32 %v2667, %v2661
    %v2672 = vmul.f32 %v2668, %v2662
    %v2673 = vmul.f32 %v2667, %v2663
    %v2674 = vmul.f32 %v2668, %v2664
    %v2675 = vmul.f32 %v2667, %v2665
    %v2676 = vmul.f32 %v2668, %v2666
    %v2677 = vadd.f32 %v2651, %v2669
    %v2678 = vadd.f32 %v2652, %v2670
    %v2679 = vadd.f32 %v2653, %v2671
    %v2680 = vadd.f32 %v2654, %v2672
    %v2681 = vadd.f32 %v2655, %v2673
    %v2682 = vadd.f32 %v2656, %v2674
    %v2683 = vadd.f32 %v2657, %v2675
    %v2684 = vadd.f32 %v2658, %v2676
    %v2685 = vld [vmem:[%s150] sm:$0xff]
    %v2686 = vld [vmem:[%s150 + $0x8] sm:$0xff]
    %v2687 = vld [vmem:[%s150 + $0x10] sm:$0xff]
    %v2688 = vld [vmem:[%s150 + $0x18] sm:$0xff]
    %v2689 = vld [vmem:[%s150 + $0x20] sm:$0xff]
    %v2690 = vld [vmem:[%s150 + $0x28] sm:$0xff]
    %v2691 = vld [vmem:[%s150 + $0x30] sm:$0xff]
    %v2692 = vld [vmem:[%s150 + $0x38] sm:$0xff]
    %v2693 = vperm.slane %v2561, 5
    %v2694 = vperm.slane %v2562, 5
    %v2695 = vmul.f32 %v2693, %v2685
    %v2696 = vmul.f32 %v2694, %v2686
    %v2697 = vmul.f32 %v2693, %v2687
    %v2698 = vmul.f32 %v2694, %v2688
    %v2699 = vmul.f32 %v2693, %v2689
    %v2700 = vmul.f32 %v2694, %v2690
    %v2701 = vmul.f32 %v2693, %v2691
    %v2702 = vmul.f32 %v2694, %v2692
    %v2703 = vadd.f32 %v2677, %v2695
    %v2704 = vadd.f32 %v2678, %v2696
    %v2705 = vadd.f32 %v2679, %v2697
    %v2706 = vadd.f32 %v2680, %v2698
    %v2707 = vadd.f32 %v2681, %v2699
    %v2708 = vadd.f32 %v2682, %v2700
    %v2709 = vadd.f32 %v2683, %v2701
    %v2710 = vadd.f32 %v2684, %v2702
    %v2711 = vld [vmem:[%s177] sm:$0xff]
    %v2712 = vld [vmem:[%s177 + $0x8] sm:$0xff]
    %v2713 = vld [vmem:[%s177 + $0x10] sm:$0xff]
    %v2714 = vld [vmem:[%s177 + $0x18] sm:$0xff]
    %v2715 = vld [vmem:[%s177 + $0x20] sm:$0xff]
    %v2716 = vld [vmem:[%s177 + $0x28] sm:$0xff]
    %v2717 = vld [vmem:[%s177 + $0x30] sm:$0xff]
    %v2718 = vld [vmem:[%s177 + $0x38] sm:$0xff]
    %v2719 = vperm.slane %v2561, 6
    %v2720 = vperm.slane %v2562, 6
    %v2721 = vmul.f32 %v2719, %v2711
    %v2722 = vmul.f32 %v2720, %v2712
    %v2723 = vmul.f32 %v2719, %v2713
    %v2724 = vmul.f32 %v2720, %v2714
    %v2725 = vmul.f32 %v2719, %v2715
    %v2726 = vmul.f32 %v2720, %v2716
    %v2727 = vmul.f32 %v2719, %v2717
    %v2728 = vmul.f32 %v2720, %v2718
    %v2729 = vadd.f32 %v2703, %v2721
    %v2730 = vadd.f32 %v2704, %v2722
    %v2731 = vadd.f32 %v2705, %v2723
    %v2732 = vadd.f32 %v2706, %v2724
    %v2733 = vadd.f32 %v2707, %v2725
    %v2734 = vadd.f32 %v2708, %v2726
    %v2735 = vadd.f32 %v2709, %v2727
    %v2736 = vadd.f32 %v2710, %v2728
    %v2737 = vld [vmem:[%s204] sm:$0xff]
    %v2738 = vld [vmem:[%s204 + $0x8] sm:$0xff]
    %v2739 = vld [vmem:[%s204 + $0x10] sm:$0xff]
    %v2740 = vld [vmem:[%s204 + $0x18] sm:$0xff]
    %v2741 = vld [vmem:[%s204 + $0x20] sm:$0xff]
    %v2742 = vld [vmem:[%s204 + $0x28] sm:$0xff]
    %v2743 = vld [vmem:[%s204 + $0x30] sm:$0xff]
    %v2744 = vld [vmem:[%s204 + $0x38] sm:$0xff]
    %v2745 = vperm.slane %v2561, 7
    %v2746 = vperm.slane %v2562, 7
    %v2747 = vmul.f32 %v2745, %v2737
    %v2748 = vmul.f32 %v2746, %v2738
    %v2749 = vmul.f32 %v2745, %v2739
    %v2750 = vmul.f32 %v2746, %v2740
    %v2751 = vmul.f32 %v2745, %v2741
    %v2752 = vmul.f32 %v2746, %v2742
    %v2753 = vmul.f32 %v2745, %v2743
    %v2754 = vmul.f32 %v2746, %v2744
    %v2755 = vadd.f32 %v2729, %v2747
    %v2756 = vadd.f32 %v2730, %v2748
    %v2757 = vadd.f32 %v2731, %v2749
    %v2758 = vadd.f32 %v2732, %v2750
    %v2759 = vadd.f32 %v2733, %v2751
    %v2760 = vadd.f32 %v2734, %v2752
    %v2761 = vadd.f32 %v2735, %v2753
    %v2762 = vadd.f32 %v2736, %v2754
    %v2763 = vpack.c.bf16 %v2756, %v2755
    %v2764 = vpack.c.bf16 %v2758, %v2757
    %v2765 = vpack.c.bf16 %v2760, %v2759
    %v2766 = vpack.c.bf16 %v2762, %v2761
    %2767 = vst [vmem:[#allocation2 + $0x180] sm:$0xff] %v2763
    %2768 = vst [vmem:[#allocation2 + $0x188] sm:$0xff] %v2764
    %2769 = vst [vmem:[#allocation2 + $0x190] sm:$0xff] %v2765
    %2770 = vst [vmem:[#allocation2 + $0x198] sm:$0xff] %v2766
    %s2771 = scalar_lea.vmem %s0, 208
    %v2772 = vld [vmem:[%s2771] sm:$0xff]
    %v2773 = vld [vmem:[%s2771 + $0x8] sm:$0xff]
    %v2774 = vld [vmem:[%s1] sm:$0xff]
    %v2775 = vld [vmem:[%s1 + $0x8] sm:$0xff]
    %v2776 = vld [vmem:[%s1 + $0x10] sm:$0xff]
    %v2777 = vld [vmem:[%s1 + $0x18] sm:$0xff]
    %v2778 = vld [vmem:[%s1 + $0x20] sm:$0xff]
    %v2779 = vld [vmem:[%s1 + $0x28] sm:$0xff]
    %v2780 = vld [vmem:[%s1 + $0x30] sm:$0xff]
    %v2781 = vld [vmem:[%s1 + $0x38] sm:$0xff]
    %v2782 = vperm.slane %v2772, 0
    %v2783 = vperm.slane %v2773, 0
    %v2784 = vmul.f32 %v2782, %v2774
    %v2785 = vmul.f32 %v2783, %v2775
    %v2786 = vmul.f32 %v2782, %v2776
    %v2787 = vmul.f32 %v2783, %v2777
    %v2788 = vmul.f32 %v2782, %v2778
    %v2789 = vmul.f32 %v2783, %v2779
    %v2790 = vmul.f32 %v2782, %v2780
    %v2791 = vmul.f32 %v2783, %v2781
    %v2792 = vld [vmem:[%s42] sm:$0xff]
    %v2793 = vld [vmem:[%s42 + $0x8] sm:$0xff]
    %v2794 = vld [vmem:[%s42 + $0x10] sm:$0xff]
    %v2795 = vld [vmem:[%s42 + $0x18] sm:$0xff]
    %v2796 = vld [vmem:[%s42 + $0x20] sm:$0xff]
    %v2797 = vld [vmem:[%s42 + $0x28] sm:$0xff]
    %v2798 = vld [vmem:[%s42 + $0x30] sm:$0xff]
    %v2799 = vld [vmem:[%s42 + $0x38] sm:$0xff]
    %v2800 = vperm.slane %v2772, 1
    %v2801 = vperm.slane %v2773, 1
    %v2802 = vmul.f32 %v2800, %v2792
    %v2803 = vmul.f32 %v2801, %v2793
    %v2804 = vmul.f32 %v2800, %v2794
    %v2805 = vmul.f32 %v2801, %v2795
    %v2806 = vmul.f32 %v2800, %v2796
    %v2807 = vmul.f32 %v2801, %v2797
    %v2808 = vmul.f32 %v2800, %v2798
    %v2809 = vmul.f32 %v2801, %v2799
    %v2810 = vadd.f32 %v2784, %v2802
    %v2811 = vadd.f32 %v2785, %v2803
    %v2812 = vadd.f32 %v2786, %v2804
    %v2813 = vadd.f32 %v2787, %v2805
    %v2814 = vadd.f32 %v2788, %v2806
    %v2815 = vadd.f32 %v2789, %v2807
    %v2816 = vadd.f32 %v2790, %v2808
    %v2817 = vadd.f32 %v2791, %v2809
    %v2818 = vld [vmem:[%s69] sm:$0xff]
    %v2819 = vld [vmem:[%s69 + $0x8] sm:$0xff]
    %v2820 = vld [vmem:[%s69 + $0x10] sm:$0xff]
    %v2821 = vld [vmem:[%s69 + $0x18] sm:$0xff]
    %v2822 = vld [vmem:[%s69 + $0x20] sm:$0xff]
    %v2823 = vld [vmem:[%s69 + $0x28] sm:$0xff]
    %v2824 = vld [vmem:[%s69 + $0x30] sm:$0xff]
    %v2825 = vld [vmem:[%s69 + $0x38] sm:$0xff]
    %v2826 = vperm.slane %v2772, 2
    %v2827 = vperm.slane %v2773, 2
    %v2828 = vmul.f32 %v2826, %v2818
    %v2829 = vmul.f32 %v2827, %v2819
    %v2830 = vmul.f32 %v2826, %v2820
    %v2831 = vmul.f32 %v2827, %v2821
    %v2832 = vmul.f32 %v2826, %v2822
    %v2833 = vmul.f32 %v2827, %v2823
    %v2834 = vmul.f32 %v2826, %v2824
    %v2835 = vmul.f32 %v2827, %v2825
    %v2836 = vadd.f32 %v2810, %v2828
    %v2837 = vadd.f32 %v2811, %v2829
    %v2838 = vadd.f32 %v2812, %v2830
    %v2839 = vadd.f32 %v2813, %v2831
    %v2840 = vadd.f32 %v2814, %v2832
    %v2841 = vadd.f32 %v2815, %v2833
    %v2842 = vadd.f32 %v2816, %v2834
    %v2843 = vadd.f32 %v2817, %v2835
    %v2844 = vld [vmem:[%s96] sm:$0xff]
    %v2845 = vld [vmem:[%s96 + $0x8] sm:$0xff]
    %v2846 = vld [vmem:[%s96 + $0x10] sm:$0xff]
    %v2847 = vld [vmem:[%s96 + $0x18] sm:$0xff]
    %v2848 = vld [vmem:[%s96 + $0x20] sm:$0xff]
    %v2849 = vld [vmem:[%s96 + $0x28] sm:$0xff]
    %v2850 = vld [vmem:[%s96 + $0x30] sm:$0xff]
    %v2851 = vld [vmem:[%s96 + $0x38] sm:$0xff]
    %v2852 = vperm.slane %v2772, 3
    %v2853 = vperm.slane %v2773, 3
    %v2854 = vmul.f32 %v2852, %v2844
    %v2855 = vmul.f32 %v2853, %v2845
    %v2856 = vmul.f32 %v2852, %v2846
    %v2857 = vmul.f32 %v2853, %v2847
    %v2858 = vmul.f32 %v2852, %v2848
    %v2859 = vmul.f32 %v2853, %v2849
    %v2860 = vmul.f32 %v2852, %v2850
    %v2861 = vmul.f32 %v2853, %v2851
    %v2862 = vadd.f32 %v2836, %v2854
    %v2863 = vadd.f32 %v2837, %v2855
    %v2864 = vadd.f32 %v2838, %v2856
    %v2865 = vadd.f32 %v2839, %v2857
    %v2866 = vadd.f32 %v2840, %v2858
    %v2867 = vadd.f32 %v2841, %v2859
    %v2868 = vadd.f32 %v2842, %v2860
    %v2869 = vadd.f32 %v2843, %v2861
    %v2870 = vld [vmem:[%s123] sm:$0xff]
    %v2871 = vld [vmem:[%s123 + $0x8] sm:$0xff]
    %v2872 = vld [vmem:[%s123 + $0x10] sm:$0xff]
    %v2873 = vld [vmem:[%s123 + $0x18] sm:$0xff]
    %v2874 = vld [vmem:[%s123 + $0x20] sm:$0xff]
    %v2875 = vld [vmem:[%s123 + $0x28] sm:$0xff]
    %v2876 = vld [vmem:[%s123 + $0x30] sm:$0xff]
    %v2877 = vld [vmem:[%s123 + $0x38] sm:$0xff]
    %v2878 = vperm.slane %v2772, 4
    %v2879 = vperm.slane %v2773, 4
    %v2880 = vmul.f32 %v2878, %v2870
    %v2881 = vmul.f32 %v2879, %v2871
    %v2882 = vmul.f32 %v2878, %v2872
    %v2883 = vmul.f32 %v2879, %v2873
    %v2884 = vmul.f32 %v2878, %v2874
    %v2885 = vmul.f32 %v2879, %v2875
    %v2886 = vmul.f32 %v2878, %v2876
    %v2887 = vmul.f32 %v2879, %v2877
    %v2888 = vadd.f32 %v2862, %v2880
    %v2889 = vadd.f32 %v2863, %v2881
    %v2890 = vadd.f32 %v2864, %v2882
    %v2891 = vadd.f32 %v2865, %v2883
    %v2892 = vadd.f32 %v2866, %v2884
    %v2893 = vadd.f32 %v2867, %v2885
    %v2894 = vadd.f32 %v2868, %v2886
    %v2895 = vadd.f32 %v2869, %v2887
    %v2896 = vld [vmem:[%s150] sm:$0xff]
    %v2897 = vld [vmem:[%s150 + $0x8] sm:$0xff]
    %v2898 = vld [vmem:[%s150 + $0x10] sm:$0xff]
    %v2899 = vld [vmem:[%s150 + $0x18] sm:$0xff]
    %v2900 = vld [vmem:[%s150 + $0x20] sm:$0xff]
    %v2901 = vld [vmem:[%s150 + $0x28] sm:$0xff]
    %v2902 = vld [vmem:[%s150 + $0x30] sm:$0xff]
    %v2903 = vld [vmem:[%s150 + $0x38] sm:$0xff]
    %v2904 = vperm.slane %v2772, 5
    %v2905 = vperm.slane %v2773, 5
    %v2906 = vmul.f32 %v2904, %v2896
    %v2907 = vmul.f32 %v2905, %v2897
    %v2908 = vmul.f32 %v2904, %v2898
    %v2909 = vmul.f32 %v2905, %v2899
    %v2910 = vmul.f32 %v2904, %v2900
    %v2911 = vmul.f32 %v2905, %v2901
    %v2912 = vmul.f32 %v2904, %v2902
    %v2913 = vmul.f32 %v2905, %v2903
    %v2914 = vadd.f32 %v2888, %v2906
    %v2915 = vadd.f32 %v2889, %v2907
    %v2916 = vadd.f32 %v2890, %v2908
    %v2917 = vadd.f32 %v2891, %v2909
    %v2918 = vadd.f32 %v2892, %v2910
    %v2919 = vadd.f32 %v2893, %v2911
    %v2920 = vadd.f32 %v2894, %v2912
    %v2921 = vadd.f32 %v2895, %v2913
    %v2922 = vld [vmem:[%s177] sm:$0xff]
    %v2923 = vld [vmem:[%s177 + $0x8] sm:$0xff]
    %v2924 = vld [vmem:[%s177 + $0x10] sm:$0xff]
    %v2925 = vld [vmem:[%s177 + $0x18] sm:$0xff]
    %v2926 = vld [vmem:[%s177 + $0x20] sm:$0xff]
    %v2927 = vld [vmem:[%s177 + $0x28] sm:$0xff]
    %v2928 = vld [vmem:[%s177 + $0x30] sm:$0xff]
    %v2929 = vld [vmem:[%s177 + $0x38] sm:$0xff]
    %v2930 = vperm.slane %v2772, 6
    %v2931 = vperm.slane %v2773, 6
    %v2932 = vmul.f32 %v2930, %v2922
    %v2933 = vmul.f32 %v2931, %v2923
    %v2934 = vmul.f32 %v2930, %v2924
    %v2935 = vmul.f32 %v2931, %v2925
    %v2936 = vmul.f32 %v2930, %v2926
    %v2937 = vmul.f32 %v2931, %v2927
    %v2938 = vmul.f32 %v2930, %v2928
    %v2939 = vmul.f32 %v2931, %v2929
    %v2940 = vadd.f32 %v2914, %v2932
    %v2941 = vadd.f32 %v2915, %v2933
    %v2942 = vadd.f32 %v2916, %v2934
    %v2943 = vadd.f32 %v2917, %v2935
    %v2944 = vadd.f32 %v2918, %v2936
    %v2945 = vadd.f32 %v2919, %v2937
    %v2946 = vadd.f32 %v2920, %v2938
    %v2947 = vadd.f32 %v2921, %v2939
    %v2948 = vld [vmem:[%s204] sm:$0xff]
    %v2949 = vld [vmem:[%s204 + $0x8] sm:$0xff]
    %v2950 = vld [vmem:[%s204 + $0x10] sm:$0xff]
    %v2951 = vld [vmem:[%s204 + $0x18] sm:$0xff]
    %v2952 = vld [vmem:[%s204 + $0x20] sm:$0xff]
    %v2953 = vld [vmem:[%s204 + $0x28] sm:$0xff]
    %v2954 = vld [vmem:[%s204 + $0x30] sm:$0xff]
    %v2955 = vld [vmem:[%s204 + $0x38] sm:$0xff]
    %v2956 = vperm.slane %v2772, 7
    %v2957 = vperm.slane %v2773, 7
    %v2958 = vmul.f32 %v2956, %v2948
    %v2959 = vmul.f32 %v2957, %v2949
    %v2960 = vmul.f32 %v2956, %v2950
    %v2961 = vmul.f32 %v2957, %v2951
    %v2962 = vmul.f32 %v2956, %v2952
    %v2963 = vmul.f32 %v2957, %v2953
    %v2964 = vmul.f32 %v2956, %v2954
    %v2965 = vmul.f32 %v2957, %v2955
    %v2966 = vadd.f32 %v2940, %v2958
    %v2967 = vadd.f32 %v2941, %v2959
    %v2968 = vadd.f32 %v2942, %v2960
    %v2969 = vadd.f32 %v2943, %v2961
    %v2970 = vadd.f32 %v2944, %v2962
    %v2971 = vadd.f32 %v2945, %v2963
    %v2972 = vadd.f32 %v2946, %v2964
    %v2973 = vadd.f32 %v2947, %v2965
    %v2974 = vpack.c.bf16 %v2967, %v2966
    %v2975 = vpack.c.bf16 %v2969, %v2968
    %v2976 = vpack.c.bf16 %v2971, %v2970
    %v2977 = vpack.c.bf16 %v2973, %v2972
    %2978 = vst [vmem:[#allocation2 + $0x1a0] sm:$0xff] %v2974
    %2979 = vst [vmem:[#allocation2 + $0x1a8] sm:$0xff] %v2975
    %2980 = vst [vmem:[#allocation2 + $0x1b0] sm:$0xff] %v2976
    %2981 = vst [vmem:[#allocation2 + $0x1b8] sm:$0xff] %v2977
    %s2982 = scalar_lea.vmem %s0, 224
    %v2983 = vld [vmem:[%s2982] sm:$0xff]
    %v2984 = vld [vmem:[%s2982 + $0x8] sm:$0xff]
    %v2985 = vld [vmem:[%s1] sm:$0xff]
    %v2986 = vld [vmem:[%s1 + $0x8] sm:$0xff]
    %v2987 = vld [vmem:[%s1 + $0x10] sm:$0xff]
    %v2988 = vld [vmem:[%s1 + $0x18] sm:$0xff]
    %v2989 = vld [vmem:[%s1 + $0x20] sm:$0xff]
    %v2990 = vld [vmem:[%s1 + $0x28] sm:$0xff]
    %v2991 = vld [vmem:[%s1 + $0x30] sm:$0xff]
    %v2992 = vld [vmem:[%s1 + $0x38] sm:$0xff]
    %v2993 = vperm.slane %v2983, 0
    %v2994 = vperm.slane %v2984, 0
    %v2995 = vmul.f32 %v2993, %v2985
    %v2996 = vmul.f32 %v2994, %v2986
    %v2997 = vmul.f32 %v2993, %v2987
    %v2998 = vmul.f32 %v2994, %v2988
    %v2999 = vmul.f32 %v2993, %v2989
    %v3000 = vmul.f32 %v2994, %v2990
    %v3001 = vmul.f32 %v2993, %v2991
    %v3002 = vmul.f32 %v2994, %v2992
    %v3003 = vld [vmem:[%s42] sm:$0xff]
    %v3004 = vld [vmem:[%s42 + $0x8] sm:$0xff]
    %v3005 = vld [vmem:[%s42 + $0x10] sm:$0xff]
    %v3006 = vld [vmem:[%s42 + $0x18] sm:$0xff]
    %v3007 = vld [vmem:[%s42 + $0x20] sm:$0xff]
    %v3008 = vld [vmem:[%s42 + $0x28] sm:$0xff]
    %v3009 = vld [vmem:[%s42 + $0x30] sm:$0xff]
    %v3010 = vld [vmem:[%s42 + $0x38] sm:$0xff]
    %v3011 = vperm.slane %v2983, 1
    %v3012 = vperm.slane %v2984, 1
    %v3013 = vmul.f32 %v3011, %v3003
    %v3014 = vmul.f32 %v3012, %v3004
    %v3015 = vmul.f32 %v3011, %v3005
    %v3016 = vmul.f32 %v3012, %v3006
    %v3017 = vmul.f32 %v3011, %v3007
    %v3018 = vmul.f32 %v3012, %v3008
    %v3019 = vmul.f32 %v3011, %v3009
    %v3020 = vmul.f32 %v3012, %v3010
    %v3021 = vadd.f32 %v2995, %v3013
    %v3022 = vadd.f32 %v2996, %v3014
    %v3023 = vadd.f32 %v2997, %v3015
    %v3024 = vadd.f32 %v2998, %v3016
    %v3025 = vadd.f32 %v2999, %v3017
    %v3026 = vadd.f32 %v3000, %v3018
    %v3027 = vadd.f32 %v3001, %v3019
    %v3028 = vadd.f32 %v3002, %v3020
    %v3029 = vld [vmem:[%s69] sm:$0xff]
    %v3030 = vld [vmem:[%s69 + $0x8] sm:$0xff]
    %v3031 = vld [vmem:[%s69 + $0x10] sm:$0xff]
    %v3032 = vld [vmem:[%s69 + $0x18] sm:$0xff]
    %v3033 = vld [vmem:[%s69 + $0x20] sm:$0xff]
    %v3034 = vld [vmem:[%s69 + $0x28] sm:$0xff]
    %v3035 = vld [vmem:[%s69 + $0x30] sm:$0xff]
    %v3036 = vld [vmem:[%s69 + $0x38] sm:$0xff]
    %v3037 = vperm.slane %v2983, 2
    %v3038 = vperm.slane %v2984, 2
    %v3039 = vmul.f32 %v3037, %v3029
    %v3040 = vmul.f32 %v3038, %v3030
    %v3041 = vmul.f32 %v3037, %v3031
    %v3042 = vmul.f32 %v3038, %v3032
    %v3043 = vmul.f32 %v3037, %v3033
    %v3044 = vmul.f32 %v3038, %v3034
    %v3045 = vmul.f32 %v3037, %v3035
    %v3046 = vmul.f32 %v3038, %v3036
    %v3047 = vadd.f32 %v3021, %v3039
    %v3048 = vadd.f32 %v3022, %v3040
    %v3049 = vadd.f32 %v3023, %v3041
    %v3050 = vadd.f32 %v3024, %v3042
    %v3051 = vadd.f32 %v3025, %v3043
    %v3052 = vadd.f32 %v3026, %v3044
    %v3053 = vadd.f32 %v3027, %v3045
    %v3054 = vadd.f32 %v3028, %v3046
    %v3055 = vld [vmem:[%s96] sm:$0xff]
    %v3056 = vld [vmem:[%s96 + $0x8] sm:$0xff]
    %v3057 = vld [vmem:[%s96 + $0x10] sm:$0xff]
    %v3058 = vld [vmem:[%s96 + $0x18] sm:$0xff]
    %v3059 = vld [vmem:[%s96 + $0x20] sm:$0xff]
    %v3060 = vld [vmem:[%s96 + $0x28] sm:$0xff]
    %v3061 = vld [vmem:[%s96 + $0x30] sm:$0xff]
    %v3062 = vld [vmem:[%s96 + $0x38] sm:$0xff]
    %v3063 = vperm.slane %v2983, 3
    %v3064 = vperm.slane %v2984, 3
    %v3065 = vmul.f32 %v3063, %v3055
    %v3066 = vmul.f32 %v3064, %v3056
    %v3067 = vmul.f32 %v3063, %v3057
    %v3068 = vmul.f32 %v3064, %v3058
    %v3069 = vmul.f32 %v3063, %v3059
    %v3070 = vmul.f32 %v3064, %v3060
    %v3071 = vmul.f32 %v3063, %v3061
    %v3072 = vmul.f32 %v3064, %v3062
    %v3073 = vadd.f32 %v3047, %v3065
    %v3074 = vadd.f32 %v3048, %v3066
    %v3075 = vadd.f32 %v3049, %v3067
    %v3076 = vadd.f32 %v3050, %v3068
    %v3077 = vadd.f32 %v3051, %v3069
    %v3078 = vadd.f32 %v3052, %v3070
    %v3079 = vadd.f32 %v3053, %v3071
    %v3080 = vadd.f32 %v3054, %v3072
    %v3081 = vld [vmem:[%s123] sm:$0xff]
    %v3082 = vld [vmem:[%s123 + $0x8] sm:$0xff]
    %v3083 = vld [vmem:[%s123 + $0x10] sm:$0xff]
    %v3084 = vld [vmem:[%s123 + $0x18] sm:$0xff]
    %v3085 = vld [vmem:[%s123 + $0x20] sm:$0xff]
    %v3086 = vld [vmem:[%s123 + $0x28] sm:$0xff]
    %v3087 = vld [vmem:[%s123 + $0x30] sm:$0xff]
    %v3088 = vld [vmem:[%s123 + $0x38] sm:$0xff]
    %v3089 = vperm.slane %v2983, 4
    %v3090 = vperm.slane %v2984, 4
    %v3091 = vmul.f32 %v3089, %v3081
    %v3092 = vmul.f32 %v3090, %v3082
    %v3093 = vmul.f32 %v3089, %v3083
    %v3094 = vmul.f32 %v3090, %v3084
    %v3095 = vmul.f32 %v3089, %v3085
    %v3096 = vmul.f32 %v3090, %v3086
    %v3097 = vmul.f32 %v3089, %v3087
    %v3098 = vmul.f32 %v3090, %v3088
    %v3099 = vadd.f32 %v3073, %v3091
    %v3100 = vadd.f32 %v3074, %v3092
    %v3101 = vadd.f32 %v3075, %v3093
    %v3102 = vadd.f32 %v3076, %v3094
    %v3103 = vadd.f32 %v3077, %v3095
    %v3104 = vadd.f32 %v3078, %v3096
    %v3105 = vadd.f32 %v3079, %v3097
    %v3106 = vadd.f32 %v3080, %v3098
    %v3107 = vld [vmem:[%s150] sm:$0xff]
    %v3108 = vld [vmem:[%s150 + $0x8] sm:$0xff]
    %v3109 = vld [vmem:[%s150 + $0x10] sm:$0xff]
    %v3110 = vld [vmem:[%s150 + $0x18] sm:$0xff]
    %v3111 = vld [vmem:[%s150 + $0x20] sm:$0xff]
    %v3112 = vld [vmem:[%s150 + $0x28] sm:$0xff]
    %v3113 = vld [vmem:[%s150 + $0x30] sm:$0xff]
    %v3114 = vld [vmem:[%s150 + $0x38] sm:$0xff]
    %v3115 = vperm.slane %v2983, 5
    %v3116 = vperm.slane %v2984, 5
    %v3117 = vmul.f32 %v3115, %v3107
    %v3118 = vmul.f32 %v3116, %v3108
    %v3119 = vmul.f32 %v3115, %v3109
    %v3120 = vmul.f32 %v3116, %v3110
    %v3121 = vmul.f32 %v3115, %v3111
    %v3122 = vmul.f32 %v3116, %v3112
    %v3123 = vmul.f32 %v3115, %v3113
    %v3124 = vmul.f32 %v3116, %v3114
    %v3125 = vadd.f32 %v3099, %v3117
    %v3126 = vadd.f32 %v3100, %v3118
    %v3127 = vadd.f32 %v3101, %v3119
    %v3128 = vadd.f32 %v3102, %v3120
    %v3129 = vadd.f32 %v3103, %v3121
    %v3130 = vadd.f32 %v3104, %v3122
    %v3131 = vadd.f32 %v3105, %v3123
    %v3132 = vadd.f32 %v3106, %v3124
    %v3133 = vld [vmem:[%s177] sm:$0xff]
    %v3134 = vld [vmem:[%s177 + $0x8] sm:$0xff]
    %v3135 = vld [vmem:[%s177 + $0x10] sm:$0xff]
    %v3136 = vld [vmem:[%s177 + $0x18] sm:$0xff]
    %v3137 = vld [vmem:[%s177 + $0x20] sm:$0xff]
    %v3138 = vld [vmem:[%s177 + $0x28] sm:$0xff]
    %v3139 = vld [vmem:[%s177 + $0x30] sm:$0xff]
    %v3140 = vld [vmem:[%s177 + $0x38] sm:$0xff]
    %v3141 = vperm.slane %v2983, 6
    %v3142 = vperm.slane %v2984, 6
    %v3143 = vmul.f32 %v3141, %v3133
    %v3144 = vmul.f32 %v3142, %v3134
    %v3145 = vmul.f32 %v3141, %v3135
    %v3146 = vmul.f32 %v3142, %v3136
    %v3147 = vmul.f32 %v3141, %v3137
    %v3148 = vmul.f32 %v3142, %v3138
    %v3149 = vmul.f32 %v3141, %v3139
    %v3150 = vmul.f32 %v3142, %v3140
    %v3151 = vadd.f32 %v3125, %v3143
    %v3152 = vadd.f32 %v3126, %v3144
    %v3153 = vadd.f32 %v3127, %v3145
    %v3154 = vadd.f32 %v3128, %v3146
    %v3155 = vadd.f32 %v3129, %v3147
    %v3156 = vadd.f32 %v3130, %v3148
    %v3157 = vadd.f32 %v3131, %v3149
    %v3158 = vadd.f32 %v3132, %v3150
    %v3159 = vld [vmem:[%s204] sm:$0xff]
    %v3160 = vld [vmem:[%s204 + $0x8] sm:$0xff]
    %v3161 = vld [vmem:[%s204 + $0x10] sm:$0xff]
    %v3162 = vld [vmem:[%s204 + $0x18] sm:$0xff]
    %v3163 = vld [vmem:[%s204 + $0x20] sm:$0xff]
    %v3164 = vld [vmem:[%s204 + $0x28] sm:$0xff]
    %v3165 = vld [vmem:[%s204 + $0x30] sm:$0xff]
    %v3166 = vld [vmem:[%s204 + $0x38] sm:$0xff]
    %v3167 = vperm.slane %v2983, 7
    %v3168 = vperm.slane %v2984, 7
    %v3169 = vmul.f32 %v3167, %v3159
    %v3170 = vmul.f32 %v3168, %v3160
    %v3171 = vmul.f32 %v3167, %v3161
    %v3172 = vmul.f32 %v3168, %v3162
    %v3173 = vmul.f32 %v3167, %v3163
    %v3174 = vmul.f32 %v3168, %v3164
    %v3175 = vmul.f32 %v3167, %v3165
    %v3176 = vmul.f32 %v3168, %v3166
    %v3177 = vadd.f32 %v3151, %v3169
    %v3178 = vadd.f32 %v3152, %v3170
    %v3179 = vadd.f32 %v3153, %v3171
    %v3180 = vadd.f32 %v3154, %v3172
    %v3181 = vadd.f32 %v3155, %v3173
    %v3182 = vadd.f32 %v3156, %v3174
    %v3183 = vadd.f32 %v3157, %v3175
    %v3184 = vadd.f32 %v3158, %v3176
    %v3185 = vpack.c.bf16 %v3178, %v3177
    %v3186 = vpack.c.bf16 %v3180, %v3179
    %v3187 = vpack.c.bf16 %v3182, %v3181
    %v3188 = vpack.c.bf16 %v3184, %v3183
    %3189 = vst [vmem:[#allocation2 + $0x1c0] sm:$0xff] %v3185
    %3190 = vst [vmem:[#allocation2 + $0x1c8] sm:$0xff] %v3186
    %3191 = vst [vmem:[#allocation2 + $0x1d0] sm:$0xff] %v3187
    %3192 = vst [vmem:[#allocation2 + $0x1d8] sm:$0xff] %v3188
    %v3193 = vld [vmem:[%s2] sm:$0xff]
    %v3194 = vld [vmem:[%s2 + $0x8] sm:$0xff]
    %v3195 = vld [vmem:[%s2 + $0x10] sm:$0xff]
    %v3196 = vld [vmem:[%s2 + $0x18] sm:$0xff]
    %v3197 = vld [vmem:[%s2 + $0x20] sm:$0xff]
    %v3198 = vld [vmem:[%s2 + $0x28] sm:$0xff]
    %v3199 = vld [vmem:[%s2 + $0x30] sm:$0xff]
    %v3200 = vld [vmem:[%s2 + $0x38] sm:$0xff]
    %v3201 = vld [vmem:[%s2 + $0x40] sm:$0xff]
    %v3202 = vld [vmem:[%s2 + $0x48] sm:$0xff]
    %v3203 = vld [vmem:[%s2 + $0x50] sm:$0xff]
    %v3204 = vld [vmem:[%s2 + $0x58] sm:$0xff]
    %v3205 = vld [vmem:[%s2 + $0x60] sm:$0xff]
    %v3206 = vld [vmem:[%s2 + $0x68] sm:$0xff]
    %v3207 = vld [vmem:[%s2 + $0x70] sm:$0xff]
    %v3208 = vld [vmem:[%s2 + $0x78] sm:$0xff]
    %v3209 = vld [vmem:[%s2 + $0x80] sm:$0xff]
    %v3210 = vld [vmem:[%s2 + $0x88] sm:$0xff]
    %v3211 = vld [vmem:[%s2 + $0x90] sm:$0xff]
    %v3212 = vld [vmem:[%s2 + $0x98] sm:$0xff]
    %v3213 = vld [vmem:[%s2 + $0xa0] sm:$0xff]
    %v3214 = vld [vmem:[%s2 + $0xa8] sm:$0xff]
    %v3215 = vld [vmem:[%s2 + $0xb0] sm:$0xff]
    %v3216 = vld [vmem:[%s2 + $0xb8] sm:$0xff]
    %v3217 = vld [vmem:[%s2 + $0xc0] sm:$0xff]
    %v3218 = vld [vmem:[%s2 + $0xc8] sm:$0xff]
    %v3219 = vld [vmem:[%s2 + $0xd0] sm:$0xff]
    %v3220 = vld [vmem:[%s2 + $0xd8] sm:$0xff]
    %v3221 = vld [vmem:[%s2 + $0xe0] sm:$0xff]
    %v3222 = vld [vmem:[%s2 + $0xe8] sm:$0xff]
    %v3223 = vld [vmem:[%s2 + $0xf0] sm:$0xff]
    %v3224 = vld [vmem:[%s2 + $0xf8] sm:$0xff]
    %v3225 = vld [vmem:[%s2 + $0x100] sm:$0xff]
    %v3226 = vld [vmem:[%s2 + $0x108] sm:$0xff]
    %v3227 = vld [vmem:[%s2 + $0x110] sm:$0xff]
    %v3228 = vld [vmem:[%s2 + $0x118] sm:$0xff]
    %v3229 = vld [vmem:[%s2 + $0x120] sm:$0xff]
    %v3230 = vld [vmem:[%s2 + $0x128] sm:$0xff]
    %v3231 = vld [vmem:[%s2 + $0x130] sm:$0xff]
    %v3232 = vld [vmem:[%s2 + $0x138] sm:$0xff]
    %v3233 = vld [vmem:[%s2 + $0x140] sm:$0xff]
    %v3234 = vld [vmem:[%s2 + $0x148] sm:$0xff]
    %v3235 = vld [vmem:[%s2 + $0x150] sm:$0xff]
    %v3236 = vld [vmem:[%s2 + $0x158] sm:$0xff]
    %v3237 = vld [vmem:[%s2 + $0x160] sm:$0xff]
    %v3238 = vld [vmem:[%s2 + $0x168] sm:$0xff]
    %v3239 = vld [vmem:[%s2 + $0x170] sm:$0xff]
    %v3240 = vld [vmem:[%s2 + $0x178] sm:$0xff]
    %v3241 = vld [vmem:[%s2 + $0x180] sm:$0xff]
    %v3242 = vld [vmem:[%s2 + $0x188] sm:$0xff]
    %v3243 = vld [vmem:[%s2 + $0x190] sm:$0xff]
    %v3244 = vld [vmem:[%s2 + $0x198] sm:$0xff]
    %v3245 = vld [vmem:[%s2 + $0x1a0] sm:$0xff]
    %v3246 = vld [vmem:[%s2 + $0x1a8] sm:$0xff]
    %v3247 = vld [vmem:[%s2 + $0x1b0] sm:$0xff]
    %v3248 = vld [vmem:[%s2 + $0x1b8] sm:$0xff]
    %v3249 = vld [vmem:[%s2 + $0x1c0] sm:$0xff]
    %v3250 = vld [vmem:[%s2 + $0x1c8] sm:$0xff]
    %v3251 = vld [vmem:[%s2 + $0x1d0] sm:$0xff]
    %v3252 = vld [vmem:[%s2 + $0x1d8] sm:$0xff]
    %v3253 = vld [vmem:[%s2 + $0x1e0] sm:$0xff]
    %v3254 = vld [vmem:[%s2 + $0x1e8] sm:$0xff]
    %v3255 = vld [vmem:[%s2 + $0x1f0] sm:$0xff]
    %v3256 = vld [vmem:[%s2 + $0x1f8] sm:$0xff]
    %v3257 = vld [vmem:[#allocation2] sm:$0xff]
    %v3258 = vld [vmem:[#allocation2 + $0x8] sm:$0xff]
    %v3259 = vld [vmem:[#allocation2 + $0x10] sm:$0xff]
    %v3260 = vld [vmem:[#allocation2 + $0x18] sm:$0xff]
    %v3261 = vld [vmem:[#allocation2 + $0x20] sm:$0xff]
    %v3262 = vld [vmem:[#allocation2 + $0x28] sm:$0xff]
    %v3263 = vld [vmem:[#allocation2 + $0x30] sm:$0xff]
    %v3264 = vld [vmem:[#allocation2 + $0x38] sm:$0xff]
    %v3265 = vld [vmem:[#allocation2 + $0x40] sm:$0xff]
    %v3266 = vld [vmem:[#allocation2 + $0x48] sm:$0xff]
    %v3267 = vld [vmem:[#allocation2 + $0x50] sm:$0xff]
    %v3268 = vld [vmem:[#allocation2 + $0x58] sm:$0xff]
    %v3269 = vld [vmem:[#allocation2 + $0x60] sm:$0xff]
    %v3270 = vld [vmem:[#allocation2 + $0x68] sm:$0xff]
    %v3271 = vld [vmem:[#allocation2 + $0x70] sm:$0xff]
    %v3272 = vld [vmem:[#allocation2 + $0x78] sm:$0xff]
    %v3273 = vld [vmem:[#allocation2 + $0x80] sm:$0xff]
    %v3274 = vld [vmem:[#allocation2 + $0x88] sm:$0xff]
    %v3275 = vld [vmem:[#allocation2 + $0x90] sm:$0xff]
    %v3276 = vld [vmem:[#allocation2 + $0x98] sm:$0xff]
    %v3277 = vld [vmem:[#allocation2 + $0xa0] sm:$0xff]
    %v3278 = vld [vmem:[#allocation2 + $0xa8] sm:$0xff]
    %v3279 = vld [vmem:[#allocation2 + $0xb0] sm:$0xff]
    %v3280 = vld [vmem:[#allocation2 + $0xb8] sm:$0xff]
    %v3281 = vld [vmem:[#allocation2 + $0xc0] sm:$0xff]
    %v3282 = vld [vmem:[#allocation2 + $0xc8] sm:$0xff]
    %v3283 = vld [vmem:[#allocation2 + $0xd0] sm:$0xff]
    %v3284 = vld [vmem:[#allocation2 + $0xd8] sm:$0xff]
    %v3285 = vld [vmem:[#allocation2 + $0xe0] sm:$0xff]
    %v3286 = vld [vmem:[#allocation2 + $0xe8] sm:$0xff]
    %v3287 = vld [vmem:[#allocation2 + $0xf0] sm:$0xff]
    %v3288 = vld [vmem:[#allocation2 + $0xf8] sm:$0xff]
    %v3289 = vld [vmem:[#allocation2 + $0x100] sm:$0xff]
    %v3290 = vld [vmem:[#allocation2 + $0x108] sm:$0xff]
    %v3291 = vld [vmem:[#allocation2 + $0x110] sm:$0xff]
    %v3292 = vld [vmem:[#allocation2 + $0x118] sm:$0xff]
    %v3293 = vld [vmem:[#allocation2 + $0x120] sm:$0xff]
    %v3294 = vld [vmem:[#allocation2 + $0x128] sm:$0xff]
    %v3295 = vld [vmem:[#allocation2 + $0x130] sm:$0xff]
    %v3296 = vld [vmem:[#allocation2 + $0x138] sm:$0xff]
    %v3297 = vld [vmem:[#allocation2 + $0x140] sm:$0xff]
    %v3298 = vld [vmem:[#allocation2 + $0x148] sm:$0xff]
    %v3299 = vld [vmem:[#allocation2 + $0x150] sm:$0xff]
    %v3300 = vld [vmem:[#allocation2 + $0x158] sm:$0xff]
    %v3301 = vld [vmem:[#allocation2 + $0x160] sm:$0xff]
    %v3302 = vld [vmem:[#allocation2 + $0x168] sm:$0xff]
    %v3303 = vld [vmem:[#allocation2 + $0x170] sm:$0xff]
    %v3304 = vld [vmem:[#allocation2 + $0x178] sm:$0xff]
    %v3305 = vld [vmem:[#allocation2 + $0x180] sm:$0xff]
    %v3306 = vld [vmem:[#allocation2 + $0x188] sm:$0xff]
    %v3307 = vld [vmem:[#allocation2 + $0x190] sm:$0xff]
    %v3308 = vld [vmem:[#allocation2 + $0x198] sm:$0xff]
    %v3309 = vld [vmem:[#allocation2 + $0x1a0] sm:$0xff]
    %v3310 = vld [vmem:[#allocation2 + $0x1a8] sm:$0xff]
    %v3311 = vld [vmem:[#allocation2 + $0x1b0] sm:$0xff]
    %v3312 = vld [vmem:[#allocation2 + $0x1b8] sm:$0xff]
    %v3313 = vld [vmem:[#allocation2 + $0x1c0] sm:$0xff]
    %v3314 = vld [vmem:[#allocation2 + $0x1c8] sm:$0xff]
    %v3315 = vld [vmem:[#allocation2 + $0x1d0] sm:$0xff]
    %v3316 = vld [vmem:[#allocation2 + $0x1d8] sm:$0xff]
    %v3381 = vunpack.c.l.b16 %v3193
    %v3382 = vunpack.c.h.b16 %v3193
    %v3383 = vunpack.c.l.b16 %v3194
    %v3384 = vunpack.c.h.b16 %v3194
    %v3385 = vunpack.c.l.b16 %v3195
    %v3386 = vunpack.c.h.b16 %v3195
    %v3387 = vunpack.c.l.b16 %v3196
    %v3388 = vunpack.c.h.b16 %v3196
    %v3389 = vunpack.c.l.b16 %v3197
    %v3390 = vunpack.c.h.b16 %v3197
    %v3391 = vunpack.c.l.b16 %v3198
    %v3392 = vunpack.c.h.b16 %v3198
    %v3393 = vunpack.c.l.b16 %v3199
    %v3394 = vunpack.c.h.b16 %v3199
    %v3395 = vunpack.c.l.b16 %v3200
    %v3396 = vunpack.c.h.b16 %v3200
    %v3397 = vunpack.c.l.b16 %v3201
    %v3398 = vunpack.c.h.b16 %v3201
    %v3399 = vunpack.c.l.b16 %v3202
    %v3400 = vunpack.c.h.b16 %v3202
    %v3401 = vunpack.c.l.b16 %v3203
    %v3402 = vunpack.c.h.b16 %v3203
    %v3403 = vunpack.c.l.b16 %v3204
    %v3404 = vunpack.c.h.b16 %v3204
    %v3405 = vunpack.c.l.b16 %v3205
    %v3406 = vunpack.c.h.b16 %v3205
    %v3407 = vunpack.c.l.b16 %v3206
    %v3408 = vunpack.c.h.b16 %v3206
    %v3409 = vunpack.c.l.b16 %v3207
    %v3410 = vunpack.c.h.b16 %v3207
    %v3411 = vunpack.c.l.b16 %v3208
    %v3412 = vunpack.c.h.b16 %v3208
    %v3413 = vunpack.c.l.b16 %v3209
    %v3414 = vunpack.c.h.b16 %v3209
    %v3415 = vunpack.c.l.b16 %v3210
    %v3416 = vunpack.c.h.b16 %v3210
    %v3417 = vunpack.c.l.b16 %v3211
    %v3418 = vunpack.c.h.b16 %v3211
    %v3419 = vunpack.c.l.b16 %v3212
    %v3420 = vunpack.c.h.b16 %v3212
    %v3421 = vunpack.c.l.b16 %v3213
    %v3422 = vunpack.c.h.b16 %v3213
    %v3423 = vunpack.c.l.b16 %v3214
    %v3424 = vunpack.c.h.b16 %v3214
    %v3425 = vunpack.c.l.b16 %v3215
    %v3426 = vunpack.c.h.b16 %v3215
    %v3427 = vunpack.c.l.b16 %v3216
    %v3428 = vunpack.c.h.b16 %v3216
    %v3429 = vunpack.c.l.b16 %v3217
    %v3430 = vunpack.c.h.b16 %v3217
    %v3431 = vunpack.c.l.b16 %v3218
    %v3432 = vunpack.c.h.b16 %v3218
    %v3433 = vunpack.c.l.b16 %v3219
    %v3434 = vunpack.c.h.b16 %v3219
    %v3435 = vunpack.c.l.b16 %v3220
    %v3436 = vunpack.c.h.b16 %v3220
    %v3437 = vunpack.c.l.b16 %v3221
    %v3438 = vunpack.c.h.b16 %v3221
    %v3439 = vunpack.c.l.b16 %v3222
    %v3440 = vunpack.c.h.b16 %v3222
    %v3441 = vunpack.c.l.b16 %v3223
    %v3442 = vunpack.c.h.b16 %v3223
    %v3443 = vunpack.c.l.b16 %v3224
    %v3444 = vunpack.c.h.b16 %v3224
    %v3445 = vunpack.c.l.b16 %v3225
    %v3446 = vunpack.c.h.b16 %v3225
    %v3447 = vunpack.c.l.b16 %v3226
    %v3448 = vunpack.c.h.b16 %v3226
    %v3449 = vunpack.c.l.b16 %v3227
    %v3450 = vunpack.c.h.b16 %v3227
    %v3451 = vunpack.c.l.b16 %v3228
    %v3452 = vunpack.c.h.b16 %v3228
    %v3453 = vunpack.c.l.b16 %v3229
    %v3454 = vunpack.c.h.b16 %v3229
    %v3455 = vunpack.c.l.b16 %v3230
    %v3456 = vunpack.c.h.b16 %v3230
    %v3457 = vunpack.c.l.b16 %v3231
    %v3458 = vunpack.c.h.b16 %v3231
    %v3459 = vunpack.c.l.b16 %v3232
    %v3460 = vunpack.c.h.b16 %v3232
    %v3461 = vunpack.c.l.b16 %v3233
    %v3462 = vunpack.c.h.b16 %v3233
    %v3463 = vunpack.c.l.b16 %v3234
    %v3464 = vunpack.c.h.b16 %v3234
    %v3465 = vunpack.c.l.b16 %v3235
    %v3466 = vunpack.c.h.b16 %v3235
    %v3467 = vunpack.c.l.b16 %v3236
    %v3468 = vunpack.c.h.b16 %v3236
    %v3469 = vunpack.c.l.b16 %v3237
    %v3470 = vunpack.c.h.b16 %v3237
    %v3471 = vunpack.c.l.b16 %v3238
    %v3472 = vunpack.c.h.b16 %v3238
    %v3473 = vunpack.c.l.b16 %v3239
    %v3474 = vunpack.c.h.b16 %v3239
    %v3475 = vunpack.c.l.b16 %v3240
    %v3476 = vunpack.c.h.b16 %v3240
    %v3477 = vunpack.c.l.b16 %v3241
    %v3478 = vunpack.c.h.b16 %v3241
    %v3479 = vunpack.c.l.b16 %v3242
    %v3480 = vunpack.c.h.b16 %v3242
    %v3481 = vunpack.c.l.b16 %v3243
    %v3482 = vunpack.c.h.b16 %v3243
    %v3483 = vunpack.c.l.b16 %v3244
    %v3484 = vunpack.c.h.b16 %v3244
    %v3485 = vunpack.c.l.b16 %v3245
    %v3486 = vunpack.c.h.b16 %v3245
    %v3487 = vunpack.c.l.b16 %v3246
    %v3488 = vunpack.c.h.b16 %v3246
    %v3489 = vunpack.c.l.b16 %v3247
    %v3490 = vunpack.c.h.b16 %v3247
    %v3491 = vunpack.c.l.b16 %v3248
    %v3492 = vunpack.c.h.b16 %v3248
    %v3493 = vunpack.c.l.b16 %v3249
    %v3494 = vunpack.c.h.b16 %v3249
    %v3495 = vunpack.c.l.b16 %v3250
    %v3496 = vunpack.c.h.b16 %v3250
    %v3497 = vunpack.c.l.b16 %v3251
    %v3498 = vunpack.c.h.b16 %v3251
    %v3499 = vunpack.c.l.b16 %v3252
    %v3500 = vunpack.c.h.b16 %v3252
    %v3501 = vunpack.c.l.b16 %v3253
    %v3502 = vunpack.c.h.b16 %v3253
    %v3503 = vunpack.c.l.b16 %v3254
    %v3504 = vunpack.c.h.b16 %v3254
    %v3505 = vunpack.c.l.b16 %v3255
    %v3506 = vunpack.c.h.b16 %v3255
    %v3507 = vunpack.c.l.b16 %v3256
    %v3508 = vunpack.c.h.b16 %v3256
    %v3509 = vpack.c.b16 %v3385, %v3381
    %v3510 = vpack.c.b16 %v3386, %v3382
    %v3511 = vpack.c.b16 %v3387, %v3383
    %v3512 = vpack.c.b16 %v3388, %v3384
    %v3513 = vpack.c.b16 %v3393, %v3389
    %v3514 = vpack.c.b16 %v3394, %v3390
    %v3515 = vpack.c.b16 %v3395, %v3391
    %v3516 = vpack.c.b16 %v3396, %v3392
    %v3517 = vpack.c.b16 %v3401, %v3397
    %v3518 = vpack.c.b16 %v3402, %v3398
    %v3519 = vpack.c.b16 %v3403, %v3399
    %v3520 = vpack.c.b16 %v3404, %v3400
    %v3521 = vpack.c.b16 %v3409, %v3405
    %v3522 = vpack.c.b16 %v3410, %v3406
    %v3523 = vpack.c.b16 %v3411, %v3407
    %v3524 = vpack.c.b16 %v3412, %v3408
    %v3525 = vpack.c.b16 %v3417, %v3413
    %v3526 = vpack.c.b16 %v3418, %v3414
    %v3527 = vpack.c.b16 %v3419, %v3415
    %v3528 = vpack.c.b16 %v3420, %v3416
    %v3529 = vpack.c.b16 %v3425, %v3421
    %v3530 = vpack.c.b16 %v3426, %v3422
    %v3531 = vpack.c.b16 %v3427, %v3423
    %v3532 = vpack.c.b16 %v3428, %v3424
    %v3533 = vpack.c.b16 %v3433, %v3429
    %v3534 = vpack.c.b16 %v3434, %v3430
    %v3535 = vpack.c.b16 %v3435, %v3431
    %v3536 = vpack.c.b16 %v3436, %v3432
    %v3537 = vpack.c.b16 %v3441, %v3437
    %v3538 = vpack.c.b16 %v3442, %v3438
    %v3539 = vpack.c.b16 %v3443, %v3439
    %v3540 = vpack.c.b16 %v3444, %v3440
    %v3541 = vpack.c.b16 %v3449, %v3445
    %v3542 = vpack.c.b16 %v3450, %v3446
    %v3543 = vpack.c.b16 %v3451, %v3447
    %v3544 = vpack.c.b16 %v3452, %v3448
    %v3545 = vpack.c.b16 %v3457, %v3453
    %v3546 = vpack.c.b16 %v3458, %v3454
    %v3547 = vpack.c.b16 %v3459, %v3455
    %v3548 = vpack.c.b16 %v3460, %v3456
    %v3549 = vpack.c.b16 %v3465, %v3461
    %v3550 = vpack.c.b16 %v3466, %v3462
    %v3551 = vpack.c.b16 %v3467, %v3463
    %v3552 = vpack.c.b16 %v3468, %v3464
    %v3553 = vpack.c.b16 %v3473, %v3469
    %v3554 = vpack.c.b16 %v3474, %v3470
    %v3555 = vpack.c.b16 %v3475, %v3471
    %v3556 = vpack.c.b16 %v3476, %v3472
    %v3557 = vpack.c.b16 %v3481, %v3477
    %v3558 = vpack.c.b16 %v3482, %v3478
    %v3559 = vpack.c.b16 %v3483, %v3479
    %v3560 = vpack.c.b16 %v3484, %v3480
    %v3561 = vpack.c.b16 %v3489, %v3485
    %v3562 = vpack.c.b16 %v3490, %v3486
    %v3563 = vpack.c.b16 %v3491, %v3487
    %v3564 = vpack.c.b16 %v3492, %v3488
    %v3565 = vpack.c.b16 %v3497, %v3493
    %v3566 = vpack.c.b16 %v3498, %v3494
    %v3567 = vpack.c.b16 %v3499, %v3495
    %v3568 = vpack.c.b16 %v3500, %v3496
    %v3569 = vpack.c.b16 %v3505, %v3501
    %v3570 = vpack.c.b16 %v3506, %v3502
    %v3571 = vpack.c.b16 %v3507, %v3503
    %v3572 = vpack.c.b16 %v3508, %v3504
    %v3681 = vunpack.c.l.b16 %v3257
    %v3682 = vunpack.c.h.b16 %v3257
    %v3683 = vunpack.c.l.b16 %v3258
    %v3684 = vunpack.c.h.b16 %v3258
    %v3685 = vunpack.c.l.b16 %v3259
    %v3686 = vunpack.c.h.b16 %v3259
    %v3687 = vunpack.c.l.b16 %v3260
    %v3688 = vunpack.c.h.b16 %v3260
    %v3689 = vunpack.c.l.b16 %v3261
    %v3690 = vunpack.c.h.b16 %v3261
    %v3691 = vunpack.c.l.b16 %v3262
    %v3692 = vunpack.c.h.b16 %v3262
    %v3693 = vunpack.c.l.b16 %v3263
    %v3694 = vunpack.c.h.b16 %v3263
    %v3695 = vunpack.c.l.b16 %v3264
    %v3696 = vunpack.c.h.b16 %v3264
    %v3697 = vunpack.c.l.b16 %v3265
    %v3698 = vunpack.c.h.b16 %v3265
    %v3699 = vunpack.c.l.b16 %v3266
    %v3700 = vunpack.c.h.b16 %v3266
    %v3701 = vunpack.c.l.b16 %v3267
    %v3702 = vunpack.c.h.b16 %v3267
    %v3703 = vunpack.c.l.b16 %v3268
    %v3704 = vunpack.c.h.b16 %v3268
    %v3705 = vunpack.c.l.b16 %v3269
    %v3706 = vunpack.c.h.b16 %v3269
    %v3707 = vunpack.c.l.b16 %v3270
    %v3708 = vunpack.c.h.b16 %v3270
    %v3709 = vunpack.c.l.b16 %v3271
    %v3710 = vunpack.c.h.b16 %v3271
    %v3711 = vunpack.c.l.b16 %v3272
    %v3712 = vunpack.c.h.b16 %v3272
    %v3713 = vunpack.c.l.b16 %v3273
    %v3714 = vunpack.c.h.b16 %v3273
    %v3715 = vunpack.c.l.b16 %v3274
    %v3716 = vunpack.c.h.b16 %v3274
    %v3717 = vunpack.c.l.b16 %v3275
    %v3718 = vunpack.c.h.b16 %v3275
    %v3719 = vunpack.c.l.b16 %v3276
    %v3720 = vunpack.c.h.b16 %v3276
    %v3721 = vunpack.c.l.b16 %v3277
    %v3722 = vunpack.c.h.b16 %v3277
    %v3723 = vunpack.c.l.b16 %v3278
    %v3724 = vunpack.c.h.b16 %v3278
    %v3725 = vunpack.c.l.b16 %v3279
    %v3726 = vunpack.c.h.b16 %v3279
    %v3727 = vunpack.c.l.b16 %v3280
    %v3728 = vunpack.c.h.b16 %v3280
    %v3729 = vunpack.c.l.b16 %v3281
    %v3730 = vunpack.c.h.b16 %v3281
    %v3731 = vunpack.c.l.b16 %v3282
    %v3732 = vunpack.c.h.b16 %v3282
    %v3733 = vunpack.c.l.b16 %v3283
    %v3734 = vunpack.c.h.b16 %v3283
    %v3735 = vunpack.c.l.b16 %v3284
    %v3736 = vunpack.c.h.b16 %v3284
    %v3737 = vunpack.c.l.b16 %v3285
    %v3738 = vunpack.c.h.b16 %v3285
    %v3739 = vunpack.c.l.b16 %v3286
    %v3740 = vunpack.c.h.b16 %v3286
    %v3741 = vunpack.c.l.b16 %v3287
    %v3742 = vunpack.c.h.b16 %v3287
    %v3743 = vunpack.c.l.b16 %v3288
    %v3744 = vunpack.c.h.b16 %v3288
    %v3745 = vunpack.c.l.b16 %v3289
    %v3746 = vunpack.c.h.b16 %v3289
    %v3747 = vunpack.c.l.b16 %v3290
    %v3748 = vunpack.c.h.b16 %v3290
    %v3749 = vunpack.c.l.b16 %v3291
    %v3750 = vunpack.c.h.b16 %v3291
    %v3751 = vunpack.c.l.b16 %v3292
    %v3752 = vunpack.c.h.b16 %v3292
    %v3753 = vunpack.c.l.b16 %v3293
    %v3754 = vunpack.c.h.b16 %v3293
    %v3755 = vunpack.c.l.b16 %v3294
    %v3756 = vunpack.c.h.b16 %v3294
    %v3757 = vunpack.c.l.b16 %v3295
    %v3758 = vunpack.c.h.b16 %v3295
    %v3759 = vunpack.c.l.b16 %v3296
    %v3760 = vunpack.c.h.b16 %v3296
    %v3761 = vunpack.c.l.b16 %v3297
    %v3762 = vunpack.c.h.b16 %v3297
    %v3763 = vunpack.c.l.b16 %v3298
    %v3764 = vunpack.c.h.b16 %v3298
    %v3765 = vunpack.c.l.b16 %v3299
    %v3766 = vunpack.c.h.b16 %v3299
    %v3767 = vunpack.c.l.b16 %v3300
    %v3768 = vunpack.c.h.b16 %v3300
    %v3769 = vunpack.c.l.b16 %v3301
    %v3770 = vunpack.c.h.b16 %v3301
    %v3771 = vunpack.c.l.b16 %v3302
    %v3772 = vunpack.c.h.b16 %v3302
    %v3773 = vunpack.c.l.b16 %v3303
    %v3774 = vunpack.c.h.b16 %v3303
    %v3775 = vunpack.c.l.b16 %v3304
    %v3776 = vunpack.c.h.b16 %v3304
    %v3777 = vunpack.c.l.b16 %v3305
    %v3778 = vunpack.c.h.b16 %v3305
    %v3779 = vunpack.c.l.b16 %v3306
    %v3780 = vunpack.c.h.b16 %v3306
    %v3781 = vunpack.c.l.b16 %v3307
    %v3782 = vunpack.c.h.b16 %v3307
    %v3783 = vunpack.c.l.b16 %v3308
    %v3784 = vunpack.c.h.b16 %v3308
    %v3785 = vunpack.c.l.b16 %v3309
    %v3786 = vunpack.c.h.b16 %v3309
    %v3787 = vunpack.c.l.b16 %v3310
    %v3788 = vunpack.c.h.b16 %v3310
    %v3789 = vunpack.c.l.b16 %v3311
    %v3790 = vunpack.c.h.b16 %v3311
    %v3791 = vunpack.c.l.b16 %v3312
    %v3792 = vunpack.c.h.b16 %v3312
    %v3793 = vunpack.c.l.b16 %v3313
    %v3794 = vunpack.c.h.b16 %v3313
    %v3795 = vunpack.c.l.b16 %v3314
    %v3796 = vunpack.c.h.b16 %v3314
    %v3797 = vunpack.c.l.b16 %v3315
    %v3798 = vunpack.c.h.b16 %v3315
    %v3799 = vunpack.c.l.b16 %v3316
    %v3800 = vunpack.c.h.b16 %v3316
    %v3801 = vpack.c.b16 %v3683, %v3681
    %v3802 = vpack.c.b16 %v3684, %v3682
    %v3803 = vpack.c.b16 %v3687, %v3685
    %v3804 = vpack.c.b16 %v3688, %v3686
    %v3805 = vpack.c.b16 %v3691, %v3689
    %v3806 = vpack.c.b16 %v3692, %v3690
    %v3807 = vpack.c.b16 %v3695, %v3693
    %v3808 = vpack.c.b16 %v3696, %v3694
    %v3809 = vpack.c.b16 %v3699, %v3697
    %v3810 = vpack.c.b16 %v3700, %v3698
    %v3811 = vpack.c.b16 %v3703, %v3701
    %v3812 = vpack.c.b16 %v3704, %v3702
    %v3813 = vpack.c.b16 %v3707, %v3705
    %v3814 = vpack.c.b16 %v3708, %v3706
    %v3815 = vpack.c.b16 %v3711, %v3709
    %v3816 = vpack.c.b16 %v3712, %v3710
    %v3817 = vpack.c.b16 %v3715, %v3713
    %v3818 = vpack.c.b16 %v3716, %v3714
    %v3819 = vpack.c.b16 %v3719, %v3717
    %v3820 = vpack.c.b16 %v3720, %v3718
    %v3821 = vpack.c.b16 %v3723, %v3721
    %v3822 = vpack.c.b16 %v3724, %v3722
    %v3823 = vpack.c.b16 %v3727, %v3725
    %v3824 = vpack.c.b16 %v3728, %v3726
    %v3825 = vpack.c.b16 %v3731, %v3729
    %v3826 = vpack.c.b16 %v3732, %v3730
    %v3827 = vpack.c.b16 %v3735, %v3733
    %v3828 = vpack.c.b16 %v3736, %v3734
    %v3829 = vpack.c.b16 %v3739, %v3737
    %v3830 = vpack.c.b16 %v3740, %v3738
    %v3831 = vpack.c.b16 %v3743, %v3741
    %v3832 = vpack.c.b16 %v3744, %v3742
    %v3833 = vpack.c.b16 %v3747, %v3745
    %v3834 = vpack.c.b16 %v3748, %v3746
    %v3835 = vpack.c.b16 %v3751, %v3749
    %v3836 = vpack.c.b16 %v3752, %v3750
    %v3837 = vpack.c.b16 %v3755, %v3753
    %v3838 = vpack.c.b16 %v3756, %v3754
    %v3839 = vpack.c.b16 %v3759, %v3757
    %v3840 = vpack.c.b16 %v3760, %v3758
    %v3841 = vpack.c.b16 %v3763, %v3761
    %v3842 = vpack.c.b16 %v3764, %v3762
    %v3843 = vpack.c.b16 %v3767, %v3765
    %v3844 = vpack.c.b16 %v3768, %v3766
    %v3845 = vpack.c.b16 %v3771, %v3769
    %v3846 = vpack.c.b16 %v3772, %v3770
    %v3847 = vpack.c.b16 %v3775, %v3773
    %v3848 = vpack.c.b16 %v3776, %v3774
    %v3849 = vpack.c.b16 %v3779, %v3777
    %v3850 = vpack.c.b16 %v3780, %v3778
    %v3851 = vpack.c.b16 %v3783, %v3781
    %v3852 = vpack.c.b16 %v3784, %v3782
    %v3853 = vpack.c.b16 %v3787, %v3785
    %v3854 = vpack.c.b16 %v3788, %v3786
    %v3855 = vpack.c.b16 %v3791, %v3789
    %v3856 = vpack.c.b16 %v3792, %v3790
    %v3857 = vpack.c.b16 %v3795, %v3793
    %v3858 = vpack.c.b16 %v3796, %v3794
    %v3859 = vpack.c.b16 %v3799, %v3797
    %v3860 = vpack.c.b16 %v3800, %v3798
    %vm3921 = vcmask 785408
    %v3923 = vsel %vm3921, %v3512, 0
    %v3926 = vsel %vm3921, %v3516, 0
    %v3929 = vsel %vm3921, %v3520, 0
    %v3932 = vsel %vm3921, %v3524, 0
    %v3935 = vsel %vm3921, %v3528, 0
    %v3938 = vsel %vm3921, %v3532, 0
    %v3941 = vsel %vm3921, %v3536, 0
    %v3944 = vsel %vm3921, %v3540, 0
    %v3947 = vsel %vm3921, %v3544, 0
    %v3950 = vsel %vm3921, %v3548, 0
    %v3953 = vsel %vm3921, %v3552, 0
    %v3956 = vsel %vm3921, %v3556, 0
    %v3959 = vsel %vm3921, %v3560, 0
    %v3962 = vsel %vm3921, %v3564, 0
    %v3965 = vsel %vm3921, %v3568, 0
    %v3968 = vsel %vm3921, %v3572, 0
    %3970 = vmatpush.bf16.msra.mxu0 %v3815
    %3971 = vmatpush.bf16.msra.mxu0 %v3813
    %3972 = vmatpush.bf16.msra.mxu0 %v3811
    %3973 = vmatpush.bf16.msra.mxu0 %v3809
    %3974 = vmatpush.bf16.msra.mxu0 %v3807
    %3975 = vmatpush.bf16.msra.mxu0 %v3805
    %3976 = vmatpush.bf16.msra.mxu0 %v3803
    %3977 = vmatpush.bf16.msra.mxu0 %v3801
    %3978 = vmatmul.bf16.gmra.mxu0 %v3509
    %v3979 = vpop.f32.mrf.mxu0
    %v3980 = vadd.f32 0.0, %v3979
    %v3981 = vpop.f32.mrf.mxu0
    %v3982 = vadd.f32 0.0, %v3981
    %3983 = vmatmul.bf16.gmra.mxu0 %v3513
    %v3984 = vpop.f32.mrf.mxu0
    %v3985 = vadd.f32 0.0, %v3984
    %v3986 = vpop.f32.mrf.mxu0
    %v3987 = vadd.f32 0.0, %v3986
    %3988 = vmatmul.bf16.gmra.mxu0 %v3517
    %v3989 = vpop.f32.mrf.mxu0
    %v3990 = vadd.f32 0.0, %v3989
    %v3991 = vpop.f32.mrf.mxu0
    %v3992 = vadd.f32 0.0, %v3991
    %3993 = vmatmul.bf16.gmra.mxu0 %v3521
    %v3994 = vpop.f32.mrf.mxu0
    %v3995 = vadd.f32 0.0, %v3994
    %v3996 = vpop.f32.mrf.mxu0
    %v3997 = vadd.f32 0.0, %v3996
    %3998 = vmatmul.bf16.gmra.mxu0 %v3525
    %v3999 = vpop.f32.mrf.mxu0
    %v4000 = vadd.f32 0.0, %v3999
    %v4001 = vpop.f32.mrf.mxu0
    %v4002 = vadd.f32 0.0, %v4001
    %4003 = vmatmul.bf16.gmra.mxu0 %v3529
    %v4004 = vpop.f32.mrf.mxu0
    %v4005 = vadd.f32 0.0, %v4004
    %v4006 = vpop.f32.mrf.mxu0
    %v4007 = vadd.f32 0.0, %v4006
    %4008 = vmatmul.bf16.gmra.mxu0 %v3533
    %v4009 = vpop.f32.mrf.mxu0
    %v4010 = vadd.f32 0.0, %v4009
    %v4011 = vpop.f32.mrf.mxu0
    %v4012 = vadd.f32 0.0, %v4011
    %4013 = vmatmul.bf16.gmra.mxu0 %v3537
    %v4014 = vpop.f32.mrf.mxu0
    %v4015 = vadd.f32 0.0, %v4014
    %v4016 = vpop.f32.mrf.mxu0
    %v4017 = vadd.f32 0.0, %v4016
    %4018 = vmatmul.bf16.gmra.mxu0 %v3541
    %v4019 = vpop.f32.mrf.mxu0
    %v4020 = vadd.f32 0.0, %v4019
    %v4021 = vpop.f32.mrf.mxu0
    %v4022 = vadd.f32 0.0, %v4021
    %4023 = vmatmul.bf16.gmra.mxu0 %v3545
    %v4024 = vpop.f32.mrf.mxu0
    %v4025 = vadd.f32 0.0, %v4024
    %v4026 = vpop.f32.mrf.mxu0
    %v4027 = vadd.f32 0.0, %v4026
    %4028 = vmatmul.bf16.gmra.mxu0 %v3549
    %v4029 = vpop.f32.mrf.mxu0
    %v4030 = vadd.f32 0.0, %v4029
    %v4031 = vpop.f32.mrf.mxu0
    %v4032 = vadd.f32 0.0, %v4031
    %4033 = vmatmul.bf16.gmra.mxu0 %v3553
    %v4034 = vpop.f32.mrf.mxu0
    %v4035 = vadd.f32 0.0, %v4034
    %v4036 = vpop.f32.mrf.mxu0
    %v4037 = vadd.f32 0.0, %v4036
    %4038 = vmatmul.bf16.gmra.mxu0 %v3557
    %v4039 = vpop.f32.mrf.mxu0
    %v4040 = vadd.f32 0.0, %v4039
    %v4041 = vpop.f32.mrf.mxu0
    %v4042 = vadd.f32 0.0, %v4041
    %4043 = vmatmul.bf16.gmra.mxu0 %v3561
    %v4044 = vpop.f32.mrf.mxu0
    %v4045 = vadd.f32 0.0, %v4044
    %v4046 = vpop.f32.mrf.mxu0
    %v4047 = vadd.f32 0.0, %v4046
    %4048 = vmatmul.bf16.gmra.mxu0 %v3565
    %v4049 = vpop.f32.mrf.mxu0
    %v4050 = vadd.f32 0.0, %v4049
    %v4051 = vpop.f32.mrf.mxu0
    %v4052 = vadd.f32 0.0, %v4051
    %4053 = vmatmul.bf16.gmra.mxu0 %v3569
    %v4054 = vpop.f32.mrf.mxu0
    %v4055 = vadd.f32 0.0, %v4054
    %v4056 = vpop.f32.mrf.mxu0
    %v4057 = vadd.f32 0.0, %v4056
    %4058 = vdwg.mxu0
    %4059 = vmatpush.bf16.msra.mxu0 %v3831
    %4060 = vmatpush.bf16.msra.mxu0 %v3829
    %4061 = vmatpush.bf16.msra.mxu0 %v3827
    %4062 = vmatpush.bf16.msra.mxu0 %v3825
    %4063 = vmatpush.bf16.msra.mxu0 %v3823
    %4064 = vmatpush.bf16.msra.mxu0 %v3821
    %4065 = vmatpush.bf16.msra.mxu0 %v3819
    %4066 = vmatpush.bf16.msra.mxu0 %v3817
    %4067 = vmatmul.bf16.gmra.mxu0 %v3510
    %v4068 = vpop.f32.mrf.mxu0
    %v4069 = vadd.f32 %v3980, %v4068
    %v4070 = vpop.f32.mrf.mxu0
    %v4071 = vadd.f32 %v3982, %v4070
    %4072 = vmatmul.bf16.gmra.mxu0 %v3514
    %v4073 = vpop.f32.mrf.mxu0
    %v4074 = vadd.f32 %v3985, %v4073
    %v4075 = vpop.f32.mrf.mxu0
    %v4076 = vadd.f32 %v3987, %v4075
    %4077 = vmatmul.bf16.gmra.mxu0 %v3518
    %v4078 = vpop.f32.mrf.mxu0
    %v4079 = vadd.f32 %v3990, %v4078
    %v4080 = vpop.f32.mrf.mxu0
    %v4081 = vadd.f32 %v3992, %v4080
    %4082 = vmatmul.bf16.gmra.mxu0 %v3522
    %v4083 = vpop.f32.mrf.mxu0
    %v4084 = vadd.f32 %v3995, %v4083
    %v4085 = vpop.f32.mrf.mxu0
    %v4086 = vadd.f32 %v3997, %v4085
    %4087 = vmatmul.bf16.gmra.mxu0 %v3526
    %v4088 = vpop.f32.mrf.mxu0
    %v4089 = vadd.f32 %v4000, %v4088
    %v4090 = vpop.f32.mrf.mxu0
    %v4091 = vadd.f32 %v4002, %v4090
    %4092 = vmatmul.bf16.gmra.mxu0 %v3530
    %v4093 = vpop.f32.mrf.mxu0
    %v4094 = vadd.f32 %v4005, %v4093
    %v4095 = vpop.f32.mrf.mxu0
    %v4096 = vadd.f32 %v4007, %v4095
    %4097 = vmatmul.bf16.gmra.mxu0 %v3534
    %v4098 = vpop.f32.mrf.mxu0
    %v4099 = vadd.f32 %v4010, %v4098
    %v4100 = vpop.f32.mrf.mxu0
    %v4101 = vadd.f32 %v4012, %v4100
    %4102 = vmatmul.bf16.gmra.mxu0 %v3538
    %v4103 = vpop.f32.mrf.mxu0
    %v4104 = vadd.f32 %v4015, %v4103
    %v4105 = vpop.f32.mrf.mxu0
    %v4106 = vadd.f32 %v4017, %v4105
    %4107 = vmatmul.bf16.gmra.mxu0 %v3542
    %v4108 = vpop.f32.mrf.mxu0
    %v4109 = vadd.f32 %v4020, %v4108
    %v4110 = vpop.f32.mrf.mxu0
    %v4111 = vadd.f32 %v4022, %v4110
    %4112 = vmatmul.bf16.gmra.mxu0 %v3546
    %v4113 = vpop.f32.mrf.mxu0
    %v4114 = vadd.f32 %v4025, %v4113
    %v4115 = vpop.f32.mrf.mxu0
    %v4116 = vadd.f32 %v4027, %v4115
    %4117 = vmatmul.bf16.gmra.mxu0 %v3550
    %v4118 = vpop.f32.mrf.mxu0
    %v4119 = vadd.f32 %v4030, %v4118
    %v4120 = vpop.f32.mrf.mxu0
    %v4121 = vadd.f32 %v4032, %v4120
    %4122 = vmatmul.bf16.gmra.mxu0 %v3554
    %v4123 = vpop.f32.mrf.mxu0
    %v4124 = vadd.f32 %v4035, %v4123
    %v4125 = vpop.f32.mrf.mxu0
    %v4126 = vadd.f32 %v4037, %v4125
    %4127 = vmatmul.bf16.gmra.mxu0 %v3558
    %v4128 = vpop.f32.mrf.mxu0
    %v4129 = vadd.f32 %v4040, %v4128
    %v4130 = vpop.f32.mrf.mxu0
    %v4131 = vadd.f32 %v4042, %v4130
    %4132 = vmatmul.bf16.gmra.mxu0 %v3562
    %v4133 = vpop.f32.mrf.mxu0
    %v4134 = vadd.f32 %v4045, %v4133
    %v4135 = vpop.f32.mrf.mxu0
    %v4136 = vadd.f32 %v4047, %v4135
    %4137 = vmatmul.bf16.gmra.mxu0 %v3566
    %v4138 = vpop.f32.mrf.mxu0
    %v4139 = vadd.f32 %v4050, %v4138
    %v4140 = vpop.f32.mrf.mxu0
    %v4141 = vadd.f32 %v4052, %v4140
    %4142 = vmatmul.bf16.gmra.mxu0 %v3570
    %v4143 = vpop.f32.mrf.mxu0
    %v4144 = vadd.f32 %v4055, %v4143
    %v4145 = vpop.f32.mrf.mxu0
    %v4146 = vadd.f32 %v4057, %v4145
    %4147 = vdwg.mxu0
    %4148 = vmatpush.bf16.msra.mxu0 %v3847
    %4149 = vmatpush.bf16.msra.mxu0 %v3845
    %4150 = vmatpush.bf16.msra.mxu0 %v3843
    %4151 = vmatpush.bf16.msra.mxu0 %v3841
    %4152 = vmatpush.bf16.msra.mxu0 %v3839
    %4153 = vmatpush.bf16.msra.mxu0 %v3837
    %4154 = vmatpush.bf16.msra.mxu0 %v3835
    %4155 = vmatpush.bf16.msra.mxu0 %v3833
    %4156 = vmatmul.bf16.gmra.mxu0 %v3511
    %v4157 = vpop.f32.mrf.mxu0
    %v4158 = vadd.f32 %v4069, %v4157
    %v4159 = vpop.f32.mrf.mxu0
    %v4160 = vadd.f32 %v4071, %v4159
    %4161 = vmatmul.bf16.gmra.mxu0 %v3515
    %v4162 = vpop.f32.mrf.mxu0
    %v4163 = vadd.f32 %v4074, %v4162
    %v4164 = vpop.f32.mrf.mxu0
    %v4165 = vadd.f32 %v4076, %v4164
    %4166 = vmatmul.bf16.gmra.mxu0 %v3519
    %v4167 = vpop.f32.mrf.mxu0
    %v4168 = vadd.f32 %v4079, %v4167
    %v4169 = vpop.f32.mrf.mxu0
    %v4170 = vadd.f32 %v4081, %v4169
    %4171 = vmatmul.bf16.gmra.mxu0 %v3523
    %v4172 = vpop.f32.mrf.mxu0
    %v4173 = vadd.f32 %v4084, %v4172
    %v4174 = vpop.f32.mrf.mxu0
    %v4175 = vadd.f32 %v4086, %v4174
    %4176 = vmatmul.bf16.gmra.mxu0 %v3527
    %v4177 = vpop.f32.mrf.mxu0
    %v4178 = vadd.f32 %v4089, %v4177
    %v4179 = vpop.f32.mrf.mxu0
    %v4180 = vadd.f32 %v4091, %v4179
    %4181 = vmatmul.bf16.gmra.mxu0 %v3531
    %v4182 = vpop.f32.mrf.mxu0
    %v4183 = vadd.f32 %v4094, %v4182
    %v4184 = vpop.f32.mrf.mxu0
    %v4185 = vadd.f32 %v4096, %v4184
    %4186 = vmatmul.bf16.gmra.mxu0 %v3535
    %v4187 = vpop.f32.mrf.mxu0
    %v4188 = vadd.f32 %v4099, %v4187
    %v4189 = vpop.f32.mrf.mxu0
    %v4190 = vadd.f32 %v4101, %v4189
    %4191 = vmatmul.bf16.gmra.mxu0 %v3539
    %v4192 = vpop.f32.mrf.mxu0
    %v4193 = vadd.f32 %v4104, %v4192
    %v4194 = vpop.f32.mrf.mxu0
    %v4195 = vadd.f32 %v4106, %v4194
    %4196 = vmatmul.bf16.gmra.mxu0 %v3543
    %v4197 = vpop.f32.mrf.mxu0
    %v4198 = vadd.f32 %v4109, %v4197
    %v4199 = vpop.f32.mrf.mxu0
    %v4200 = vadd.f32 %v4111, %v4199
    %4201 = vmatmul.bf16.gmra.mxu0 %v3547
    %v4202 = vpop.f32.mrf.mxu0
    %v4203 = vadd.f32 %v4114, %v4202
    %v4204 = vpop.f32.mrf.mxu0
    %v4205 = vadd.f32 %v4116, %v4204
    %4206 = vmatmul.bf16.gmra.mxu0 %v3551
    %v4207 = vpop.f32.mrf.mxu0
    %v4208 = vadd.f32 %v4119, %v4207
    %v4209 = vpop.f32.mrf.mxu0
    %v4210 = vadd.f32 %v4121, %v4209
    %4211 = vmatmul.bf16.gmra.mxu0 %v3555
    %v4212 = vpop.f32.mrf.mxu0
    %v4213 = vadd.f32 %v4124, %v4212
    %v4214 = vpop.f32.mrf.mxu0
    %v4215 = vadd.f32 %v4126, %v4214
    %4216 = vmatmul.bf16.gmra.mxu0 %v3559
    %v4217 = vpop.f32.mrf.mxu0
    %v4218 = vadd.f32 %v4129, %v4217
    %v4219 = vpop.f32.mrf.mxu0
    %v4220 = vadd.f32 %v4131, %v4219
    %4221 = vmatmul.bf16.gmra.mxu0 %v3563
    %v4222 = vpop.f32.mrf.mxu0
    %v4223 = vadd.f32 %v4134, %v4222
    %v4224 = vpop.f32.mrf.mxu0
    %v4225 = vadd.f32 %v4136, %v4224
    %4226 = vmatmul.bf16.gmra.mxu0 %v3567
    %v4227 = vpop.f32.mrf.mxu0
    %v4228 = vadd.f32 %v4139, %v4227
    %v4229 = vpop.f32.mrf.mxu0
    %v4230 = vadd.f32 %v4141, %v4229
    %4231 = vmatmul.bf16.gmra.mxu0 %v3571
    %v4232 = vpop.f32.mrf.mxu0
    %v4233 = vadd.f32 %v4144, %v4232
    %v4234 = vpop.f32.mrf.mxu0
    %v4235 = vadd.f32 %v4146, %v4234
    %4236 = vdwg.mxu0
    %4237 = vmatpush.bf16.msra.mxu0 0
    %4238 = vmatpush.bf16.msra.mxu0 0
    %4239 = vmatpush.bf16.msra.mxu0 %v3859
    %4240 = vmatpush.bf16.msra.mxu0 %v3857
    %4241 = vmatpush.bf16.msra.mxu0 %v3855
    %4242 = vmatpush.bf16.msra.mxu0 %v3853
    %4243 = vmatpush.bf16.msra.mxu0 %v3851
    %4244 = vmatpush.bf16.msra.mxu0 %v3849
    %4245 = vmatmul.bf16.gmra.mxu0 %v3923
    %v4246 = vpop.f32.mrf.mxu0
    %v4247 = vadd.f32 %v4158, %v4246
    %v4248 = vpop.f32.mrf.mxu0
    %v4249 = vadd.f32 %v4160, %v4248
    %4250 = vmatmul.bf16.gmra.mxu0 %v3926
    %v4251 = vpop.f32.mrf.mxu0
    %v4252 = vadd.f32 %v4163, %v4251
    %v4253 = vpop.f32.mrf.mxu0
    %v4254 = vadd.f32 %v4165, %v4253
    %4255 = vmatmul.bf16.gmra.mxu0 %v3929
    %v4256 = vpop.f32.mrf.mxu0
    %v4257 = vadd.f32 %v4168, %v4256
    %v4258 = vpop.f32.mrf.mxu0
    %v4259 = vadd.f32 %v4170, %v4258
    %4260 = vmatmul.bf16.gmra.mxu0 %v3932
    %v4261 = vpop.f32.mrf.mxu0
    %v4262 = vadd.f32 %v4173, %v4261
    %v4263 = vpop.f32.mrf.mxu0
    %v4264 = vadd.f32 %v4175, %v4263
    %4265 = vmatmul.bf16.gmra.mxu0 %v3935
    %v4266 = vpop.f32.mrf.mxu0
    %v4267 = vadd.f32 %v4178, %v4266
    %v4268 = vpop.f32.mrf.mxu0
    %v4269 = vadd.f32 %v4180, %v4268
    %4270 = vmatmul.bf16.gmra.mxu0 %v3938
    %v4271 = vpop.f32.mrf.mxu0
    %v4272 = vadd.f32 %v4183, %v4271
    %v4273 = vpop.f32.mrf.mxu0
    %v4274 = vadd.f32 %v4185, %v4273
    %4275 = vmatmul.bf16.gmra.mxu0 %v3941
    %v4276 = vpop.f32.mrf.mxu0
    %v4277 = vadd.f32 %v4188, %v4276
    %v4278 = vpop.f32.mrf.mxu0
    %v4279 = vadd.f32 %v4190, %v4278
    %4280 = vmatmul.bf16.gmra.mxu0 %v3944
    %v4281 = vpop.f32.mrf.mxu0
    %v4282 = vadd.f32 %v4193, %v4281
    %v4283 = vpop.f32.mrf.mxu0
    %v4284 = vadd.f32 %v4195, %v4283
    %4285 = vmatmul.bf16.gmra.mxu0 %v3947
    %v4286 = vpop.f32.mrf.mxu0
    %v4287 = vadd.f32 %v4198, %v4286
    %v4288 = vpop.f32.mrf.mxu0
    %v4289 = vadd.f32 %v4200, %v4288
    %4290 = vmatmul.bf16.gmra.mxu0 %v3950
    %v4291 = vpop.f32.mrf.mxu0
    %v4292 = vadd.f32 %v4203, %v4291
    %v4293 = vpop.f32.mrf.mxu0
    %v4294 = vadd.f32 %v4205, %v4293
    %4295 = vmatmul.bf16.gmra.mxu0 %v3953
    %v4296 = vpop.f32.mrf.mxu0
    %v4297 = vadd.f32 %v4208, %v4296
    %v4298 = vpop.f32.mrf.mxu0
    %v4299 = vadd.f32 %v4210, %v4298
    %4300 = vmatmul.bf16.gmra.mxu0 %v3956
    %v4301 = vpop.f32.mrf.mxu0
    %v4302 = vadd.f32 %v4213, %v4301
    %v4303 = vpop.f32.mrf.mxu0
    %v4304 = vadd.f32 %v4215, %v4303
    %4305 = vmatmul.bf16.gmra.mxu0 %v3959
    %v4306 = vpop.f32.mrf.mxu0
    %v4307 = vadd.f32 %v4218, %v4306
    %v4308 = vpop.f32.mrf.mxu0
    %v4309 = vadd.f32 %v4220, %v4308
    %4310 = vmatmul.bf16.gmra.mxu0 %v3962
    %v4311 = vpop.f32.mrf.mxu0
    %v4312 = vadd.f32 %v4223, %v4311
    %v4313 = vpop.f32.mrf.mxu0
    %v4314 = vadd.f32 %v4225, %v4313
    %4315 = vmatmul.bf16.gmra.mxu0 %v3965
    %v4316 = vpop.f32.mrf.mxu0
    %v4317 = vadd.f32 %v4228, %v4316
    %v4318 = vpop.f32.mrf.mxu0
    %v4319 = vadd.f32 %v4230, %v4318
    %4320 = vmatmul.bf16.gmra.mxu0 %v3968
    %v4321 = vpop.f32.mrf.mxu0
    %v4322 = vadd.f32 %v4233, %v4321
    %v4323 = vpop.f32.mrf.mxu0
    %v4324 = vadd.f32 %v4235, %v4323
    %4325 = vdwg.mxu0
    %4326 = vmatpush.bf16.msra.mxu0 %v3816
    %4327 = vmatpush.bf16.msra.mxu0 %v3814
    %4328 = vmatpush.bf16.msra.mxu0 %v3812
    %4329 = vmatpush.bf16.msra.mxu0 %v3810
    %4330 = vmatpush.bf16.msra.mxu0 %v3808
    %4331 = vmatpush.bf16.msra.mxu0 %v3806
    %4332 = vmatpush.bf16.msra.mxu0 %v3804
    %4333 = vmatpush.bf16.msra.mxu0 %v3802
    %4334 = vmatmul.bf16.gmra.mxu0 %v3509
    %v4335 = vpop.f32.mrf.mxu0
    %v4336 = vadd.f32 0.0, %v4335
    %v4337 = vpop.f32.mrf.mxu0
    %v4338 = vadd.f32 0.0, %v4337
    %4339 = vmatmul.bf16.gmra.mxu0 %v3513
    %v4340 = vpop.f32.mrf.mxu0
    %v4341 = vadd.f32 0.0, %v4340
    %v4342 = vpop.f32.mrf.mxu0
    %v4343 = vadd.f32 0.0, %v4342
    %4344 = vmatmul.bf16.gmra.mxu0 %v3517
    %v4345 = vpop.f32.mrf.mxu0
    %v4346 = vadd.f32 0.0, %v4345
    %v4347 = vpop.f32.mrf.mxu0
    %v4348 = vadd.f32 0.0, %v4347
    %4349 = vmatmul.bf16.gmra.mxu0 %v3521
    %v4350 = vpop.f32.mrf.mxu0
    %v4351 = vadd.f32 0.0, %v4350
    %v4352 = vpop.f32.mrf.mxu0
    %v4353 = vadd.f32 0.0, %v4352
    %4354 = vmatmul.bf16.gmra.mxu0 %v3525
    %v4355 = vpop.f32.mrf.mxu0
    %v4356 = vadd.f32 0.0, %v4355
    %v4357 = vpop.f32.mrf.mxu0
    %v4358 = vadd.f32 0.0, %v4357
    %4359 = vmatmul.bf16.gmra.mxu0 %v3529
    %v4360 = vpop.f32.mrf.mxu0
    %v4361 = vadd.f32 0.0, %v4360
    %v4362 = vpop.f32.mrf.mxu0
    %v4363 = vadd.f32 0.0, %v4362
    %4364 = vmatmul.bf16.gmra.mxu0 %v3533
    %v4365 = vpop.f32.mrf.mxu0
    %v4366 = vadd.f32 0.0, %v4365
    %v4367 = vpop.f32.mrf.mxu0
    %v4368 = vadd.f32 0.0, %v4367
    %4369 = vmatmul.bf16.gmra.mxu0 %v3537
    %v4370 = vpop.f32.mrf.mxu0
    %v4371 = vadd.f32 0.0, %v4370
    %v4372 = vpop.f32.mrf.mxu0
    %v4373 = vadd.f32 0.0, %v4372
    %4374 = vmatmul.bf16.gmra.mxu0 %v3541
    %v4375 = vpop.f32.mrf.mxu0
    %v4376 = vadd.f32 0.0, %v4375
    %v4377 = vpop.f32.mrf.mxu0
    %v4378 = vadd.f32 0.0, %v4377
    %4379 = vmatmul.bf16.gmra.mxu0 %v3545
    %v4380 = vpop.f32.mrf.mxu0
    %v4381 = vadd.f32 0.0, %v4380
    %v4382 = vpop.f32.mrf.mxu0
    %v4383 = vadd.f32 0.0, %v4382
    %4384 = vmatmul.bf16.gmra.mxu0 %v3549
    %v4385 = vpop.f32.mrf.mxu0
    %v4386 = vadd.f32 0.0, %v4385
    %v4387 = vpop.f32.mrf.mxu0
    %v4388 = vadd.f32 0.0, %v4387
    %4389 = vmatmul.bf16.gmra.mxu0 %v3553
    %v4390 = vpop.f32.mrf.mxu0
    %v4391 = vadd.f32 0.0, %v4390
    %v4392 = vpop.f32.mrf.mxu0
    %v4393 = vadd.f32 0.0, %v4392
    %4394 = vmatmul.bf16.gmra.mxu0 %v3557
    %v4395 = vpop.f32.mrf.mxu0
    %v4396 = vadd.f32 0.0, %v4395
    %v4397 = vpop.f32.mrf.mxu0
    %v4398 = vadd.f32 0.0, %v4397
    %4399 = vmatmul.bf16.gmra.mxu0 %v3561
    %v4400 = vpop.f32.mrf.mxu0
    %v4401 = vadd.f32 0.0, %v4400
    %v4402 = vpop.f32.mrf.mxu0
    %v4403 = vadd.f32 0.0, %v4402
    %4404 = vmatmul.bf16.gmra.mxu0 %v3565
    %v4405 = vpop.f32.mrf.mxu0
    %v4406 = vadd.f32 0.0, %v4405
    %v4407 = vpop.f32.mrf.mxu0
    %v4408 = vadd.f32 0.0, %v4407
    %4409 = vmatmul.bf16.gmra.mxu0 %v3569
    %v4410 = vpop.f32.mrf.mxu0
    %v4411 = vadd.f32 0.0, %v4410
    %v4412 = vpop.f32.mrf.mxu0
    %v4413 = vadd.f32 0.0, %v4412
    %4414 = vdwg.mxu0
    %4415 = vmatpush.bf16.msra.mxu0 %v3832
    %4416 = vmatpush.bf16.msra.mxu0 %v3830
    %4417 = vmatpush.bf16.msra.mxu0 %v3828
    %4418 = vmatpush.bf16.msra.mxu0 %v3826
    %4419 = vmatpush.bf16.msra.mxu0 %v3824
    %4420 = vmatpush.bf16.msra.mxu0 %v3822
    %4421 = vmatpush.bf16.msra.mxu0 %v3820
    %4422 = vmatpush.bf16.msra.mxu0 %v3818
    %4423 = vmatmul.bf16.gmra.mxu0 %v3510
    %v4424 = vpop.f32.mrf.mxu0
    %v4425 = vadd.f32 %v4336, %v4424
    %v4426 = vpop.f32.mrf.mxu0
    %v4427 = vadd.f32 %v4338, %v4426
    %4428 = vmatmul.bf16.gmra.mxu0 %v3514
    %v4429 = vpop.f32.mrf.mxu0
    %v4430 = vadd.f32 %v4341, %v4429
    %v4431 = vpop.f32.mrf.mxu0
    %v4432 = vadd.f32 %v4343, %v4431
    %4433 = vmatmul.bf16.gmra.mxu0 %v3518
    %v4434 = vpop.f32.mrf.mxu0
    %v4435 = vadd.f32 %v4346, %v4434
    %v4436 = vpop.f32.mrf.mxu0
    %v4437 = vadd.f32 %v4348, %v4436
    %4438 = vmatmul.bf16.gmra.mxu0 %v3522
    %v4439 = vpop.f32.mrf.mxu0
    %v4440 = vadd.f32 %v4351, %v4439
    %v4441 = vpop.f32.mrf.mxu0
    %v4442 = vadd.f32 %v4353, %v4441
    %4443 = vmatmul.bf16.gmra.mxu0 %v3526
    %v4444 = vpop.f32.mrf.mxu0
    %v4445 = vadd.f32 %v4356, %v4444
    %v4446 = vpop.f32.mrf.mxu0
    %v4447 = vadd.f32 %v4358, %v4446
    %4448 = vmatmul.bf16.gmra.mxu0 %v3530
    %v4449 = vpop.f32.mrf.mxu0
    %v4450 = vadd.f32 %v4361, %v4449
    %v4451 = vpop.f32.mrf.mxu0
    %v4452 = vadd.f32 %v4363, %v4451
    %4453 = vmatmul.bf16.gmra.mxu0 %v3534
    %v4454 = vpop.f32.mrf.mxu0
    %v4455 = vadd.f32 %v4366, %v4454
    %v4456 = vpop.f32.mrf.mxu0
    %v4457 = vadd.f32 %v4368, %v4456
    %4458 = vmatmul.bf16.gmra.mxu0 %v3538
    %v4459 = vpop.f32.mrf.mxu0
    %v4460 = vadd.f32 %v4371, %v4459
    %v4461 = vpop.f32.mrf.mxu0
    %v4462 = vadd.f32 %v4373, %v4461
    %4463 = vmatmul.bf16.gmra.mxu0 %v3542
    %v4464 = vpop.f32.mrf.mxu0
    %v4465 = vadd.f32 %v4376, %v4464
    %v4466 = vpop.f32.mrf.mxu0
    %v4467 = vadd.f32 %v4378, %v4466
    %4468 = vmatmul.bf16.gmra.mxu0 %v3546
    %v4469 = vpop.f32.mrf.mxu0
    %v4470 = vadd.f32 %v4381, %v4469
    %v4471 = vpop.f32.mrf.mxu0
    %v4472 = vadd.f32 %v4383, %v4471
    %4473 = vmatmul.bf16.gmra.mxu0 %v3550
    %v4474 = vpop.f32.mrf.mxu0
    %v4475 = vadd.f32 %v4386, %v4474
    %v4476 = vpop.f32.mrf.mxu0
    %v4477 = vadd.f32 %v4388, %v4476
    %4478 = vmatmul.bf16.gmra.mxu0 %v3554
    %v4479 = vpop.f32.mrf.mxu0
    %v4480 = vadd.f32 %v4391, %v4479
    %v4481 = vpop.f32.mrf.mxu0
    %v4482 = vadd.f32 %v4393, %v4481
    %4483 = vmatmul.bf16.gmra.mxu0 %v3558
    %v4484 = vpop.f32.mrf.mxu0
    %v4485 = vadd.f32 %v4396, %v4484
    %v4486 = vpop.f32.mrf.mxu0
    %v4487 = vadd.f32 %v4398, %v4486
    %4488 = vmatmul.bf16.gmra.mxu0 %v3562
    %v4489 = vpop.f32.mrf.mxu0
    %v4490 = vadd.f32 %v4401, %v4489
    %v4491 = vpop.f32.mrf.mxu0
    %v4492 = vadd.f32 %v4403, %v4491
    %4493 = vmatmul.bf16.gmra.mxu0 %v3566
    %v4494 = vpop.f32.mrf.mxu0
    %v4495 = vadd.f32 %v4406, %v4494
    %v4496 = vpop.f32.mrf.mxu0
    %v4497 = vadd.f32 %v4408, %v4496
    %4498 = vmatmul.bf16.gmra.mxu0 %v3570
    %v4499 = vpop.f32.mrf.mxu0
    %v4500 = vadd.f32 %v4411, %v4499
    %v4501 = vpop.f32.mrf.mxu0
    %v4502 = vadd.f32 %v4413, %v4501
    %4503 = vdwg.mxu0
    %4504 = vmatpush.bf16.msra.mxu0 %v3848
    %4505 = vmatpush.bf16.msra.mxu0 %v3846
    %4506 = vmatpush.bf16.msra.mxu0 %v3844
    %4507 = vmatpush.bf16.msra.mxu0 %v3842
    %4508 = vmatpush.bf16.msra.mxu0 %v3840
    %4509 = vmatpush.bf16.msra.mxu0 %v3838
    %4510 = vmatpush.bf16.msra.mxu0 %v3836
    %4511 = vmatpush.bf16.msra.mxu0 %v3834
    %4512 = vmatmul.bf16.gmra.mxu0 %v3511
    %v4513 = vpop.f32.mrf.mxu0
    %v4514 = vadd.f32 %v4425, %v4513
    %v4515 = vpop.f32.mrf.mxu0
    %v4516 = vadd.f32 %v4427, %v4515
    %4517 = vmatmul.bf16.gmra.mxu0 %v3515
    %v4518 = vpop.f32.mrf.mxu0
    %v4519 = vadd.f32 %v4430, %v4518
    %v4520 = vpop.f32.mrf.mxu0
    %v4521 = vadd.f32 %v4432, %v4520
    %4522 = vmatmul.bf16.gmra.mxu0 %v3519
    %v4523 = vpop.f32.mrf.mxu0
    %v4524 = vadd.f32 %v4435, %v4523
    %v4525 = vpop.f32.mrf.mxu0
    %v4526 = vadd.f32 %v4437, %v4525
    %4527 = vmatmul.bf16.gmra.mxu0 %v3523
    %v4528 = vpop.f32.mrf.mxu0
    %v4529 = vadd.f32 %v4440, %v4528
    %v4530 = vpop.f32.mrf.mxu0
    %v4531 = vadd.f32 %v4442, %v4530
    %4532 = vmatmul.bf16.gmra.mxu0 %v3527
    %v4533 = vpop.f32.mrf.mxu0
    %v4534 = vadd.f32 %v4445, %v4533
    %v4535 = vpop.f32.mrf.mxu0
    %v4536 = vadd.f32 %v4447, %v4535
    %4537 = vmatmul.bf16.gmra.mxu0 %v3531
    %v4538 = vpop.f32.mrf.mxu0
    %v4539 = vadd.f32 %v4450, %v4538
    %v4540 = vpop.f32.mrf.mxu0
    %v4541 = vadd.f32 %v4452, %v4540
    %4542 = vmatmul.bf16.gmra.mxu0 %v3535
    %v4543 = vpop.f32.mrf.mxu0
    %v4544 = vadd.f32 %v4455, %v4543
    %v4545 = vpop.f32.mrf.mxu0
    %v4546 = vadd.f32 %v4457, %v4545
    %4547 = vmatmul.bf16.gmra.mxu0 %v3539
    %v4548 = vpop.f32.mrf.mxu0
    %v4549 = vadd.f32 %v4460, %v4548
    %v4550 = vpop.f32.mrf.mxu0
    %v4551 = vadd.f32 %v4462, %v4550
    %4552 = vmatmul.bf16.gmra.mxu0 %v3543
    %v4553 = vpop.f32.mrf.mxu0
    %v4554 = vadd.f32 %v4465, %v4553
    %v4555 = vpop.f32.mrf.mxu0
    %v4556 = vadd.f32 %v4467, %v4555
    %4557 = vmatmul.bf16.gmra.mxu0 %v3547
    %v4558 = vpop.f32.mrf.mxu0
    %v4559 = vadd.f32 %v4470, %v4558
    %v4560 = vpop.f32.mrf.mxu0
    %v4561 = vadd.f32 %v4472, %v4560
    %4562 = vmatmul.bf16.gmra.mxu0 %v3551
    %v4563 = vpop.f32.mrf.mxu0
    %v4564 = vadd.f32 %v4475, %v4563
    %v4565 = vpop.f32.mrf.mxu0
    %v4566 = vadd.f32 %v4477, %v4565
    %4567 = vmatmul.bf16.gmra.mxu0 %v3555
    %v4568 = vpop.f32.mrf.mxu0
    %v4569 = vadd.f32 %v4480, %v4568
    %v4570 = vpop.f32.mrf.mxu0
    %v4571 = vadd.f32 %v4482, %v4570
    %4572 = vmatmul.bf16.gmra.mxu0 %v3559
    %v4573 = vpop.f32.mrf.mxu0
    %v4574 = vadd.f32 %v4485, %v4573
    %v4575 = vpop.f32.mrf.mxu0
    %v4576 = vadd.f32 %v4487, %v4575
    %4577 = vmatmul.bf16.gmra.mxu0 %v3563
    %v4578 = vpop.f32.mrf.mxu0
    %v4579 = vadd.f32 %v4490, %v4578
    %v4580 = vpop.f32.mrf.mxu0
    %v4581 = vadd.f32 %v4492, %v4580
    %4582 = vmatmul.bf16.gmra.mxu0 %v3567
    %v4583 = vpop.f32.mrf.mxu0
    %v4584 = vadd.f32 %v4495, %v4583
    %v4585 = vpop.f32.mrf.mxu0
    %v4586 = vadd.f32 %v4497, %v4585
    %4587 = vmatmul.bf16.gmra.mxu0 %v3571
    %v4588 = vpop.f32.mrf.mxu0
    %v4589 = vadd.f32 %v4500, %v4588
    %v4590 = vpop.f32.mrf.mxu0
    %v4591 = vadd.f32 %v4502, %v4590
    %4592 = vdwg.mxu0
    %4593 = vmatpush.bf16.msra.mxu0 0
    %4594 = vmatpush.bf16.msra.mxu0 0
    %4595 = vmatpush.bf16.msra.mxu0 %v3860
    %4596 = vmatpush.bf16.msra.mxu0 %v3858
    %4597 = vmatpush.bf16.msra.mxu0 %v3856
    %4598 = vmatpush.bf16.msra.mxu0 %v3854
    %4599 = vmatpush.bf16.msra.mxu0 %v3852
    %4600 = vmatpush.bf16.msra.mxu0 %v3850
    %4601 = vmatmul.bf16.gmra.mxu0 %v3923
    %v4602 = vpop.f32.mrf.mxu0
    %v4603 = vadd.f32 %v4514, %v4602
    %v4604 = vpop.f32.mrf.mxu0
    %v4605 = vadd.f32 %v4516, %v4604
    %4606 = vmatmul.bf16.gmra.mxu0 %v3926
    %v4607 = vpop.f32.mrf.mxu0
    %v4608 = vadd.f32 %v4519, %v4607
    %v4609 = vpop.f32.mrf.mxu0
    %v4610 = vadd.f32 %v4521, %v4609
    %4611 = vmatmul.bf16.gmra.mxu0 %v3929
    %v4612 = vpop.f32.mrf.mxu0
    %v4613 = vadd.f32 %v4524, %v4612
    %v4614 = vpop.f32.mrf.mxu0
    %v4615 = vadd.f32 %v4526, %v4614
    %4616 = vmatmul.bf16.gmra.mxu0 %v3932
    %v4617 = vpop.f32.mrf.mxu0
    %v4618 = vadd.f32 %v4529, %v4617
    %v4619 = vpop.f32.mrf.mxu0
    %v4620 = vadd.f32 %v4531, %v4619
    %4621 = vmatmul.bf16.gmra.mxu0 %v3935
    %v4622 = vpop.f32.mrf.mxu0
    %v4623 = vadd.f32 %v4534, %v4622
    %v4624 = vpop.f32.mrf.mxu0
    %v4625 = vadd.f32 %v4536, %v4624
    %4626 = vmatmul.bf16.gmra.mxu0 %v3938
    %v4627 = vpop.f32.mrf.mxu0
    %v4628 = vadd.f32 %v4539, %v4627
    %v4629 = vpop.f32.mrf.mxu0
    %v4630 = vadd.f32 %v4541, %v4629
    %4631 = vmatmul.bf16.gmra.mxu0 %v3941
    %v4632 = vpop.f32.mrf.mxu0
    %v4633 = vadd.f32 %v4544, %v4632
    %v4634 = vpop.f32.mrf.mxu0
    %v4635 = vadd.f32 %v4546, %v4634
    %4636 = vmatmul.bf16.gmra.mxu0 %v3944
    %v4637 = vpop.f32.mrf.mxu0
    %v4638 = vadd.f32 %v4549, %v4637
    %v4639 = vpop.f32.mrf.mxu0
    %v4640 = vadd.f32 %v4551, %v4639
    %4641 = vmatmul.bf16.gmra.mxu0 %v3947
    %v4642 = vpop.f32.mrf.mxu0
    %v4643 = vadd.f32 %v4554, %v4642
    %v4644 = vpop.f32.mrf.mxu0
    %v4645 = vadd.f32 %v4556, %v4644
    %4646 = vmatmul.bf16.gmra.mxu0 %v3950
    %v4647 = vpop.f32.mrf.mxu0
    %v4648 = vadd.f32 %v4559, %v4647
    %v4649 = vpop.f32.mrf.mxu0
    %v4650 = vadd.f32 %v4561, %v4649
    %4651 = vmatmul.bf16.gmra.mxu0 %v3953
    %v4652 = vpop.f32.mrf.mxu0
    %v4653 = vadd.f32 %v4564, %v4652
    %v4654 = vpop.f32.mrf.mxu0
    %v4655 = vadd.f32 %v4566, %v4654
    %4656 = vmatmul.bf16.gmra.mxu0 %v3956
    %v4657 = vpop.f32.mrf.mxu0
    %v4658 = vadd.f32 %v4569, %v4657
    %v4659 = vpop.f32.mrf.mxu0
    %v4660 = vadd.f32 %v4571, %v4659
    %4661 = vmatmul.bf16.gmra.mxu0 %v3959
    %v4662 = vpop.f32.mrf.mxu0
    %v4663 = vadd.f32 %v4574, %v4662
    %v4664 = vpop.f32.mrf.mxu0
    %v4665 = vadd.f32 %v4576, %v4664
    %4666 = vmatmul.bf16.gmra.mxu0 %v3962
    %v4667 = vpop.f32.mrf.mxu0
    %v4668 = vadd.f32 %v4579, %v4667
    %v4669 = vpop.f32.mrf.mxu0
    %v4670 = vadd.f32 %v4581, %v4669
    %4671 = vmatmul.bf16.gmra.mxu0 %v3965
    %v4672 = vpop.f32.mrf.mxu0
    %v4673 = vadd.f32 %v4584, %v4672
    %v4674 = vpop.f32.mrf.mxu0
    %v4675 = vadd.f32 %v4586, %v4674
    %4676 = vmatmul.bf16.gmra.mxu0 %v3968
    %v4677 = vpop.f32.mrf.mxu0
    %v4678 = vadd.f32 %v4589, %v4677
    %v4679 = vpop.f32.mrf.mxu0
    %v4680 = vadd.f32 %v4591, %v4679
    %4681 = vdwg.mxu0
    %4682 = vst [vmem:[#allocation3] sm:$0xff] %v4247
    %4683 = vst [vmem:[#allocation3 + $0x8] sm:$0xff] %v4603
    %4684 = vst [vmem:[#allocation3 + $0x10] sm:$0xff] %v4249
    %4685 = vst [vmem:[#allocation3 + $0x18] sm:$0xff] %v4605
    %4686 = vst [vmem:[#allocation3 + $0x20] sm:$0xff] %v4252
    %4687 = vst [vmem:[#allocation3 + $0x28] sm:$0xff] %v4608
    %4688 = vst [vmem:[#allocation3 + $0x30] sm:$0xff] %v4254
    %4689 = vst [vmem:[#allocation3 + $0x38] sm:$0xff] %v4610
    %4690 = vst [vmem:[#allocation3 + $0x40] sm:$0xff] %v4257
    %4691 = vst [vmem:[#allocation3 + $0x48] sm:$0xff] %v4613
    %4692 = vst [vmem:[#allocation3 + $0x50] sm:$0xff] %v4259
    %4693 = vst [vmem:[#allocation3 + $0x58] sm:$0xff] %v4615
    %4694 = vst [vmem:[#allocation3 + $0x60] sm:$0xff] %v4262
    %4695 = vst [vmem:[#allocation3 + $0x68] sm:$0xff] %v4618
    %4696 = vst [vmem:[#allocation3 + $0x70] sm:$0xff] %v4264
    %4697 = vst [vmem:[#allocation3 + $0x78] sm:$0xff] %v4620
    %4698 = vst [vmem:[#allocation3 + $0x80] sm:$0xff] %v4267
    %4699 = vst [vmem:[#allocation3 + $0x88] sm:$0xff] %v4623
    %4700 = vst [vmem:[#allocation3 + $0x90] sm:$0xff] %v4269
    %4701 = vst [vmem:[#allocation3 + $0x98] sm:$0xff] %v4625
    %4702 = vst [vmem:[#allocation3 + $0xa0] sm:$0xff] %v4272
    %4703 = vst [vmem:[#allocation3 + $0xa8] sm:$0xff] %v4628
    %4704 = vst [vmem:[#allocation3 + $0xb0] sm:$0xff] %v4274
    %4705 = vst [vmem:[#allocation3 + $0xb8] sm:$0xff] %v4630
    %4706 = vst [vmem:[#allocation3 + $0xc0] sm:$0xff] %v4277
    %4707 = vst [vmem:[#allocation3 + $0xc8] sm:$0xff] %v4633
    %4708 = vst [vmem:[#allocation3 + $0xd0] sm:$0xff] %v4279
    %4709 = vst [vmem:[#allocation3 + $0xd8] sm:$0xff] %v4635
    %4710 = vst [vmem:[#allocation3 + $0xe0] sm:$0xff] %v4282
    %4711 = vst [vmem:[#allocation3 + $0xe8] sm:$0xff] %v4638
    %4712 = vst [vmem:[#allocation3 + $0xf0] sm:$0xff] %v4284
    %4713 = vst [vmem:[#allocation3 + $0xf8] sm:$0xff] %v4640
    %4714 = vst [vmem:[#allocation3 + $0x100] sm:$0xff] %v4287
    %4715 = vst [vmem:[#allocation3 + $0x108] sm:$0xff] %v4643
    %4716 = vst [vmem:[#allocation3 + $0x110] sm:$0xff] %v4289
    %4717 = vst [vmem:[#allocation3 + $0x118] sm:$0xff] %v4645
    %4718 = vst [vmem:[#allocation3 + $0x120] sm:$0xff] %v4292
    %4719 = vst [vmem:[#allocation3 + $0x128] sm:$0xff] %v4648
    %4720 = vst [vmem:[#allocation3 + $0x130] sm:$0xff] %v4294
    %4721 = vst [vmem:[#allocation3 + $0x138] sm:$0xff] %v4650
    %4722 = vst [vmem:[#allocation3 + $0x140] sm:$0xff] %v4297
    %4723 = vst [vmem:[#allocation3 + $0x148] sm:$0xff] %v4653
    %4724 = vst [vmem:[#allocation3 + $0x150] sm:$0xff] %v4299
    %4725 = vst [vmem:[#allocation3 + $0x158] sm:$0xff] %v4655
    %4726 = vst [vmem:[#allocation3 + $0x160] sm:$0xff] %v4302
    %4727 = vst [vmem:[#allocation3 + $0x168] sm:$0xff] %v4658
    %4728 = vst [vmem:[#allocation3 + $0x170] sm:$0xff] %v4304
    %4729 = vst [vmem:[#allocation3 + $0x178] sm:$0xff] %v4660
    %4730 = vst [vmem:[#allocation3 + $0x180] sm:$0xff] %v4307
    %4731 = vst [vmem:[#allocation3 + $0x188] sm:$0xff] %v4663
    %4732 = vst [vmem:[#allocation3 + $0x190] sm:$0xff] %v4309
    %4733 = vst [vmem:[#allocation3 + $0x198] sm:$0xff] %v4665
    %4734 = vst [vmem:[#allocation3 + $0x1a0] sm:$0xff] %v4312
    %4735 = vst [vmem:[#allocation3 + $0x1a8] sm:$0xff] %v4668
    %4736 = vst [vmem:[#allocation3 + $0x1b0] sm:$0xff] %v4314
    %4737 = vst [vmem:[#allocation3 + $0x1b8] sm:$0xff] %v4670
    %4738 = vst [vmem:[#allocation3 + $0x1c0] sm:$0xff] %v4317
    %4739 = vst [vmem:[#allocation3 + $0x1c8] sm:$0xff] %v4673
    %4740 = vst [vmem:[#allocation3 + $0x1d0] sm:$0xff] %v4319
    %4741 = vst [vmem:[#allocation3 + $0x1d8] sm:$0xff] %v4675
    %4742 = vst [vmem:[#allocation3 + $0x1e0] sm:$0xff] %v4322
    %4743 = vst [vmem:[#allocation3 + $0x1e8] sm:$0xff] %v4678
    %4744 = vst [vmem:[#allocation3 + $0x1f0] sm:$0xff] %v4324
    %4745 = vst [vmem:[#allocation3 + $0x1f8] sm:$0xff] %v4680
    %v4746 = vld [vmem:[#allocation3] sm:$0xff]
    %v4747 = vld [vmem:[#allocation3 + $0x8] sm:$0xff]
    %v4748 = vld [vmem:[#allocation3 + $0x10] sm:$0xff]
    %v4749 = vld [vmem:[#allocation3 + $0x18] sm:$0xff]
    %v4750 = vld [vmem:[#allocation3 + $0x20] sm:$0xff]
    %v4751 = vld [vmem:[#allocation3 + $0x28] sm:$0xff]
    %v4752 = vld [vmem:[#allocation3 + $0x30] sm:$0xff]
    %v4753 = vld [vmem:[#allocation3 + $0x38] sm:$0xff]
    %v4754 = vld [vmem:[#allocation3 + $0x40] sm:$0xff]
    %v4755 = vld [vmem:[#allocation3 + $0x48] sm:$0xff]
    %v4756 = vld [vmem:[#allocation3 + $0x50] sm:$0xff]
    %v4757 = vld [vmem:[#allocation3 + $0x58] sm:$0xff]
    %v4758 = vld [vmem:[#allocation3 + $0x60] sm:$0xff]
    %v4759 = vld [vmem:[#allocation3 + $0x68] sm:$0xff]
    %v4760 = vld [vmem:[#allocation3 + $0x70] sm:$0xff]
    %v4761 = vld [vmem:[#allocation3 + $0x78] sm:$0xff]
    %v4762 = vadd.f32 %v4746, %v4747
    %4763 = vadd.xlane.f32.xlu0 %v4762
    %v4764 = vpop.xlane.xlu0 %4763
    %v4765 = vadd.f32 %v4748, %v4749
    %4766 = vadd.xlane.f32.xlu0 %v4765
    %v4767 = vpop.xlane.xlu0 %4766
    %v4768 = vadd.f32 %v4750, %v4751
    %4769 = vadd.xlane.f32.xlu0 %v4768
    %v4770 = vpop.xlane.xlu0 %4769
    %v4771 = vadd.f32 %v4752, %v4753
    %4772 = vadd.xlane.f32.xlu0 %v4771
    %v4773 = vpop.xlane.xlu0 %4772
    %v4774 = vadd.f32 %v4754, %v4755
    %4775 = vadd.xlane.f32.xlu0 %v4774
    %v4776 = vpop.xlane.xlu0 %4775
    %v4777 = vadd.f32 %v4756, %v4757
    %4778 = vadd.xlane.f32.xlu0 %v4777
    %v4779 = vpop.xlane.xlu0 %4778
    %v4780 = vadd.f32 %v4758, %v4759
    %4781 = vadd.xlane.f32.xlu0 %v4780
    %v4782 = vpop.xlane.xlu0 %4781
    %v4783 = vadd.f32 %v4760, %v4761
    %4784 = vadd.xlane.f32.xlu0 %v4783
    %v4785 = vpop.xlane.xlu0 %4784
    %v4786 = vmul.f32 %v4764, 0.00390625
    %v4787 = vmul.f32 %v4767, 0.00390625
    %v4788 = vmul.f32 %v4770, 0.00390625
    %v4789 = vmul.f32 %v4773, 0.00390625
    %v4790 = vmul.f32 %v4776, 0.00390625
    %v4791 = vmul.f32 %v4779, 0.00390625
    %v4792 = vmul.f32 %v4782, 0.00390625
    %v4793 = vmul.f32 %v4785, 0.00390625
    %v4794 = vmul.f32 %v4746, %v4746
    %v4795 = vmul.f32 %v4747, %v4747
    %v4796 = vmul.f32 %v4748, %v4748
    %v4797 = vmul.f32 %v4749, %v4749
    %v4798 = vmul.f32 %v4750, %v4750
    %v4799 = vmul.f32 %v4751, %v4751
    %v4800 = vmul.f32 %v4752, %v4752
    %v4801 = vmul.f32 %v4753, %v4753
    %v4802 = vmul.f32 %v4754, %v4754
    %v4803 = vmul.f32 %v4755, %v4755
    %v4804 = vmul.f32 %v4756, %v4756
    %v4805 = vmul.f32 %v4757, %v4757
    %v4806 = vmul.f32 %v4758, %v4758
    %v4807 = vmul.f32 %v4759, %v4759
    %v4808 = vmul.f32 %v4760, %v4760
    %v4809 = vmul.f32 %v4761, %v4761
    %v4810 = vadd.f32 %v4794, %v4795
    %4811 = vadd.xlane.f32.xlu0 %v4810
    %v4812 = vpop.xlane.xlu0 %4811
    %v4813 = vadd.f32 %v4796, %v4797
    %4814 = vadd.xlane.f32.xlu0 %v4813
    %v4815 = vpop.xlane.xlu0 %4814
    %v4816 = vadd.f32 %v4798, %v4799
    %4817 = vadd.xlane.f32.xlu0 %v4816
    %v4818 = vpop.xlane.xlu0 %4817
    %v4819 = vadd.f32 %v4800, %v4801
    %4820 = vadd.xlane.f32.xlu0 %v4819
    %v4821 = vpop.xlane.xlu0 %4820
    %v4822 = vadd.f32 %v4802, %v4803
    %4823 = vadd.xlane.f32.xlu0 %v4822
    %v4824 = vpop.xlane.xlu0 %4823
    %v4825 = vadd.f32 %v4804, %v4805
    %4826 = vadd.xlane.f32.xlu0 %v4825
    %v4827 = vpop.xlane.xlu0 %4826
    %v4828 = vadd.f32 %v4806, %v4807
    %4829 = vadd.xlane.f32.xlu0 %v4828
    %v4830 = vpop.xlane.xlu0 %4829
    %v4831 = vadd.f32 %v4808, %v4809
    %4832 = vadd.xlane.f32.xlu0 %v4831
    %v4833 = vpop.xlane.xlu0 %4832
    %v4834 = vmul.f32 %v4812, 0.00390625
    %v4835 = vmul.f32 %v4815, 0.00390625
    %v4836 = vmul.f32 %v4818, 0.00390625
    %v4837 = vmul.f32 %v4821, 0.00390625
    %v4838 = vmul.f32 %v4824, 0.00390625
    %v4839 = vmul.f32 %v4827, 0.00390625
    %v4840 = vmul.f32 %v4830, 0.00390625
    %v4841 = vmul.f32 %v4833, 0.00390625
    %v4842 = vmul.f32 %v4786, %v4786
    %v4843 = vmul.f32 %v4787, %v4787
    %v4844 = vmul.f32 %v4788, %v4788
    %v4845 = vmul.f32 %v4789, %v4789
    %v4846 = vmul.f32 %v4790, %v4790
    %v4847 = vmul.f32 %v4791, %v4791
    %v4848 = vmul.f32 %v4792, %v4792
    %v4849 = vmul.f32 %v4793, %v4793
    %v4850 = vsub.f32 %v4834, %v4842
    %v4851 = vsub.f32 %v4835, %v4843
    %v4852 = vsub.f32 %v4836, %v4844
    %v4853 = vsub.f32 %v4837, %v4845
    %v4854 = vsub.f32 %v4838, %v4846
    %v4855 = vsub.f32 %v4839, %v4847
    %v4856 = vsub.f32 %v4840, %v4848
    %v4857 = vsub.f32 %v4841, %v4849
    %v4858 = vmax.f32 %v4850, 0.0
    %v4859 = vmax.f32 %v4851, 0.0
    %v4860 = vmax.f32 %v4852, 0.0
    %v4861 = vmax.f32 %v4853, 0.0
    %v4862 = vmax.f32 %v4854, 0.0
    %v4863 = vmax.f32 %v4855, 0.0
    %v4864 = vmax.f32 %v4856, 0.0
    %v4865 = vmax.f32 %v4857, 0.0
    %v4866 = vld [vmem:[%s3] sm:$0xff]
    %v4867 = vld [vmem:[%s3 + $0x8] sm:$0xff]
    %v4868 = vld [vmem:[%s3 + $0x10] sm:$0xff]
    %v4869 = vld [vmem:[%s3 + $0x18] sm:$0xff]
    %v4870 = vld [vmem:[%s3 + $0x20] sm:$0xff]
    %v4871 = vld [vmem:[%s3 + $0x28] sm:$0xff]
    %v4872 = vld [vmem:[%s3 + $0x30] sm:$0xff]
    %v4873 = vld [vmem:[%s3 + $0x38] sm:$0xff]
    %v4874 = vadd.f32 %v4858, 1e-05
    %v4875 = vadd.f32 %v4859, 1e-05
    %v4876 = vadd.f32 %v4860, 1e-05
    %v4877 = vadd.f32 %v4861, 1e-05
    %v4878 = vadd.f32 %v4862, 1e-05
    %v4879 = vadd.f32 %v4863, 1e-05
    %v4880 = vadd.f32 %v4864, 1e-05
    %v4881 = vadd.f32 %v4865, 1e-05
    %v4882 = vrsqrt.pop %v4874
    %v4883 = vmul.f32 %v4882, %v4874
    %v4884 = vmul.f32 %v4883, %v4882
    %v4885 = vmul.f32 0.5, %v4884
    %v4886 = vsub.f32 1.5, %v4885
    %v4887 = vmul.f32 %v4882, %v4886
    %vm4888 = vweird.f32 %v4874
    %vm4889 = vweird.f32 %v4882
    %vm4890 = vmor %vm4888, %vm4889
    %v4891 = vsel %vm4890, %v4882, %v4887
    %v4892 = vrsqrt.pop %v4875
    %v4893 = vmul.f32 %v4892, %v4875
    %v4894 = vmul.f32 %v4893, %v4892
    %v4895 = vmul.f32 0.5, %v4894
    %v4896 = vsub.f32 1.5, %v4895
    %v4897 = vmul.f32 %v4892, %v4896
    %vm4898 = vweird.f32 %v4875
    %vm4899 = vweird.f32 %v4892
    %vm4900 = vmor %vm4898, %vm4899
    %v4901 = vsel %vm4900, %v4892, %v4897
    %v4902 = vrsqrt.pop %v4876
    %v4903 = vmul.f32 %v4902, %v4876
    %v4904 = vmul.f32 %v4903, %v4902
    %v4905 = vmul.f32 0.5, %v4904
    %v4906 = vsub.f32 1.5, %v4905
    %v4907 = vmul.f32 %v4902, %v4906
    %vm4908 = vweird.f32 %v4876
    %vm4909 = vweird.f32 %v4902
    %vm4910 = vmor %vm4908, %vm4909
    %v4911 = vsel %vm4910, %v4902, %v4907
    %v4912 = vrsqrt.pop %v4877
    %v4913 = vmul.f32 %v4912, %v4877
    %v4914 = vmul.f32 %v4913, %v4912
    %v4915 = vmul.f32 0.5, %v4914
    %v4916 = vsub.f32 1.5, %v4915
    %v4917 = vmul.f32 %v4912, %v4916
    %vm4918 = vweird.f32 %v4877
    %vm4919 = vweird.f32 %v4912
    %vm4920 = vmor %vm4918, %vm4919
    %v4921 = vsel %vm4920, %v4912, %v4917
    %v4922 = vrsqrt.pop %v4878
    %v4923 = vmul.f32 %v4922, %v4878
    %v4924 = vmul.f32 %v4923, %v4922
    %v4925 = vmul.f32 0.5, %v4924
    %v4926 = vsub.f32 1.5, %v4925
    %v4927 = vmul.f32 %v4922, %v4926
    %vm4928 = vweird.f32 %v4878
    %vm4929 = vweird.f32 %v4922
    %vm4930 = vmor %vm4928, %vm4929
    %v4931 = vsel %vm4930, %v4922, %v4927
    %v4932 = vrsqrt.pop %v4879
    %v4933 = vmul.f32 %v4932, %v4879
    %v4934 = vmul.f32 %v4933, %v4932
    %v4935 = vmul.f32 0.5, %v4934
    %v4936 = vsub.f32 1.5, %v4935
    %v4937 = vmul.f32 %v4932, %v4936
    %vm4938 = vweird.f32 %v4879
    %vm4939 = vweird.f32 %v4932
    %vm4940 = vmor %vm4938, %vm4939
    %v4941 = vsel %vm4940, %v4932, %v4937
    %v4942 = vrsqrt.pop %v4880
    %v4943 = vmul.f32 %v4942, %v4880
    %v4944 = vmul.f32 %v4943, %v4942
    %v4945 = vmul.f32 0.5, %v4944
    %v4946 = vsub.f32 1.5, %v4945
    %v4947 = vmul.f32 %v4942, %v4946
    %vm4948 = vweird.f32 %v4880
    %vm4949 = vweird.f32 %v4942
    %vm4950 = vmor %vm4948, %vm4949
    %v4951 = vsel %vm4950, %v4942, %v4947
    %v4952 = vrsqrt.pop %v4881
    %v4953 = vmul.f32 %v4952, %v4881
    %v4954 = vmul.f32 %v4953, %v4952
    %v4955 = vmul.f32 0.5, %v4954
    %v4956 = vsub.f32 1.5, %v4955
    %v4957 = vmul.f32 %v4952, %v4956
    %vm4958 = vweird.f32 %v4881
    %vm4959 = vweird.f32 %v4952
    %vm4960 = vmor %vm4958, %vm4959
    %v4961 = vsel %vm4960, %v4952, %v4957
    %v4962 = vmul.f32 %v4866, %v4891
    %v4963 = vmul.f32 %v4867, %v4901
    %v4964 = vmul.f32 %v4868, %v4911
    %v4965 = vmul.f32 %v4869, %v4921
    %v4966 = vmul.f32 %v4870, %v4931
    %v4967 = vmul.f32 %v4871, %v4941
    %v4968 = vmul.f32 %v4872, %v4951
    %v4969 = vmul.f32 %v4873, %v4961
    %v4970 = vld [vmem:[%s4] sm:$0xff]
    %v4971 = vld [vmem:[%s4 + $0x8] sm:$0xff]
    %v4972 = vld [vmem:[%s4 + $0x10] sm:$0xff]
    %v4973 = vld [vmem:[%s4 + $0x18] sm:$0xff]
    %v4974 = vld [vmem:[%s4 + $0x20] sm:$0xff]
    %v4975 = vld [vmem:[%s4 + $0x28] sm:$0xff]
    %v4976 = vld [vmem:[%s4 + $0x30] sm:$0xff]
    %v4977 = vld [vmem:[%s4 + $0x38] sm:$0xff]
    %v4978 = vmul.f32 %v4786, %v4962
    %v4979 = vmul.f32 %v4787, %v4963
    %v4980 = vmul.f32 %v4788, %v4964
    %v4981 = vmul.f32 %v4789, %v4965
    %v4982 = vmul.f32 %v4790, %v4966
    %v4983 = vmul.f32 %v4791, %v4967
    %v4984 = vmul.f32 %v4792, %v4968
    %v4985 = vmul.f32 %v4793, %v4969
    %v4986 = vsub.f32 %v4970, %v4978
    %v4987 = vsub.f32 %v4971, %v4979
    %v4988 = vsub.f32 %v4972, %v4980
    %v4989 = vsub.f32 %v4973, %v4981
    %v4990 = vsub.f32 %v4974, %v4982
    %v4991 = vsub.f32 %v4975, %v4983
    %v4992 = vsub.f32 %v4976, %v4984
    %v4993 = vsub.f32 %v4977, %v4985
    %4995 = vset.pattern.permute.xlu0 0
    %4996 = vperm.xlu0 %4995, %v4962
    %v4997 = vpop.permute.xlu0 %4996
    %5000 = vset.pattern.permute.xlu0 0
    %5001 = vperm.xlu0 %5000, %v4963
    %v5002 = vpop.permute.xlu0 %5001
    %5005 = vset.pattern.permute.xlu0 0
    %5006 = vperm.xlu0 %5005, %v4964
    %v5007 = vpop.permute.xlu0 %5006
    %5010 = vset.pattern.permute.xlu0 0
    %5011 = vperm.xlu0 %5010, %v4965
    %v5012 = vpop.permute.xlu0 %5011
    %5015 = vset.pattern.permute.xlu0 0
    %5016 = vperm.xlu0 %5015, %v4966
    %v5017 = vpop.permute.xlu0 %5016
    %5020 = vset.pattern.permute.xlu0 0
    %5021 = vperm.xlu0 %5020, %v4967
    %v5022 = vpop.permute.xlu0 %5021
    %5025 = vset.pattern.permute.xlu0 0
    %5026 = vperm.xlu0 %5025, %v4968
    %v5027 = vpop.permute.xlu0 %5026
    %5030 = vset.pattern.permute.xlu0 0
    %5031 = vperm.xlu0 %5030, %v4969
    %v5032 = vpop.permute.xlu0 %5031
    %v5034 = vmul.f32 %v4746, %v4997
    %v5035 = vmul.f32 %v4747, %v4997
    %v5036 = vmul.f32 %v4748, %v5002
    %v5037 = vmul.f32 %v4749, %v5002
    %v5038 = vmul.f32 %v4750, %v5007
    %v5039 = vmul.f32 %v4751, %v5007
    %v5040 = vmul.f32 %v4752, %v5012
    %v5041 = vmul.f32 %v4753, %v5012
    %v5042 = vmul.f32 %v4754, %v5017
    %v5043 = vmul.f32 %v4755, %v5017
    %v5044 = vmul.f32 %v4756, %v5022
    %v5045 = vmul.f32 %v4757, %v5022
    %v5046 = vmul.f32 %v4758, %v5027
    %v5047 = vmul.f32 %v4759, %v5027
    %v5048 = vmul.f32 %v4760, %v5032
    %v5049 = vmul.f32 %v4761, %v5032
    %5051 = vset.pattern.permute.xlu0 0
    %5052 = vperm.xlu0 %5051, %v4986
    %v5053 = vpop.permute.xlu0 %5052
    %5056 = vset.pattern.permute.xlu0 0
    %5057 = vperm.xlu0 %5056, %v4987
    %v5058 = vpop.permute.xlu0 %5057
    %5061 = vset.pattern.permute.xlu0 0
    %5062 = vperm.xlu0 %5061, %v4988
    %v5063 = vpop.permute.xlu0 %5062
    %5066 = vset.pattern.permute.xlu0 0
    %5067 = vperm.xlu0 %5066, %v4989
    %v5068 = vpop.permute.xlu0 %5067
    %5071 = vset.pattern.permute.xlu0 0
    %5072 = vperm.xlu0 %5071, %v4990
    %v5073 = vpop.permute.xlu0 %5072
    %5076 = vset.pattern.permute.xlu0 0
    %5077 = vperm.xlu0 %5076, %v4991
    %v5078 = vpop.permute.xlu0 %5077
    %5081 = vset.pattern.permute.xlu0 0
    %5082 = vperm.xlu0 %5081, %v4992
    %v5083 = vpop.permute.xlu0 %5082
    %5086 = vset.pattern.permute.xlu0 0
    %5087 = vperm.xlu0 %5086, %v4993
    %v5088 = vpop.permute.xlu0 %5087
    %v5090 = vadd.f32 %v5034, %v5053
    %v5091 = vadd.f32 %v5035, %v5053
    %v5092 = vadd.f32 %v5036, %v5058
    %v5093 = vadd.f32 %v5037, %v5058
    %v5094 = vadd.f32 %v5038, %v5063
    %v5095 = vadd.f32 %v5039, %v5063
    %v5096 = vadd.f32 %v5040, %v5068
    %v5097 = vadd.f32 %v5041, %v5068
    %v5098 = vadd.f32 %v5042, %v5073
    %v5099 = vadd.f32 %v5043, %v5073
    %v5100 = vadd.f32 %v5044, %v5078
    %v5101 = vadd.f32 %v5045, %v5078
    %v5102 = vadd.f32 %v5046, %v5083
    %v5103 = vadd.f32 %v5047, %v5083
    %v5104 = vadd.f32 %v5048, %v5088
    %v5105 = vadd.f32 %v5049, %v5088
    %v5106 = vmax.f32 %v5090, 0.0
    %v5107 = vmax.f32 %v5091, 0.0
    %v5108 = vmax.f32 %v5092, 0.0
    %v5109 = vmax.f32 %v5093, 0.0
    %v5110 = vmax.f32 %v5094, 0.0
    %v5111 = vmax.f32 %v5095, 0.0
    %v5112 = vmax.f32 %v5096, 0.0
    %v5113 = vmax.f32 %v5097, 0.0
    %v5114 = vmax.f32 %v5098, 0.0
    %v5115 = vmax.f32 %v5099, 0.0
    %v5116 = vmax.f32 %v5100, 0.0
    %v5117 = vmax.f32 %v5101, 0.0
    %v5118 = vmax.f32 %v5102, 0.0
    %v5119 = vmax.f32 %v5103, 0.0
    %v5120 = vmax.f32 %v5104, 0.0
    %v5121 = vmax.f32 %v5105, 0.0
    %5122 = vst [vmem:[#allocation4] sm:$0xff] %v5106
    %5123 = vst [vmem:[#allocation4 + $0x8] sm:$0xff] %v5108
    %5124 = vst [vmem:[#allocation4 + $0x10] sm:$0xff] %v5110
    %5125 = vst [vmem:[#allocation4 + $0x18] sm:$0xff] %v5112
    %5126 = vst [vmem:[#allocation4 + $0x20] sm:$0xff] %v5114
    %5127 = vst [vmem:[#allocation4 + $0x28] sm:$0xff] %v5116
    %5128 = vst [vmem:[#allocation4 + $0x30] sm:$0xff] %v5118
    %5129 = vst [vmem:[#allocation4 + $0x38] sm:$0xff] %v5120
    %s5130 = scalar_lea.vmem [#allocation4], 256
    %5131 = vst [vmem:[%s5130] sm:$0xff] %v5107
    %5132 = vst [vmem:[%s5130 + $0x8] sm:$0xff] %v5109
    %5133 = vst [vmem:[%s5130 + $0x10] sm:$0xff] %v5111
    %5134 = vst [vmem:[%s5130 + $0x18] sm:$0xff] %v5113
    %5135 = vst [vmem:[%s5130 + $0x20] sm:$0xff] %v5115
    %5136 = vst [vmem:[%s5130 + $0x28] sm:$0xff] %v5117
    %5137 = vst [vmem:[%s5130 + $0x30] sm:$0xff] %v5119
    %5138 = vst [vmem:[%s5130 + $0x38] sm:$0xff] %v5121
    %v5139 = vld [vmem:[#allocation3 + $0x80] sm:$0xff]
    %v5140 = vld [vmem:[#allocation3 + $0x88] sm:$0xff]
    %v5141 = vld [vmem:[#allocation3 + $0x90] sm:$0xff]
    %v5142 = vld [vmem:[#allocation3 + $0x98] sm:$0xff]
    %v5143 = vld [vmem:[#allocation3 + $0xa0] sm:$0xff]
    %v5144 = vld [vmem:[#allocation3 + $0xa8] sm:$0xff]
    %v5145 = vld [vmem:[#allocation3 + $0xb0] sm:$0xff]
    %v5146 = vld [vmem:[#allocation3 + $0xb8] sm:$0xff]
    %v5147 = vld [vmem:[#allocation3 + $0xc0] sm:$0xff]
    %v5148 = vld [vmem:[#allocation3 + $0xc8] sm:$0xff]
    %v5149 = vld [vmem:[#allocation3 + $0xd0] sm:$0xff]
    %v5150 = vld [vmem:[#allocation3 + $0xd8] sm:$0xff]
    %v5151 = vld [vmem:[#allocation3 + $0xe0] sm:$0xff]
    %v5152 = vld [vmem:[#allocation3 + $0xe8] sm:$0xff]
    %v5153 = vld [vmem:[#allocation3 + $0xf0] sm:$0xff]
    %v5154 = vld [vmem:[#allocation3 + $0xf8] sm:$0xff]
    %v5155 = vadd.f32 %v5139, %v5140
    %5156 = vadd.xlane.f32.xlu0 %v5155
    %v5157 = vpop.xlane.xlu0 %5156
    %v5158 = vadd.f32 %v5141, %v5142
    %5159 = vadd.xlane.f32.xlu0 %v5158
    %v5160 = vpop.xlane.xlu0 %5159
    %v5161 = vadd.f32 %v5143, %v5144
    %5162 = vadd.xlane.f32.xlu0 %v5161
    %v5163 = vpop.xlane.xlu0 %5162
    %v5164 = vadd.f32 %v5145, %v5146
    %5165 = vadd.xlane.f32.xlu0 %v5164
    %v5166 = vpop.xlane.xlu0 %5165
    %v5167 = vadd.f32 %v5147, %v5148
    %5168 = vadd.xlane.f32.xlu0 %v5167
    %v5169 = vpop.xlane.xlu0 %5168
    %v5170 = vadd.f32 %v5149, %v5150
    %5171 = vadd.xlane.f32.xlu0 %v5170
    %v5172 = vpop.xlane.xlu0 %5171
    %v5173 = vadd.f32 %v5151, %v5152
    %5174 = vadd.xlane.f32.xlu0 %v5173
    %v5175 = vpop.xlane.xlu0 %5174
    %v5176 = vadd.f32 %v5153, %v5154
    %5177 = vadd.xlane.f32.xlu0 %v5176
    %v5178 = vpop.xlane.xlu0 %5177
    %v5179 = vmul.f32 %v5157, 0.00390625
    %v5180 = vmul.f32 %v5160, 0.00390625
    %v5181 = vmul.f32 %v5163, 0.00390625
    %v5182 = vmul.f32 %v5166, 0.00390625
    %v5183 = vmul.f32 %v5169, 0.00390625
    %v5184 = vmul.f32 %v5172, 0.00390625
    %v5185 = vmul.f32 %v5175, 0.00390625
    %v5186 = vmul.f32 %v5178, 0.00390625
    %v5187 = vmul.f32 %v5139, %v5139
    %v5188 = vmul.f32 %v5140, %v5140
    %v5189 = vmul.f32 %v5141, %v5141
    %v5190 = vmul.f32 %v5142, %v5142
    %v5191 = vmul.f32 %v5143, %v5143
    %v5192 = vmul.f32 %v5144, %v5144
    %v5193 = vmul.f32 %v5145, %v5145
    %v5194 = vmul.f32 %v5146, %v5146
    %v5195 = vmul.f32 %v5147, %v5147
    %v5196 = vmul.f32 %v5148, %v5148
    %v5197 = vmul.f32 %v5149, %v5149
    %v5198 = vmul.f32 %v5150, %v5150
    %v5199 = vmul.f32 %v5151, %v5151
    %v5200 = vmul.f32 %v5152, %v5152
    %v5201 = vmul.f32 %v5153, %v5153
    %v5202 = vmul.f32 %v5154, %v5154
    %v5203 = vadd.f32 %v5187, %v5188
    %5204 = vadd.xlane.f32.xlu0 %v5203
    %v5205 = vpop.xlane.xlu0 %5204
    %v5206 = vadd.f32 %v5189, %v5190
    %5207 = vadd.xlane.f32.xlu0 %v5206
    %v5208 = vpop.xlane.xlu0 %5207
    %v5209 = vadd.f32 %v5191, %v5192
    %5210 = vadd.xlane.f32.xlu0 %v5209
    %v5211 = vpop.xlane.xlu0 %5210
    %v5212 = vadd.f32 %v5193, %v5194
    %5213 = vadd.xlane.f32.xlu0 %v5212
    %v5214 = vpop.xlane.xlu0 %5213
    %v5215 = vadd.f32 %v5195, %v5196
    %5216 = vadd.xlane.f32.xlu0 %v5215
    %v5217 = vpop.xlane.xlu0 %5216
    %v5218 = vadd.f32 %v5197, %v5198
    %5219 = vadd.xlane.f32.xlu0 %v5218
    %v5220 = vpop.xlane.xlu0 %5219
    %v5221 = vadd.f32 %v5199, %v5200
    %5222 = vadd.xlane.f32.xlu0 %v5221
    %v5223 = vpop.xlane.xlu0 %5222
    %v5224 = vadd.f32 %v5201, %v5202
    %5225 = vadd.xlane.f32.xlu0 %v5224
    %v5226 = vpop.xlane.xlu0 %5225
    %v5227 = vmul.f32 %v5205, 0.00390625
    %v5228 = vmul.f32 %v5208, 0.00390625
    %v5229 = vmul.f32 %v5211, 0.00390625
    %v5230 = vmul.f32 %v5214, 0.00390625
    %v5231 = vmul.f32 %v5217, 0.00390625
    %v5232 = vmul.f32 %v5220, 0.00390625
    %v5233 = vmul.f32 %v5223, 0.00390625
    %v5234 = vmul.f32 %v5226, 0.00390625
    %v5235 = vmul.f32 %v5179, %v5179
    %v5236 = vmul.f32 %v5180, %v5180
    %v5237 = vmul.f32 %v5181, %v5181
    %v5238 = vmul.f32 %v5182, %v5182
    %v5239 = vmul.f32 %v5183, %v5183
    %v5240 = vmul.f32 %v5184, %v5184
    %v5241 = vmul.f32 %v5185, %v5185
    %v5242 = vmul.f32 %v5186, %v5186
    %v5243 = vsub.f32 %v5227, %v5235
    %v5244 = vsub.f32 %v5228, %v5236
    %v5245 = vsub.f32 %v5229, %v5237
    %v5246 = vsub.f32 %v5230, %v5238
    %v5247 = vsub.f32 %v5231, %v5239
    %v5248 = vsub.f32 %v5232, %v5240
    %v5249 = vsub.f32 %v5233, %v5241
    %v5250 = vsub.f32 %v5234, %v5242
    %v5251 = vmax.f32 %v5243, 0.0
    %v5252 = vmax.f32 %v5244, 0.0
    %v5253 = vmax.f32 %v5245, 0.0
    %v5254 = vmax.f32 %v5246, 0.0
    %v5255 = vmax.f32 %v5247, 0.0
    %v5256 = vmax.f32 %v5248, 0.0
    %v5257 = vmax.f32 %v5249, 0.0
    %v5258 = vmax.f32 %v5250, 0.0
    %v5259 = vld [vmem:[%s3 + $0x40] sm:$0xff]
    %v5260 = vld [vmem:[%s3 + $0x48] sm:$0xff]
    %v5261 = vld [vmem:[%s3 + $0x50] sm:$0xff]
    %v5262 = vld [vmem:[%s3 + $0x58] sm:$0xff]
    %v5263 = vld [vmem:[%s3 + $0x60] sm:$0xff]
    %v5264 = vld [vmem:[%s3 + $0x68] sm:$0xff]
    %v5265 = vld [vmem:[%s3 + $0x70] sm:$0xff]
    %v5266 = vld [vmem:[%s3 + $0x78] sm:$0xff]
    %v5267 = vadd.f32 %v5251, 1e-05
    %v5268 = vadd.f32 %v5252, 1e-05
    %v5269 = vadd.f32 %v5253, 1e-05
    %v5270 = vadd.f32 %v5254, 1e-05
    %v5271 = vadd.f32 %v5255, 1e-05
    %v5272 = vadd.f32 %v5256, 1e-05
    %v5273 = vadd.f32 %v5257, 1e-05
    %v5274 = vadd.f32 %v5258, 1e-05
    %v5275 = vrsqrt.pop %v5267
    %v5276 = vmul.f32 %v5275, %v5267
    %v5277 = vmul.f32 %v5276, %v5275
    %v5278 = vmul.f32 0.5, %v5277
    %v5279 = vsub.f32 1.5, %v5278
    %v5280 = vmul.f32 %v5275, %v5279
    %vm5281 = vweird.f32 %v5267
    %vm5282 = vweird.f32 %v5275
    %vm5283 = vmor %vm5281, %vm5282
    %v5284 = vsel %vm5283, %v5275, %v5280
    %v5285 = vrsqrt.pop %v5268
    %v5286 = vmul.f32 %v5285, %v5268
    %v5287 = vmul.f32 %v5286, %v5285
    %v5288 = vmul.f32 0.5, %v5287
    %v5289 = vsub.f32 1.5, %v5288
    %v5290 = vmul.f32 %v5285, %v5289
    %vm5291 = vweird.f32 %v5268
    %vm5292 = vweird.f32 %v5285
    %vm5293 = vmor %vm5291, %vm5292
    %v5294 = vsel %vm5293, %v5285, %v5290
    %v5295 = vrsqrt.pop %v5269
    %v5296 = vmul.f32 %v5295, %v5269
    %v5297 = vmul.f32 %v5296, %v5295
    %v5298 = vmul.f32 0.5, %v5297
    %v5299 = vsub.f32 1.5, %v5298
    %v5300 = vmul.f32 %v5295, %v5299
    %vm5301 = vweird.f32 %v5269
    %vm5302 = vweird.f32 %v5295
    %vm5303 = vmor %vm5301, %vm5302
    %v5304 = vsel %vm5303, %v5295, %v5300
    %v5305 = vrsqrt.pop %v5270
    %v5306 = vmul.f32 %v5305, %v5270
    %v5307 = vmul.f32 %v5306, %v5305
    %v5308 = vmul.f32 0.5, %v5307
    %v5309 = vsub.f32 1.5, %v5308
    %v5310 = vmul.f32 %v5305, %v5309
    %vm5311 = vweird.f32 %v5270
    %vm5312 = vweird.f32 %v5305
    %vm5313 = vmor %vm5311, %vm5312
    %v5314 = vsel %vm5313, %v5305, %v5310
    %v5315 = vrsqrt.pop %v5271
    %v5316 = vmul.f32 %v5315, %v5271
    %v5317 = vmul.f32 %v5316, %v5315
    %v5318 = vmul.f32 0.5, %v5317
    %v5319 = vsub.f32 1.5, %v5318
    %v5320 = vmul.f32 %v5315, %v5319
    %vm5321 = vweird.f32 %v5271
    %vm5322 = vweird.f32 %v5315
    %vm5323 = vmor %vm5321, %vm5322
    %v5324 = vsel %vm5323, %v5315, %v5320
    %v5325 = vrsqrt.pop %v5272
    %v5326 = vmul.f32 %v5325, %v5272
    %v5327 = vmul.f32 %v5326, %v5325
    %v5328 = vmul.f32 0.5, %v5327
    %v5329 = vsub.f32 1.5, %v5328
    %v5330 = vmul.f32 %v5325, %v5329
    %vm5331 = vweird.f32 %v5272
    %vm5332 = vweird.f32 %v5325
    %vm5333 = vmor %vm5331, %vm5332
    %v5334 = vsel %vm5333, %v5325, %v5330
    %v5335 = vrsqrt.pop %v5273
    %v5336 = vmul.f32 %v5335, %v5273
    %v5337 = vmul.f32 %v5336, %v5335
    %v5338 = vmul.f32 0.5, %v5337
    %v5339 = vsub.f32 1.5, %v5338
    %v5340 = vmul.f32 %v5335, %v5339
    %vm5341 = vweird.f32 %v5273
    %vm5342 = vweird.f32 %v5335
    %vm5343 = vmor %vm5341, %vm5342
    %v5344 = vsel %vm5343, %v5335, %v5340
    %v5345 = vrsqrt.pop %v5274
    %v5346 = vmul.f32 %v5345, %v5274
    %v5347 = vmul.f32 %v5346, %v5345
    %v5348 = vmul.f32 0.5, %v5347
    %v5349 = vsub.f32 1.5, %v5348
    %v5350 = vmul.f32 %v5345, %v5349
    %vm5351 = vweird.f32 %v5274
    %vm5352 = vweird.f32 %v5345
    %vm5353 = vmor %vm5351, %vm5352
    %v5354 = vsel %vm5353, %v5345, %v5350
    %v5355 = vmul.f32 %v5259, %v5284
    %v5356 = vmul.f32 %v5260, %v5294
    %v5357 = vmul.f32 %v5261, %v5304
    %v5358 = vmul.f32 %v5262, %v5314
    %v5359 = vmul.f32 %v5263, %v5324
    %v5360 = vmul.f32 %v5264, %v5334
    %v5361 = vmul.f32 %v5265, %v5344
    %v5362 = vmul.f32 %v5266, %v5354
    %v5363 = vld [vmem:[%s4 + $0x40] sm:$0xff]
    %v5364 = vld [vmem:[%s4 + $0x48] sm:$0xff]
    %v5365 = vld [vmem:[%s4 + $0x50] sm:$0xff]
    %v5366 = vld [vmem:[%s4 + $0x58] sm:$0xff]
    %v5367 = vld [vmem:[%s4 + $0x60] sm:$0xff]
    %v5368 = vld [vmem:[%s4 + $0x68] sm:$0xff]
    %v5369 = vld [vmem:[%s4 + $0x70] sm:$0xff]
    %v5370 = vld [vmem:[%s4 + $0x78] sm:$0xff]
    %v5371 = vmul.f32 %v5179, %v5355
    %v5372 = vmul.f32 %v5180, %v5356
    %v5373 = vmul.f32 %v5181, %v5357
    %v5374 = vmul.f32 %v5182, %v5358
    %v5375 = vmul.f32 %v5183, %v5359
    %v5376 = vmul.f32 %v5184, %v5360
    %v5377 = vmul.f32 %v5185, %v5361
    %v5378 = vmul.f32 %v5186, %v5362
    %v5379 = vsub.f32 %v5363, %v5371
    %v5380 = vsub.f32 %v5364, %v5372
    %v5381 = vsub.f32 %v5365, %v5373
    %v5382 = vsub.f32 %v5366, %v5374
    %v5383 = vsub.f32 %v5367, %v5375
    %v5384 = vsub.f32 %v5368, %v5376
    %v5385 = vsub.f32 %v5369, %v5377
    %v5386 = vsub.f32 %v5370, %v5378
    %5388 = vset.pattern.permute.xlu0 0
    %5389 = vperm.xlu0 %5388, %v5355
    %v5390 = vpop.permute.xlu0 %5389
    %5393 = vset.pattern.permute.xlu0 0
    %5394 = vperm.xlu0 %5393, %v5356
    %v5395 = vpop.permute.xlu0 %5394
    %5398 = vset.pattern.permute.xlu0 0
    %5399 = vperm.xlu0 %5398, %v5357
    %v5400 = vpop.permute.xlu0 %5399
    %5403 = vset.pattern.permute.xlu0 0
    %5404 = vperm.xlu0 %5403, %v5358
    %v5405 = vpop.permute.xlu0 %5404
    %5408 = vset.pattern.permute.xlu0 0
    %5409 = vperm.xlu0 %5408, %v5359
    %v5410 = vpop.permute.xlu0 %5409
    %5413 = vset.pattern.permute.xlu0 0
    %5414 = vperm.xlu0 %5413, %v5360
    %v5415 = vpop.permute.xlu0 %5414
    %5418 = vset.pattern.permute.xlu0 0
    %5419 = vperm.xlu0 %5418, %v5361
    %v5420 = vpop.permute.xlu0 %5419
    %5423 = vset.pattern.permute.xlu0 0
    %5424 = vperm.xlu0 %5423, %v5362
    %v5425 = vpop.permute.xlu0 %5424
    %v5427 = vmul.f32 %v5139, %v5390
    %v5428 = vmul.f32 %v5140, %v5390
    %v5429 = vmul.f32 %v5141, %v5395
    %v5430 = vmul.f32 %v5142, %v5395
    %v5431 = vmul.f32 %v5143, %v5400
    %v5432 = vmul.f32 %v5144, %v5400
    %v5433 = vmul.f32 %v5145, %v5405
    %v5434 = vmul.f32 %v5146, %v5405
    %v5435 = vmul.f32 %v5147, %v5410
    %v5436 = vmul.f32 %v5148, %v5410
    %v5437 = vmul.f32 %v5149, %v5415
    %v5438 = vmul.f32 %v5150, %v5415
    %v5439 = vmul.f32 %v5151, %v5420
    %v5440 = vmul.f32 %v5152, %v5420
    %v5441 = vmul.f32 %v5153, %v5425
    %v5442 = vmul.f32 %v5154, %v5425
    %5444 = vset.pattern.permute.xlu0 0
    %5445 = vperm.xlu0 %5444, %v5379
    %v5446 = vpop.permute.xlu0 %5445
    %5449 = vset.pattern.permute.xlu0 0
    %5450 = vperm.xlu0 %5449, %v5380
    %v5451 = vpop.permute.xlu0 %5450
    %5454 = vset.pattern.permute.xlu0 0
    %5455 = vperm.xlu0 %5454, %v5381
    %v5456 = vpop.permute.xlu0 %5455
    %5459 = vset.pattern.permute.xlu0 0
    %5460 = vperm.xlu0 %5459, %v5382
    %v5461 = vpop.permute.xlu0 %5460
    %5464 = vset.pattern.permute.xlu0 0
    %5465 = vperm.xlu0 %5464, %v5383
    %v5466 = vpop.permute.xlu0 %5465
    %5469 = vset.pattern.permute.xlu0 0
    %5470 = vperm.xlu0 %5469, %v5384
    %v5471 = vpop.permute.xlu0 %5470
    %5474 = vset.pattern.permute.xlu0 0
    %5475 = vperm.xlu0 %5474, %v5385
    %v5476 = vpop.permute.xlu0 %5475
    %5479 = vset.pattern.permute.xlu0 0
    %5480 = vperm.xlu0 %5479, %v5386
    %v5481 = vpop.permute.xlu0 %5480
    %v5483 = vadd.f32 %v5427, %v5446
    %v5484 = vadd.f32 %v5428, %v5446
    %v5485 = vadd.f32 %v5429, %v5451
    %v5486 = vadd.f32 %v5430, %v5451
    %v5487 = vadd.f32 %v5431, %v5456
    %v5488 = vadd.f32 %v5432, %v5456
    %v5489 = vadd.f32 %v5433, %v5461
    %v5490 = vadd.f32 %v5434, %v5461
    %v5491 = vadd.f32 %v5435, %v5466
    %v5492 = vadd.f32 %v5436, %v5466
    %v5493 = vadd.f32 %v5437, %v5471
    %v5494 = vadd.f32 %v5438, %v5471
    %v5495 = vadd.f32 %v5439, %v5476
    %v5496 = vadd.f32 %v5440, %v5476
    %v5497 = vadd.f32 %v5441, %v5481
    %v5498 = vadd.f32 %v5442, %v5481
    %v5499 = vmax.f32 %v5483, 0.0
    %v5500 = vmax.f32 %v5484, 0.0
    %v5501 = vmax.f32 %v5485, 0.0
    %v5502 = vmax.f32 %v5486, 0.0
    %v5503 = vmax.f32 %v5487, 0.0
    %v5504 = vmax.f32 %v5488, 0.0
    %v5505 = vmax.f32 %v5489, 0.0
    %v5506 = vmax.f32 %v5490, 0.0
    %v5507 = vmax.f32 %v5491, 0.0
    %v5508 = vmax.f32 %v5492, 0.0
    %v5509 = vmax.f32 %v5493, 0.0
    %v5510 = vmax.f32 %v5494, 0.0
    %v5511 = vmax.f32 %v5495, 0.0
    %v5512 = vmax.f32 %v5496, 0.0
    %v5513 = vmax.f32 %v5497, 0.0
    %v5514 = vmax.f32 %v5498, 0.0
    %5515 = vst [vmem:[#allocation4 + $0x40] sm:$0xff] %v5499
    %5516 = vst [vmem:[#allocation4 + $0x48] sm:$0xff] %v5501
    %5517 = vst [vmem:[#allocation4 + $0x50] sm:$0xff] %v5503
    %5518 = vst [vmem:[#allocation4 + $0x58] sm:$0xff] %v5505
    %5519 = vst [vmem:[#allocation4 + $0x60] sm:$0xff] %v5507
    %5520 = vst [vmem:[#allocation4 + $0x68] sm:$0xff] %v5509
    %5521 = vst [vmem:[#allocation4 + $0x70] sm:$0xff] %v5511
    %5522 = vst [vmem:[#allocation4 + $0x78] sm:$0xff] %v5513
    %5523 = vst [vmem:[%s5130 + $0x40] sm:$0xff] %v5500
    %5524 = vst [vmem:[%s5130 + $0x48] sm:$0xff] %v5502
    %5525 = vst [vmem:[%s5130 + $0x50] sm:$0xff] %v5504
    %5526 = vst [vmem:[%s5130 + $0x58] sm:$0xff] %v5506
    %5527 = vst [vmem:[%s5130 + $0x60] sm:$0xff] %v5508
    %5528 = vst [vmem:[%s5130 + $0x68] sm:$0xff] %v5510
    %5529 = vst [vmem:[%s5130 + $0x70] sm:$0xff] %v5512
    %5530 = vst [vmem:[%s5130 + $0x78] sm:$0xff] %v5514
    %v5531 = vld [vmem:[#allocation3 + $0x100] sm:$0xff]
    %v5532 = vld [vmem:[#allocation3 + $0x108] sm:$0xff]
    %v5533 = vld [vmem:[#allocation3 + $0x110] sm:$0xff]
    %v5534 = vld [vmem:[#allocation3 + $0x118] sm:$0xff]
    %v5535 = vld [vmem:[#allocation3 + $0x120] sm:$0xff]
    %v5536 = vld [vmem:[#allocation3 + $0x128] sm:$0xff]
    %v5537 = vld [vmem:[#allocation3 + $0x130] sm:$0xff]
    %v5538 = vld [vmem:[#allocation3 + $0x138] sm:$0xff]
    %v5539 = vld [vmem:[#allocation3 + $0x140] sm:$0xff]
    %v5540 = vld [vmem:[#allocation3 + $0x148] sm:$0xff]
    %v5541 = vld [vmem:[#allocation3 + $0x150] sm:$0xff]
    %v5542 = vld [vmem:[#allocation3 + $0x158] sm:$0xff]
    %v5543 = vld [vmem:[#allocation3 + $0x160] sm:$0xff]
    %v5544 = vld [vmem:[#allocation3 + $0x168] sm:$0xff]
    %v5545 = vld [vmem:[#allocation3 + $0x170] sm:$0xff]
    %v5546 = vld [vmem:[#allocation3 + $0x178] sm:$0xff]
    %v5547 = vadd.f32 %v5531, %v5532
    %5548 = vadd.xlane.f32.xlu0 %v5547
    %v5549 = vpop.xlane.xlu0 %5548
    %v5550 = vadd.f32 %v5533, %v5534
    %5551 = vadd.xlane.f32.xlu0 %v5550
    %v5552 = vpop.xlane.xlu0 %5551
    %v5553 = vadd.f32 %v5535, %v5536
    %5554 = vadd.xlane.f32.xlu0 %v5553
    %v5555 = vpop.xlane.xlu0 %5554
    %v5556 = vadd.f32 %v5537, %v5538
    %5557 = vadd.xlane.f32.xlu0 %v5556
    %v5558 = vpop.xlane.xlu0 %5557
    %v5559 = vadd.f32 %v5539, %v5540
    %5560 = vadd.xlane.f32.xlu0 %v5559
    %v5561 = vpop.xlane.xlu0 %5560
    %v5562 = vadd.f32 %v5541, %v5542
    %5563 = vadd.xlane.f32.xlu0 %v5562
    %v5564 = vpop.xlane.xlu0 %5563
    %v5565 = vadd.f32 %v5543, %v5544
    %5566 = vadd.xlane.f32.xlu0 %v5565
    %v5567 = vpop.xlane.xlu0 %5566
    %v5568 = vadd.f32 %v5545, %v5546
    %5569 = vadd.xlane.f32.xlu0 %v5568
    %v5570 = vpop.xlane.xlu0 %5569
    %v5571 = vmul.f32 %v5549, 0.00390625
    %v5572 = vmul.f32 %v5552, 0.00390625
    %v5573 = vmul.f32 %v5555, 0.00390625
    %v5574 = vmul.f32 %v5558, 0.00390625
    %v5575 = vmul.f32 %v5561, 0.00390625
    %v5576 = vmul.f32 %v5564, 0.00390625
    %v5577 = vmul.f32 %v5567, 0.00390625
    %v5578 = vmul.f32 %v5570, 0.00390625
    %v5579 = vmul.f32 %v5531, %v5531
    %v5580 = vmul.f32 %v5532, %v5532
    %v5581 = vmul.f32 %v5533, %v5533
    %v5582 = vmul.f32 %v5534, %v5534
    %v5583 = vmul.f32 %v5535, %v5535
    %v5584 = vmul.f32 %v5536, %v5536
    %v5585 = vmul.f32 %v5537, %v5537
    %v5586 = vmul.f32 %v5538, %v5538
    %v5587 = vmul.f32 %v5539, %v5539
    %v5588 = vmul.f32 %v5540, %v5540
    %v5589 = vmul.f32 %v5541, %v5541
    %v5590 = vmul.f32 %v5542, %v5542
    %v5591 = vmul.f32 %v5543, %v5543
    %v5592 = vmul.f32 %v5544, %v5544
    %v5593 = vmul.f32 %v5545, %v5545
    %v5594 = vmul.f32 %v5546, %v5546
    %v5595 = vadd.f32 %v5579, %v5580
    %5596 = vadd.xlane.f32.xlu0 %v5595
    %v5597 = vpop.xlane.xlu0 %5596
    %v5598 = vadd.f32 %v5581, %v5582
    %5599 = vadd.xlane.f32.xlu0 %v5598
    %v5600 = vpop.xlane.xlu0 %5599
    %v5601 = vadd.f32 %v5583, %v5584
    %5602 = vadd.xlane.f32.xlu0 %v5601
    %v5603 = vpop.xlane.xlu0 %5602
    %v5604 = vadd.f32 %v5585, %v5586
    %5605 = vadd.xlane.f32.xlu0 %v5604
    %v5606 = vpop.xlane.xlu0 %5605
    %v5607 = vadd.f32 %v5587, %v5588
    %5608 = vadd.xlane.f32.xlu0 %v5607
    %v5609 = vpop.xlane.xlu0 %5608
    %v5610 = vadd.f32 %v5589, %v5590
    %5611 = vadd.xlane.f32.xlu0 %v5610
    %v5612 = vpop.xlane.xlu0 %5611
    %v5613 = vadd.f32 %v5591, %v5592
    %5614 = vadd.xlane.f32.xlu0 %v5613
    %v5615 = vpop.xlane.xlu0 %5614
    %v5616 = vadd.f32 %v5593, %v5594
    %5617 = vadd.xlane.f32.xlu0 %v5616
    %v5618 = vpop.xlane.xlu0 %5617
    %v5619 = vmul.f32 %v5597, 0.00390625
    %v5620 = vmul.f32 %v5600, 0.00390625
    %v5621 = vmul.f32 %v5603, 0.00390625
    %v5622 = vmul.f32 %v5606, 0.00390625
    %v5623 = vmul.f32 %v5609, 0.00390625
    %v5624 = vmul.f32 %v5612, 0.00390625
    %v5625 = vmul.f32 %v5615, 0.00390625
    %v5626 = vmul.f32 %v5618, 0.00390625
    %v5627 = vmul.f32 %v5571, %v5571
    %v5628 = vmul.f32 %v5572, %v5572
    %v5629 = vmul.f32 %v5573, %v5573
    %v5630 = vmul.f32 %v5574, %v5574
    %v5631 = vmul.f32 %v5575, %v5575
    %v5632 = vmul.f32 %v5576, %v5576
    %v5633 = vmul.f32 %v5577, %v5577
    %v5634 = vmul.f32 %v5578, %v5578
    %v5635 = vsub.f32 %v5619, %v5627
    %v5636 = vsub.f32 %v5620, %v5628
    %v5637 = vsub.f32 %v5621, %v5629
    %v5638 = vsub.f32 %v5622, %v5630
    %v5639 = vsub.f32 %v5623, %v5631
    %v5640 = vsub.f32 %v5624, %v5632
    %v5641 = vsub.f32 %v5625, %v5633
    %v5642 = vsub.f32 %v5626, %v5634
    %v5643 = vmax.f32 %v5635, 0.0
    %v5644 = vmax.f32 %v5636, 0.0
    %v5645 = vmax.f32 %v5637, 0.0
    %v5646 = vmax.f32 %v5638, 0.0
    %v5647 = vmax.f32 %v5639, 0.0
    %v5648 = vmax.f32 %v5640, 0.0
    %v5649 = vmax.f32 %v5641, 0.0
    %v5650 = vmax.f32 %v5642, 0.0
    %v5651 = vld [vmem:[%s3 + $0x80] sm:$0xff]
    %v5652 = vld [vmem:[%s3 + $0x88] sm:$0xff]
    %v5653 = vld [vmem:[%s3 + $0x90] sm:$0xff]
    %v5654 = vld [vmem:[%s3 + $0x98] sm:$0xff]
    %v5655 = vld [vmem:[%s3 + $0xa0] sm:$0xff]
    %v5656 = vld [vmem:[%s3 + $0xa8] sm:$0xff]
    %v5657 = vld [vmem:[%s3 + $0xb0] sm:$0xff]
    %v5658 = vld [vmem:[%s3 + $0xb8] sm:$0xff]
    %v5659 = vadd.f32 %v5643, 1e-05
    %v5660 = vadd.f32 %v5644, 1e-05
    %v5661 = vadd.f32 %v5645, 1e-05
    %v5662 = vadd.f32 %v5646, 1e-05
    %v5663 = vadd.f32 %v5647, 1e-05
    %v5664 = vadd.f32 %v5648, 1e-05
    %v5665 = vadd.f32 %v5649, 1e-05
    %v5666 = vadd.f32 %v5650, 1e-05
    %v5667 = vrsqrt.pop %v5659
    %v5668 = vmul.f32 %v5667, %v5659
    %v5669 = vmul.f32 %v5668, %v5667
    %v5670 = vmul.f32 0.5, %v5669
    %v5671 = vsub.f32 1.5, %v5670
    %v5672 = vmul.f32 %v5667, %v5671
    %vm5673 = vweird.f32 %v5659
    %vm5674 = vweird.f32 %v5667
    %vm5675 = vmor %vm5673, %vm5674
    %v5676 = vsel %vm5675, %v5667, %v5672
    %v5677 = vrsqrt.pop %v5660
    %v5678 = vmul.f32 %v5677, %v5660
    %v5679 = vmul.f32 %v5678, %v5677
    %v5680 = vmul.f32 0.5, %v5679
    %v5681 = vsub.f32 1.5, %v5680
    %v5682 = vmul.f32 %v5677, %v5681
    %vm5683 = vweird.f32 %v5660
    %vm5684 = vweird.f32 %v5677
    %vm5685 = vmor %vm5683, %vm5684
    %v5686 = vsel %vm5685, %v5677, %v5682
    %v5687 = vrsqrt.pop %v5661
    %v5688 = vmul.f32 %v5687, %v5661
    %v5689 = vmul.f32 %v5688, %v5687
    %v5690 = vmul.f32 0.5, %v5689
    %v5691 = vsub.f32 1.5, %v5690
    %v5692 = vmul.f32 %v5687, %v5691
    %vm5693 = vweird.f32 %v5661
    %vm5694 = vweird.f32 %v5687
    %vm5695 = vmor %vm5693, %vm5694
    %v5696 = vsel %vm5695, %v5687, %v5692
    %v5697 = vrsqrt.pop %v5662
    %v5698 = vmul.f32 %v5697, %v5662
    %v5699 = vmul.f32 %v5698, %v5697
    %v5700 = vmul.f32 0.5, %v5699
    %v5701 = vsub.f32 1.5, %v5700
    %v5702 = vmul.f32 %v5697, %v5701
    %vm5703 = vweird.f32 %v5662
    %vm5704 = vweird.f32 %v5697
    %vm5705 = vmor %vm5703, %vm5704
    %v5706 = vsel %vm5705, %v5697, %v5702
    %v5707 = vrsqrt.pop %v5663
    %v5708 = vmul.f32 %v5707, %v5663
    %v5709 = vmul.f32 %v5708, %v5707
    %v5710 = vmul.f32 0.5, %v5709
    %v5711 = vsub.f32 1.5, %v5710
    %v5712 = vmul.f32 %v5707, %v5711
    %vm5713 = vweird.f32 %v5663
    %vm5714 = vweird.f32 %v5707
    %vm5715 = vmor %vm5713, %vm5714
    %v5716 = vsel %vm5715, %v5707, %v5712
    %v5717 = vrsqrt.pop %v5664
    %v5718 = vmul.f32 %v5717, %v5664
    %v5719 = vmul.f32 %v5718, %v5717
    %v5720 = vmul.f32 0.5, %v5719
    %v5721 = vsub.f32 1.5, %v5720
    %v5722 = vmul.f32 %v5717, %v5721
    %vm5723 = vweird.f32 %v5664
    %vm5724 = vweird.f32 %v5717
    %vm5725 = vmor %vm5723, %vm5724
    %v5726 = vsel %vm5725, %v5717, %v5722
    %v5727 = vrsqrt.pop %v5665
    %v5728 = vmul.f32 %v5727, %v5665
    %v5729 = vmul.f32 %v5728, %v5727
    %v5730 = vmul.f32 0.5, %v5729
    %v5731 = vsub.f32 1.5, %v5730
    %v5732 = vmul.f32 %v5727, %v5731
    %vm5733 = vweird.f32 %v5665
    %vm5734 = vweird.f32 %v5727
    %vm5735 = vmor %vm5733, %vm5734
    %v5736 = vsel %vm5735, %v5727, %v5732
    %v5737 = vrsqrt.pop %v5666
    %v5738 = vmul.f32 %v5737, %v5666
    %v5739 = vmul.f32 %v5738, %v5737
    %v5740 = vmul.f32 0.5, %v5739
    %v5741 = vsub.f32 1.5, %v5740
    %v5742 = vmul.f32 %v5737, %v5741
    %vm5743 = vweird.f32 %v5666
    %vm5744 = vweird.f32 %v5737
    %vm5745 = vmor %vm5743, %vm5744
    %v5746 = vsel %vm5745, %v5737, %v5742
    %v5747 = vmul.f32 %v5651, %v5676
    %v5748 = vmul.f32 %v5652, %v5686
    %v5749 = vmul.f32 %v5653, %v5696
    %v5750 = vmul.f32 %v5654, %v5706
    %v5751 = vmul.f32 %v5655, %v5716
    %v5752 = vmul.f32 %v5656, %v5726
    %v5753 = vmul.f32 %v5657, %v5736
    %v5754 = vmul.f32 %v5658, %v5746
    %v5755 = vld [vmem:[%s4 + $0x80] sm:$0xff]
    %v5756 = vld [vmem:[%s4 + $0x88] sm:$0xff]
    %v5757 = vld [vmem:[%s4 + $0x90] sm:$0xff]
    %v5758 = vld [vmem:[%s4 + $0x98] sm:$0xff]
    %v5759 = vld [vmem:[%s4 + $0xa0] sm:$0xff]
    %v5760 = vld [vmem:[%s4 + $0xa8] sm:$0xff]
    %v5761 = vld [vmem:[%s4 + $0xb0] sm:$0xff]
    %v5762 = vld [vmem:[%s4 + $0xb8] sm:$0xff]
    %v5763 = vmul.f32 %v5571, %v5747
    %v5764 = vmul.f32 %v5572, %v5748
    %v5765 = vmul.f32 %v5573, %v5749
    %v5766 = vmul.f32 %v5574, %v5750
    %v5767 = vmul.f32 %v5575, %v5751
    %v5768 = vmul.f32 %v5576, %v5752
    %v5769 = vmul.f32 %v5577, %v5753
    %v5770 = vmul.f32 %v5578, %v5754
    %v5771 = vsub.f32 %v5755, %v5763
    %v5772 = vsub.f32 %v5756, %v5764
    %v5773 = vsub.f32 %v5757, %v5765
    %v5774 = vsub.f32 %v5758, %v5766
    %v5775 = vsub.f32 %v5759, %v5767
    %v5776 = vsub.f32 %v5760, %v5768
    %v5777 = vsub.f32 %v5761, %v5769
    %v5778 = vsub.f32 %v5762, %v5770
    %5780 = vset.pattern.permute.xlu0 0
    %5781 = vperm.xlu0 %5780, %v5747
    %v5782 = vpop.permute.xlu0 %5781
    %5785 = vset.pattern.permute.xlu0 0
    %5786 = vperm.xlu0 %5785, %v5748
    %v5787 = vpop.permute.xlu0 %5786
    %5790 = vset.pattern.permute.xlu0 0
    %5791 = vperm.xlu0 %5790, %v5749
    %v5792 = vpop.permute.xlu0 %5791
    %5795 = vset.pattern.permute.xlu0 0
    %5796 = vperm.xlu0 %5795, %v5750
    %v5797 = vpop.permute.xlu0 %5796
    %5800 = vset.pattern.permute.xlu0 0
    %5801 = vperm.xlu0 %5800, %v5751
    %v5802 = vpop.permute.xlu0 %5801
    %5805 = vset.pattern.permute.xlu0 0
    %5806 = vperm.xlu0 %5805, %v5752
    %v5807 = vpop.permute.xlu0 %5806
    %5810 = vset.pattern.permute.xlu0 0
    %5811 = vperm.xlu0 %5810, %v5753
    %v5812 = vpop.permute.xlu0 %5811
    %5815 = vset.pattern.permute.xlu0 0
    %5816 = vperm.xlu0 %5815, %v5754
    %v5817 = vpop.permute.xlu0 %5816
    %v5819 = vmul.f32 %v5531, %v5782
    %v5820 = vmul.f32 %v5532, %v5782
    %v5821 = vmul.f32 %v5533, %v5787
    %v5822 = vmul.f32 %v5534, %v5787
    %v5823 = vmul.f32 %v5535, %v5792
    %v5824 = vmul.f32 %v5536, %v5792
    %v5825 = vmul.f32 %v5537, %v5797
    %v5826 = vmul.f32 %v5538, %v5797
    %v5827 = vmul.f32 %v5539, %v5802
    %v5828 = vmul.f32 %v5540, %v5802
    %v5829 = vmul.f32 %v5541, %v5807
    %v5830 = vmul.f32 %v5542, %v5807
    %v5831 = vmul.f32 %v5543, %v5812
    %v5832 = vmul.f32 %v5544, %v5812
    %v5833 = vmul.f32 %v5545, %v5817
    %v5834 = vmul.f32 %v5546, %v5817
    %5836 = vset.pattern.permute.xlu0 0
    %5837 = vperm.xlu0 %5836, %v5771
    %v5838 = vpop.permute.xlu0 %5837
    %5841 = vset.pattern.permute.xlu0 0
    %5842 = vperm.xlu0 %5841, %v5772
    %v5843 = vpop.permute.xlu0 %5842
    %5846 = vset.pattern.permute.xlu0 0
    %5847 = vperm.xlu0 %5846, %v5773
    %v5848 = vpop.permute.xlu0 %5847
    %5851 = vset.pattern.permute.xlu0 0
    %5852 = vperm.xlu0 %5851, %v5774
    %v5853 = vpop.permute.xlu0 %5852
    %5856 = vset.pattern.permute.xlu0 0
    %5857 = vperm.xlu0 %5856, %v5775
    %v5858 = vpop.permute.xlu0 %5857
    %5861 = vset.pattern.permute.xlu0 0
    %5862 = vperm.xlu0 %5861, %v5776
    %v5863 = vpop.permute.xlu0 %5862
    %5866 = vset.pattern.permute.xlu0 0
    %5867 = vperm.xlu0 %5866, %v5777
    %v5868 = vpop.permute.xlu0 %5867
    %5871 = vset.pattern.permute.xlu0 0
    %5872 = vperm.xlu0 %5871, %v5778
    %v5873 = vpop.permute.xlu0 %5872
    %v5875 = vadd.f32 %v5819, %v5838
    %v5876 = vadd.f32 %v5820, %v5838
    %v5877 = vadd.f32 %v5821, %v5843
    %v5878 = vadd.f32 %v5822, %v5843
    %v5879 = vadd.f32 %v5823, %v5848
    %v5880 = vadd.f32 %v5824, %v5848
    %v5881 = vadd.f32 %v5825, %v5853
    %v5882 = vadd.f32 %v5826, %v5853
    %v5883 = vadd.f32 %v5827, %v5858
    %v5884 = vadd.f32 %v5828, %v5858
    %v5885 = vadd.f32 %v5829, %v5863
    %v5886 = vadd.f32 %v5830, %v5863
    %v5887 = vadd.f32 %v5831, %v5868
    %v5888 = vadd.f32 %v5832, %v5868
    %v5889 = vadd.f32 %v5833, %v5873
    %v5890 = vadd.f32 %v5834, %v5873
    %v5891 = vmax.f32 %v5875, 0.0
    %v5892 = vmax.f32 %v5876, 0.0
    %v5893 = vmax.f32 %v5877, 0.0
    %v5894 = vmax.f32 %v5878, 0.0
    %v5895 = vmax.f32 %v5879, 0.0
    %v5896 = vmax.f32 %v5880, 0.0
    %v5897 = vmax.f32 %v5881, 0.0
    %v5898 = vmax.f32 %v5882, 0.0
    %v5899 = vmax.f32 %v5883, 0.0
    %v5900 = vmax.f32 %v5884, 0.0
    %v5901 = vmax.f32 %v5885, 0.0
    %v5902 = vmax.f32 %v5886, 0.0
    %v5903 = vmax.f32 %v5887, 0.0
    %v5904 = vmax.f32 %v5888, 0.0
    %v5905 = vmax.f32 %v5889, 0.0
    %v5906 = vmax.f32 %v5890, 0.0
    %5907 = vst [vmem:[#allocation4 + $0x80] sm:$0xff] %v5891
    %5908 = vst [vmem:[#allocation4 + $0x88] sm:$0xff] %v5893
    %5909 = vst [vmem:[#allocation4 + $0x90] sm:$0xff] %v5895
    %5910 = vst [vmem:[#allocation4 + $0x98] sm:$0xff] %v5897
    %5911 = vst [vmem:[#allocation4 + $0xa0] sm:$0xff] %v5899
    %5912 = vst [vmem:[#allocation4 + $0xa8] sm:$0xff] %v5901
    %5913 = vst [vmem:[#allocation4 + $0xb0] sm:$0xff] %v5903
    %5914 = vst [vmem:[#allocation4 + $0xb8] sm:$0xff] %v5905
    %5915 = vst [vmem:[%s5130 + $0x80] sm:$0xff] %v5892
    %5916 = vst [vmem:[%s5130 + $0x88] sm:$0xff] %v5894
    %5917 = vst [vmem:[%s5130 + $0x90] sm:$0xff] %v5896
    %5918 = vst [vmem:[%s5130 + $0x98] sm:$0xff] %v5898
    %5919 = vst [vmem:[%s5130 + $0xa0] sm:$0xff] %v5900
    %5920 = vst [vmem:[%s5130 + $0xa8] sm:$0xff] %v5902
    %5921 = vst [vmem:[%s5130 + $0xb0] sm:$0xff] %v5904
    %5922 = vst [vmem:[%s5130 + $0xb8] sm:$0xff] %v5906
    %v5923 = vld [vmem:[#allocation3 + $0x180] sm:$0xff]
    %v5924 = vld [vmem:[#allocation3 + $0x188] sm:$0xff]
    %v5925 = vld [vmem:[#allocation3 + $0x190] sm:$0xff]
    %v5926 = vld [vmem:[#allocation3 + $0x198] sm:$0xff]
    %v5927 = vld [vmem:[#allocation3 + $0x1a0] sm:$0xff]
    %v5928 = vld [vmem:[#allocation3 + $0x1a8] sm:$0xff]
    %v5929 = vld [vmem:[#allocation3 + $0x1b0] sm:$0xff]
    %v5930 = vld [vmem:[#allocation3 + $0x1b8] sm:$0xff]
    %v5931 = vld [vmem:[#allocation3 + $0x1c0] sm:$0xff]
    %v5932 = vld [vmem:[#allocation3 + $0x1c8] sm:$0xff]
    %v5933 = vld [vmem:[#allocation3 + $0x1d0] sm:$0xff]
    %v5934 = vld [vmem:[#allocation3 + $0x1d8] sm:$0xff]
    %v5935 = vld [vmem:[#allocation3 + $0x1e0] sm:$0xff]
    %v5936 = vld [vmem:[#allocation3 + $0x1e8] sm:$0xff]
    %v5937 = vld [vmem:[#allocation3 + $0x1f0] sm:$0xff]
    %v5938 = vld [vmem:[#allocation3 + $0x1f8] sm:$0xff]
    %v5939 = vadd.f32 %v5923, %v5924
    %5940 = vadd.xlane.f32.xlu0 %v5939
    %v5941 = vpop.xlane.xlu0 %5940
    %v5942 = vadd.f32 %v5925, %v5926
    %5943 = vadd.xlane.f32.xlu0 %v5942
    %v5944 = vpop.xlane.xlu0 %5943
    %v5945 = vadd.f32 %v5927, %v5928
    %5946 = vadd.xlane.f32.xlu0 %v5945
    %v5947 = vpop.xlane.xlu0 %5946
    %v5948 = vadd.f32 %v5929, %v5930
    %5949 = vadd.xlane.f32.xlu0 %v5948
    %v5950 = vpop.xlane.xlu0 %5949
    %v5951 = vadd.f32 %v5931, %v5932
    %5952 = vadd.xlane.f32.xlu0 %v5951
    %v5953 = vpop.xlane.xlu0 %5952
    %v5954 = vadd.f32 %v5933, %v5934
    %5955 = vadd.xlane.f32.xlu0 %v5954
    %v5956 = vpop.xlane.xlu0 %5955
    %v5957 = vadd.f32 %v5935, %v5936
    %5958 = vadd.xlane.f32.xlu0 %v5957
    %v5959 = vpop.xlane.xlu0 %5958
    %v5960 = vadd.f32 %v5937, %v5938
    %5961 = vadd.xlane.f32.xlu0 %v5960
    %v5962 = vpop.xlane.xlu0 %5961
    %v5963 = vmul.f32 %v5941, 0.00390625
    %v5964 = vmul.f32 %v5944, 0.00390625
    %v5965 = vmul.f32 %v5947, 0.00390625
    %v5966 = vmul.f32 %v5950, 0.00390625
    %v5967 = vmul.f32 %v5953, 0.00390625
    %v5968 = vmul.f32 %v5956, 0.00390625
    %v5969 = vmul.f32 %v5959, 0.00390625
    %v5970 = vmul.f32 %v5962, 0.00390625
    %v5971 = vmul.f32 %v5923, %v5923
    %v5972 = vmul.f32 %v5924, %v5924
    %v5973 = vmul.f32 %v5925, %v5925
    %v5974 = vmul.f32 %v5926, %v5926
    %v5975 = vmul.f32 %v5927, %v5927
    %v5976 = vmul.f32 %v5928, %v5928
    %v5977 = vmul.f32 %v5929, %v5929
    %v5978 = vmul.f32 %v5930, %v5930
    %v5979 = vmul.f32 %v5931, %v5931
    %v5980 = vmul.f32 %v5932, %v5932
    %v5981 = vmul.f32 %v5933, %v5933
    %v5982 = vmul.f32 %v5934, %v5934
    %v5983 = vmul.f32 %v5935, %v5935
    %v5984 = vmul.f32 %v5936, %v5936
    %v5985 = vmul.f32 %v5937, %v5937
    %v5986 = vmul.f32 %v5938, %v5938
    %v5987 = vadd.f32 %v5971, %v5972
    %5988 = vadd.xlane.f32.xlu0 %v5987
    %v5989 = vpop.xlane.xlu0 %5988
    %v5990 = vadd.f32 %v5973, %v5974
    %5991 = vadd.xlane.f32.xlu0 %v5990
    %v5992 = vpop.xlane.xlu0 %5991
    %v5993 = vadd.f32 %v5975, %v5976
    %5994 = vadd.xlane.f32.xlu0 %v5993
    %v5995 = vpop.xlane.xlu0 %5994
    %v5996 = vadd.f32 %v5977, %v5978
    %5997 = vadd.xlane.f32.xlu0 %v5996
    %v5998 = vpop.xlane.xlu0 %5997
    %v5999 = vadd.f32 %v5979, %v5980
    %6000 = vadd.xlane.f32.xlu0 %v5999
    %v6001 = vpop.xlane.xlu0 %6000
    %v6002 = vadd.f32 %v5981, %v5982
    %6003 = vadd.xlane.f32.xlu0 %v6002
    %v6004 = vpop.xlane.xlu0 %6003
    %v6005 = vadd.f32 %v5983, %v5984
    %6006 = vadd.xlane.f32.xlu0 %v6005
    %v6007 = vpop.xlane.xlu0 %6006
    %v6008 = vadd.f32 %v5985, %v5986
    %6009 = vadd.xlane.f32.xlu0 %v6008
    %v6010 = vpop.xlane.xlu0 %6009
    %v6011 = vmul.f32 %v5989, 0.00390625
    %v6012 = vmul.f32 %v5992, 0.00390625
    %v6013 = vmul.f32 %v5995, 0.00390625
    %v6014 = vmul.f32 %v5998, 0.00390625
    %v6015 = vmul.f32 %v6001, 0.00390625
    %v6016 = vmul.f32 %v6004, 0.00390625
    %v6017 = vmul.f32 %v6007, 0.00390625
    %v6018 = vmul.f32 %v6010, 0.00390625
    %v6019 = vmul.f32 %v5963, %v5963
    %v6020 = vmul.f32 %v5964, %v5964
    %v6021 = vmul.f32 %v5965, %v5965
    %v6022 = vmul.f32 %v5966, %v5966
    %v6023 = vmul.f32 %v5967, %v5967
    %v6024 = vmul.f32 %v5968, %v5968
    %v6025 = vmul.f32 %v5969, %v5969
    %v6026 = vmul.f32 %v5970, %v5970
    %v6027 = vsub.f32 %v6011, %v6019
    %v6028 = vsub.f32 %v6012, %v6020
    %v6029 = vsub.f32 %v6013, %v6021
    %v6030 = vsub.f32 %v6014, %v6022
    %v6031 = vsub.f32 %v6015, %v6023
    %v6032 = vsub.f32 %v6016, %v6024
    %v6033 = vsub.f32 %v6017, %v6025
    %v6034 = vsub.f32 %v6018, %v6026
    %v6035 = vmax.f32 %v6027, 0.0
    %v6036 = vmax.f32 %v6028, 0.0
    %v6037 = vmax.f32 %v6029, 0.0
    %v6038 = vmax.f32 %v6030, 0.0
    %v6039 = vmax.f32 %v6031, 0.0
    %v6040 = vmax.f32 %v6032, 0.0
    %v6041 = vmax.f32 %v6033, 0.0
    %v6042 = vmax.f32 %v6034, 0.0
    %v6043 = vld [vmem:[%s3 + $0xc0] sm:$0xff]
    %v6044 = vld [vmem:[%s3 + $0xc8] sm:$0xff]
    %v6045 = vld [vmem:[%s3 + $0xd0] sm:$0xff]
    %v6046 = vld [vmem:[%s3 + $0xd8] sm:$0xff]
    %v6047 = vld [vmem:[%s3 + $0xe0] sm:$0xff]
    %v6048 = vld [vmem:[%s3 + $0xe8] sm:$0xff]
    %v6049 = vld [vmem:[%s3 + $0xf0] sm:$0xff]
    %v6050 = vld [vmem:[%s3 + $0xf8] sm:$0xff]
    %v6051 = vadd.f32 %v6035, 1e-05
    %v6052 = vadd.f32 %v6036, 1e-05
    %v6053 = vadd.f32 %v6037, 1e-05
    %v6054 = vadd.f32 %v6038, 1e-05
    %v6055 = vadd.f32 %v6039, 1e-05
    %v6056 = vadd.f32 %v6040, 1e-05
    %v6057 = vadd.f32 %v6041, 1e-05
    %v6058 = vadd.f32 %v6042, 1e-05
    %v6059 = vrsqrt.pop %v6051
    %v6060 = vmul.f32 %v6059, %v6051
    %v6061 = vmul.f32 %v6060, %v6059
    %v6062 = vmul.f32 0.5, %v6061
    %v6063 = vsub.f32 1.5, %v6062
    %v6064 = vmul.f32 %v6059, %v6063
    %vm6065 = vweird.f32 %v6051
    %vm6066 = vweird.f32 %v6059
    %vm6067 = vmor %vm6065, %vm6066
    %v6068 = vsel %vm6067, %v6059, %v6064
    %v6069 = vrsqrt.pop %v6052
    %v6070 = vmul.f32 %v6069, %v6052
    %v6071 = vmul.f32 %v6070, %v6069
    %v6072 = vmul.f32 0.5, %v6071
    %v6073 = vsub.f32 1.5, %v6072
    %v6074 = vmul.f32 %v6069, %v6073
    %vm6075 = vweird.f32 %v6052
    %vm6076 = vweird.f32 %v6069
    %vm6077 = vmor %vm6075, %vm6076
    %v6078 = vsel %vm6077, %v6069, %v6074
    %v6079 = vrsqrt.pop %v6053
    %v6080 = vmul.f32 %v6079, %v6053
    %v6081 = vmul.f32 %v6080, %v6079
    %v6082 = vmul.f32 0.5, %v6081
    %v6083 = vsub.f32 1.5, %v6082
    %v6084 = vmul.f32 %v6079, %v6083
    %vm6085 = vweird.f32 %v6053
    %vm6086 = vweird.f32 %v6079
    %vm6087 = vmor %vm6085, %vm6086
    %v6088 = vsel %vm6087, %v6079, %v6084
    %v6089 = vrsqrt.pop %v6054
    %v6090 = vmul.f32 %v6089, %v6054
    %v6091 = vmul.f32 %v6090, %v6089
    %v6092 = vmul.f32 0.5, %v6091
    %v6093 = vsub.f32 1.5, %v6092
    %v6094 = vmul.f32 %v6089, %v6093
    %vm6095 = vweird.f32 %v6054
    %vm6096 = vweird.f32 %v6089
    %vm6097 = vmor %vm6095, %vm6096
    %v6098 = vsel %vm6097, %v6089, %v6094
    %v6099 = vrsqrt.pop %v6055
    %v6100 = vmul.f32 %v6099, %v6055
    %v6101 = vmul.f32 %v6100, %v6099
    %v6102 = vmul.f32 0.5, %v6101
    %v6103 = vsub.f32 1.5, %v6102
    %v6104 = vmul.f32 %v6099, %v6103
    %vm6105 = vweird.f32 %v6055
    %vm6106 = vweird.f32 %v6099
    %vm6107 = vmor %vm6105, %vm6106
    %v6108 = vsel %vm6107, %v6099, %v6104
    %v6109 = vrsqrt.pop %v6056
    %v6110 = vmul.f32 %v6109, %v6056
    %v6111 = vmul.f32 %v6110, %v6109
    %v6112 = vmul.f32 0.5, %v6111
    %v6113 = vsub.f32 1.5, %v6112
    %v6114 = vmul.f32 %v6109, %v6113
    %vm6115 = vweird.f32 %v6056
    %vm6116 = vweird.f32 %v6109
    %vm6117 = vmor %vm6115, %vm6116
    %v6118 = vsel %vm6117, %v6109, %v6114
    %v6119 = vrsqrt.pop %v6057
    %v6120 = vmul.f32 %v6119, %v6057
    %v6121 = vmul.f32 %v6120, %v6119
    %v6122 = vmul.f32 0.5, %v6121
    %v6123 = vsub.f32 1.5, %v6122
    %v6124 = vmul.f32 %v6119, %v6123
    %vm6125 = vweird.f32 %v6057
    %vm6126 = vweird.f32 %v6119
    %vm6127 = vmor %vm6125, %vm6126
    %v6128 = vsel %vm6127, %v6119, %v6124
    %v6129 = vrsqrt.pop %v6058
    %v6130 = vmul.f32 %v6129, %v6058
    %v6131 = vmul.f32 %v6130, %v6129
    %v6132 = vmul.f32 0.5, %v6131
    %v6133 = vsub.f32 1.5, %v6132
    %v6134 = vmul.f32 %v6129, %v6133
    %vm6135 = vweird.f32 %v6058
    %vm6136 = vweird.f32 %v6129
    %vm6137 = vmor %vm6135, %vm6136
    %v6138 = vsel %vm6137, %v6129, %v6134
    %v6139 = vmul.f32 %v6043, %v6068
    %v6140 = vmul.f32 %v6044, %v6078
    %v6141 = vmul.f32 %v6045, %v6088
    %v6142 = vmul.f32 %v6046, %v6098
    %v6143 = vmul.f32 %v6047, %v6108
    %v6144 = vmul.f32 %v6048, %v6118
    %v6145 = vmul.f32 %v6049, %v6128
    %v6146 = vmul.f32 %v6050, %v6138
    %v6147 = vld [vmem:[%s4 + $0xc0] sm:$0xff]
    %v6148 = vld [vmem:[%s4 + $0xc8] sm:$0xff]
    %v6149 = vld [vmem:[%s4 + $0xd0] sm:$0xff]
    %v6150 = vld [vmem:[%s4 + $0xd8] sm:$0xff]
    %v6151 = vld [vmem:[%s4 + $0xe0] sm:$0xff]
    %v6152 = vld [vmem:[%s4 + $0xe8] sm:$0xff]
    %v6153 = vld [vmem:[%s4 + $0xf0] sm:$0xff]
    %v6154 = vld [vmem:[%s4 + $0xf8] sm:$0xff]
    %v6155 = vmul.f32 %v5963, %v6139
    %v6156 = vmul.f32 %v5964, %v6140
    %v6157 = vmul.f32 %v5965, %v6141
    %v6158 = vmul.f32 %v5966, %v6142
    %v6159 = vmul.f32 %v5967, %v6143
    %v6160 = vmul.f32 %v5968, %v6144
    %v6161 = vmul.f32 %v5969, %v6145
    %v6162 = vmul.f32 %v5970, %v6146
    %v6163 = vsub.f32 %v6147, %v6155
    %v6164 = vsub.f32 %v6148, %v6156
    %v6165 = vsub.f32 %v6149, %v6157
    %v6166 = vsub.f32 %v6150, %v6158
    %v6167 = vsub.f32 %v6151, %v6159
    %v6168 = vsub.f32 %v6152, %v6160
    %v6169 = vsub.f32 %v6153, %v6161
    %v6170 = vsub.f32 %v6154, %v6162
    %6172 = vset.pattern.permute.xlu0 0
    %6173 = vperm.xlu0 %6172, %v6139
    %v6174 = vpop.permute.xlu0 %6173
    %6177 = vset.pattern.permute.xlu0 0
    %6178 = vperm.xlu0 %6177, %v6140
    %v6179 = vpop.permute.xlu0 %6178
    %6182 = vset.pattern.permute.xlu0 0
    %6183 = vperm.xlu0 %6182, %v6141
    %v6184 = vpop.permute.xlu0 %6183
    %6187 = vset.pattern.permute.xlu0 0
    %6188 = vperm.xlu0 %6187, %v6142
    %v6189 = vpop.permute.xlu0 %6188
    %6192 = vset.pattern.permute.xlu0 0
    %6193 = vperm.xlu0 %6192, %v6143
    %v6194 = vpop.permute.xlu0 %6193
    %6197 = vset.pattern.permute.xlu0 0
    %6198 = vperm.xlu0 %6197, %v6144
    %v6199 = vpop.permute.xlu0 %6198
    %6202 = vset.pattern.permute.xlu0 0
    %6203 = vperm.xlu0 %6202, %v6145
    %v6204 = vpop.permute.xlu0 %6203
    %6207 = vset.pattern.permute.xlu0 0
    %6208 = vperm.xlu0 %6207, %v6146
    %v6209 = vpop.permute.xlu0 %6208
    %v6211 = vmul.f32 %v5923, %v6174
    %v6212 = vmul.f32 %v5924, %v6174
    %v6213 = vmul.f32 %v5925, %v6179
    %v6214 = vmul.f32 %v5926, %v6179
    %v6215 = vmul.f32 %v5927, %v6184
    %v6216 = vmul.f32 %v5928, %v6184
    %v6217 = vmul.f32 %v5929, %v6189
    %v6218 = vmul.f32 %v5930, %v6189
    %v6219 = vmul.f32 %v5931, %v6194
    %v6220 = vmul.f32 %v5932, %v6194
    %v6221 = vmul.f32 %v5933, %v6199
    %v6222 = vmul.f32 %v5934, %v6199
    %v6223 = vmul.f32 %v5935, %v6204
    %v6224 = vmul.f32 %v5936, %v6204
    %v6225 = vmul.f32 %v5937, %v6209
    %v6226 = vmul.f32 %v5938, %v6209
    %6228 = vset.pattern.permute.xlu0 0
    %6229 = vperm.xlu0 %6228, %v6163
    %v6230 = vpop.permute.xlu0 %6229
    %6233 = vset.pattern.permute.xlu0 0
    %6234 = vperm.xlu0 %6233, %v6164
    %v6235 = vpop.permute.xlu0 %6234
    %6238 = vset.pattern.permute.xlu0 0
    %6239 = vperm.xlu0 %6238, %v6165
    %v6240 = vpop.permute.xlu0 %6239
    %6243 = vset.pattern.permute.xlu0 0
    %6244 = vperm.xlu0 %6243, %v6166
    %v6245 = vpop.permute.xlu0 %6244
    %6248 = vset.pattern.permute.xlu0 0
    %6249 = vperm.xlu0 %6248, %v6167
    %v6250 = vpop.permute.xlu0 %6249
    %6253 = vset.pattern.permute.xlu0 0
    %6254 = vperm.xlu0 %6253, %v6168
    %v6255 = vpop.permute.xlu0 %6254
    %6258 = vset.pattern.permute.xlu0 0
    %6259 = vperm.xlu0 %6258, %v6169
    %v6260 = vpop.permute.xlu0 %6259
    %6263 = vset.pattern.permute.xlu0 0
    %6264 = vperm.xlu0 %6263, %v6170
    %v6265 = vpop.permute.xlu0 %6264
    %v6267 = vadd.f32 %v6211, %v6230
    %v6268 = vadd.f32 %v6212, %v6230
    %v6269 = vadd.f32 %v6213, %v6235
    %v6270 = vadd.f32 %v6214, %v6235
    %v6271 = vadd.f32 %v6215, %v6240
    %v6272 = vadd.f32 %v6216, %v6240
    %v6273 = vadd.f32 %v6217, %v6245
    %v6274 = vadd.f32 %v6218, %v6245
    %v6275 = vadd.f32 %v6219, %v6250
    %v6276 = vadd.f32 %v6220, %v6250
    %v6277 = vadd.f32 %v6221, %v6255
    %v6278 = vadd.f32 %v6222, %v6255
    %v6279 = vadd.f32 %v6223, %v6260
    %v6280 = vadd.f32 %v6224, %v6260
    %v6281 = vadd.f32 %v6225, %v6265
    %v6282 = vadd.f32 %v6226, %v6265
    %v6283 = vmax.f32 %v6267, 0.0
    %v6284 = vmax.f32 %v6268, 0.0
    %v6285 = vmax.f32 %v6269, 0.0
    %v6286 = vmax.f32 %v6270, 0.0
    %v6287 = vmax.f32 %v6271, 0.0
    %v6288 = vmax.f32 %v6272, 0.0
    %v6289 = vmax.f32 %v6273, 0.0
    %v6290 = vmax.f32 %v6274, 0.0
    %v6291 = vmax.f32 %v6275, 0.0
    %v6292 = vmax.f32 %v6276, 0.0
    %v6293 = vmax.f32 %v6277, 0.0
    %v6294 = vmax.f32 %v6278, 0.0
    %v6295 = vmax.f32 %v6279, 0.0
    %v6296 = vmax.f32 %v6280, 0.0
    %v6297 = vmax.f32 %v6281, 0.0
    %v6298 = vmax.f32 %v6282, 0.0
    %6299 = vst [vmem:[#allocation4 + $0xc0] sm:$0xff] %v6283
    %6300 = vst [vmem:[#allocation4 + $0xc8] sm:$0xff] %v6285
    %6301 = vst [vmem:[#allocation4 + $0xd0] sm:$0xff] %v6287
    %6302 = vst [vmem:[#allocation4 + $0xd8] sm:$0xff] %v6289
    %6303 = vst [vmem:[#allocation4 + $0xe0] sm:$0xff] %v6291
    %6304 = vst [vmem:[#allocation4 + $0xe8] sm:$0xff] %v6293
    %6305 = vst [vmem:[#allocation4 + $0xf0] sm:$0xff] %v6295
    %6306 = vst [vmem:[#allocation4 + $0xf8] sm:$0xff] %v6297
    %6307 = vst [vmem:[%s5130 + $0xc0] sm:$0xff] %v6284
    %6308 = vst [vmem:[%s5130 + $0xc8] sm:$0xff] %v6286
    %6309 = vst [vmem:[%s5130 + $0xd0] sm:$0xff] %v6288
    %6310 = vst [vmem:[%s5130 + $0xd8] sm:$0xff] %v6290
    %6311 = vst [vmem:[%s5130 + $0xe0] sm:$0xff] %v6292
    %6312 = vst [vmem:[%s5130 + $0xe8] sm:$0xff] %v6294
    %6313 = vst [vmem:[%s5130 + $0xf0] sm:$0xff] %v6296
    %6314 = vst [vmem:[%s5130 + $0xf8] sm:$0xff] %v6298
    // Predicated region
    $region22: #{kp_classifier_forward.1} parent=1 // pred_check
      _
    $region23: #{kp_classifier_forward.1} parent=1 // pred_check_branch
      %6316 = sbr.rel (0) target = $region25
    $region24: #{kp_classifier_forward.1} parent=1 // pred_region
      %6318 = vsyncadd [#allocation5], 0
      %s6319 = sshll.u32 [#allocation4], 4
      %s6320 = int_to_ptr.vmem [resolvable:$true] %s6319
      %s6321 = sshll.u32 %s5, 4
      %s6322 = int_to_ptr.hbm [resolvable:$true] %s6321
      %6327 = dma.vmem_to_hbm [thread:$0]  %s6320, 8192, %s6322, [#allocation5], 128, 128, 8
    $region25: #{kp_classifier_forward.1} parent=1 // pred_fallthru
      _
    // Predicated region
    $region26: #{kp_classifier_forward.1} parent=1 // pred_check
      _
    $region27: #{kp_classifier_forward.1} parent=1 // pred_check_branch
      %6329 = sbr.rel (0) target = $region29
    $region28: #{kp_classifier_forward.1} parent=1 // pred_region
      %6331 = dma.done [#allocation5], 8192
    $region29: #{kp_classifier_forward.1} parent=1 // pred_fallthru
      _
    %6332 = vsyncpa [#allocation5], 1

</llo_original>
